<compile_context>
chip_gen: v5e
topology: v5e:2x2
jax: 0.10.0
libtpu: 0.0.40
codegen_flags: <defaults>
</compile_context>

<pallas_src>
import jax
import jax.numpy as jnp
from jax.experimental import pallas as pl
from jax.experimental.pallas import tpu as pltpu

COMPUTE_DTYPE = jnp.bfloat16   # MXU operand dtype (accumulation stays float32)
CONV_K = 8                     # every conv in DF: kernel_size=8, stride=1
POOL_K = 8                     # every pool in DF: kernel_size=8 (stride = kernel)

CONV_NAMES = ("l1c1", "l1c2", "l2c1", "l2c2", "l3c1", "l3c2", "l4c1")
FC_NAMES = ("fc1", "fc2", "fc")


# ----------------------------------------------------------------------------
# In-kernel building blocks (operate on jnp values + VMEM scratch refs)
# ----------------------------------------------------------------------------

def _act(x, kind):
    if kind == "elu":    # ELU(alpha=1)
        return jnp.where(x > 0, x, jnp.exp(jnp.minimum(x, 0.0)) - 1.0)
    if kind == "relu":
        return jnp.maximum(x, 0.0)
    return x


def _fill_padded(pad_ref, x, pad_left, pad_right):
    """Write zero-SAME-padded `x` into VMEM scratch (PyTorch F.pad semantics)."""
    bb, L, C = x.shape
    if pad_left:
        pad_ref[:, :pad_left, :C] = jnp.zeros((bb, pad_left, C), jnp.float32)
    if pad_right:
        pad_ref[:, pad_left + L:pad_left + L + pad_right, :C] = jnp.zeros(
            (bb, pad_right, C), jnp.float32)
    pad_ref[:, pad_left:pad_left + L, :C] = x


def _conv1d_same(x, w, b, act, pad_ref, cols_ref):
    """SAME conv (stride 1) + folded-BN bias + activation.

    x: (bb, L, Cin) f32; w: (K*Cin, Cout) bf16 (im2col row order k*Cin + c);
    b: (1, Cout) f32  ->  (bb, L, Cout) f32.
    """
    bb, L, Cin = x.shape
    Cout = w.shape[1]
    K = w.shape[0] // Cin
    p = K - 1
    pad_left, pad_right = p // 2, p - p // 2
    _fill_padded(pad_ref, x, pad_left, pad_right)

    if Cin == 1:
        # First layer: contraction dim is only K=8 -> cheaper as 8 VPU
        # broadcast multiply-accumulates than as an MXU matmul.
        wf = w.astype(jnp.float32)                       # (K, Cout)
        acc = jnp.zeros((bb, L, Cout), jnp.float32)
        for k in range(K):
            acc = acc + pad_ref[:, k:k + L, :1] * wf[k:k + 1, :]
        y = acc + b
    else:
        # im2col built in VMEM scratch, then ONE MXU matmul with a K*Cin
        # contraction (256/512/1024 -> fills v5e's 128 / v6e-v7x's 256 K-dim).
        for k in range(K):
            cols_ref[:, :L, k * Cin:(k + 1) * Cin] = pad_ref[:, k:k + L, :Cin]
        cols = cols_ref[:, :L, :K * Cin].reshape(bb * L, K * Cin)
        y = jnp.dot(cols.astype(w.dtype), w, preferred_element_type=jnp.float32)
        y = y.reshape(bb, L, Cout) + b
    return _act(y, act)


def _maxpool1d_same(x, pad_ref, pool_ref, kernel_size=POOL_K, pad_stride=1):
    """MyMaxPool1dPadSame(kernel_size, stride_size=1): the pad amount is computed
    with stride=1 (zero pad, F.pad), pooling stride = kernel_size (nn.MaxPool1d)."""
    bb, L, C = x.shape
    out_dim = (L + pad_stride - 1) // pad_stride
    p = max(0, (out_dim - 1) * pad_stride + kernel_size - L)
    pad_left, pad_right = p // 2, p - p // 2
    _fill_padded(pad_ref, x, pad_left, pad_right)
    Lp = L + p
    Lout = (Lp - kernel_size) // kernel_size + 1          # ceil_mode=False
    # Non-overlapping windows; small static trip count -> keep everything as
    # basic contiguous loads + sublane reduce + masked stores.
    for wi in range(Lout):
        win = pad_ref[:, wi * kernel_size:(wi + 1) * kernel_size, :C]   # (bb, K, C)
        pool_ref[:, wi:wi + 1, :C] = jnp.max(win, axis=1, keepdims=True)
    return pool_ref[:, :Lout, :C]


# ----------------------------------------------------------------------------
# Fused forward kernel
# ----------------------------------------------------------------------------

def _df_fused_kernel(x_ref,
                     w11, b11, w12, b12,
                     w21, b21, w22, b22,
                     w31, b31, w32, b32,
                     w41, b41,
                     wf1, bf1, wf2, bf2, wfc, bfc,
                     o_ref, pad_ref, cols_ref, pool_ref):
    x = x_ref[...]                                        # (bb, L, 1) f32, NLC

    # layer1: (conv+BN+ELU) x2, maxpool, dropout(=identity at inference)
    x = _conv1d_same(x, w11[...], b11[...], "elu", pad_ref, cols_ref)
    x = _conv1d_same(x, w12[...], b12[...], "elu", pad_ref, cols_ref)
    x = _maxpool1d_same(x, pad_ref, pool_ref)

    # layer2: (conv+BN+ReLU) x2, maxpool, dropout(=id)
    x = _conv1d_same(x, w21[...], b21[...], "relu", pad_ref, cols_ref)
    x = _conv1d_same(x, w22[...], b22[...], "relu", pad_ref, cols_ref)
    x = _maxpool1d_same(x, pad_ref, pool_ref)

    # layer3
    x = _conv1d_same(x, w31[...], b31[...], "relu", pad_ref, cols_ref)
    x = _conv1d_same(x, w32[...], b32[...], "relu", pad_ref, cols_ref)
    x = _maxpool1d_same(x, pad_ref, pool_ref)

    # layer4
    x = _conv1d_same(x, w41[...], b41[...], "relu", pad_ref, cols_ref)
    x = _maxpool1d_same(x, pad_ref, pool_ref)

    # flatten in PyTorch NCL order: (bb, L4, C) -> (bb, C*L4)
    bb, L4, C = x.shape
    if L4 == 1:
        flat = x.reshape(bb, C)
    else:
        # TODO(synk): only exercised for lengths where L4 > 1 (not at length=128);
        # the lane-merging reshape may force a relayout there.
        flat = jnp.transpose(x, (0, 2, 1)).reshape(bb, C * L4)

    # layer5: (Linear+BN+ReLU+Dropout) x2 then fc  (Dropout = identity)
    def dense(h, w, b, act):
        y = jnp.dot(h.astype(w.dtype), w, preferred_element_type=jnp.float32) + b
        return _act(y, act)

    h = dense(flat, wf1[...], bf1[...], "relu")
    h = dense(h, wf2[...], bf2[...], "relu")
    out = dense(h, wfc[...], bfc[...], "none")

    o_ref[...] = out.reshape(o_ref.shape)


# ----------------------------------------------------------------------------
# Wrapper
# ----------------------------------------------------------------------------

def df_forward(x_ncw, params):
    """x_ncw: [B, 1, L] (PyTorch NCW)  ->  logits [B, num_classes]."""
    B, cin, L = x_ncw.shape
    assert cin == 1
    x = x_ncw.reshape(B, L, 1).astype(jnp.float32)   # NCW -> NLC (Cin=1: free reshape)
    num_classes = params["fc"][0].shape[1]

    # Two "parallel" batch blocks when possible so v7x's second TensorCore gets
    # half the batch; on single-TC chips they are just two cheap grid steps.
    bb = B // 2 if (B >= 2 and B % 2 == 0) else B
    n_blocks = B // bb

    # Scratch sizing covers every layer (later layers use sub-rectangles).
    conv_cins = [params[n][0].shape[0] // CONV_K for n in CONV_NAMES]
    conv_couts = [params[n][0].shape[1] for n in CONV_NAMES]
    c_max = max(conv_cins + conv_couts)                    # 256
    pad_rows = L + CONV_K - 1                              # longest padded length
    pool_rows = -(-L // POOL_K)                            # largest pooled length
    scratch_shapes = [
        pltpu.VMEM((bb, pad_rows, c_max), jnp.float32),                 # padded act
        pltpu.VMEM((bb, L, CONV_K * max(conv_cins)), jnp.float32),      # im2col patches
        pltpu.VMEM((bb, pool_rows, c_max), jnp.float32),                # pool output
    ]

    args = [x]
    in_specs = [pl.BlockSpec((bb, L, 1), lambda i: (i, 0, 0))]
    for name in CONV_NAMES + FC_NAMES:
        for arr in params[name]:                            # (w, b)
            args.append(arr)
            in_specs.append(
                pl.BlockSpec(arr.shape, lambda i, _nd=arr.ndim: (0,) * _nd))

    out = pl.pallas_call(
        _df_fused_kernel,
        out_shape=jax.ShapeDtypeStruct((B, 1, num_classes), jnp.float32),
        grid=(n_blocks,),
        in_specs=in_specs,
        out_specs=pl.BlockSpec((bb, 1, num_classes), lambda i: (i, 0, 0)),
        scratch_shapes=scratch_shapes,
        compiler_params=pltpu.CompilerParams(
            dimension_semantics=("parallel",),
            vmem_limit_bytes=32 * 1024 * 1024,
        ),
    )(*args)
    return out.reshape(B, num_classes)


# ----------------------------------------------------------------------------
# Parameter setup (synthetic, deterministic; BatchNorm folded into conv/linear)
# ----------------------------------------------------------------------------

def _fold_bn(w, b, gamma, beta, mean, var, eps=1e-5):
    s = gamma / jnp.sqrt(var + eps)
    return w * s, (b - mean) * s + beta


def init_params(key, feat_in, num_classes=100):
    keys = iter(jax.random.split(key, 64))

    def nk():
        return next(keys)

    def conv_bn(cin, cout, k=CONV_K):
        w = 0.1 * jax.random.normal(nk(), (k, cin, cout), jnp.float32)
        b = 0.05 * jax.random.normal(nk(), (cout,), jnp.float32)
        gamma = 1.0 + 0.1 * jax.random.normal(nk(), (cout,), jnp.float32)
        beta = 0.05 * jax.random.normal(nk(), (cout,), jnp.float32)
        mean = 0.05 * jax.random.normal(nk(), (cout,), jnp.float32)
        var = jnp.abs(1.0 + 0.1 * jax.random.normal(nk(), (cout,), jnp.float32))
        return _fold_bn(w, b, gamma, beta, mean, var)

    def lin_bn(din, dout, bn=True):
        w = 0.05 * jax.random.normal(nk(), (din, dout), jnp.float32)
        b = 0.05 * jax.random.normal(nk(), (dout,), jnp.float32)
        if not bn:
            return w, b
        gamma = 1.0 + 0.1 * jax.random.normal(nk(), (dout,), jnp.float32)
        beta = 0.05 * jax.random.normal(nk(), (dout,), jnp.float32)
        mean = 0.05 * jax.random.normal(nk(), (dout,), jnp.float32)
        var = jnp.abs(1.0 + 0.1 * jax.random.normal(nk(), (dout,), jnp.float32))
        return _fold_bn(w, b, gamma, beta, mean, var)

    return {
        "l1c1": conv_bn(1, 32), "l1c2": conv_bn(32, 32),
        "l2c1": conv_bn(32, 64), "l2c2": conv_bn(64, 64),
        "l3c1": conv_bn(64, 128), "l3c2": conv_bn(128, 128),
        "l4c1": conv_bn(128, 256),
        "fc1": lin_bn(feat_in, 512),
        "fc2": lin_bn(512, 512),
        "fc": lin_bn(512, num_classes, bn=False),
    }


def prepare_params(raw):
    """Kernel layout: conv w -> (K*Cin, Cout) in bf16 (im2col row order k*Cin + c),
    fc w -> bf16, every bias -> (1, Dout) f32."""
    out = {}
    for name, (w, b) in raw.items():
        if w.ndim == 3:                      # conv: (K, Cin, Cout)
            k, cin, cout = w.shape
            w = w.reshape(k * cin, cout)
        out[name] = (w.astype(COMPUTE_DTYPE),
                     b.reshape(1, -1).astype(jnp.float32))
    return out


def linear_input(length):
    res = length
    for _ in range(4):
        res = -(-res // 8)   # ceil(res / 8)
    return res


# ----------------------------------------------------------------------------
# Main
# ----------------------------------------------------------------------------

if __name__ == "__main__":
    key = jax.random.PRNGKey(0)
    pkey, xkey = jax.random.split(key)

    batch = 2
    length = 128              # DF(length=128) -> linear_input() == 1 -> MLP input 256
    num_classes = 100

    feat_in = 256 * linear_input(length)
    params = prepare_params(init_params(pkey, feat_in, num_classes))

    x = jax.random.normal(xkey, (batch, 1, length), jnp.float32)

    fwd = jax.jit(df_forward)
    out = jax.block_until_ready(fwd(x, params))

    assert out.shape == (batch, num_classes), out.shape
    assert jnp.all(jnp.isfinite(out))
    print("KERNEL_OK")
</pallas_src>

<mosaic_0001>
module attributes {stable_mosaic.version = 11 : i64} {
  func.func @_df_fused_kernel(%arg0: i32, %arg1: memref<1x128x1xf32, #tpu.memory_space<vmem>>, %arg2: memref<8x32xbf16, #tpu.memory_space<vmem>>, %arg3: memref<1x32xf32, #tpu.memory_space<vmem>>, %arg4: memref<256x32xbf16, #tpu.memory_space<vmem>>, %arg5: memref<1x32xf32, #tpu.memory_space<vmem>>, %arg6: memref<256x64xbf16, #tpu.memory_space<vmem>>, %arg7: memref<1x64xf32, #tpu.memory_space<vmem>>, %arg8: memref<512x64xbf16, #tpu.memory_space<vmem>>, %arg9: memref<1x64xf32, #tpu.memory_space<vmem>>, %arg10: memref<512x128xbf16, #tpu.memory_space<vmem>>, %arg11: memref<1x128xf32, #tpu.memory_space<vmem>>, %arg12: memref<1024x128xbf16, #tpu.memory_space<vmem>>, %arg13: memref<1x128xf32, #tpu.memory_space<vmem>>, %arg14: memref<1024x256xbf16, #tpu.memory_space<vmem>>, %arg15: memref<1x256xf32, #tpu.memory_space<vmem>>, %arg16: memref<256x512xbf16, #tpu.memory_space<vmem>>, %arg17: memref<1x512xf32, #tpu.memory_space<vmem>>, %arg18: memref<512x512xbf16, #tpu.memory_space<vmem>>, %arg19: memref<1x512xf32, #tpu.memory_space<vmem>>, %arg20: memref<512x100xbf16, #tpu.memory_space<vmem>>, %arg21: memref<1x100xf32, #tpu.memory_space<vmem>>, %arg22: memref<1x1x100xf32, #tpu.memory_space<vmem>>, %arg23: memref<1x135x256xf32, #tpu.memory_space<vmem>>, %arg24: memref<1x128x1024xf32, #tpu.memory_space<vmem>>, %arg25: memref<1x16x256xf32, #tpu.memory_space<vmem>>) attributes {dimension_semantics = [#tpu.dimension_semantics<parallel>], iteration_bounds = array<i64: 2>, scalar_prefetch = 0 : i64, scratch_operands = 3 : i64, tpu.core_type = #tpu.core_type<tc>, window_params = [{transform_indices = @transform_0, window_bounds = array<i64: 1, 128, 1>}, {pipeline_mode = #tpu.pipeline_mode<synchronous>, transform_indices = @transform_1, window_bounds = array<i64: 8, 32>}, {pipeline_mode = #tpu.pipeline_mode<synchronous>, transform_indices = @transform_2, window_bounds = array<i64: 1, 32>}, {pipeline_mode = #tpu.pipeline_mode<synchronous>, transform_indices = @transform_3, window_bounds = array<i64: 256, 32>}, {pipeline_mode = #tpu.pipeline_mode<synchronous>, transform_indices = @transform_4, window_bounds = array<i64: 1, 32>}, {pipeline_mode = #tpu.pipeline_mode<synchronous>, transform_indices = @transform_5, window_bounds = array<i64: 256, 64>}, {pipeline_mode = #tpu.pipeline_mode<synchronous>, transform_indices = @transform_6, window_bounds = array<i64: 1, 64>}, {pipeline_mode = #tpu.pipeline_mode<synchronous>, transform_indices = @transform_7, window_bounds = array<i64: 512, 64>}, {pipeline_mode = #tpu.pipeline_mode<synchronous>, transform_indices = @transform_8, window_bounds = array<i64: 1, 64>}, {pipeline_mode = #tpu.pipeline_mode<synchronous>, transform_indices = @transform_9, window_bounds = array<i64: 512, 128>}, {pipeline_mode = #tpu.pipeline_mode<synchronous>, transform_indices = @transform_10, window_bounds = array<i64: 1, 128>}, {pipeline_mode = #tpu.pipeline_mode<synchronous>, transform_indices = @transform_11, window_bounds = array<i64: 1024, 128>}, {pipeline_mode = #tpu.pipeline_mode<synchronous>, transform_indices = @transform_12, window_bounds = array<i64: 1, 128>}, {pipeline_mode = #tpu.pipeline_mode<synchronous>, transform_indices = @transform_13, window_bounds = array<i64: 1024, 256>}, {pipeline_mode = #tpu.pipeline_mode<synchronous>, transform_indices = @transform_14, window_bounds = array<i64: 1, 256>}, {pipeline_mode = #tpu.pipeline_mode<synchronous>, transform_indices = @transform_15, window_bounds = array<i64: 256, 512>}, {pipeline_mode = #tpu.pipeline_mode<synchronous>, transform_indices = @transform_16, window_bounds = array<i64: 1, 512>}, {pipeline_mode = #tpu.pipeline_mode<synchronous>, transform_indices = @transform_17, window_bounds = array<i64: 512, 512>}, {pipeline_mode = #tpu.pipeline_mode<synchronous>, transform_indices = @transform_18, window_bounds = array<i64: 1, 512>}, {pipeline_mode = #tpu.pipeline_mode<synchronous>, transform_indices = @transform_19, window_bounds = array<i64: 512, 100>}, {pipeline_mode = #tpu.pipeline_mode<synchronous>, transform_indices = @transform_20, window_bounds = array<i64: 1, 100>}, {transform_indices = @transform_21, window_bounds = array<i64: 1, 1, 100>}]} {
    %c0 = arith.constant 0 : index
    %c0_0 = arith.constant 0 : index
    %c0_1 = arith.constant 0 : index
    %0 = vector.load %arg1[%c0, %c0_0, %c0_1] : memref<1x128x1xf32, #tpu.memory_space<vmem>>, vector<1x128x1xf32>
    %c0_2 = arith.constant 0 : index
    %c0_3 = arith.constant 0 : index
    %1 = vector.load %arg2[%c0_2, %c0_3] : memref<8x32xbf16, #tpu.memory_space<vmem>>, vector<8x32xbf16>
    %c0_4 = arith.constant 0 : index
    %c0_5 = arith.constant 0 : index
    %2 = vector.load %arg3[%c0_4, %c0_5] : memref<1x32xf32, #tpu.memory_space<vmem>>, vector<1x32xf32>
    %cst = arith.constant 0.000000e+00 : f32
    %3 = vector.broadcast %cst : f32 to vector<1x3x1xf32>
    %c0_6 = arith.constant 0 : index
    %c0_7 = arith.constant 0 : index
    %c0_8 = arith.constant 0 : index
    %4 = vector.load %arg23[%c0_6, %c0_7, %c0_8] : memref<1x135x256xf32, #tpu.memory_space<vmem>>, vector<1x3x1xf32>
    tpu.vector_store %arg23[%c0_6, %c0_7, %c0_8], %3 {strides = array<i32>} : memref<1x135x256xf32, #tpu.memory_space<vmem>>, vector<1x3x1xf32>,
    %cst_9 = arith.constant 0.000000e+00 : f32
    %5 = vector.broadcast %cst_9 : f32 to vector<1x4x1xf32>
    %c0_10 = arith.constant 0 : index
    %c131 = arith.constant 131 : index
    %c0_11 = arith.constant 0 : index
    %6 = vector.load %arg23[%c0_10, %c131, %c0_11] : memref<1x135x256xf32, #tpu.memory_space<vmem>>, vector<1x4x1xf32>
    tpu.vector_store %arg23[%c0_10, %c131, %c0_11], %5 {strides = array<i32>} : memref<1x135x256xf32, #tpu.memory_space<vmem>>, vector<1x4x1xf32>,
    %c0_12 = arith.constant 0 : index
    %c3 = arith.constant 3 : index
    %c0_13 = arith.constant 0 : index
    %7 = vector.load %arg23[%c0_12, %c3, %c0_13] : memref<1x135x256xf32, #tpu.memory_space<vmem>>, vector<1x128x1xf32>
    tpu.vector_store %arg23[%c0_12, %c3, %c0_13], %0 {strides = array<i32>} : memref<1x135x256xf32, #tpu.memory_space<vmem>>, vector<1x128x1xf32>,
    %8 = arith.extf %1 : vector<8x32xbf16> to vector<8x32xf32>
    %cst_14 = arith.constant 0.000000e+00 : f32
    %9 = vector.broadcast %cst_14 : f32 to vector<1x128x32xf32>
    %c0_15 = arith.constant 0 : index
    %c0_16 = arith.constant 0 : index
    %c0_17 = arith.constant 0 : index
    %10 = vector.load %arg23[%c0_15, %c0_16, %c0_17] : memref<1x135x256xf32, #tpu.memory_space<vmem>>, vector<1x128x1xf32>
    %11 = vector.extract_strided_slice %8 {offsets = [0, 0], sizes = [1, 32], strides = [1, 1]} : vector<8x32xf32> to vector<1x32xf32>
    %12 = vector.shape_cast %11 : vector<1x32xf32> to vector<1x1x32xf32>
    %13 = vector.broadcast %10 : vector<1x128x1xf32> to vector<1x128x32xf32>
    %14 = vector.broadcast %12 : vector<1x1x32xf32> to vector<1x128x32xf32>
    %15 = arith.mulf %13, %14 : vector<1x128x32xf32>
    %16 = arith.addf %9, %15 : vector<1x128x32xf32>
    %c0_18 = arith.constant 0 : index
    %c1 = arith.constant 1 : index
    %c0_19 = arith.constant 0 : index
    %17 = vector.load %arg23[%c0_18, %c1, %c0_19] : memref<1x135x256xf32, #tpu.memory_space<vmem>>, vector<1x128x1xf32>
    %18 = vector.extract_strided_slice %8 {offsets = [1, 0], sizes = [1, 32], strides = [1, 1]} : vector<8x32xf32> to vector<1x32xf32>
    %19 = vector.shape_cast %18 : vector<1x32xf32> to vector<1x1x32xf32>
    %20 = vector.broadcast %17 : vector<1x128x1xf32> to vector<1x128x32xf32>
    %21 = vector.broadcast %19 : vector<1x1x32xf32> to vector<1x128x32xf32>
    %22 = arith.mulf %20, %21 : vector<1x128x32xf32>
    %23 = arith.addf %16, %22 : vector<1x128x32xf32>
    %c0_20 = arith.constant 0 : index
    %c2 = arith.constant 2 : index
    %c0_21 = arith.constant 0 : index
    %24 = vector.load %arg23[%c0_20, %c2, %c0_21] : memref<1x135x256xf32, #tpu.memory_space<vmem>>, vector<1x128x1xf32>
    %25 = vector.extract_strided_slice %8 {offsets = [2, 0], sizes = [1, 32], strides = [1, 1]} : vector<8x32xf32> to vector<1x32xf32>
    %26 = vector.shape_cast %25 : vector<1x32xf32> to vector<1x1x32xf32>
    %27 = vector.broadcast %24 : vector<1x128x1xf32> to vector<1x128x32xf32>
    %28 = vector.broadcast %26 : vector<1x1x32xf32> to vector<1x128x32xf32>
    %29 = arith.mulf %27, %28 : vector<1x128x32xf32>
    %30 = arith.addf %23, %29 : vector<1x128x32xf32>
    %c0_22 = arith.constant 0 : index
    %c3_23 = arith.constant 3 : index
    %c0_24 = arith.constant 0 : index
    %31 = vector.load %arg23[%c0_22, %c3_23, %c0_24] : memref<1x135x256xf32, #tpu.memory_space<vmem>>, vector<1x128x1xf32>
    %32 = vector.extract_strided_slice %8 {offsets = [3, 0], sizes = [1, 32], strides = [1, 1]} : vector<8x32xf32> to vector<1x32xf32>
    %33 = vector.shape_cast %32 : vector<1x32xf32> to vector<1x1x32xf32>
    %34 = vector.broadcast %31 : vector<1x128x1xf32> to vector<1x128x32xf32>
    %35 = vector.broadcast %33 : vector<1x1x32xf32> to vector<1x128x32xf32>
    %36 = arith.mulf %34, %35 : vector<1x128x32xf32>
    %37 = arith.addf %30, %36 : vector<1x128x32xf32>
    %c0_25 = arith.constant 0 : index
    %c4 = arith.constant 4 : index
    %c0_26 = arith.constant 0 : index
    %38 = vector.load %arg23[%c0_25, %c4, %c0_26] : memref<1x135x256xf32, #tpu.memory_space<vmem>>, vector<1x128x1xf32>
    %39 = vector.extract_strided_slice %8 {offsets = [4, 0], sizes = [1, 32], strides = [1, 1]} : vector<8x32xf32> to vector<1x32xf32>
    %40 = vector.shape_cast %39 : vector<1x32xf32> to vector<1x1x32xf32>
    %41 = vector.broadcast %38 : vector<1x128x1xf32> to vector<1x128x32xf32>
    %42 = vector.broadcast %40 : vector<1x1x32xf32> to vector<1x128x32xf32>
    %43 = arith.mulf %41, %42 : vector<1x128x32xf32>
    %44 = arith.addf %37, %43 : vector<1x128x32xf32>
    %c0_27 = arith.constant 0 : index
    %c5 = arith.constant 5 : index
    %c0_28 = arith.constant 0 : index
    %45 = vector.load %arg23[%c0_27, %c5, %c0_28] : memref<1x135x256xf32, #tpu.memory_space<vmem>>, vector<1x128x1xf32>
    %46 = vector.extract_strided_slice %8 {offsets = [5, 0], sizes = [1, 32], strides = [1, 1]} : vector<8x32xf32> to vector<1x32xf32>
    %47 = vector.shape_cast %46 : vector<1x32xf32> to vector<1x1x32xf32>
    %48 = vector.broadcast %45 : vector<1x128x1xf32> to vector<1x128x32xf32>
    %49 = vector.broadcast %47 : vector<1x1x32xf32> to vector<1x128x32xf32>
    %50 = arith.mulf %48, %49 : vector<1x128x32xf32>
    %51 = arith.addf %44, %50 : vector<1x128x32xf32>
    %c0_29 = arith.constant 0 : index
    %c6 = arith.constant 6 : index
    %c0_30 = arith.constant 0 : index
    %52 = vector.load %arg23[%c0_29, %c6, %c0_30] : memref<1x135x256xf32, #tpu.memory_space<vmem>>, vector<1x128x1xf32>
    %53 = vector.extract_strided_slice %8 {offsets = [6, 0], sizes = [1, 32], strides = [1, 1]} : vector<8x32xf32> to vector<1x32xf32>
    %54 = vector.shape_cast %53 : vector<1x32xf32> to vector<1x1x32xf32>
    %55 = vector.broadcast %52 : vector<1x128x1xf32> to vector<1x128x32xf32>
    %56 = vector.broadcast %54 : vector<1x1x32xf32> to vector<1x128x32xf32>
    %57 = arith.mulf %55, %56 : vector<1x128x32xf32>
    %58 = arith.addf %51, %57 : vector<1x128x32xf32>
    %c0_31 = arith.constant 0 : index
    %c7 = arith.constant 7 : index
    %c0_32 = arith.constant 0 : index
    %59 = vector.load %arg23[%c0_31, %c7, %c0_32] : memref<1x135x256xf32, #tpu.memory_space<vmem>>, vector<1x128x1xf32>
    %60 = vector.extract_strided_slice %8 {offsets = [7, 0], sizes = [1, 32], strides = [1, 1]} : vector<8x32xf32> to vector<1x32xf32>
    %61 = vector.shape_cast %60 : vector<1x32xf32> to vector<1x1x32xf32>
    %62 = vector.broadcast %59 : vector<1x128x1xf32> to vector<1x128x32xf32>
    %63 = vector.broadcast %61 : vector<1x1x32xf32> to vector<1x128x32xf32>
    %64 = arith.mulf %62, %63 : vector<1x128x32xf32>
    %65 = arith.addf %58, %64 : vector<1x128x32xf32>
    %66 = vector.shape_cast %2 : vector<1x32xf32> to vector<1x1x32xf32>
    %67 = vector.broadcast %66 : vector<1x1x32xf32> to vector<1x128x32xf32>
    %68 = arith.addf %65, %67 : vector<1x128x32xf32>
    %cst_33 = arith.constant 0.000000e+00 : f32
    %69 = vector.broadcast %cst_33 : f32 to vector<1x128x32xf32>
    %70 = arith.cmpf ogt, %68, %69 : vector<1x128x32xf32>
    %cst_34 = arith.constant 0.000000e+00 : f32
    %71 = vector.broadcast %cst_34 : f32 to vector<1x128x32xf32>
    %72 = arith.minimumf %68, %71 : vector<1x128x32xf32>
    %73 = math.exp %72 : vector<1x128x32xf32>
    %cst_35 = arith.constant 1.000000e+00 : f32
    %74 = vector.broadcast %cst_35 : f32 to vector<1x128x32xf32>
    %75 = arith.subf %73, %74 : vector<1x128x32xf32>
    %76 = arith.select %70, %68, %75 : vector<1x128x32xi1>, vector<1x128x32xf32>
    %c0_36 = arith.constant 0 : index
    %c0_37 = arith.constant 0 : index
    %77 = vector.load %arg4[%c0_36, %c0_37] : memref<256x32xbf16, #tpu.memory_space<vmem>>, vector<256x32xbf16>
    %c0_38 = arith.constant 0 : index
    %c0_39 = arith.constant 0 : index
    %78 = vector.load %arg5[%c0_38, %c0_39] : memref<1x32xf32, #tpu.memory_space<vmem>>, vector<1x32xf32>
    %cst_40 = arith.constant 0.000000e+00 : f32
    %79 = vector.broadcast %cst_40 : f32 to vector<1x3x32xf32>
    %c0_41 = arith.constant 0 : index
    %c0_42 = arith.constant 0 : index
    %c0_43 = arith.constant 0 : index
    %80 = vector.load %arg23[%c0_41, %c0_42, %c0_43] : memref<1x135x256xf32, #tpu.memory_space<vmem>>, vector<1x3x32xf32>
    tpu.vector_store %arg23[%c0_41, %c0_42, %c0_43], %79 {strides = array<i32>} : memref<1x135x256xf32, #tpu.memory_space<vmem>>, vector<1x3x32xf32>,
    %cst_44 = arith.constant 0.000000e+00 : f32
    %81 = vector.broadcast %cst_44 : f32 to vector<1x4x32xf32>
    %c0_45 = arith.constant 0 : index
    %c131_46 = arith.constant 131 : index
    %c0_47 = arith.constant 0 : index
    %82 = vector.load %arg23[%c0_45, %c131_46, %c0_47] : memref<1x135x256xf32, #tpu.memory_space<vmem>>, vector<1x4x32xf32>
    tpu.vector_store %arg23[%c0_45, %c131_46, %c0_47], %81 {strides = array<i32>} : memref<1x135x256xf32, #tpu.memory_space<vmem>>, vector<1x4x32xf32>,
    %c0_48 = arith.constant 0 : index
    %c3_49 = arith.constant 3 : index
    %c0_50 = arith.constant 0 : index
    %83 = vector.load %arg23[%c0_48, %c3_49, %c0_50] : memref<1x135x256xf32, #tpu.memory_space<vmem>>, vector<1x128x32xf32>
    tpu.vector_store %arg23[%c0_48, %c3_49, %c0_50], %76 {strides = array<i32>} : memref<1x135x256xf32, #tpu.memory_space<vmem>>, vector<1x128x32xf32>,
    %c0_51 = arith.constant 0 : index
    %c0_52 = arith.constant 0 : index
    %c0_53 = arith.constant 0 : index
    %84 = vector.load %arg23[%c0_51, %c0_52, %c0_53] : memref<1x135x256xf32, #tpu.memory_space<vmem>>, vector<1x128x32xf32>
    %c0_54 = arith.constant 0 : index
    %c0_55 = arith.constant 0 : index
    %c0_56 = arith.constant 0 : index
    %85 = vector.load %arg24[%c0_54, %c0_55, %c0_56] : memref<1x128x1024xf32, #tpu.memory_space<vmem>>, vector<1x128x32xf32>
    tpu.vector_store %arg24[%c0_54, %c0_55, %c0_56], %84 {strides = array<i32>} : memref<1x128x1024xf32, #tpu.memory_space<vmem>>, vector<1x128x32xf32>,
    %c0_57 = arith.constant 0 : index
    %c1_58 = arith.constant 1 : index
    %c0_59 = arith.constant 0 : index
    %86 = vector.load %arg23[%c0_57, %c1_58, %c0_59] : memref<1x135x256xf32, #tpu.memory_space<vmem>>, vector<1x128x32xf32>
    %c0_60 = arith.constant 0 : index
    %c0_61 = arith.constant 0 : index
    %c32 = arith.constant 32 : index
    %87 = vector.load %arg24[%c0_60, %c0_61, %c32] : memref<1x128x1024xf32, #tpu.memory_space<vmem>>, vector<1x128x32xf32>
    tpu.vector_store %arg24[%c0_60, %c0_61, %c32], %86 {strides = array<i32>} : memref<1x128x1024xf32, #tpu.memory_space<vmem>>, vector<1x128x32xf32>,
    %c0_62 = arith.constant 0 : index
    %c2_63 = arith.constant 2 : index
    %c0_64 = arith.constant 0 : index
    %88 = vector.load %arg23[%c0_62, %c2_63, %c0_64] : memref<1x135x256xf32, #tpu.memory_space<vmem>>, vector<1x128x32xf32>
    %c0_65 = arith.constant 0 : index
    %c0_66 = arith.constant 0 : index
    %c64 = arith.constant 64 : index
    %89 = vector.load %arg24[%c0_65, %c0_66, %c64] : memref<1x128x1024xf32, #tpu.memory_space<vmem>>, vector<1x128x32xf32>
    tpu.vector_store %arg24[%c0_65, %c0_66, %c64], %88 {strides = array<i32>} : memref<1x128x1024xf32, #tpu.memory_space<vmem>>, vector<1x128x32xf32>,
    %c0_67 = arith.constant 0 : index
    %c3_68 = arith.constant 3 : index
    %c0_69 = arith.constant 0 : index
    %90 = vector.load %arg23[%c0_67, %c3_68, %c0_69] : memref<1x135x256xf32, #tpu.memory_space<vmem>>, vector<1x128x32xf32>
    %c0_70 = arith.constant 0 : index
    %c0_71 = arith.constant 0 : index
    %c96 = arith.constant 96 : index
    %91 = vector.load %arg24[%c0_70, %c0_71, %c96] : memref<1x128x1024xf32, #tpu.memory_space<vmem>>, vector<1x128x32xf32>
    tpu.vector_store %arg24[%c0_70, %c0_71, %c96], %90 {strides = array<i32>} : memref<1x128x1024xf32, #tpu.memory_space<vmem>>, vector<1x128x32xf32>,
    %c0_72 = arith.constant 0 : index
    %c4_73 = arith.constant 4 : index
    %c0_74 = arith.constant 0 : index
    %92 = vector.load %arg23[%c0_72, %c4_73, %c0_74] : memref<1x135x256xf32, #tpu.memory_space<vmem>>, vector<1x128x32xf32>
    %c0_75 = arith.constant 0 : index
    %c0_76 = arith.constant 0 : index
    %c128 = arith.constant 128 : index
    %93 = vector.load %arg24[%c0_75, %c0_76, %c128] : memref<1x128x1024xf32, #tpu.memory_space<vmem>>, vector<1x128x32xf32>
    tpu.vector_store %arg24[%c0_75, %c0_76, %c128], %92 {strides = array<i32>} : memref<1x128x1024xf32, #tpu.memory_space<vmem>>, vector<1x128x32xf32>,
    %c0_77 = arith.constant 0 : index
    %c5_78 = arith.constant 5 : index
    %c0_79 = arith.constant 0 : index
    %94 = vector.load %arg23[%c0_77, %c5_78, %c0_79] : memref<1x135x256xf32, #tpu.memory_space<vmem>>, vector<1x128x32xf32>
    %c0_80 = arith.constant 0 : index
    %c0_81 = arith.constant 0 : index
    %c160 = arith.constant 160 : index
    %95 = vector.load %arg24[%c0_80, %c0_81, %c160] : memref<1x128x1024xf32, #tpu.memory_space<vmem>>, vector<1x128x32xf32>
    tpu.vector_store %arg24[%c0_80, %c0_81, %c160], %94 {strides = array<i32>} : memref<1x128x1024xf32, #tpu.memory_space<vmem>>, vector<1x128x32xf32>,
    %c0_82 = arith.constant 0 : index
    %c6_83 = arith.constant 6 : index
    %c0_84 = arith.constant 0 : index
    %96 = vector.load %arg23[%c0_82, %c6_83, %c0_84] : memref<1x135x256xf32, #tpu.memory_space<vmem>>, vector<1x128x32xf32>
    %c0_85 = arith.constant 0 : index
    %c0_86 = arith.constant 0 : index
    %c192 = arith.constant 192 : index
    %97 = vector.load %arg24[%c0_85, %c0_86, %c192] : memref<1x128x1024xf32, #tpu.memory_space<vmem>>, vector<1x128x32xf32>
    tpu.vector_store %arg24[%c0_85, %c0_86, %c192], %96 {strides = array<i32>} : memref<1x128x1024xf32, #tpu.memory_space<vmem>>, vector<1x128x32xf32>,
    %c0_87 = arith.constant 0 : index
    %c7_88 = arith.constant 7 : index
    %c0_89 = arith.constant 0 : index
    %98 = vector.load %arg23[%c0_87, %c7_88, %c0_89] : memref<1x135x256xf32, #tpu.memory_space<vmem>>, vector<1x128x32xf32>
    %c0_90 = arith.constant 0 : index
    %c0_91 = arith.constant 0 : index
    %c224 = arith.constant 224 : index
    %99 = vector.load %arg24[%c0_90, %c0_91, %c224] : memref<1x128x1024xf32, #tpu.memory_space<vmem>>, vector<1x128x32xf32>
    tpu.vector_store %arg24[%c0_90, %c0_91, %c224], %98 {strides = array<i32>} : memref<1x128x1024xf32, #tpu.memory_space<vmem>>, vector<1x128x32xf32>,
    %c0_92 = arith.constant 0 : index
    %c0_93 = arith.constant 0 : index
    %c0_94 = arith.constant 0 : index
    %100 = vector.load %arg24[%c0_92, %c0_93, %c0_94] : memref<1x128x1024xf32, #tpu.memory_space<vmem>>, vector<1x128x256xf32>
    %101 = vector.shape_cast %100 : vector<1x128x256xf32> to vector<128x256xf32>
    %102 = arith.truncf %101 : vector<128x256xf32> to vector<128x256xbf16>
    %cst_95 = arith.constant dense<0.000000e+00> : vector<128x32xf32>
    %103 = tpu.matmul %102, %77, %cst_95 {dimension_numbers = #tpu.dot_dimension_numbers<[1], [0], [0], [1], [0, 0, 1, 1], [], []>} : vector<128x256xbf16>, vector<256x32xbf16>, vector<128x32xf32> -> vector<128x32xf32>
    %104 = vector.shape_cast %103 : vector<128x32xf32> to vector<1x128x32xf32>
    %105 = vector.shape_cast %78 : vector<1x32xf32> to vector<1x1x32xf32>
    %106 = vector.broadcast %105 : vector<1x1x32xf32> to vector<1x128x32xf32>
    %107 = arith.addf %104, %106 : vector<1x128x32xf32>
    %cst_96 = arith.constant 0.000000e+00 : f32
    %108 = vector.broadcast %cst_96 : f32 to vector<1x128x32xf32>
    %109 = arith.cmpf ogt, %107, %108 : vector<1x128x32xf32>
    %cst_97 = arith.constant 0.000000e+00 : f32
    %110 = vector.broadcast %cst_97 : f32 to vector<1x128x32xf32>
    %111 = arith.minimumf %107, %110 : vector<1x128x32xf32>
    %112 = math.exp %111 : vector<1x128x32xf32>
    %cst_98 = arith.constant 1.000000e+00 : f32
    %113 = vector.broadcast %cst_98 : f32 to vector<1x128x32xf32>
    %114 = arith.subf %112, %113 : vector<1x128x32xf32>
    %115 = arith.select %109, %107, %114 : vector<1x128x32xi1>, vector<1x128x32xf32>
    %cst_99 = arith.constant 0.000000e+00 : f32
    %116 = vector.broadcast %cst_99 : f32 to vector<1x3x32xf32>
    %c0_100 = arith.constant 0 : index
    %c0_101 = arith.constant 0 : index
    %c0_102 = arith.constant 0 : index
    %117 = vector.load %arg23[%c0_100, %c0_101, %c0_102] : memref<1x135x256xf32, #tpu.memory_space<vmem>>, vector<1x3x32xf32>
    tpu.vector_store %arg23[%c0_100, %c0_101, %c0_102], %116 {strides = array<i32>} : memref<1x135x256xf32, #tpu.memory_space<vmem>>, vector<1x3x32xf32>,
    %cst_103 = arith.constant 0.000000e+00 : f32
    %118 = vector.broadcast %cst_103 : f32 to vector<1x4x32xf32>
    %c0_104 = arith.constant 0 : index
    %c131_105 = arith.constant 131 : index
    %c0_106 = arith.constant 0 : index
    %119 = vector.load %arg23[%c0_104, %c131_105, %c0_106] : memref<1x135x256xf32, #tpu.memory_space<vmem>>, vector<1x4x32xf32>
    tpu.vector_store %arg23[%c0_104, %c131_105, %c0_106], %118 {strides = array<i32>} : memref<1x135x256xf32, #tpu.memory_space<vmem>>, vector<1x4x32xf32>,
    %c0_107 = arith.constant 0 : index
    %c3_108 = arith.constant 3 : index
    %c0_109 = arith.constant 0 : index
    %120 = vector.load %arg23[%c0_107, %c3_108, %c0_109] : memref<1x135x256xf32, #tpu.memory_space<vmem>>, vector<1x128x32xf32>
    tpu.vector_store %arg23[%c0_107, %c3_108, %c0_109], %115 {strides = array<i32>} : memref<1x135x256xf32, #tpu.memory_space<vmem>>, vector<1x128x32xf32>,
    %c0_110 = arith.constant 0 : index
    %c0_111 = arith.constant 0 : index
    %c0_112 = arith.constant 0 : index
    %121 = vector.load %arg23[%c0_110, %c0_111, %c0_112] : memref<1x135x256xf32, #tpu.memory_space<vmem>>, vector<1x8x32xf32>
    %cst_113 = arith.constant dense<0xFF800000> : vector<1x32xf32>
    %122 = vector.multi_reduction <maximumf>, %121, %cst_113 [1] : vector<1x8x32xf32> to vector<1x32xf32>
    %123 = vector.shape_cast %122 : vector<1x32xf32> to vector<1x1x32xf32>
    %c0_114 = arith.constant 0 : index
    %c0_115 = arith.constant 0 : index
    %c0_116 = arith.constant 0 : index
    %124 = vector.load %arg25[%c0_114, %c0_115, %c0_116] : memref<1x16x256xf32, #tpu.memory_space<vmem>>, vector<1x1x32xf32>
    tpu.vector_store %arg25[%c0_114, %c0_115, %c0_116], %123 {strides = array<i32>} : memref<1x16x256xf32, #tpu.memory_space<vmem>>, vector<1x1x32xf32>,
    %c0_117 = arith.constant 0 : index
    %c8 = arith.constant 8 : index
    %c0_118 = arith.constant 0 : index
    %125 = vector.load %arg23[%c0_117, %c8, %c0_118] : memref<1x135x256xf32, #tpu.memory_space<vmem>>, vector<1x8x32xf32>
    %cst_119 = arith.constant dense<0xFF800000> : vector<1x32xf32>
    %126 = vector.multi_reduction <maximumf>, %125, %cst_119 [1] : vector<1x8x32xf32> to vector<1x32xf32>
    %127 = vector.shape_cast %126 : vector<1x32xf32> to vector<1x1x32xf32>
    %c0_120 = arith.constant 0 : index
    %c1_121 = arith.constant 1 : index
    %c0_122 = arith.constant 0 : index
    %128 = vector.load %arg25[%c0_120, %c1_121, %c0_122] : memref<1x16x256xf32, #tpu.memory_space<vmem>>, vector<1x1x32xf32>
    tpu.vector_store %arg25[%c0_120, %c1_121, %c0_122], %127 {strides = array<i32>} : memref<1x16x256xf32, #tpu.memory_space<vmem>>, vector<1x1x32xf32>,
    %c0_123 = arith.constant 0 : index
    %c16 = arith.constant 16 : index
    %c0_124 = arith.constant 0 : index
    %129 = vector.load %arg23[%c0_123, %c16, %c0_124] : memref<1x135x256xf32, #tpu.memory_space<vmem>>, vector<1x8x32xf32>
    %cst_125 = arith.constant dense<0xFF800000> : vector<1x32xf32>
    %130 = vector.multi_reduction <maximumf>, %129, %cst_125 [1] : vector<1x8x32xf32> to vector<1x32xf32>
    %131 = vector.shape_cast %130 : vector<1x32xf32> to vector<1x1x32xf32>
    %c0_126 = arith.constant 0 : index
    %c2_127 = arith.constant 2 : index
    %c0_128 = arith.constant 0 : index
    %132 = vector.load %arg25[%c0_126, %c2_127, %c0_128] : memref<1x16x256xf32, #tpu.memory_space<vmem>>, vector<1x1x32xf32>
    tpu.vector_store %arg25[%c0_126, %c2_127, %c0_128], %131 {strides = array<i32>} : memref<1x16x256xf32, #tpu.memory_space<vmem>>, vector<1x1x32xf32>,
    %c0_129 = arith.constant 0 : index
    %c24 = arith.constant 24 : index
    %c0_130 = arith.constant 0 : index
    %133 = vector.load %arg23[%c0_129, %c24, %c0_130] : memref<1x135x256xf32, #tpu.memory_space<vmem>>, vector<1x8x32xf32>
    %cst_131 = arith.constant dense<0xFF800000> : vector<1x32xf32>
    %134 = vector.multi_reduction <maximumf>, %133, %cst_131 [1] : vector<1x8x32xf32> to vector<1x32xf32>
    %135 = vector.shape_cast %134 : vector<1x32xf32> to vector<1x1x32xf32>
    %c0_132 = arith.constant 0 : index
    %c3_133 = arith.constant 3 : index
    %c0_134 = arith.constant 0 : index
    %136 = vector.load %arg25[%c0_132, %c3_133, %c0_134] : memref<1x16x256xf32, #tpu.memory_space<vmem>>, vector<1x1x32xf32>
    tpu.vector_store %arg25[%c0_132, %c3_133, %c0_134], %135 {strides = array<i32>} : memref<1x16x256xf32, #tpu.memory_space<vmem>>, vector<1x1x32xf32>,
    %c0_135 = arith.constant 0 : index
    %c32_136 = arith.constant 32 : index
    %c0_137 = arith.constant 0 : index
    %137 = vector.load %arg23[%c0_135, %c32_136, %c0_137] : memref<1x135x256xf32, #tpu.memory_space<vmem>>, vector<1x8x32xf32>
    %cst_138 = arith.constant dense<0xFF800000> : vector<1x32xf32>
    %138 = vector.multi_reduction <maximumf>, %137, %cst_138 [1] : vector<1x8x32xf32> to vector<1x32xf32>
    %139 = vector.shape_cast %138 : vector<1x32xf32> to vector<1x1x32xf32>
    %c0_139 = arith.constant 0 : index
    %c4_140 = arith.constant 4 : index
    %c0_141 = arith.constant 0 : index
    %140 = vector.load %arg25[%c0_139, %c4_140, %c0_141] : memref<1x16x256xf32, #tpu.memory_space<vmem>>, vector<1x1x32xf32>
    tpu.vector_store %arg25[%c0_139, %c4_140, %c0_141], %139 {strides = array<i32>} : memref<1x16x256xf32, #tpu.memory_space<vmem>>, vector<1x1x32xf32>,
    %c0_142 = arith.constant 0 : index
    %c40 = arith.constant 40 : index
    %c0_143 = arith.constant 0 : index
    %141 = vector.load %arg23[%c0_142, %c40, %c0_143] : memref<1x135x256xf32, #tpu.memory_space<vmem>>, vector<1x8x32xf32>
    %cst_144 = arith.constant dense<0xFF800000> : vector<1x32xf32>
    %142 = vector.multi_reduction <maximumf>, %141, %cst_144 [1] : vector<1x8x32xf32> to vector<1x32xf32>
    %143 = vector.shape_cast %142 : vector<1x32xf32> to vector<1x1x32xf32>
    %c0_145 = arith.constant 0 : index
    %c5_146 = arith.constant 5 : index
    %c0_147 = arith.constant 0 : index
    %144 = vector.load %arg25[%c0_145, %c5_146, %c0_147] : memref<1x16x256xf32, #tpu.memory_space<vmem>>, vector<1x1x32xf32>
    tpu.vector_store %arg25[%c0_145, %c5_146, %c0_147], %143 {strides = array<i32>} : memref<1x16x256xf32, #tpu.memory_space<vmem>>, vector<1x1x32xf32>,
    %c0_148 = arith.constant 0 : index
    %c48 = arith.constant 48 : index
    %c0_149 = arith.constant 0 : index
    %145 = vector.load %arg23[%c0_148, %c48, %c0_149] : memref<1x135x256xf32, #tpu.memory_space<vmem>>, vector<1x8x32xf32>
    %cst_150 = arith.constant dense<0xFF800000> : vector<1x32xf32>
    %146 = vector.multi_reduction <maximumf>, %145, %cst_150 [1] : vector<1x8x32xf32> to vector<1x32xf32>
    %147 = vector.shape_cast %146 : vector<1x32xf32> to vector<1x1x32xf32>
    %c0_151 = arith.constant 0 : index
    %c6_152 = arith.constant 6 : index
    %c0_153 = arith.constant 0 : index
    %148 = vector.load %arg25[%c0_151, %c6_152, %c0_153] : memref<1x16x256xf32, #tpu.memory_space<vmem>>, vector<1x1x32xf32>
    tpu.vector_store %arg25[%c0_151, %c6_152, %c0_153], %147 {strides = array<i32>} : memref<1x16x256xf32, #tpu.memory_space<vmem>>, vector<1x1x32xf32>,
    %c0_154 = arith.constant 0 : index
    %c56 = arith.constant 56 : index
    %c0_155 = arith.constant 0 : index
    %149 = vector.load %arg23[%c0_154, %c56, %c0_155] : memref<1x135x256xf32, #tpu.memory_space<vmem>>, vector<1x8x32xf32>
    %cst_156 = arith.constant dense<0xFF800000> : vector<1x32xf32>
    %150 = vector.multi_reduction <maximumf>, %149, %cst_156 [1] : vector<1x8x32xf32> to vector<1x32xf32>
    %151 = vector.shape_cast %150 : vector<1x32xf32> to vector<1x1x32xf32>
    %c0_157 = arith.constant 0 : index
    %c7_158 = arith.constant 7 : index
    %c0_159 = arith.constant 0 : index
    %152 = vector.load %arg25[%c0_157, %c7_158, %c0_159] : memref<1x16x256xf32, #tpu.memory_space<vmem>>, vector<1x1x32xf32>
    tpu.vector_store %arg25[%c0_157, %c7_158, %c0_159], %151 {strides = array<i32>} : memref<1x16x256xf32, #tpu.memory_space<vmem>>, vector<1x1x32xf32>,
    %c0_160 = arith.constant 0 : index
    %c64_161 = arith.constant 64 : index
    %c0_162 = arith.constant 0 : index
    %153 = vector.load %arg23[%c0_160, %c64_161, %c0_162] : memref<1x135x256xf32, #tpu.memory_space<vmem>>, vector<1x8x32xf32>
    %cst_163 = arith.constant dense<0xFF800000> : vector<1x32xf32>
    %154 = vector.multi_reduction <maximumf>, %153, %cst_163 [1] : vector<1x8x32xf32> to vector<1x32xf32>
    %155 = vector.shape_cast %154 : vector<1x32xf32> to vector<1x1x32xf32>
    %c0_164 = arith.constant 0 : index
    %c8_165 = arith.constant 8 : index
    %c0_166 = arith.constant 0 : index
    %156 = vector.load %arg25[%c0_164, %c8_165, %c0_166] : memref<1x16x256xf32, #tpu.memory_space<vmem>>, vector<1x1x32xf32>
    tpu.vector_store %arg25[%c0_164, %c8_165, %c0_166], %155 {strides = array<i32>} : memref<1x16x256xf32, #tpu.memory_space<vmem>>, vector<1x1x32xf32>,
    %c0_167 = arith.constant 0 : index
    %c72 = arith.constant 72 : index
    %c0_168 = arith.constant 0 : index
    %157 = vector.load %arg23[%c0_167, %c72, %c0_168] : memref<1x135x256xf32, #tpu.memory_space<vmem>>, vector<1x8x32xf32>
    %cst_169 = arith.constant dense<0xFF800000> : vector<1x32xf32>
    %158 = vector.multi_reduction <maximumf>, %157, %cst_169 [1] : vector<1x8x32xf32> to vector<1x32xf32>
    %159 = vector.shape_cast %158 : vector<1x32xf32> to vector<1x1x32xf32>
    %c0_170 = arith.constant 0 : index
    %c9 = arith.constant 9 : index
    %c0_171 = arith.constant 0 : index
    %160 = vector.load %arg25[%c0_170, %c9, %c0_171] : memref<1x16x256xf32, #tpu.memory_space<vmem>>, vector<1x1x32xf32>
    tpu.vector_store %arg25[%c0_170, %c9, %c0_171], %159 {strides = array<i32>} : memref<1x16x256xf32, #tpu.memory_space<vmem>>, vector<1x1x32xf32>,
    %c0_172 = arith.constant 0 : index
    %c80 = arith.constant 80 : index
    %c0_173 = arith.constant 0 : index
    %161 = vector.load %arg23[%c0_172, %c80, %c0_173] : memref<1x135x256xf32, #tpu.memory_space<vmem>>, vector<1x8x32xf32>
    %cst_174 = arith.constant dense<0xFF800000> : vector<1x32xf32>
    %162 = vector.multi_reduction <maximumf>, %161, %cst_174 [1] : vector<1x8x32xf32> to vector<1x32xf32>
    %163 = vector.shape_cast %162 : vector<1x32xf32> to vector<1x1x32xf32>
    %c0_175 = arith.constant 0 : index
    %c10 = arith.constant 10 : index
    %c0_176 = arith.constant 0 : index
    %164 = vector.load %arg25[%c0_175, %c10, %c0_176] : memref<1x16x256xf32, #tpu.memory_space<vmem>>, vector<1x1x32xf32>
    tpu.vector_store %arg25[%c0_175, %c10, %c0_176], %163 {strides = array<i32>} : memref<1x16x256xf32, #tpu.memory_space<vmem>>, vector<1x1x32xf32>,
    %c0_177 = arith.constant 0 : index
    %c88 = arith.constant 88 : index
    %c0_178 = arith.constant 0 : index
    %165 = vector.load %arg23[%c0_177, %c88, %c0_178] : memref<1x135x256xf32, #tpu.memory_space<vmem>>, vector<1x8x32xf32>
    %cst_179 = arith.constant dense<0xFF800000> : vector<1x32xf32>
    %166 = vector.multi_reduction <maximumf>, %165, %cst_179 [1] : vector<1x8x32xf32> to vector<1x32xf32>
    %167 = vector.shape_cast %166 : vector<1x32xf32> to vector<1x1x32xf32>
    %c0_180 = arith.constant 0 : index
    %c11 = arith.constant 11 : index
    %c0_181 = arith.constant 0 : index
    %168 = vector.load %arg25[%c0_180, %c11, %c0_181] : memref<1x16x256xf32, #tpu.memory_space<vmem>>, vector<1x1x32xf32>
    tpu.vector_store %arg25[%c0_180, %c11, %c0_181], %167 {strides = array<i32>} : memref<1x16x256xf32, #tpu.memory_space<vmem>>, vector<1x1x32xf32>,
    %c0_182 = arith.constant 0 : index
    %c96_183 = arith.constant 96 : index
    %c0_184 = arith.constant 0 : index
    %169 = vector.load %arg23[%c0_182, %c96_183, %c0_184] : memref<1x135x256xf32, #tpu.memory_space<vmem>>, vector<1x8x32xf32>
    %cst_185 = arith.constant dense<0xFF800000> : vector<1x32xf32>
    %170 = vector.multi_reduction <maximumf>, %169, %cst_185 [1] : vector<1x8x32xf32> to vector<1x32xf32>
    %171 = vector.shape_cast %170 : vector<1x32xf32> to vector<1x1x32xf32>
    %c0_186 = arith.constant 0 : index
    %c12 = arith.constant 12 : index
    %c0_187 = arith.constant 0 : index
    %172 = vector.load %arg25[%c0_186, %c12, %c0_187] : memref<1x16x256xf32, #tpu.memory_space<vmem>>, vector<1x1x32xf32>
    tpu.vector_store %arg25[%c0_186, %c12, %c0_187], %171 {strides = array<i32>} : memref<1x16x256xf32, #tpu.memory_space<vmem>>, vector<1x1x32xf32>,
    %c0_188 = arith.constant 0 : index
    %c104 = arith.constant 104 : index
    %c0_189 = arith.constant 0 : index
    %173 = vector.load %arg23[%c0_188, %c104, %c0_189] : memref<1x135x256xf32, #tpu.memory_space<vmem>>, vector<1x8x32xf32>
    %cst_190 = arith.constant dense<0xFF800000> : vector<1x32xf32>
    %174 = vector.multi_reduction <maximumf>, %173, %cst_190 [1] : vector<1x8x32xf32> to vector<1x32xf32>
    %175 = vector.shape_cast %174 : vector<1x32xf32> to vector<1x1x32xf32>
    %c0_191 = arith.constant 0 : index
    %c13 = arith.constant 13 : index
    %c0_192 = arith.constant 0 : index
    %176 = vector.load %arg25[%c0_191, %c13, %c0_192] : memref<1x16x256xf32, #tpu.memory_space<vmem>>, vector<1x1x32xf32>
    tpu.vector_store %arg25[%c0_191, %c13, %c0_192], %175 {strides = array<i32>} : memref<1x16x256xf32, #tpu.memory_space<vmem>>, vector<1x1x32xf32>,
    %c0_193 = arith.constant 0 : index
    %c112 = arith.constant 112 : index
    %c0_194 = arith.constant 0 : index
    %177 = vector.load %arg23[%c0_193, %c112, %c0_194] : memref<1x135x256xf32, #tpu.memory_space<vmem>>, vector<1x8x32xf32>
    %cst_195 = arith.constant dense<0xFF800000> : vector<1x32xf32>
    %178 = vector.multi_reduction <maximumf>, %177, %cst_195 [1] : vector<1x8x32xf32> to vector<1x32xf32>
    %179 = vector.shape_cast %178 : vector<1x32xf32> to vector<1x1x32xf32>
    %c0_196 = arith.constant 0 : index
    %c14 = arith.constant 14 : index
    %c0_197 = arith.constant 0 : index
    %180 = vector.load %arg25[%c0_196, %c14, %c0_197] : memref<1x16x256xf32, #tpu.memory_space<vmem>>, vector<1x1x32xf32>
    tpu.vector_store %arg25[%c0_196, %c14, %c0_197], %179 {strides = array<i32>} : memref<1x16x256xf32, #tpu.memory_space<vmem>>, vector<1x1x32xf32>,
    %c0_198 = arith.constant 0 : index
    %c120 = arith.constant 120 : index
    %c0_199 = arith.constant 0 : index
    %181 = vector.load %arg23[%c0_198, %c120, %c0_199] : memref<1x135x256xf32, #tpu.memory_space<vmem>>, vector<1x8x32xf32>
    %cst_200 = arith.constant dense<0xFF800000> : vector<1x32xf32>
    %182 = vector.multi_reduction <maximumf>, %181, %cst_200 [1] : vector<1x8x32xf32> to vector<1x32xf32>
    %183 = vector.shape_cast %182 : vector<1x32xf32> to vector<1x1x32xf32>
    %c0_201 = arith.constant 0 : index
    %c15 = arith.constant 15 : index
    %c0_202 = arith.constant 0 : index
    %184 = vector.load %arg25[%c0_201, %c15, %c0_202] : memref<1x16x256xf32, #tpu.memory_space<vmem>>, vector<1x1x32xf32>
    tpu.vector_store %arg25[%c0_201, %c15, %c0_202], %183 {strides = array<i32>} : memref<1x16x256xf32, #tpu.memory_space<vmem>>, vector<1x1x32xf32>,
    %c0_203 = arith.constant 0 : index
    %c0_204 = arith.constant 0 : index
    %c0_205 = arith.constant 0 : index
    %185 = vector.load %arg25[%c0_203, %c0_204, %c0_205] : memref<1x16x256xf32, #tpu.memory_space<vmem>>, vector<1x16x32xf32>
    %c0_206 = arith.constant 0 : index
    %c0_207 = arith.constant 0 : index
    %186 = vector.load %arg6[%c0_206, %c0_207] : memref<256x64xbf16, #tpu.memory_space<vmem>>, vector<256x64xbf16>
    %c0_208 = arith.constant 0 : index
    %c0_209 = arith.constant 0 : index
    %187 = vector.load %arg7[%c0_208, %c0_209] : memref<1x64xf32, #tpu.memory_space<vmem>>, vector<1x64xf32>
    %cst_210 = arith.constant 0.000000e+00 : f32
    %188 = vector.broadcast %cst_210 : f32 to vector<1x3x32xf32>
    %c0_211 = arith.constant 0 : index
    %c0_212 = arith.constant 0 : index
    %c0_213 = arith.constant 0 : index
    %189 = vector.load %arg23[%c0_211, %c0_212, %c0_213] : memref<1x135x256xf32, #tpu.memory_space<vmem>>, vector<1x3x32xf32>
    tpu.vector_store %arg23[%c0_211, %c0_212, %c0_213], %188 {strides = array<i32>} : memref<1x135x256xf32, #tpu.memory_space<vmem>>, vector<1x3x32xf32>,
    %cst_214 = arith.constant 0.000000e+00 : f32
    %190 = vector.broadcast %cst_214 : f32 to vector<1x4x32xf32>
    %c0_215 = arith.constant 0 : index
    %c19 = arith.constant 19 : index
    %c0_216 = arith.constant 0 : index
    %191 = vector.load %arg23[%c0_215, %c19, %c0_216] : memref<1x135x256xf32, #tpu.memory_space<vmem>>, vector<1x4x32xf32>
    tpu.vector_store %arg23[%c0_215, %c19, %c0_216], %190 {strides = array<i32>} : memref<1x135x256xf32, #tpu.memory_space<vmem>>, vector<1x4x32xf32>,
    %c0_217 = arith.constant 0 : index
    %c3_218 = arith.constant 3 : index
    %c0_219 = arith.constant 0 : index
    %192 = vector.load %arg23[%c0_217, %c3_218, %c0_219] : memref<1x135x256xf32, #tpu.memory_space<vmem>>, vector<1x16x32xf32>
    tpu.vector_store %arg23[%c0_217, %c3_218, %c0_219], %185 {strides = array<i32>} : memref<1x135x256xf32, #tpu.memory_space<vmem>>, vector<1x16x32xf32>,
    %c0_220 = arith.constant 0 : index
    %c0_221 = arith.constant 0 : index
    %c0_222 = arith.constant 0 : index
    %193 = vector.load %arg23[%c0_220, %c0_221, %c0_222] : memref<1x135x256xf32, #tpu.memory_space<vmem>>, vector<1x16x32xf32>
    %c0_223 = arith.constant 0 : index
    %c0_224 = arith.constant 0 : index
    %c0_225 = arith.constant 0 : index
    %194 = vector.load %arg24[%c0_223, %c0_224, %c0_225] : memref<1x128x1024xf32, #tpu.memory_space<vmem>>, vector<1x16x32xf32>
    tpu.vector_store %arg24[%c0_223, %c0_224, %c0_225], %193 {strides = array<i32>} : memref<1x128x1024xf32, #tpu.memory_space<vmem>>, vector<1x16x32xf32>,
    %c0_226 = arith.constant 0 : index
    %c1_227 = arith.constant 1 : index
    %c0_228 = arith.constant 0 : index
    %195 = vector.load %arg23[%c0_226, %c1_227, %c0_228] : memref<1x135x256xf32, #tpu.memory_space<vmem>>, vector<1x16x32xf32>
    %c0_229 = arith.constant 0 : index
    %c0_230 = arith.constant 0 : index
    %c32_231 = arith.constant 32 : index
    %196 = vector.load %arg24[%c0_229, %c0_230, %c32_231] : memref<1x128x1024xf32, #tpu.memory_space<vmem>>, vector<1x16x32xf32>
    tpu.vector_store %arg24[%c0_229, %c0_230, %c32_231], %195 {strides = array<i32>} : memref<1x128x1024xf32, #tpu.memory_space<vmem>>, vector<1x16x32xf32>,
    %c0_232 = arith.constant 0 : index
    %c2_233 = arith.constant 2 : index
    %c0_234 = arith.constant 0 : index
    %197 = vector.load %arg23[%c0_232, %c2_233, %c0_234] : memref<1x135x256xf32, #tpu.memory_space<vmem>>, vector<1x16x32xf32>
    %c0_235 = arith.constant 0 : index
    %c0_236 = arith.constant 0 : index
    %c64_237 = arith.constant 64 : index
    %198 = vector.load %arg24[%c0_235, %c0_236, %c64_237] : memref<1x128x1024xf32, #tpu.memory_space<vmem>>, vector<1x16x32xf32>
    tpu.vector_store %arg24[%c0_235, %c0_236, %c64_237], %197 {strides = array<i32>} : memref<1x128x1024xf32, #tpu.memory_space<vmem>>, vector<1x16x32xf32>,
    %c0_238 = arith.constant 0 : index
    %c3_239 = arith.constant 3 : index
    %c0_240 = arith.constant 0 : index
    %199 = vector.load %arg23[%c0_238, %c3_239, %c0_240] : memref<1x135x256xf32, #tpu.memory_space<vmem>>, vector<1x16x32xf32>
    %c0_241 = arith.constant 0 : index
    %c0_242 = arith.constant 0 : index
    %c96_243 = arith.constant 96 : index
    %200 = vector.load %arg24[%c0_241, %c0_242, %c96_243] : memref<1x128x1024xf32, #tpu.memory_space<vmem>>, vector<1x16x32xf32>
    tpu.vector_store %arg24[%c0_241, %c0_242, %c96_243], %199 {strides = array<i32>} : memref<1x128x1024xf32, #tpu.memory_space<vmem>>, vector<1x16x32xf32>,
    %c0_244 = arith.constant 0 : index
    %c4_245 = arith.constant 4 : index
    %c0_246 = arith.constant 0 : index
    %201 = vector.load %arg23[%c0_244, %c4_245, %c0_246] : memref<1x135x256xf32, #tpu.memory_space<vmem>>, vector<1x16x32xf32>
    %c0_247 = arith.constant 0 : index
    %c0_248 = arith.constant 0 : index
    %c128_249 = arith.constant 128 : index
    %202 = vector.load %arg24[%c0_247, %c0_248, %c128_249] : memref<1x128x1024xf32, #tpu.memory_space<vmem>>, vector<1x16x32xf32>
    tpu.vector_store %arg24[%c0_247, %c0_248, %c128_249], %201 {strides = array<i32>} : memref<1x128x1024xf32, #tpu.memory_space<vmem>>, vector<1x16x32xf32>,
    %c0_250 = arith.constant 0 : index
    %c5_251 = arith.constant 5 : index
    %c0_252 = arith.constant 0 : index
    %203 = vector.load %arg23[%c0_250, %c5_251, %c0_252] : memref<1x135x256xf32, #tpu.memory_space<vmem>>, vector<1x16x32xf32>
    %c0_253 = arith.constant 0 : index
    %c0_254 = arith.constant 0 : index
    %c160_255 = arith.constant 160 : index
    %204 = vector.load %arg24[%c0_253, %c0_254, %c160_255] : memref<1x128x1024xf32, #tpu.memory_space<vmem>>, vector<1x16x32xf32>
    tpu.vector_store %arg24[%c0_253, %c0_254, %c160_255], %203 {strides = array<i32>} : memref<1x128x1024xf32, #tpu.memory_space<vmem>>, vector<1x16x32xf32>,
    %c0_256 = arith.constant 0 : index
    %c6_257 = arith.constant 6 : index
    %c0_258 = arith.constant 0 : index
    %205 = vector.load %arg23[%c0_256, %c6_257, %c0_258] : memref<1x135x256xf32, #tpu.memory_space<vmem>>, vector<1x16x32xf32>
    %c0_259 = arith.constant 0 : index
    %c0_260 = arith.constant 0 : index
    %c192_261 = arith.constant 192 : index
    %206 = vector.load %arg24[%c0_259, %c0_260, %c192_261] : memref<1x128x1024xf32, #tpu.memory_space<vmem>>, vector<1x16x32xf32>
    tpu.vector_store %arg24[%c0_259, %c0_260, %c192_261], %205 {strides = array<i32>} : memref<1x128x1024xf32, #tpu.memory_space<vmem>>, vector<1x16x32xf32>,
    %c0_262 = arith.constant 0 : index
    %c7_263 = arith.constant 7 : index
    %c0_264 = arith.constant 0 : index
    %207 = vector.load %arg23[%c0_262, %c7_263, %c0_264] : memref<1x135x256xf32, #tpu.memory_space<vmem>>, vector<1x16x32xf32>
    %c0_265 = arith.constant 0 : index
    %c0_266 = arith.constant 0 : index
    %c224_267 = arith.constant 224 : index
    %208 = vector.load %arg24[%c0_265, %c0_266, %c224_267] : memref<1x128x1024xf32, #tpu.memory_space<vmem>>, vector<1x16x32xf32>
    tpu.vector_store %arg24[%c0_265, %c0_266, %c224_267], %207 {strides = array<i32>} : memref<1x128x1024xf32, #tpu.memory_space<vmem>>, vector<1x16x32xf32>,
    %c0_268 = arith.constant 0 : index
    %c0_269 = arith.constant 0 : index
    %c0_270 = arith.constant 0 : index
    %209 = vector.load %arg24[%c0_268, %c0_269, %c0_270] : memref<1x128x1024xf32, #tpu.memory_space<vmem>>, vector<1x16x256xf32>
    %210 = vector.shape_cast %209 : vector<1x16x256xf32> to vector<16x256xf32>
    %211 = arith.truncf %210 : vector<16x256xf32> to vector<16x256xbf16>
    %cst_271 = arith.constant dense<0.000000e+00> : vector<16x64xf32>
    %212 = tpu.matmul %211, %186, %cst_271 {dimension_numbers = #tpu.dot_dimension_numbers<[1], [0], [0], [1], [0, 0, 1, 1], [], []>} : vector<16x256xbf16>, vector<256x64xbf16>, vector<16x64xf32> -> vector<16x64xf32>
    %213 = vector.shape_cast %212 : vector<16x64xf32> to vector<1x16x64xf32>
    %214 = vector.shape_cast %187 : vector<1x64xf32> to vector<1x1x64xf32>
    %215 = vector.broadcast %214 : vector<1x1x64xf32> to vector<1x16x64xf32>
    %216 = arith.addf %213, %215 : vector<1x16x64xf32>
    %cst_272 = arith.constant 0.000000e+00 : f32
    %217 = vector.broadcast %cst_272 : f32 to vector<1x16x64xf32>
    %218 = arith.maximumf %216, %217 : vector<1x16x64xf32>
    %c0_273 = arith.constant 0 : index
    %c0_274 = arith.constant 0 : index
    %219 = vector.load %arg8[%c0_273, %c0_274] : memref<512x64xbf16, #tpu.memory_space<vmem>>, vector<512x64xbf16>
    %c0_275 = arith.constant 0 : index
    %c0_276 = arith.constant 0 : index
    %220 = vector.load %arg9[%c0_275, %c0_276] : memref<1x64xf32, #tpu.memory_space<vmem>>, vector<1x64xf32>
    %cst_277 = arith.constant 0.000000e+00 : f32
    %221 = vector.broadcast %cst_277 : f32 to vector<1x3x64xf32>
    %c0_278 = arith.constant 0 : index
    %c0_279 = arith.constant 0 : index
    %c0_280 = arith.constant 0 : index
    %222 = vector.load %arg23[%c0_278, %c0_279, %c0_280] : memref<1x135x256xf32, #tpu.memory_space<vmem>>, vector<1x3x64xf32>
    tpu.vector_store %arg23[%c0_278, %c0_279, %c0_280], %221 {strides = array<i32>} : memref<1x135x256xf32, #tpu.memory_space<vmem>>, vector<1x3x64xf32>,
    %cst_281 = arith.constant 0.000000e+00 : f32
    %223 = vector.broadcast %cst_281 : f32 to vector<1x4x64xf32>
    %c0_282 = arith.constant 0 : index
    %c19_283 = arith.constant 19 : index
    %c0_284 = arith.constant 0 : index
    %224 = vector.load %arg23[%c0_282, %c19_283, %c0_284] : memref<1x135x256xf32, #tpu.memory_space<vmem>>, vector<1x4x64xf32>
    tpu.vector_store %arg23[%c0_282, %c19_283, %c0_284], %223 {strides = array<i32>} : memref<1x135x256xf32, #tpu.memory_space<vmem>>, vector<1x4x64xf32>,
    %c0_285 = arith.constant 0 : index
    %c3_286 = arith.constant 3 : index
    %c0_287 = arith.constant 0 : index
    %225 = vector.load %arg23[%c0_285, %c3_286, %c0_287] : memref<1x135x256xf32, #tpu.memory_space<vmem>>, vector<1x16x64xf32>
    tpu.vector_store %arg23[%c0_285, %c3_286, %c0_287], %218 {strides = array<i32>} : memref<1x135x256xf32, #tpu.memory_space<vmem>>, vector<1x16x64xf32>,
    %c0_288 = arith.constant 0 : index
    %c0_289 = arith.constant 0 : index
    %c0_290 = arith.constant 0 : index
    %226 = vector.load %arg23[%c0_288, %c0_289, %c0_290] : memref<1x135x256xf32, #tpu.memory_space<vmem>>, vector<1x16x64xf32>
    %c0_291 = arith.constant 0 : index
    %c0_292 = arith.constant 0 : index
    %c0_293 = arith.constant 0 : index
    %227 = vector.load %arg24[%c0_291, %c0_292, %c0_293] : memref<1x128x1024xf32, #tpu.memory_space<vmem>>, vector<1x16x64xf32>
    tpu.vector_store %arg24[%c0_291, %c0_292, %c0_293], %226 {strides = array<i32>} : memref<1x128x1024xf32, #tpu.memory_space<vmem>>, vector<1x16x64xf32>,
    %c0_294 = arith.constant 0 : index
    %c1_295 = arith.constant 1 : index
    %c0_296 = arith.constant 0 : index
    %228 = vector.load %arg23[%c0_294, %c1_295, %c0_296] : memref<1x135x256xf32, #tpu.memory_space<vmem>>, vector<1x16x64xf32>
    %c0_297 = arith.constant 0 : index
    %c0_298 = arith.constant 0 : index
    %c64_299 = arith.constant 64 : index
    %229 = vector.load %arg24[%c0_297, %c0_298, %c64_299] : memref<1x128x1024xf32, #tpu.memory_space<vmem>>, vector<1x16x64xf32>
    tpu.vector_store %arg24[%c0_297, %c0_298, %c64_299], %228 {strides = array<i32>} : memref<1x128x1024xf32, #tpu.memory_space<vmem>>, vector<1x16x64xf32>,
    %c0_300 = arith.constant 0 : index
    %c2_301 = arith.constant 2 : index
    %c0_302 = arith.constant 0 : index
    %230 = vector.load %arg23[%c0_300, %c2_301, %c0_302] : memref<1x135x256xf32, #tpu.memory_space<vmem>>, vector<1x16x64xf32>
    %c0_303 = arith.constant 0 : index
    %c0_304 = arith.constant 0 : index
    %c128_305 = arith.constant 128 : index
    %231 = vector.load %arg24[%c0_303, %c0_304, %c128_305] : memref<1x128x1024xf32, #tpu.memory_space<vmem>>, vector<1x16x64xf32>
    tpu.vector_store %arg24[%c0_303, %c0_304, %c128_305], %230 {strides = array<i32>} : memref<1x128x1024xf32, #tpu.memory_space<vmem>>, vector<1x16x64xf32>,
    %c0_306 = arith.constant 0 : index
    %c3_307 = arith.constant 3 : index
    %c0_308 = arith.constant 0 : index
    %232 = vector.load %arg23[%c0_306, %c3_307, %c0_308] : memref<1x135x256xf32, #tpu.memory_space<vmem>>, vector<1x16x64xf32>
    %c0_309 = arith.constant 0 : index
    %c0_310 = arith.constant 0 : index
    %c192_311 = arith.constant 192 : index
    %233 = vector.load %arg24[%c0_309, %c0_310, %c192_311] : memref<1x128x1024xf32, #tpu.memory_space<vmem>>, vector<1x16x64xf32>
    tpu.vector_store %arg24[%c0_309, %c0_310, %c192_311], %232 {strides = array<i32>} : memref<1x128x1024xf32, #tpu.memory_space<vmem>>, vector<1x16x64xf32>,
    %c0_312 = arith.constant 0 : index
    %c4_313 = arith.constant 4 : index
    %c0_314 = arith.constant 0 : index
    %234 = vector.load %arg23[%c0_312, %c4_313, %c0_314] : memref<1x135x256xf32, #tpu.memory_space<vmem>>, vector<1x16x64xf32>
    %c0_315 = arith.constant 0 : index
    %c0_316 = arith.constant 0 : index
    %c256 = arith.constant 256 : index
    %235 = vector.load %arg24[%c0_315, %c0_316, %c256] : memref<1x128x1024xf32, #tpu.memory_space<vmem>>, vector<1x16x64xf32>
    tpu.vector_store %arg24[%c0_315, %c0_316, %c256], %234 {strides = array<i32>} : memref<1x128x1024xf32, #tpu.memory_space<vmem>>, vector<1x16x64xf32>,
    %c0_317 = arith.constant 0 : index
    %c5_318 = arith.constant 5 : index
    %c0_319 = arith.constant 0 : index
    %236 = vector.load %arg23[%c0_317, %c5_318, %c0_319] : memref<1x135x256xf32, #tpu.memory_space<vmem>>, vector<1x16x64xf32>
    %c0_320 = arith.constant 0 : index
    %c0_321 = arith.constant 0 : index
    %c320 = arith.constant 320 : index
    %237 = vector.load %arg24[%c0_320, %c0_321, %c320] : memref<1x128x1024xf32, #tpu.memory_space<vmem>>, vector<1x16x64xf32>
    tpu.vector_store %arg24[%c0_320, %c0_321, %c320], %236 {strides = array<i32>} : memref<1x128x1024xf32, #tpu.memory_space<vmem>>, vector<1x16x64xf32>,
    %c0_322 = arith.constant 0 : index
    %c6_323 = arith.constant 6 : index
    %c0_324 = arith.constant 0 : index
    %238 = vector.load %arg23[%c0_322, %c6_323, %c0_324] : memref<1x135x256xf32, #tpu.memory_space<vmem>>, vector<1x16x64xf32>
    %c0_325 = arith.constant 0 : index
    %c0_326 = arith.constant 0 : index
    %c384 = arith.constant 384 : index
    %239 = vector.load %arg24[%c0_325, %c0_326, %c384] : memref<1x128x1024xf32, #tpu.memory_space<vmem>>, vector<1x16x64xf32>
    tpu.vector_store %arg24[%c0_325, %c0_326, %c384], %238 {strides = array<i32>} : memref<1x128x1024xf32, #tpu.memory_space<vmem>>, vector<1x16x64xf32>,
    %c0_327 = arith.constant 0 : index
    %c7_328 = arith.constant 7 : index
    %c0_329 = arith.constant 0 : index
    %240 = vector.load %arg23[%c0_327, %c7_328, %c0_329] : memref<1x135x256xf32, #tpu.memory_space<vmem>>, vector<1x16x64xf32>
    %c0_330 = arith.constant 0 : index
    %c0_331 = arith.constant 0 : index
    %c448 = arith.constant 448 : index
    %241 = vector.load %arg24[%c0_330, %c0_331, %c448] : memref<1x128x1024xf32, #tpu.memory_space<vmem>>, vector<1x16x64xf32>
    tpu.vector_store %arg24[%c0_330, %c0_331, %c448], %240 {strides = array<i32>} : memref<1x128x1024xf32, #tpu.memory_space<vmem>>, vector<1x16x64xf32>,
    %c0_332 = arith.constant 0 : index
    %c0_333 = arith.constant 0 : index
    %c0_334 = arith.constant 0 : index
    %242 = vector.load %arg24[%c0_332, %c0_333, %c0_334] : memref<1x128x1024xf32, #tpu.memory_space<vmem>>, vector<1x16x512xf32>
    %243 = vector.shape_cast %242 : vector<1x16x512xf32> to vector<16x512xf32>
    %244 = arith.truncf %243 : vector<16x512xf32> to vector<16x512xbf16>
    %cst_335 = arith.constant dense<0.000000e+00> : vector<16x64xf32>
    %245 = tpu.matmul %244, %219, %cst_335 {dimension_numbers = #tpu.dot_dimension_numbers<[1], [0], [0], [1], [0, 0, 1, 1], [], []>} : vector<16x512xbf16>, vector<512x64xbf16>, vector<16x64xf32> -> vector<16x64xf32>
    %246 = vector.shape_cast %245 : vector<16x64xf32> to vector<1x16x64xf32>
    %247 = vector.shape_cast %220 : vector<1x64xf32> to vector<1x1x64xf32>
    %248 = vector.broadcast %247 : vector<1x1x64xf32> to vector<1x16x64xf32>
    %249 = arith.addf %246, %248 : vector<1x16x64xf32>
    %cst_336 = arith.constant 0.000000e+00 : f32
    %250 = vector.broadcast %cst_336 : f32 to vector<1x16x64xf32>
    %251 = arith.maximumf %249, %250 : vector<1x16x64xf32>
    %cst_337 = arith.constant 0.000000e+00 : f32
    %252 = vector.broadcast %cst_337 : f32 to vector<1x3x64xf32>
    %c0_338 = arith.constant 0 : index
    %c0_339 = arith.constant 0 : index
    %c0_340 = arith.constant 0 : index
    %253 = vector.load %arg23[%c0_338, %c0_339, %c0_340] : memref<1x135x256xf32, #tpu.memory_space<vmem>>, vector<1x3x64xf32>
    tpu.vector_store %arg23[%c0_338, %c0_339, %c0_340], %252 {strides = array<i32>} : memref<1x135x256xf32, #tpu.memory_space<vmem>>, vector<1x3x64xf32>,
    %cst_341 = arith.constant 0.000000e+00 : f32
    %254 = vector.broadcast %cst_341 : f32 to vector<1x4x64xf32>
    %c0_342 = arith.constant 0 : index
    %c19_343 = arith.constant 19 : index
    %c0_344 = arith.constant 0 : index
    %255 = vector.load %arg23[%c0_342, %c19_343, %c0_344] : memref<1x135x256xf32, #tpu.memory_space<vmem>>, vector<1x4x64xf32>
    tpu.vector_store %arg23[%c0_342, %c19_343, %c0_344], %254 {strides = array<i32>} : memref<1x135x256xf32, #tpu.memory_space<vmem>>, vector<1x4x64xf32>,
    %c0_345 = arith.constant 0 : index
    %c3_346 = arith.constant 3 : index
    %c0_347 = arith.constant 0 : index
    %256 = vector.load %arg23[%c0_345, %c3_346, %c0_347] : memref<1x135x256xf32, #tpu.memory_space<vmem>>, vector<1x16x64xf32>
    tpu.vector_store %arg23[%c0_345, %c3_346, %c0_347], %251 {strides = array<i32>} : memref<1x135x256xf32, #tpu.memory_space<vmem>>, vector<1x16x64xf32>,
    %c0_348 = arith.constant 0 : index
    %c0_349 = arith.constant 0 : index
    %c0_350 = arith.constant 0 : index
    %257 = vector.load %arg23[%c0_348, %c0_349, %c0_350] : memref<1x135x256xf32, #tpu.memory_space<vmem>>, vector<1x8x64xf32>
    %cst_351 = arith.constant dense<0xFF800000> : vector<1x64xf32>
    %258 = vector.multi_reduction <maximumf>, %257, %cst_351 [1] : vector<1x8x64xf32> to vector<1x64xf32>
    %259 = vector.shape_cast %258 : vector<1x64xf32> to vector<1x1x64xf32>
    %c0_352 = arith.constant 0 : index
    %c0_353 = arith.constant 0 : index
    %c0_354 = arith.constant 0 : index
    %260 = vector.load %arg25[%c0_352, %c0_353, %c0_354] : memref<1x16x256xf32, #tpu.memory_space<vmem>>, vector<1x1x64xf32>
    tpu.vector_store %arg25[%c0_352, %c0_353, %c0_354], %259 {strides = array<i32>} : memref<1x16x256xf32, #tpu.memory_space<vmem>>, vector<1x1x64xf32>,
    %c0_355 = arith.constant 0 : index
    %c8_356 = arith.constant 8 : index
    %c0_357 = arith.constant 0 : index
    %261 = vector.load %arg23[%c0_355, %c8_356, %c0_357] : memref<1x135x256xf32, #tpu.memory_space<vmem>>, vector<1x8x64xf32>
    %cst_358 = arith.constant dense<0xFF800000> : vector<1x64xf32>
    %262 = vector.multi_reduction <maximumf>, %261, %cst_358 [1] : vector<1x8x64xf32> to vector<1x64xf32>
    %263 = vector.shape_cast %262 : vector<1x64xf32> to vector<1x1x64xf32>
    %c0_359 = arith.constant 0 : index
    %c1_360 = arith.constant 1 : index
    %c0_361 = arith.constant 0 : index
    %264 = vector.load %arg25[%c0_359, %c1_360, %c0_361] : memref<1x16x256xf32, #tpu.memory_space<vmem>>, vector<1x1x64xf32>
    tpu.vector_store %arg25[%c0_359, %c1_360, %c0_361], %263 {strides = array<i32>} : memref<1x16x256xf32, #tpu.memory_space<vmem>>, vector<1x1x64xf32>,
    %c0_362 = arith.constant 0 : index
    %c0_363 = arith.constant 0 : index
    %c0_364 = arith.constant 0 : index
    %265 = vector.load %arg25[%c0_362, %c0_363, %c0_364] : memref<1x16x256xf32, #tpu.memory_space<vmem>>, vector<1x2x64xf32>
    %c0_365 = arith.constant 0 : index
    %c0_366 = arith.constant 0 : index
    %266 = vector.load %arg10[%c0_365, %c0_366] : memref<512x128xbf16, #tpu.memory_space<vmem>>, vector<512x128xbf16>
    %c0_367 = arith.constant 0 : index
    %c0_368 = arith.constant 0 : index
    %267 = vector.load %arg11[%c0_367, %c0_368] : memref<1x128xf32, #tpu.memory_space<vmem>>, vector<1x128xf32>
    %cst_369 = arith.constant 0.000000e+00 : f32
    %268 = vector.broadcast %cst_369 : f32 to vector<1x3x64xf32>
    %c0_370 = arith.constant 0 : index
    %c0_371 = arith.constant 0 : index
    %c0_372 = arith.constant 0 : index
    %269 = vector.load %arg23[%c0_370, %c0_371, %c0_372] : memref<1x135x256xf32, #tpu.memory_space<vmem>>, vector<1x3x64xf32>
    tpu.vector_store %arg23[%c0_370, %c0_371, %c0_372], %268 {strides = array<i32>} : memref<1x135x256xf32, #tpu.memory_space<vmem>>, vector<1x3x64xf32>,
    %cst_373 = arith.constant 0.000000e+00 : f32
    %270 = vector.broadcast %cst_373 : f32 to vector<1x4x64xf32>
    %c0_374 = arith.constant 0 : index
    %c5_375 = arith.constant 5 : index
    %c0_376 = arith.constant 0 : index
    %271 = vector.load %arg23[%c0_374, %c5_375, %c0_376] : memref<1x135x256xf32, #tpu.memory_space<vmem>>, vector<1x4x64xf32>
    tpu.vector_store %arg23[%c0_374, %c5_375, %c0_376], %270 {strides = array<i32>} : memref<1x135x256xf32, #tpu.memory_space<vmem>>, vector<1x4x64xf32>,
    %c0_377 = arith.constant 0 : index
    %c3_378 = arith.constant 3 : index
    %c0_379 = arith.constant 0 : index
    %272 = vector.load %arg23[%c0_377, %c3_378, %c0_379] : memref<1x135x256xf32, #tpu.memory_space<vmem>>, vector<1x2x64xf32>
    tpu.vector_store %arg23[%c0_377, %c3_378, %c0_379], %265 {strides = array<i32>} : memref<1x135x256xf32, #tpu.memory_space<vmem>>, vector<1x2x64xf32>,
    %c0_380 = arith.constant 0 : index
    %c0_381 = arith.constant 0 : index
    %c0_382 = arith.constant 0 : index
    %273 = vector.load %arg23[%c0_380, %c0_381, %c0_382] : memref<1x135x256xf32, #tpu.memory_space<vmem>>, vector<1x2x64xf32>
    %c0_383 = arith.constant 0 : index
    %c0_384 = arith.constant 0 : index
    %c0_385 = arith.constant 0 : index
    %274 = vector.load %arg24[%c0_383, %c0_384, %c0_385] : memref<1x128x1024xf32, #tpu.memory_space<vmem>>, vector<1x2x64xf32>
    tpu.vector_store %arg24[%c0_383, %c0_384, %c0_385], %273 {strides = array<i32>} : memref<1x128x1024xf32, #tpu.memory_space<vmem>>, vector<1x2x64xf32>,
    %c0_386 = arith.constant 0 : index
    %c1_387 = arith.constant 1 : index
    %c0_388 = arith.constant 0 : index
    %275 = vector.load %arg23[%c0_386, %c1_387, %c0_388] : memref<1x135x256xf32, #tpu.memory_space<vmem>>, vector<1x2x64xf32>
    %c0_389 = arith.constant 0 : index
    %c0_390 = arith.constant 0 : index
    %c64_391 = arith.constant 64 : index
    %276 = vector.load %arg24[%c0_389, %c0_390, %c64_391] : memref<1x128x1024xf32, #tpu.memory_space<vmem>>, vector<1x2x64xf32>
    tpu.vector_store %arg24[%c0_389, %c0_390, %c64_391], %275 {strides = array<i32>} : memref<1x128x1024xf32, #tpu.memory_space<vmem>>, vector<1x2x64xf32>,
    %c0_392 = arith.constant 0 : index
    %c2_393 = arith.constant 2 : index
    %c0_394 = arith.constant 0 : index
    %277 = vector.load %arg23[%c0_392, %c2_393, %c0_394] : memref<1x135x256xf32, #tpu.memory_space<vmem>>, vector<1x2x64xf32>
    %c0_395 = arith.constant 0 : index
    %c0_396 = arith.constant 0 : index
    %c128_397 = arith.constant 128 : index
    %278 = vector.load %arg24[%c0_395, %c0_396, %c128_397] : memref<1x128x1024xf32, #tpu.memory_space<vmem>>, vector<1x2x64xf32>
    tpu.vector_store %arg24[%c0_395, %c0_396, %c128_397], %277 {strides = array<i32>} : memref<1x128x1024xf32, #tpu.memory_space<vmem>>, vector<1x2x64xf32>,
    %c0_398 = arith.constant 0 : index
    %c3_399 = arith.constant 3 : index
    %c0_400 = arith.constant 0 : index
    %279 = vector.load %arg23[%c0_398, %c3_399, %c0_400] : memref<1x135x256xf32, #tpu.memory_space<vmem>>, vector<1x2x64xf32>
    %c0_401 = arith.constant 0 : index
    %c0_402 = arith.constant 0 : index
    %c192_403 = arith.constant 192 : index
    %280 = vector.load %arg24[%c0_401, %c0_402, %c192_403] : memref<1x128x1024xf32, #tpu.memory_space<vmem>>, vector<1x2x64xf32>
    tpu.vector_store %arg24[%c0_401, %c0_402, %c192_403], %279 {strides = array<i32>} : memref<1x128x1024xf32, #tpu.memory_space<vmem>>, vector<1x2x64xf32>,
    %c0_404 = arith.constant 0 : index
    %c4_405 = arith.constant 4 : index
    %c0_406 = arith.constant 0 : index
    %281 = vector.load %arg23[%c0_404, %c4_405, %c0_406] : memref<1x135x256xf32, #tpu.memory_space<vmem>>, vector<1x2x64xf32>
    %c0_407 = arith.constant 0 : index
    %c0_408 = arith.constant 0 : index
    %c256_409 = arith.constant 256 : index
    %282 = vector.load %arg24[%c0_407, %c0_408, %c256_409] : memref<1x128x1024xf32, #tpu.memory_space<vmem>>, vector<1x2x64xf32>
    tpu.vector_store %arg24[%c0_407, %c0_408, %c256_409], %281 {strides = array<i32>} : memref<1x128x1024xf32, #tpu.memory_space<vmem>>, vector<1x2x64xf32>,
    %c0_410 = arith.constant 0 : index
    %c5_411 = arith.constant 5 : index
    %c0_412 = arith.constant 0 : index
    %283 = vector.load %arg23[%c0_410, %c5_411, %c0_412] : memref<1x135x256xf32, #tpu.memory_space<vmem>>, vector<1x2x64xf32>
    %c0_413 = arith.constant 0 : index
    %c0_414 = arith.constant 0 : index
    %c320_415 = arith.constant 320 : index
    %284 = vector.load %arg24[%c0_413, %c0_414, %c320_415] : memref<1x128x1024xf32, #tpu.memory_space<vmem>>, vector<1x2x64xf32>
    tpu.vector_store %arg24[%c0_413, %c0_414, %c320_415], %283 {strides = array<i32>} : memref<1x128x1024xf32, #tpu.memory_space<vmem>>, vector<1x2x64xf32>,
    %c0_416 = arith.constant 0 : index
    %c6_417 = arith.constant 6 : index
    %c0_418 = arith.constant 0 : index
    %285 = vector.load %arg23[%c0_416, %c6_417, %c0_418] : memref<1x135x256xf32, #tpu.memory_space<vmem>>, vector<1x2x64xf32>
    %c0_419 = arith.constant 0 : index
    %c0_420 = arith.constant 0 : index
    %c384_421 = arith.constant 384 : index
    %286 = vector.load %arg24[%c0_419, %c0_420, %c384_421] : memref<1x128x1024xf32, #tpu.memory_space<vmem>>, vector<1x2x64xf32>
    tpu.vector_store %arg24[%c0_419, %c0_420, %c384_421], %285 {strides = array<i32>} : memref<1x128x1024xf32, #tpu.memory_space<vmem>>, vector<1x2x64xf32>,
    %c0_422 = arith.constant 0 : index
    %c7_423 = arith.constant 7 : index
    %c0_424 = arith.constant 0 : index
    %287 = vector.load %arg23[%c0_422, %c7_423, %c0_424] : memref<1x135x256xf32, #tpu.memory_space<vmem>>, vector<1x2x64xf32>
    %c0_425 = arith.constant 0 : index
    %c0_426 = arith.constant 0 : index
    %c448_427 = arith.constant 448 : index
    %288 = vector.load %arg24[%c0_425, %c0_426, %c448_427] : memref<1x128x1024xf32, #tpu.memory_space<vmem>>, vector<1x2x64xf32>
    tpu.vector_store %arg24[%c0_425, %c0_426, %c448_427], %287 {strides = array<i32>} : memref<1x128x1024xf32, #tpu.memory_space<vmem>>, vector<1x2x64xf32>,
    %c0_428 = arith.constant 0 : index
    %c0_429 = arith.constant 0 : index
    %c0_430 = arith.constant 0 : index
    %289 = vector.load %arg24[%c0_428, %c0_429, %c0_430] : memref<1x128x1024xf32, #tpu.memory_space<vmem>>, vector<1x2x512xf32>
    %290 = vector.shape_cast %289 : vector<1x2x512xf32> to vector<2x512xf32>
    %291 = arith.truncf %290 : vector<2x512xf32> to vector<2x512xbf16>
    %cst_431 = arith.constant dense<0.000000e+00> : vector<2x128xf32>
    %292 = tpu.matmul %291, %266, %cst_431 {dimension_numbers = #tpu.dot_dimension_numbers<[1], [0], [0], [1], [0, 0, 1, 1], [], []>} : vector<2x512xbf16>, vector<512x128xbf16>, vector<2x128xf32> -> vector<2x128xf32>
    %293 = vector.shape_cast %292 : vector<2x128xf32> to vector<1x2x128xf32>
    %294 = vector.shape_cast %267 : vector<1x128xf32> to vector<1x1x128xf32>
    %295 = vector.broadcast %294 : vector<1x1x128xf32> to vector<1x2x128xf32>
    %296 = arith.addf %293, %295 : vector<1x2x128xf32>
    %cst_432 = arith.constant 0.000000e+00 : f32
    %297 = vector.broadcast %cst_432 : f32 to vector<1x2x128xf32>
    %298 = arith.maximumf %296, %297 : vector<1x2x128xf32>
    %c0_433 = arith.constant 0 : index
    %c0_434 = arith.constant 0 : index
    %299 = vector.load %arg12[%c0_433, %c0_434] : memref<1024x128xbf16, #tpu.memory_space<vmem>>, vector<1024x128xbf16>
    %c0_435 = arith.constant 0 : index
    %c0_436 = arith.constant 0 : index
    %300 = vector.load %arg13[%c0_435, %c0_436] : memref<1x128xf32, #tpu.memory_space<vmem>>, vector<1x128xf32>
    %cst_437 = arith.constant 0.000000e+00 : f32
    %301 = vector.broadcast %cst_437 : f32 to vector<1x3x128xf32>
    %c0_438 = arith.constant 0 : index
    %c0_439 = arith.constant 0 : index
    %c0_440 = arith.constant 0 : index
    %302 = vector.load %arg23[%c0_438, %c0_439, %c0_440] : memref<1x135x256xf32, #tpu.memory_space<vmem>>, vector<1x3x128xf32>
    tpu.vector_store %arg23[%c0_438, %c0_439, %c0_440], %301 {strides = array<i32>} : memref<1x135x256xf32, #tpu.memory_space<vmem>>, vector<1x3x128xf32>,
    %cst_441 = arith.constant 0.000000e+00 : f32
    %303 = vector.broadcast %cst_441 : f32 to vector<1x4x128xf32>
    %c0_442 = arith.constant 0 : index
    %c5_443 = arith.constant 5 : index
    %c0_444 = arith.constant 0 : index
    %304 = vector.load %arg23[%c0_442, %c5_443, %c0_444] : memref<1x135x256xf32, #tpu.memory_space<vmem>>, vector<1x4x128xf32>
    tpu.vector_store %arg23[%c0_442, %c5_443, %c0_444], %303 {strides = array<i32>} : memref<1x135x256xf32, #tpu.memory_space<vmem>>, vector<1x4x128xf32>,
    %c0_445 = arith.constant 0 : index
    %c3_446 = arith.constant 3 : index
    %c0_447 = arith.constant 0 : index
    %305 = vector.load %arg23[%c0_445, %c3_446, %c0_447] : memref<1x135x256xf32, #tpu.memory_space<vmem>>, vector<1x2x128xf32>
    tpu.vector_store %arg23[%c0_445, %c3_446, %c0_447], %298 {strides = array<i32>} : memref<1x135x256xf32, #tpu.memory_space<vmem>>, vector<1x2x128xf32>,
    %c0_448 = arith.constant 0 : index
    %c0_449 = arith.constant 0 : index
    %c0_450 = arith.constant 0 : index
    %306 = vector.load %arg23[%c0_448, %c0_449, %c0_450] : memref<1x135x256xf32, #tpu.memory_space<vmem>>, vector<1x2x128xf32>
    %c0_451 = arith.constant 0 : index
    %c0_452 = arith.constant 0 : index
    %c0_453 = arith.constant 0 : index
    %307 = vector.load %arg24[%c0_451, %c0_452, %c0_453] : memref<1x128x1024xf32, #tpu.memory_space<vmem>>, vector<1x2x128xf32>
    tpu.vector_store %arg24[%c0_451, %c0_452, %c0_453], %306 {strides = array<i32>} : memref<1x128x1024xf32, #tpu.memory_space<vmem>>, vector<1x2x128xf32>,
    %c0_454 = arith.constant 0 : index
    %c1_455 = arith.constant 1 : index
    %c0_456 = arith.constant 0 : index
    %308 = vector.load %arg23[%c0_454, %c1_455, %c0_456] : memref<1x135x256xf32, #tpu.memory_space<vmem>>, vector<1x2x128xf32>
    %c0_457 = arith.constant 0 : index
    %c0_458 = arith.constant 0 : index
    %c128_459 = arith.constant 128 : index
    %309 = vector.load %arg24[%c0_457, %c0_458, %c128_459] : memref<1x128x1024xf32, #tpu.memory_space<vmem>>, vector<1x2x128xf32>
    tpu.vector_store %arg24[%c0_457, %c0_458, %c128_459], %308 {strides = array<i32>} : memref<1x128x1024xf32, #tpu.memory_space<vmem>>, vector<1x2x128xf32>,
    %c0_460 = arith.constant 0 : index
    %c2_461 = arith.constant 2 : index
    %c0_462 = arith.constant 0 : index
    %310 = vector.load %arg23[%c0_460, %c2_461, %c0_462] : memref<1x135x256xf32, #tpu.memory_space<vmem>>, vector<1x2x128xf32>
    %c0_463 = arith.constant 0 : index
    %c0_464 = arith.constant 0 : index
    %c256_465 = arith.constant 256 : index
    %311 = vector.load %arg24[%c0_463, %c0_464, %c256_465] : memref<1x128x1024xf32, #tpu.memory_space<vmem>>, vector<1x2x128xf32>
    tpu.vector_store %arg24[%c0_463, %c0_464, %c256_465], %310 {strides = array<i32>} : memref<1x128x1024xf32, #tpu.memory_space<vmem>>, vector<1x2x128xf32>,
    %c0_466 = arith.constant 0 : index
    %c3_467 = arith.constant 3 : index
    %c0_468 = arith.constant 0 : index
    %312 = vector.load %arg23[%c0_466, %c3_467, %c0_468] : memref<1x135x256xf32, #tpu.memory_space<vmem>>, vector<1x2x128xf32>
    %c0_469 = arith.constant 0 : index
    %c0_470 = arith.constant 0 : index
    %c384_471 = arith.constant 384 : index
    %313 = vector.load %arg24[%c0_469, %c0_470, %c384_471] : memref<1x128x1024xf32, #tpu.memory_space<vmem>>, vector<1x2x128xf32>
    tpu.vector_store %arg24[%c0_469, %c0_470, %c384_471], %312 {strides = array<i32>} : memref<1x128x1024xf32, #tpu.memory_space<vmem>>, vector<1x2x128xf32>,
    %c0_472 = arith.constant 0 : index
    %c4_473 = arith.constant 4 : index
    %c0_474 = arith.constant 0 : index
    %314 = vector.load %arg23[%c0_472, %c4_473, %c0_474] : memref<1x135x256xf32, #tpu.memory_space<vmem>>, vector<1x2x128xf32>
    %c0_475 = arith.constant 0 : index
    %c0_476 = arith.constant 0 : index
    %c512 = arith.constant 512 : index
    %315 = vector.load %arg24[%c0_475, %c0_476, %c512] : memref<1x128x1024xf32, #tpu.memory_space<vmem>>, vector<1x2x128xf32>
    tpu.vector_store %arg24[%c0_475, %c0_476, %c512], %314 {strides = array<i32>} : memref<1x128x1024xf32, #tpu.memory_space<vmem>>, vector<1x2x128xf32>,
    %c0_477 = arith.constant 0 : index
    %c5_478 = arith.constant 5 : index
    %c0_479 = arith.constant 0 : index
    %316 = vector.load %arg23[%c0_477, %c5_478, %c0_479] : memref<1x135x256xf32, #tpu.memory_space<vmem>>, vector<1x2x128xf32>
    %c0_480 = arith.constant 0 : index
    %c0_481 = arith.constant 0 : index
    %c640 = arith.constant 640 : index
    %317 = vector.load %arg24[%c0_480, %c0_481, %c640] : memref<1x128x1024xf32, #tpu.memory_space<vmem>>, vector<1x2x128xf32>
    tpu.vector_store %arg24[%c0_480, %c0_481, %c640], %316 {strides = array<i32>} : memref<1x128x1024xf32, #tpu.memory_space<vmem>>, vector<1x2x128xf32>,
    %c0_482 = arith.constant 0 : index
    %c6_483 = arith.constant 6 : index
    %c0_484 = arith.constant 0 : index
    %318 = vector.load %arg23[%c0_482, %c6_483, %c0_484] : memref<1x135x256xf32, #tpu.memory_space<vmem>>, vector<1x2x128xf32>
    %c0_485 = arith.constant 0 : index
    %c0_486 = arith.constant 0 : index
    %c768 = arith.constant 768 : index
    %319 = vector.load %arg24[%c0_485, %c0_486, %c768] : memref<1x128x1024xf32, #tpu.memory_space<vmem>>, vector<1x2x128xf32>
    tpu.vector_store %arg24[%c0_485, %c0_486, %c768], %318 {strides = array<i32>} : memref<1x128x1024xf32, #tpu.memory_space<vmem>>, vector<1x2x128xf32>,
    %c0_487 = arith.constant 0 : index
    %c7_488 = arith.constant 7 : index
    %c0_489 = arith.constant 0 : index
    %320 = vector.load %arg23[%c0_487, %c7_488, %c0_489] : memref<1x135x256xf32, #tpu.memory_space<vmem>>, vector<1x2x128xf32>
    %c0_490 = arith.constant 0 : index
    %c0_491 = arith.constant 0 : index
    %c896 = arith.constant 896 : index
    %321 = vector.load %arg24[%c0_490, %c0_491, %c896] : memref<1x128x1024xf32, #tpu.memory_space<vmem>>, vector<1x2x128xf32>
    tpu.vector_store %arg24[%c0_490, %c0_491, %c896], %320 {strides = array<i32>} : memref<1x128x1024xf32, #tpu.memory_space<vmem>>, vector<1x2x128xf32>,
    %c0_492 = arith.constant 0 : index
    %c0_493 = arith.constant 0 : index
    %c0_494 = arith.constant 0 : index
    %322 = vector.load %arg24[%c0_492, %c0_493, %c0_494] : memref<1x128x1024xf32, #tpu.memory_space<vmem>>, vector<1x2x1024xf32>
    %323 = vector.shape_cast %322 : vector<1x2x1024xf32> to vector<2x1024xf32>
    %324 = arith.truncf %323 : vector<2x1024xf32> to vector<2x1024xbf16>
    %cst_495 = arith.constant dense<0.000000e+00> : vector<2x128xf32>
    %325 = tpu.matmul %324, %299, %cst_495 {dimension_numbers = #tpu.dot_dimension_numbers<[1], [0], [0], [1], [0, 0, 1, 1], [], []>} : vector<2x1024xbf16>, vector<1024x128xbf16>, vector<2x128xf32> -> vector<2x128xf32>
    %326 = vector.shape_cast %325 : vector<2x128xf32> to vector<1x2x128xf32>
    %327 = vector.shape_cast %300 : vector<1x128xf32> to vector<1x1x128xf32>
    %328 = vector.broadcast %327 : vector<1x1x128xf32> to vector<1x2x128xf32>
    %329 = arith.addf %326, %328 : vector<1x2x128xf32>
    %cst_496 = arith.constant 0.000000e+00 : f32
    %330 = vector.broadcast %cst_496 : f32 to vector<1x2x128xf32>
    %331 = arith.maximumf %329, %330 : vector<1x2x128xf32>
    %cst_497 = arith.constant 0.000000e+00 : f32
    %332 = vector.broadcast %cst_497 : f32 to vector<1x3x128xf32>
    %c0_498 = arith.constant 0 : index
    %c0_499 = arith.constant 0 : index
    %c0_500 = arith.constant 0 : index
    %333 = vector.load %arg23[%c0_498, %c0_499, %c0_500] : memref<1x135x256xf32, #tpu.memory_space<vmem>>, vector<1x3x128xf32>
    tpu.vector_store %arg23[%c0_498, %c0_499, %c0_500], %332 {strides = array<i32>} : memref<1x135x256xf32, #tpu.memory_space<vmem>>, vector<1x3x128xf32>,
    %cst_501 = arith.constant 0.000000e+00 : f32
    %334 = vector.broadcast %cst_501 : f32 to vector<1x4x128xf32>
    %c0_502 = arith.constant 0 : index
    %c5_503 = arith.constant 5 : index
    %c0_504 = arith.constant 0 : index
    %335 = vector.load %arg23[%c0_502, %c5_503, %c0_504] : memref<1x135x256xf32, #tpu.memory_space<vmem>>, vector<1x4x128xf32>
    tpu.vector_store %arg23[%c0_502, %c5_503, %c0_504], %334 {strides = array<i32>} : memref<1x135x256xf32, #tpu.memory_space<vmem>>, vector<1x4x128xf32>,
    %c0_505 = arith.constant 0 : index
    %c3_506 = arith.constant 3 : index
    %c0_507 = arith.constant 0 : index
    %336 = vector.load %arg23[%c0_505, %c3_506, %c0_507] : memref<1x135x256xf32, #tpu.memory_space<vmem>>, vector<1x2x128xf32>
    tpu.vector_store %arg23[%c0_505, %c3_506, %c0_507], %331 {strides = array<i32>} : memref<1x135x256xf32, #tpu.memory_space<vmem>>, vector<1x2x128xf32>,
    %c0_508 = arith.constant 0 : index
    %c0_509 = arith.constant 0 : index
    %c0_510 = arith.constant 0 : index
    %337 = vector.load %arg23[%c0_508, %c0_509, %c0_510] : memref<1x135x256xf32, #tpu.memory_space<vmem>>, vector<1x8x128xf32>
    %cst_511 = arith.constant dense<0xFF800000> : vector<1x128xf32>
    %338 = vector.multi_reduction <maximumf>, %337, %cst_511 [1] : vector<1x8x128xf32> to vector<1x128xf32>
    %339 = vector.shape_cast %338 : vector<1x128xf32> to vector<1x1x128xf32>
    %c0_512 = arith.constant 0 : index
    %c0_513 = arith.constant 0 : index
    %c0_514 = arith.constant 0 : index
    %340 = vector.load %arg25[%c0_512, %c0_513, %c0_514] : memref<1x16x256xf32, #tpu.memory_space<vmem>>, vector<1x1x128xf32>
    tpu.vector_store %arg25[%c0_512, %c0_513, %c0_514], %339 {strides = array<i32>} : memref<1x16x256xf32, #tpu.memory_space<vmem>>, vector<1x1x128xf32>,
    %c0_515 = arith.constant 0 : index
    %c0_516 = arith.constant 0 : index
    %c0_517 = arith.constant 0 : index
    %341 = vector.load %arg25[%c0_515, %c0_516, %c0_517] : memref<1x16x256xf32, #tpu.memory_space<vmem>>, vector<1x1x128xf32>
    %c0_518 = arith.constant 0 : index
    %c0_519 = arith.constant 0 : index
    %342 = vector.load %arg14[%c0_518, %c0_519] : memref<1024x256xbf16, #tpu.memory_space<vmem>>, vector<1024x256xbf16>
    %c0_520 = arith.constant 0 : index
    %c0_521 = arith.constant 0 : index
    %343 = vector.load %arg15[%c0_520, %c0_521] : memref<1x256xf32, #tpu.memory_space<vmem>>, vector<1x256xf32>
    %cst_522 = arith.constant 0.000000e+00 : f32
    %344 = vector.broadcast %cst_522 : f32 to vector<1x3x128xf32>
    %c0_523 = arith.constant 0 : index
    %c0_524 = arith.constant 0 : index
    %c0_525 = arith.constant 0 : index
    %345 = vector.load %arg23[%c0_523, %c0_524, %c0_525] : memref<1x135x256xf32, #tpu.memory_space<vmem>>, vector<1x3x128xf32>
    tpu.vector_store %arg23[%c0_523, %c0_524, %c0_525], %344 {strides = array<i32>} : memref<1x135x256xf32, #tpu.memory_space<vmem>>, vector<1x3x128xf32>,
    %cst_526 = arith.constant 0.000000e+00 : f32
    %346 = vector.broadcast %cst_526 : f32 to vector<1x4x128xf32>
    %c0_527 = arith.constant 0 : index
    %c4_528 = arith.constant 4 : index
    %c0_529 = arith.constant 0 : index
    %347 = vector.load %arg23[%c0_527, %c4_528, %c0_529] : memref<1x135x256xf32, #tpu.memory_space<vmem>>, vector<1x4x128xf32>
    tpu.vector_store %arg23[%c0_527, %c4_528, %c0_529], %346 {strides = array<i32>} : memref<1x135x256xf32, #tpu.memory_space<vmem>>, vector<1x4x128xf32>,
    %c0_530 = arith.constant 0 : index
    %c3_531 = arith.constant 3 : index
    %c0_532 = arith.constant 0 : index
    %348 = vector.load %arg23[%c0_530, %c3_531, %c0_532] : memref<1x135x256xf32, #tpu.memory_space<vmem>>, vector<1x1x128xf32>
    tpu.vector_store %arg23[%c0_530, %c3_531, %c0_532], %341 {strides = array<i32>} : memref<1x135x256xf32, #tpu.memory_space<vmem>>, vector<1x1x128xf32>,
    %c0_533 = arith.constant 0 : index
    %c0_534 = arith.constant 0 : index
    %c0_535 = arith.constant 0 : index
    %349 = vector.load %arg23[%c0_533, %c0_534, %c0_535] : memref<1x135x256xf32, #tpu.memory_space<vmem>>, vector<1x1x128xf32>
    %c0_536 = arith.constant 0 : index
    %c0_537 = arith.constant 0 : index
    %c0_538 = arith.constant 0 : index
    %350 = vector.load %arg24[%c0_536, %c0_537, %c0_538] : memref<1x128x1024xf32, #tpu.memory_space<vmem>>, vector<1x1x128xf32>
    tpu.vector_store %arg24[%c0_536, %c0_537, %c0_538], %349 {strides = array<i32>} : memref<1x128x1024xf32, #tpu.memory_space<vmem>>, vector<1x1x128xf32>,
    %c0_539 = arith.constant 0 : index
    %c1_540 = arith.constant 1 : index
    %c0_541 = arith.constant 0 : index
    %351 = vector.load %arg23[%c0_539, %c1_540, %c0_541] : memref<1x135x256xf32, #tpu.memory_space<vmem>>, vector<1x1x128xf32>
    %c0_542 = arith.constant 0 : index
    %c0_543 = arith.constant 0 : index
    %c128_544 = arith.constant 128 : index
    %352 = vector.load %arg24[%c0_542, %c0_543, %c128_544] : memref<1x128x1024xf32, #tpu.memory_space<vmem>>, vector<1x1x128xf32>
    tpu.vector_store %arg24[%c0_542, %c0_543, %c128_544], %351 {strides = array<i32>} : memref<1x128x1024xf32, #tpu.memory_space<vmem>>, vector<1x1x128xf32>,
    %c0_545 = arith.constant 0 : index
    %c2_546 = arith.constant 2 : index
    %c0_547 = arith.constant 0 : index
    %353 = vector.load %arg23[%c0_545, %c2_546, %c0_547] : memref<1x135x256xf32, #tpu.memory_space<vmem>>, vector<1x1x128xf32>
    %c0_548 = arith.constant 0 : index
    %c0_549 = arith.constant 0 : index
    %c256_550 = arith.constant 256 : index
    %354 = vector.load %arg24[%c0_548, %c0_549, %c256_550] : memref<1x128x1024xf32, #tpu.memory_space<vmem>>, vector<1x1x128xf32>
    tpu.vector_store %arg24[%c0_548, %c0_549, %c256_550], %353 {strides = array<i32>} : memref<1x128x1024xf32, #tpu.memory_space<vmem>>, vector<1x1x128xf32>,
    %c0_551 = arith.constant 0 : index
    %c3_552 = arith.constant 3 : index
    %c0_553 = arith.constant 0 : index
    %355 = vector.load %arg23[%c0_551, %c3_552, %c0_553] : memref<1x135x256xf32, #tpu.memory_space<vmem>>, vector<1x1x128xf32>
    %c0_554 = arith.constant 0 : index
    %c0_555 = arith.constant 0 : index
    %c384_556 = arith.constant 384 : index
    %356 = vector.load %arg24[%c0_554, %c0_555, %c384_556] : memref<1x128x1024xf32, #tpu.memory_space<vmem>>, vector<1x1x128xf32>
    tpu.vector_store %arg24[%c0_554, %c0_555, %c384_556], %355 {strides = array<i32>} : memref<1x128x1024xf32, #tpu.memory_space<vmem>>, vector<1x1x128xf32>,
    %c0_557 = arith.constant 0 : index
    %c4_558 = arith.constant 4 : index
    %c0_559 = arith.constant 0 : index
    %357 = vector.load %arg23[%c0_557, %c4_558, %c0_559] : memref<1x135x256xf32, #tpu.memory_space<vmem>>, vector<1x1x128xf32>
    %c0_560 = arith.constant 0 : index
    %c0_561 = arith.constant 0 : index
    %c512_562 = arith.constant 512 : index
    %358 = vector.load %arg24[%c0_560, %c0_561, %c512_562] : memref<1x128x1024xf32, #tpu.memory_space<vmem>>, vector<1x1x128xf32>
    tpu.vector_store %arg24[%c0_560, %c0_561, %c512_562], %357 {strides = array<i32>} : memref<1x128x1024xf32, #tpu.memory_space<vmem>>, vector<1x1x128xf32>,
    %c0_563 = arith.constant 0 : index
    %c5_564 = arith.constant 5 : index
    %c0_565 = arith.constant 0 : index
    %359 = vector.load %arg23[%c0_563, %c5_564, %c0_565] : memref<1x135x256xf32, #tpu.memory_space<vmem>>, vector<1x1x128xf32>
    %c0_566 = arith.constant 0 : index
    %c0_567 = arith.constant 0 : index
    %c640_568 = arith.constant 640 : index
    %360 = vector.load %arg24[%c0_566, %c0_567, %c640_568] : memref<1x128x1024xf32, #tpu.memory_space<vmem>>, vector<1x1x128xf32>
    tpu.vector_store %arg24[%c0_566, %c0_567, %c640_568], %359 {strides = array<i32>} : memref<1x128x1024xf32, #tpu.memory_space<vmem>>, vector<1x1x128xf32>,
    %c0_569 = arith.constant 0 : index
    %c6_570 = arith.constant 6 : index
    %c0_571 = arith.constant 0 : index
    %361 = vector.load %arg23[%c0_569, %c6_570, %c0_571] : memref<1x135x256xf32, #tpu.memory_space<vmem>>, vector<1x1x128xf32>
    %c0_572 = arith.constant 0 : index
    %c0_573 = arith.constant 0 : index
    %c768_574 = arith.constant 768 : index
    %362 = vector.load %arg24[%c0_572, %c0_573, %c768_574] : memref<1x128x1024xf32, #tpu.memory_space<vmem>>, vector<1x1x128xf32>
    tpu.vector_store %arg24[%c0_572, %c0_573, %c768_574], %361 {strides = array<i32>} : memref<1x128x1024xf32, #tpu.memory_space<vmem>>, vector<1x1x128xf32>,
    %c0_575 = arith.constant 0 : index
    %c7_576 = arith.constant 7 : index
    %c0_577 = arith.constant 0 : index
    %363 = vector.load %arg23[%c0_575, %c7_576, %c0_577] : memref<1x135x256xf32, #tpu.memory_space<vmem>>, vector<1x1x128xf32>
    %c0_578 = arith.constant 0 : index
    %c0_579 = arith.constant 0 : index
    %c896_580 = arith.constant 896 : index
    %364 = vector.load %arg24[%c0_578, %c0_579, %c896_580] : memref<1x128x1024xf32, #tpu.memory_space<vmem>>, vector<1x1x128xf32>
    tpu.vector_store %arg24[%c0_578, %c0_579, %c896_580], %363 {strides = array<i32>} : memref<1x128x1024xf32, #tpu.memory_space<vmem>>, vector<1x1x128xf32>,
    %c0_581 = arith.constant 0 : index
    %c0_582 = arith.constant 0 : index
    %c0_583 = arith.constant 0 : index
    %365 = vector.load %arg24[%c0_581, %c0_582, %c0_583] : memref<1x128x1024xf32, #tpu.memory_space<vmem>>, vector<1x1x1024xf32>
    %366 = vector.shape_cast %365 : vector<1x1x1024xf32> to vector<1x1024xf32>
    %367 = arith.truncf %366 : vector<1x1024xf32> to vector<1x1024xbf16>
    %cst_584 = arith.constant dense<0.000000e+00> : vector<1x256xf32>
    %368 = tpu.matmul %367, %342, %cst_584 {dimension_numbers = #tpu.dot_dimension_numbers<[1], [0], [0], [1], [0, 0, 1, 1], [], []>} : vector<1x1024xbf16>, vector<1024x256xbf16>, vector<1x256xf32> -> vector<1x256xf32>
    %369 = vector.shape_cast %368 : vector<1x256xf32> to vector<1x1x256xf32>
    %370 = vector.shape_cast %343 : vector<1x256xf32> to vector<1x1x256xf32>
    %371 = arith.addf %369, %370 : vector<1x1x256xf32>
    %cst_585 = arith.constant 0.000000e+00 : f32
    %372 = vector.broadcast %cst_585 : f32 to vector<1x1x256xf32>
    %373 = arith.maximumf %371, %372 : vector<1x1x256xf32>
    %cst_586 = arith.constant 0.000000e+00 : f32
    %374 = vector.broadcast %cst_586 : f32 to vector<1x3x256xf32>
    %c0_587 = arith.constant 0 : index
    %c0_588 = arith.constant 0 : index
    %c0_589 = arith.constant 0 : index
    %375 = vector.load %arg23[%c0_587, %c0_588, %c0_589] : memref<1x135x256xf32, #tpu.memory_space<vmem>>, vector<1x3x256xf32>
    tpu.vector_store %arg23[%c0_587, %c0_588, %c0_589], %374 {strides = array<i32>} : memref<1x135x256xf32, #tpu.memory_space<vmem>>, vector<1x3x256xf32>,
    %cst_590 = arith.constant 0.000000e+00 : f32
    %376 = vector.broadcast %cst_590 : f32 to vector<1x4x256xf32>
    %c0_591 = arith.constant 0 : index
    %c4_592 = arith.constant 4 : index
    %c0_593 = arith.constant 0 : index
    %377 = vector.load %arg23[%c0_591, %c4_592, %c0_593] : memref<1x135x256xf32, #tpu.memory_space<vmem>>, vector<1x4x256xf32>
    tpu.vector_store %arg23[%c0_591, %c4_592, %c0_593], %376 {strides = array<i32>} : memref<1x135x256xf32, #tpu.memory_space<vmem>>, vector<1x4x256xf32>,
    %c0_594 = arith.constant 0 : index
    %c3_595 = arith.constant 3 : index
    %c0_596 = arith.constant 0 : index
    %378 = vector.load %arg23[%c0_594, %c3_595, %c0_596] : memref<1x135x256xf32, #tpu.memory_space<vmem>>, vector<1x1x256xf32>
    tpu.vector_store %arg23[%c0_594, %c3_595, %c0_596], %373 {strides = array<i32>} : memref<1x135x256xf32, #tpu.memory_space<vmem>>, vector<1x1x256xf32>,
    %c0_597 = arith.constant 0 : index
    %c0_598 = arith.constant 0 : index
    %c0_599 = arith.constant 0 : index
    %379 = vector.load %arg23[%c0_597, %c0_598, %c0_599] : memref<1x135x256xf32, #tpu.memory_space<vmem>>, vector<1x8x256xf32>
    %cst_600 = arith.constant dense<0xFF800000> : vector<1x256xf32>
    %380 = vector.multi_reduction <maximumf>, %379, %cst_600 [1] : vector<1x8x256xf32> to vector<1x256xf32>
    %381 = vector.shape_cast %380 : vector<1x256xf32> to vector<1x1x256xf32>
    %c0_601 = arith.constant 0 : index
    %c0_602 = arith.constant 0 : index
    %c0_603 = arith.constant 0 : index
    %382 = vector.load %arg25[%c0_601, %c0_602, %c0_603] : memref<1x16x256xf32, #tpu.memory_space<vmem>>, vector<1x1x256xf32>
    tpu.vector_store %arg25[%c0_601, %c0_602, %c0_603], %381 {strides = array<i32>} : memref<1x16x256xf32, #tpu.memory_space<vmem>>, vector<1x1x256xf32>,
    %c0_604 = arith.constant 0 : index
    %c0_605 = arith.constant 0 : index
    %c0_606 = arith.constant 0 : index
    %383 = vector.load %arg25[%c0_604, %c0_605, %c0_606] : memref<1x16x256xf32, #tpu.memory_space<vmem>>, vector<1x1x256xf32>
    %384 = vector.shape_cast %383 : vector<1x1x256xf32> to vector<1x256xf32>
    %c0_607 = arith.constant 0 : index
    %c0_608 = arith.constant 0 : index
    %385 = vector.load %arg16[%c0_607, %c0_608] : memref<256x512xbf16, #tpu.memory_space<vmem>>, vector<256x512xbf16>
    %c0_609 = arith.constant 0 : index
    %c0_610 = arith.constant 0 : index
    %386 = vector.load %arg17[%c0_609, %c0_610] : memref<1x512xf32, #tpu.memory_space<vmem>>, vector<1x512xf32>
    %387 = arith.truncf %384 : vector<1x256xf32> to vector<1x256xbf16>
    %cst_611 = arith.constant dense<0.000000e+00> : vector<1x512xf32>
    %388 = tpu.matmul %387, %385, %cst_611 {dimension_numbers = #tpu.dot_dimension_numbers<[1], [0], [0], [1], [0, 0, 1, 1], [], []>} : vector<1x256xbf16>, vector<256x512xbf16>, vector<1x512xf32> -> vector<1x512xf32>
    %389 = arith.addf %388, %386 : vector<1x512xf32>
    %cst_612 = arith.constant 0.000000e+00 : f32
    %390 = vector.broadcast %cst_612 : f32 to vector<1x512xf32>
    %391 = arith.maximumf %389, %390 : vector<1x512xf32>
    %c0_613 = arith.constant 0 : index
    %c0_614 = arith.constant 0 : index
    %392 = vector.load %arg18[%c0_613, %c0_614] : memref<512x512xbf16, #tpu.memory_space<vmem>>, vector<512x512xbf16>
    %c0_615 = arith.constant 0 : index
    %c0_616 = arith.constant 0 : index
    %393 = vector.load %arg19[%c0_615, %c0_616] : memref<1x512xf32, #tpu.memory_space<vmem>>, vector<1x512xf32>
    %394 = arith.truncf %391 : vector<1x512xf32> to vector<1x512xbf16>
    %cst_617 = arith.constant dense<0.000000e+00> : vector<1x512xf32>
    %395 = tpu.matmul %394, %392, %cst_617 {dimension_numbers = #tpu.dot_dimension_numbers<[1], [0], [0], [1], [0, 0, 1, 1], [], []>} : vector<1x512xbf16>, vector<512x512xbf16>, vector<1x512xf32> -> vector<1x512xf32>
    %396 = arith.addf %395, %393 : vector<1x512xf32>
    %cst_618 = arith.constant 0.000000e+00 : f32
    %397 = vector.broadcast %cst_618 : f32 to vector<1x512xf32>
    %398 = arith.maximumf %396, %397 : vector<1x512xf32>
    %c0_619 = arith.constant 0 : index
    %c0_620 = arith.constant 0 : index
    %399 = vector.load %arg20[%c0_619, %c0_620] : memref<512x100xbf16, #tpu.memory_space<vmem>>, vector<512x100xbf16>
    %c0_621 = arith.constant 0 : index
    %c0_622 = arith.constant 0 : index
    %400 = vector.load %arg21[%c0_621, %c0_622] : memref<1x100xf32, #tpu.memory_space<vmem>>, vector<1x100xf32>
    %401 = arith.truncf %398 : vector<1x512xf32> to vector<1x512xbf16>
    %cst_623 = arith.constant dense<0.000000e+00> : vector<1x100xf32>
    %402 = tpu.matmul %401, %399, %cst_623 {dimension_numbers = #tpu.dot_dimension_numbers<[1], [0], [0], [1], [0, 0, 1, 1], [], []>} : vector<1x512xbf16>, vector<512x100xbf16>, vector<1x100xf32> -> vector<1x100xf32>
    %403 = arith.addf %402, %400 : vector<1x100xf32>
    %404 = vector.shape_cast %403 : vector<1x100xf32> to vector<1x1x100xf32>
    %c0_624 = arith.constant 0 : index
    %c0_625 = arith.constant 0 : index
    %c0_626 = arith.constant 0 : index
    %405 = vector.load %arg22[%c0_624, %c0_625, %c0_626] : memref<1x1x100xf32, #tpu.memory_space<vmem>>, vector<1x1x100xf32>
    tpu.vector_store %arg22[%c0_624, %c0_625, %c0_626], %404 {strides = array<i32>} : memref<1x1x100xf32, #tpu.memory_space<vmem>>, vector<1x1x100xf32>,
    return
  }
  func.func @transform_0(%arg0: i32) -> (i32, i32, i32) {
    %c0_i32 = arith.constant 0 : i32
    %c0_i32_0 = arith.constant 0 : i32
    %c0_i32_1 = arith.constant 0 : i32
    return %arg0, %c0_i32, %c0_i32_0 : i32, i32, i32
  }
  func.func @transform_1(%arg0: i32) -> (i32, i32) {
    %c0_i32 = arith.constant 0 : i32
    %c0_i32_0 = arith.constant 0 : i32
    %c0_i32_1 = arith.constant 0 : i32
    return %c0_i32, %c0_i32_0 : i32, i32
  }
  func.func @transform_2(%arg0: i32) -> (i32, i32) {
    %c0_i32 = arith.constant 0 : i32
    %c0_i32_0 = arith.constant 0 : i32
    %c0_i32_1 = arith.constant 0 : i32
    return %c0_i32, %c0_i32_0 : i32, i32
  }
  func.func @transform_3(%arg0: i32) -> (i32, i32) {
    %c0_i32 = arith.constant 0 : i32
    %c0_i32_0 = arith.constant 0 : i32
    %c0_i32_1 = arith.constant 0 : i32
    return %c0_i32, %c0_i32_0 : i32, i32
  }
  func.func @transform_4(%arg0: i32) -> (i32, i32) {
    %c0_i32 = arith.constant 0 : i32
    %c0_i32_0 = arith.constant 0 : i32
    %c0_i32_1 = arith.constant 0 : i32
    return %c0_i32, %c0_i32_0 : i32, i32
  }
  func.func @transform_5(%arg0: i32) -> (i32, i32) {
    %c0_i32 = arith.constant 0 : i32
    %c0_i32_0 = arith.constant 0 : i32
    %c0_i32_1 = arith.constant 0 : i32
    return %c0_i32, %c0_i32_0 : i32, i32
  }
  func.func @transform_6(%arg0: i32) -> (i32, i32) {
    %c0_i32 = arith.constant 0 : i32
    %c0_i32_0 = arith.constant 0 : i32
    %c0_i32_1 = arith.constant 0 : i32
    return %c0_i32, %c0_i32_0 : i32, i32
  }
  func.func @transform_7(%arg0: i32) -> (i32, i32) {
    %c0_i32 = arith.constant 0 : i32
    %c0_i32_0 = arith.constant 0 : i32
    %c0_i32_1 = arith.constant 0 : i32
    return %c0_i32, %c0_i32_0 : i32, i32
  }
  func.func @transform_8(%arg0: i32) -> (i32, i32) {
    %c0_i32 = arith.constant 0 : i32
    %c0_i32_0 = arith.constant 0 : i32
    %c0_i32_1 = arith.constant 0 : i32
    return %c0_i32, %c0_i32_0 : i32, i32
  }
  func.func @transform_9(%arg0: i32) -> (i32, i32) {
    %c0_i32 = arith.constant 0 : i32
    %c0_i32_0 = arith.constant 0 : i32
    %c0_i32_1 = arith.constant 0 : i32
    return %c0_i32, %c0_i32_0 : i32, i32
  }
  func.func @transform_10(%arg0: i32) -> (i32, i32) {
    %c0_i32 = arith.constant 0 : i32
    %c0_i32_0 = arith.constant 0 : i32
    %c0_i32_1 = arith.constant 0 : i32
    return %c0_i32, %c0_i32_0 : i32, i32
  }
  func.func @transform_11(%arg0: i32) -> (i32, i32) {
    %c0_i32 = arith.constant 0 : i32
    %c0_i32_0 = arith.constant 0 : i32
    %c0_i32_1 = arith.constant 0 : i32
    return %c0_i32, %c0_i32_0 : i32, i32
  }
  func.func @transform_12(%arg0: i32) -> (i32, i32) {
    %c0_i32 = arith.constant 0 : i32
    %c0_i32_0 = arith.constant 0 : i32
    %c0_i32_1 = arith.constant 0 : i32
    return %c0_i32, %c0_i32_0 : i32, i32
  }
  func.func @transform_13(%arg0: i32) -> (i32, i32) {
    %c0_i32 = arith.constant 0 : i32
    %c0_i32_0 = arith.constant 0 : i32
    %c0_i32_1 = arith.constant 0 : i32
    return %c0_i32, %c0_i32_0 : i32, i32
  }
  func.func @transform_14(%arg0: i32) -> (i32, i32) {
    %c0_i32 = arith.constant 0 : i32
    %c0_i32_0 = arith.constant 0 : i32
    %c0_i32_1 = arith.constant 0 : i32
    return %c0_i32, %c0_i32_0 : i32, i32
  }
  func.func @transform_15(%arg0: i32) -> (i32, i32) {
    %c0_i32 = arith.constant 0 : i32
    %c0_i32_0 = arith.constant 0 : i32
    %c0_i32_1 = arith.constant 0 : i32
    return %c0_i32, %c0_i32_0 : i32, i32
  }
  func.func @transform_16(%arg0: i32) -> (i32, i32) {
    %c0_i32 = arith.constant 0 : i32
    %c0_i32_0 = arith.constant 0 : i32
    %c0_i32_1 = arith.constant 0 : i32
    return %c0_i32, %c0_i32_0 : i32, i32
  }
  func.func @transform_17(%arg0: i32) -> (i32, i32) {
    %c0_i32 = arith.constant 0 : i32
    %c0_i32_0 = arith.constant 0 : i32
    %c0_i32_1 = arith.constant 0 : i32
    return %c0_i32, %c0_i32_0 : i32, i32
  }
  func.func @transform_18(%arg0: i32) -> (i32, i32) {
    %c0_i32 = arith.constant 0 : i32
    %c0_i32_0 = arith.constant 0 : i32
    %c0_i32_1 = arith.constant 0 : i32
    return %c0_i32, %c0_i32_0 : i32, i32
  }
  func.func @transform_19(%arg0: i32) -> (i32, i32) {
    %c0_i32 = arith.constant 0 : i32
    %c0_i32_0 = arith.constant 0 : i32
    %c0_i32_1 = arith.constant 0 : i32
    return %c0_i32, %c0_i32_0 : i32, i32
  }
  func.func @transform_20(%arg0: i32) -> (i32, i32) {
    %c0_i32 = arith.constant 0 : i32
    %c0_i32_0 = arith.constant 0 : i32
    %c0_i32_1 = arith.constant 0 : i32
    return %c0_i32, %c0_i32_0 : i32, i32
  }
  func.func @transform_21(%arg0: i32) -> (i32, i32, i32) {
    %c0_i32 = arith.constant 0 : i32
    %c0_i32_0 = arith.constant 0 : i32
    %c0_i32_1 = arith.constant 0 : i32
    return %arg0, %c0_i32, %c0_i32_0 : i32, i32, i32
  }
}

</mosaic_0001>

<llo_original>
// kernel: df_forward.1
$region0: #{df_forward.1}
  #allocation0 [shape = 'u32[]', space=smem, size = 0x4, offset = 0x4, fixed_abs, tag = 'smem constant byte address 0x4 - core index']
  #allocation1 [shape = 'u32[72,128]{1,0:T(1,128)}', space=vmem, size = 0x9000, scoped, tag = 'internal scratch']
  #allocation2 [shape = 'f32[1,135,256]{2,1,0:T(8,128)}', space=vmem, size = 0x22000, scoped, tag = 'scratch operand']
  #allocation3 [shape = 'f32[1,128,1024]{2,1,0:T(8,128)}', space=vmem, size = 0x80000, scoped, tag = 'scratch operand']
  #allocation4 [shape = 'f32[1,16,256]{2,1,0:T(8,128)}', space=vmem, size = 0x4000, scoped, tag = 'scratch operand']
  %s0 = inlined_call_operand.vmem [shape: f32[2,128,1], index: 0, kind: input, shape index: {}]
  %s1 = inlined_call_operand.vmem [shape: bf16[8,32], index: 1, kind: input, shape index: {}]
  %s2 = inlined_call_operand.vmem [shape: f32[1,32], index: 2, kind: input, shape index: {}]
  %s3 = inlined_call_operand.vmem [shape: bf16[256,32], index: 3, kind: input, shape index: {}]
  %s4 = inlined_call_operand.vmem [shape: f32[1,32], index: 4, kind: input, shape index: {}]
  %s5 = inlined_call_operand.vmem [shape: bf16[256,64], index: 5, kind: input, shape index: {}]
  %s6 = inlined_call_operand.vmem [shape: f32[1,64], index: 6, kind: input, shape index: {}]
  %s7 = inlined_call_operand.vmem [shape: bf16[512,64], index: 7, kind: input, shape index: {}]
  %s8 = inlined_call_operand.vmem [shape: f32[1,64], index: 8, kind: input, shape index: {}]
  %s9 = inlined_call_operand.vmem [shape: bf16[512,128], index: 9, kind: input, shape index: {}]
  %s10 = inlined_call_operand.vmem [shape: f32[1,128], index: 10, kind: input, shape index: {}]
  %s11 = inlined_call_operand.vmem [shape: bf16[1024,128], index: 11, kind: input, shape index: {}]
  %s12 = inlined_call_operand.vmem [shape: f32[1,128], index: 12, kind: input, shape index: {}]
  %s13 = inlined_call_operand.hbm [shape: bf16[1024,256], index: 13, kind: input, shape index: {}]
  %s14 = inlined_call_operand.vmem [shape: f32[1,256], index: 14, kind: input, shape index: {}]
  %s15 = inlined_call_operand.hbm [shape: bf16[256,512], index: 15, kind: input, shape index: {}]
  %s16 = inlined_call_operand.vmem [shape: f32[1,512], index: 16, kind: input, shape index: {}]
  %s17 = inlined_call_operand.hbm [shape: bf16[512,512], index: 17, kind: input, shape index: {}]
  %s18 = inlined_call_operand.vmem [shape: f32[1,512], index: 18, kind: input, shape index: {}]
  %s19 = inlined_call_operand.vmem [shape: bf16[512,100], index: 19, kind: input, shape index: {}]
  %s20 = inlined_call_operand.vmem [shape: f32[1,100], index: 20, kind: input, shape index: {}]
  %s21 = inlined_call_operand.hbm [shape: f32[2,1,100], index: 21, kind: output, shape index: {}]
  %s22 = sld [smem:[#allocation0]]
  $region129: #{df_forward.1} parent=0
    _
  %s24 = ssub.s32 1, %s22
  %s25 = scalar_select 0, %s24, %s22
  $region1: #{df_forward.1} parent=0
    #allocation5 [shape = 'u8[524288]{0}', space=vmem, size = 0x80000, scoped, tag = 'input window, operand 13, single buffered']
    #allocation6 [shape = 's32[2]{0}', space=sflag, size = 0x8, scoped, tag = 'scoped memory for df_forward.1']
    #allocation7 [shape = 's32[2]{0}', space=sflag, size = 0x8, scoped, tag = 'scoped memory for df_forward.1']
    #allocation8 [shape = 'u8[262144]{0}', space=vmem, size = 0x40000, scoped, tag = 'input window, operand 15, single buffered']
    #allocation9 [shape = 's32[1]{0}', space=sflag, size = 0x4, scoped, tag = 'scoped memory for df_forward.1']
    #allocation10 [shape = 'u8[524288]{0}', space=vmem, size = 0x80000, scoped, tag = 'input window, operand 17, single buffered']
    #allocation11 [shape = 'u8[1024]{0}', space=vmem, size = 0x400, scoped, tag = 'output window, operand 0']
    %26 = vsyncpa [#allocation6], 0
    %27 = vsyncpa [#allocation9], 0
    %28 = vsyncpa [#allocation7], 0
    %s29 = scalar_lea.sflag [#allocation7], 1
    %30 = vsyncpa %s29, 0
    loop: start=0, step=1, limit=4
    $region2: #{df_forward.1} parent=1 // loop_pre_header
      _
    $region3: #{df_forward.1} parent=1 // loop_header
      %s32 = sphi 0, %s36
      %p33 = scmp.ge.s32.totalorder %s32, 4
      %s42 = sphi 0, %s44
      %s45 = sphi 0, %s42
      %s46 = sphi 0, %s45
      %s62 = sphi 0, %s46
      %s66 = sphi 0, %s66
      %s68 = sphi 0, %s66
      %s69 = sphi 0, %s68
      %s83 = sphi 0, %s69
      %s87 = sphi 0, %s87
      %s89 = sphi 0, %s87
      %s90 = sphi 0, %s89
      %s104 = sphi 0, %s90
      %s108 = sphi 0, %s108
      %s110 = sphi 0, %s108
      %s111 = sphi 0, %s110
      %s125 = sphi 0, %s111
      %s129 = sphi 0, %s129
      %s131 = sphi 0, %s129
      %s132 = sphi 0, %s131
      %s146 = sphi 0, %s132
      %s150 = sphi 0, %s150
      %s152 = sphi 0, %s150
      %s153 = sphi 0, %s152
      %s167 = sphi 0, %s153
      %s171 = sphi 0, %s171
      %s173 = sphi 0, %s171
      %s174 = sphi 0, %s173
      %s188 = sphi 0, %s174
      %s192 = sphi 0, %s192
      %s194 = sphi 0, %s192
      %s195 = sphi 0, %s194
      %s209 = sphi 0, %s195
      %s213 = sphi 0, %s213
      %s215 = sphi 0, %s213
      %s216 = sphi 0, %s215
      %s230 = sphi 0, %s216
      %s234 = sphi 0, %s234
      %s236 = sphi 0, %s234
      %s237 = sphi 0, %s236
      %s251 = sphi 0, %s237
      %s255 = sphi 0, %s255
      %s257 = sphi 0, %s255
      %s258 = sphi 0, %s257
      %s272 = sphi 0, %s258
      %s276 = sphi 0, %s276
      %s278 = sphi 0, %s276
      %s279 = sphi 0, %s278
      %s293 = sphi 0, %s279
      %s297 = sphi 0, %s297
      %s299 = sphi 0, %s297
      %s300 = sphi 0, %s299
      %s314 = sphi 0, %s300
      %s318 = sphi 0, %s318
      %s320 = sphi 0, %s318
      %s321 = sphi 0, %s320
      %s335 = sphi 0, %s321
      %s339 = sphi 0, %s339
      %s341 = sphi 0, %s339
      %s342 = sphi 0, %s341
      %s356 = sphi 0, %s342
      %s360 = sphi 0, %s360
      %s362 = sphi 0, %s360
      %s363 = sphi 0, %s362
      %s377 = sphi 0, %s363
      %s381 = sphi 0, %s381
      %s383 = sphi 0, %s381
      %s384 = sphi 0, %s383
      %s398 = sphi 0, %s384
      %s402 = sphi 0, %s402
      %s404 = sphi 0, %s402
      %s405 = sphi 0, %s404
      %s419 = sphi 0, %s405
      %s423 = sphi 0, %s423
      %s425 = sphi 0, %s423
      %s426 = sphi 0, %s425
      %s440 = sphi 0, %s426
      %s444 = sphi 0, %s444
      %s446 = sphi 0, %s444
      %s447 = sphi 0, %s446
      %s461 = sphi 0, %s447
      %s465 = sphi 0, %s465
      %s467 = sphi 0, %s465
      %s468 = sphi 0, %s467
      %s482 = sphi 0, %s468
      %s488 = sphi 0, %s490
      %s491 = sphi 0, %s488
      %s492 = sphi 0, %s491
      %s508 = sphi 0, %s492
    $region4: #{df_forward.1} parent=1 // loop_header_branch
      %35 = sbr.rel (%p33) target = $region8
    $region5: #{df_forward.1} parent=1 // loop_body
      %s37 = ssub.s32 %s32, 1
      %s38 = ssub.s32 %s32, 2
      %s39 = sadd.s32 %s32, 1
      %s40 = ssub.s32 %s32, %s39
      %p41 = scmp.eq.s32.totalorder %s40, 0
      %s43 = sadd.s32 %s42, 1
      %s44 = scalar_select %p41, %s42, %s43
      %p47 = pneg %p41
      %p48 = scmp.eq.s32.totalorder %s32, 1
      %p49 = por %p47, %p48
      %p50 = scmp.ne.s32.totalorder %s42, %s45
      %p51 = scmp.eq.s32.totalorder %s32, 0
      %p52 = por %p50, %p51
      %p53 = scmp.ne.s32.totalorder %s42, %s45
      %p54 = scmp.eq.s32.totalorder %s37, 1
      %p55 = por %p53, %p54
      %p56 = scmp.ne.s32.totalorder %s45, %s46
      %p57 = scmp.eq.s32.totalorder %s37, 0
      %p58 = por %p56, %p57
      %p59 = scmp.ne.s32.totalorder %s45, %s46
      %p60 = scmp.eq.s32.totalorder %s38, 1
      %p61 = por %p59, %p60
      %p63 = scmp.ne.s32.totalorder %s46, %s62
      %p64 = scmp.eq.s32.totalorder %s38, 0
      %p65 = por %p63, %p64
      %s67 = sadd.s32 %s66, 1
      %p70 = scmp.eq.s32.totalorder %s32, 1
      %p71 = scmp.ne.s32.totalorder %s66, %s68
      %p72 = scmp.eq.s32.totalorder %s32, 0
      %p73 = por %p71, %p72
      %p74 = scmp.ne.s32.totalorder %s66, %s68
      %p75 = scmp.eq.s32.totalorder %s37, 1
      %p76 = por %p74, %p75
      %p77 = scmp.ne.s32.totalorder %s68, %s69
      %p78 = scmp.eq.s32.totalorder %s37, 0
      %p79 = por %p77, %p78
      %p80 = scmp.ne.s32.totalorder %s68, %s69
      %p81 = scmp.eq.s32.totalorder %s38, 1
      %p82 = por %p80, %p81
      %p84 = scmp.ne.s32.totalorder %s69, %s83
      %p85 = scmp.eq.s32.totalorder %s38, 0
      %p86 = por %p84, %p85
      %s88 = sadd.s32 %s87, 1
      %p91 = scmp.eq.s32.totalorder %s32, 1
      %p92 = scmp.ne.s32.totalorder %s87, %s89
      %p93 = scmp.eq.s32.totalorder %s32, 0
      %p94 = por %p92, %p93
      %p95 = scmp.ne.s32.totalorder %s87, %s89
      %p96 = scmp.eq.s32.totalorder %s37, 1
      %p97 = por %p95, %p96
      %p98 = scmp.ne.s32.totalorder %s89, %s90
      %p99 = scmp.eq.s32.totalorder %s37, 0
      %p100 = por %p98, %p99
      %p101 = scmp.ne.s32.totalorder %s89, %s90
      %p102 = scmp.eq.s32.totalorder %s38, 1
      %p103 = por %p101, %p102
      %p105 = scmp.ne.s32.totalorder %s90, %s104
      %p106 = scmp.eq.s32.totalorder %s38, 0
      %p107 = por %p105, %p106
      %s109 = sadd.s32 %s108, 1
      %p112 = scmp.eq.s32.totalorder %s32, 1
      %p113 = scmp.ne.s32.totalorder %s108, %s110
      %p114 = scmp.eq.s32.totalorder %s32, 0
      %p115 = por %p113, %p114
      %p116 = scmp.ne.s32.totalorder %s108, %s110
      %p117 = scmp.eq.s32.totalorder %s37, 1
      %p118 = por %p116, %p117
      %p119 = scmp.ne.s32.totalorder %s110, %s111
      %p120 = scmp.eq.s32.totalorder %s37, 0
      %p121 = por %p119, %p120
      %p122 = scmp.ne.s32.totalorder %s110, %s111
      %p123 = scmp.eq.s32.totalorder %s38, 1
      %p124 = por %p122, %p123
      %p126 = scmp.ne.s32.totalorder %s111, %s125
      %p127 = scmp.eq.s32.totalorder %s38, 0
      %p128 = por %p126, %p127
      %s130 = sadd.s32 %s129, 1
      %p133 = scmp.eq.s32.totalorder %s32, 1
      %p134 = scmp.ne.s32.totalorder %s129, %s131
      %p135 = scmp.eq.s32.totalorder %s32, 0
      %p136 = por %p134, %p135
      %p137 = scmp.ne.s32.totalorder %s129, %s131
      %p138 = scmp.eq.s32.totalorder %s37, 1
      %p139 = por %p137, %p138
      %p140 = scmp.ne.s32.totalorder %s131, %s132
      %p141 = scmp.eq.s32.totalorder %s37, 0
      %p142 = por %p140, %p141
      %p143 = scmp.ne.s32.totalorder %s131, %s132
      %p144 = scmp.eq.s32.totalorder %s38, 1
      %p145 = por %p143, %p144
      %p147 = scmp.ne.s32.totalorder %s132, %s146
      %p148 = scmp.eq.s32.totalorder %s38, 0
      %p149 = por %p147, %p148
      %s151 = sadd.s32 %s150, 1
      %p154 = scmp.eq.s32.totalorder %s32, 1
      %p155 = scmp.ne.s32.totalorder %s150, %s152
      %p156 = scmp.eq.s32.totalorder %s32, 0
      %p157 = por %p155, %p156
      %p158 = scmp.ne.s32.totalorder %s150, %s152
      %p159 = scmp.eq.s32.totalorder %s37, 1
      %p160 = por %p158, %p159
      %p161 = scmp.ne.s32.totalorder %s152, %s153
      %p162 = scmp.eq.s32.totalorder %s37, 0
      %p163 = por %p161, %p162
      %p164 = scmp.ne.s32.totalorder %s152, %s153
      %p165 = scmp.eq.s32.totalorder %s38, 1
      %p166 = por %p164, %p165
      %p168 = scmp.ne.s32.totalorder %s153, %s167
      %p169 = scmp.eq.s32.totalorder %s38, 0
      %p170 = por %p168, %p169
      %s172 = sadd.s32 %s171, 1
      %p175 = scmp.eq.s32.totalorder %s32, 1
      %p176 = scmp.ne.s32.totalorder %s171, %s173
      %p177 = scmp.eq.s32.totalorder %s32, 0
      %p178 = por %p176, %p177
      %p179 = scmp.ne.s32.totalorder %s171, %s173
      %p180 = scmp.eq.s32.totalorder %s37, 1
      %p181 = por %p179, %p180
      %p182 = scmp.ne.s32.totalorder %s173, %s174
      %p183 = scmp.eq.s32.totalorder %s37, 0
      %p184 = por %p182, %p183
      %p185 = scmp.ne.s32.totalorder %s173, %s174
      %p186 = scmp.eq.s32.totalorder %s38, 1
      %p187 = por %p185, %p186
      %p189 = scmp.ne.s32.totalorder %s174, %s188
      %p190 = scmp.eq.s32.totalorder %s38, 0
      %p191 = por %p189, %p190
      %s193 = sadd.s32 %s192, 1
      %p196 = scmp.eq.s32.totalorder %s32, 1
      %p197 = scmp.ne.s32.totalorder %s192, %s194
      %p198 = scmp.eq.s32.totalorder %s32, 0
      %p199 = por %p197, %p198
      %p200 = scmp.ne.s32.totalorder %s192, %s194
      %p201 = scmp.eq.s32.totalorder %s37, 1
      %p202 = por %p200, %p201
      %p203 = scmp.ne.s32.totalorder %s194, %s195
      %p204 = scmp.eq.s32.totalorder %s37, 0
      %p205 = por %p203, %p204
      %p206 = scmp.ne.s32.totalorder %s194, %s195
      %p207 = scmp.eq.s32.totalorder %s38, 1
      %p208 = por %p206, %p207
      %p210 = scmp.ne.s32.totalorder %s195, %s209
      %p211 = scmp.eq.s32.totalorder %s38, 0
      %p212 = por %p210, %p211
      %s214 = sadd.s32 %s213, 1
      %p217 = scmp.eq.s32.totalorder %s32, 1
      %p218 = scmp.ne.s32.totalorder %s213, %s215
      %p219 = scmp.eq.s32.totalorder %s32, 0
      %p220 = por %p218, %p219
      %p221 = scmp.ne.s32.totalorder %s213, %s215
      %p222 = scmp.eq.s32.totalorder %s37, 1
      %p223 = por %p221, %p222
      %p224 = scmp.ne.s32.totalorder %s215, %s216
      %p225 = scmp.eq.s32.totalorder %s37, 0
      %p226 = por %p224, %p225
      %p227 = scmp.ne.s32.totalorder %s215, %s216
      %p228 = scmp.eq.s32.totalorder %s38, 1
      %p229 = por %p227, %p228
      %p231 = scmp.ne.s32.totalorder %s216, %s230
      %p232 = scmp.eq.s32.totalorder %s38, 0
      %p233 = por %p231, %p232
      %s235 = sadd.s32 %s234, 1
      %p238 = scmp.eq.s32.totalorder %s32, 1
      %p239 = scmp.ne.s32.totalorder %s234, %s236
      %p240 = scmp.eq.s32.totalorder %s32, 0
      %p241 = por %p239, %p240
      %p242 = scmp.ne.s32.totalorder %s234, %s236
      %p243 = scmp.eq.s32.totalorder %s37, 1
      %p244 = por %p242, %p243
      %p245 = scmp.ne.s32.totalorder %s236, %s237
      %p246 = scmp.eq.s32.totalorder %s37, 0
      %p247 = por %p245, %p246
      %p248 = scmp.ne.s32.totalorder %s236, %s237
      %p249 = scmp.eq.s32.totalorder %s38, 1
      %p250 = por %p248, %p249
      %p252 = scmp.ne.s32.totalorder %s237, %s251
      %p253 = scmp.eq.s32.totalorder %s38, 0
      %p254 = por %p252, %p253
      %s256 = sadd.s32 %s255, 1
      %p259 = scmp.eq.s32.totalorder %s32, 1
      %p260 = scmp.ne.s32.totalorder %s255, %s257
      %p261 = scmp.eq.s32.totalorder %s32, 0
      %p262 = por %p260, %p261
      %p263 = scmp.ne.s32.totalorder %s255, %s257
      %p264 = scmp.eq.s32.totalorder %s37, 1
      %p265 = por %p263, %p264
      %p266 = scmp.ne.s32.totalorder %s257, %s258
      %p267 = scmp.eq.s32.totalorder %s37, 0
      %p268 = por %p266, %p267
      %p269 = scmp.ne.s32.totalorder %s257, %s258
      %p270 = scmp.eq.s32.totalorder %s38, 1
      %p271 = por %p269, %p270
      %p273 = scmp.ne.s32.totalorder %s258, %s272
      %p274 = scmp.eq.s32.totalorder %s38, 0
      %p275 = por %p273, %p274
      %s277 = sadd.s32 %s276, 1
      %p280 = scmp.eq.s32.totalorder %s32, 1
      %p281 = scmp.ne.s32.totalorder %s276, %s278
      %p282 = scmp.eq.s32.totalorder %s32, 0
      %p283 = por %p281, %p282
      %p284 = scmp.ne.s32.totalorder %s276, %s278
      %p285 = scmp.eq.s32.totalorder %s37, 1
      %p286 = por %p284, %p285
      %p287 = scmp.ne.s32.totalorder %s278, %s279
      %p288 = scmp.eq.s32.totalorder %s37, 0
      %p289 = por %p287, %p288
      %p290 = scmp.ne.s32.totalorder %s278, %s279
      %p291 = scmp.eq.s32.totalorder %s38, 1
      %p292 = por %p290, %p291
      %p294 = scmp.ne.s32.totalorder %s279, %s293
      %p295 = scmp.eq.s32.totalorder %s38, 0
      %p296 = por %p294, %p295
      %s298 = sadd.s32 %s297, 1
      %p301 = scmp.eq.s32.totalorder %s32, 1
      %p302 = scmp.ne.s32.totalorder %s297, %s299
      %p303 = scmp.eq.s32.totalorder %s32, 0
      %p304 = por %p302, %p303
      %p305 = scmp.ne.s32.totalorder %s297, %s299
      %p306 = scmp.eq.s32.totalorder %s37, 1
      %p307 = por %p305, %p306
      %p308 = scmp.ne.s32.totalorder %s299, %s300
      %p309 = scmp.eq.s32.totalorder %s37, 0
      %p310 = por %p308, %p309
      %p311 = scmp.ne.s32.totalorder %s299, %s300
      %p312 = scmp.eq.s32.totalorder %s38, 1
      %p313 = por %p311, %p312
      %p315 = scmp.ne.s32.totalorder %s300, %s314
      %p316 = scmp.eq.s32.totalorder %s38, 0
      %p317 = por %p315, %p316
      %s319 = sadd.s32 %s318, 1
      %p322 = scmp.eq.s32.totalorder %s32, 1
      %p323 = scmp.ne.s32.totalorder %s318, %s320
      %p324 = scmp.eq.s32.totalorder %s32, 0
      %p325 = por %p323, %p324
      %p326 = scmp.ne.s32.totalorder %s318, %s320
      %p327 = scmp.eq.s32.totalorder %s37, 1
      %p328 = por %p326, %p327
      %p329 = scmp.ne.s32.totalorder %s320, %s321
      %p330 = scmp.eq.s32.totalorder %s37, 0
      %p331 = por %p329, %p330
      %p332 = scmp.ne.s32.totalorder %s320, %s321
      %p333 = scmp.eq.s32.totalorder %s38, 1
      %p334 = por %p332, %p333
      %p336 = scmp.ne.s32.totalorder %s321, %s335
      %p337 = scmp.eq.s32.totalorder %s38, 0
      %p338 = por %p336, %p337
      %s340 = sadd.s32 %s339, 1
      %p343 = scmp.eq.s32.totalorder %s32, 1
      %p344 = scmp.ne.s32.totalorder %s339, %s341
      %p345 = scmp.eq.s32.totalorder %s32, 0
      %p346 = por %p344, %p345
      %p347 = scmp.ne.s32.totalorder %s339, %s341
      %p348 = scmp.eq.s32.totalorder %s37, 1
      %p349 = por %p347, %p348
      %p350 = scmp.ne.s32.totalorder %s341, %s342
      %p351 = scmp.eq.s32.totalorder %s37, 0
      %p352 = por %p350, %p351
      %p353 = scmp.ne.s32.totalorder %s341, %s342
      %p354 = scmp.eq.s32.totalorder %s38, 1
      %p355 = por %p353, %p354
      %p357 = scmp.ne.s32.totalorder %s342, %s356
      %p358 = scmp.eq.s32.totalorder %s38, 0
      %p359 = por %p357, %p358
      %s361 = sadd.s32 %s360, 1
      %p364 = scmp.eq.s32.totalorder %s32, 1
      %p365 = scmp.ne.s32.totalorder %s360, %s362
      %p366 = scmp.eq.s32.totalorder %s32, 0
      %p367 = por %p365, %p366
      %p368 = scmp.ne.s32.totalorder %s360, %s362
      %p369 = scmp.eq.s32.totalorder %s37, 1
      %p370 = por %p368, %p369
      %p371 = scmp.ne.s32.totalorder %s362, %s363
      %p372 = scmp.eq.s32.totalorder %s37, 0
      %p373 = por %p371, %p372
      %p374 = scmp.ne.s32.totalorder %s362, %s363
      %p375 = scmp.eq.s32.totalorder %s38, 1
      %p376 = por %p374, %p375
      %p378 = scmp.ne.s32.totalorder %s363, %s377
      %p379 = scmp.eq.s32.totalorder %s38, 0
      %p380 = por %p378, %p379
      %s382 = sadd.s32 %s381, 1
      %p385 = scmp.eq.s32.totalorder %s32, 1
      %p386 = scmp.ne.s32.totalorder %s381, %s383
      %p387 = scmp.eq.s32.totalorder %s32, 0
      %p388 = por %p386, %p387
      %p389 = scmp.ne.s32.totalorder %s381, %s383
      %p390 = scmp.eq.s32.totalorder %s37, 1
      %p391 = por %p389, %p390
      %p392 = scmp.ne.s32.totalorder %s383, %s384
      %p393 = scmp.eq.s32.totalorder %s37, 0
      %p394 = por %p392, %p393
      %p395 = scmp.ne.s32.totalorder %s383, %s384
      %p396 = scmp.eq.s32.totalorder %s38, 1
      %p397 = por %p395, %p396
      %p399 = scmp.ne.s32.totalorder %s384, %s398
      %p400 = scmp.eq.s32.totalorder %s38, 0
      %p401 = por %p399, %p400
      %s403 = sadd.s32 %s402, 1
      %p406 = scmp.eq.s32.totalorder %s32, 1
      %p407 = scmp.ne.s32.totalorder %s402, %s404
      %p408 = scmp.eq.s32.totalorder %s32, 0
      %p409 = por %p407, %p408
      %p410 = scmp.ne.s32.totalorder %s402, %s404
      %p411 = scmp.eq.s32.totalorder %s37, 1
      %p412 = por %p410, %p411
      %p413 = scmp.ne.s32.totalorder %s404, %s405
      %p414 = scmp.eq.s32.totalorder %s37, 0
      %p415 = por %p413, %p414
      %p416 = scmp.ne.s32.totalorder %s404, %s405
      %p417 = scmp.eq.s32.totalorder %s38, 1
      %p418 = por %p416, %p417
      %p420 = scmp.ne.s32.totalorder %s405, %s419
      %p421 = scmp.eq.s32.totalorder %s38, 0
      %p422 = por %p420, %p421
      %s424 = sadd.s32 %s423, 1
      %p427 = scmp.eq.s32.totalorder %s32, 1
      %p428 = scmp.ne.s32.totalorder %s423, %s425
      %p429 = scmp.eq.s32.totalorder %s32, 0
      %p430 = por %p428, %p429
      %p431 = scmp.ne.s32.totalorder %s423, %s425
      %p432 = scmp.eq.s32.totalorder %s37, 1
      %p433 = por %p431, %p432
      %p434 = scmp.ne.s32.totalorder %s425, %s426
      %p435 = scmp.eq.s32.totalorder %s37, 0
      %p436 = por %p434, %p435
      %p437 = scmp.ne.s32.totalorder %s425, %s426
      %p438 = scmp.eq.s32.totalorder %s38, 1
      %p439 = por %p437, %p438
      %p441 = scmp.ne.s32.totalorder %s426, %s440
      %p442 = scmp.eq.s32.totalorder %s38, 0
      %p443 = por %p441, %p442
      %s445 = sadd.s32 %s444, 1
      %p448 = scmp.eq.s32.totalorder %s32, 1
      %p449 = scmp.ne.s32.totalorder %s444, %s446
      %p450 = scmp.eq.s32.totalorder %s32, 0
      %p451 = por %p449, %p450
      %p452 = scmp.ne.s32.totalorder %s444, %s446
      %p453 = scmp.eq.s32.totalorder %s37, 1
      %p454 = por %p452, %p453
      %p455 = scmp.ne.s32.totalorder %s446, %s447
      %p456 = scmp.eq.s32.totalorder %s37, 0
      %p457 = por %p455, %p456
      %p458 = scmp.ne.s32.totalorder %s446, %s447
      %p459 = scmp.eq.s32.totalorder %s38, 1
      %p460 = por %p458, %p459
      %p462 = scmp.ne.s32.totalorder %s447, %s461
      %p463 = scmp.eq.s32.totalorder %s38, 0
      %p464 = por %p462, %p463
      %s466 = sadd.s32 %s465, 1
      %p469 = scmp.eq.s32.totalorder %s32, 1
      %p470 = scmp.ne.s32.totalorder %s465, %s467
      %p471 = scmp.eq.s32.totalorder %s32, 0
      %p472 = por %p470, %p471
      %p473 = scmp.ne.s32.totalorder %s465, %s467
      %p474 = scmp.eq.s32.totalorder %s37, 1
      %p475 = por %p473, %p474
      %p476 = scmp.ne.s32.totalorder %s467, %s468
      %p477 = scmp.eq.s32.totalorder %s37, 0
      %p478 = por %p476, %p477
      %p479 = scmp.ne.s32.totalorder %s467, %s468
      %p480 = scmp.eq.s32.totalorder %s38, 1
      %p481 = por %p479, %p480
      %p483 = scmp.ne.s32.totalorder %s468, %s482
      %p484 = scmp.eq.s32.totalorder %s38, 0
      %p485 = por %p483, %p484
      %s486 = ssub.s32 %s32, %s39
      %p487 = scmp.eq.s32.totalorder %s486, 0
      %s489 = sadd.s32 %s488, 1
      %s490 = scalar_select %p487, %s488, %s489
      %p493 = pneg %p487
      %p494 = scmp.eq.s32.totalorder %s32, 1
      %p495 = por %p493, %p494
      %p496 = scmp.ne.s32.totalorder %s488, %s491
      %p497 = scmp.eq.s32.totalorder %s32, 0
      %p498 = por %p496, %p497
      %p499 = scmp.ne.s32.totalorder %s488, %s491
      %p500 = scmp.eq.s32.totalorder %s37, 1
      %p501 = por %p499, %p500
      %p502 = scmp.ne.s32.totalorder %s491, %s492
      %p503 = scmp.eq.s32.totalorder %s37, 0
      %p504 = por %p502, %p503
      %p505 = scmp.ne.s32.totalorder %s491, %s492
      %p506 = scmp.eq.s32.totalorder %s38, 1
      %p507 = por %p505, %p506
      %p509 = scmp.ne.s32.totalorder %s492, %s508
      %p510 = scmp.eq.s32.totalorder %s38, 0
      %p511 = por %p509, %p510
      %p512 = scmp.le.s32.totalorder 1, %s32
      %p513 = scmp.lt.s32.totalorder %s32, 3
      %p514 = pnand %p512, %p513
      %p515 = pneg %p514
      // Predicated region
      $region9: #{df_forward.1} parent=5 // pred_check
        _
      $region10: #{df_forward.1} parent=5 // pred_check_branch
        %517 = sbr.rel (%p514) target = $region12
      $region11: #{df_forward.1} parent=5 // pred_region
        %s518 = ssub.s32 %s32, 1
        // Predicated region
        $region13: #{df_forward.1} parent=11 // pred_check
          %p519 = pneg %p79
        $region14: #{df_forward.1} parent=11 // pred_check_branch
          %521 = sbr.rel (%p519) target = $region16
        $region15: #{df_forward.1} parent=11 // pred_region
          _
        $region16: #{df_forward.1} parent=11 // pred_fallthru
          _
        // Predicated region
        $region17: #{df_forward.1} parent=11 // pred_check
          %p522 = pneg %p100
        $region18: #{df_forward.1} parent=11 // pred_check_branch
          %524 = sbr.rel (%p522) target = $region20
        $region19: #{df_forward.1} parent=11 // pred_region
          _
        $region20: #{df_forward.1} parent=11 // pred_fallthru
          _
        // Predicated region
        $region21: #{df_forward.1} parent=11 // pred_check
          %p525 = pneg %p121
        $region22: #{df_forward.1} parent=11 // pred_check_branch
          %527 = sbr.rel (%p525) target = $region24
        $region23: #{df_forward.1} parent=11 // pred_region
          _
        $region24: #{df_forward.1} parent=11 // pred_fallthru
          _
        // Predicated region
        $region25: #{df_forward.1} parent=11 // pred_check
          %p528 = pneg %p142
        $region26: #{df_forward.1} parent=11 // pred_check_branch
          %530 = sbr.rel (%p528) target = $region28
        $region27: #{df_forward.1} parent=11 // pred_region
          _
        $region28: #{df_forward.1} parent=11 // pred_fallthru
          _
        // Predicated region
        $region29: #{df_forward.1} parent=11 // pred_check
          %p531 = pneg %p163
        $region30: #{df_forward.1} parent=11 // pred_check_branch
          %533 = sbr.rel (%p531) target = $region32
        $region31: #{df_forward.1} parent=11 // pred_region
          _
        $region32: #{df_forward.1} parent=11 // pred_fallthru
          _
        // Predicated region
        $region33: #{df_forward.1} parent=11 // pred_check
          %p534 = pneg %p184
        $region34: #{df_forward.1} parent=11 // pred_check_branch
          %536 = sbr.rel (%p534) target = $region36
        $region35: #{df_forward.1} parent=11 // pred_region
          _
        $region36: #{df_forward.1} parent=11 // pred_fallthru
          _
        // Predicated region
        $region37: #{df_forward.1} parent=11 // pred_check
          %p537 = pneg %p205
        $region38: #{df_forward.1} parent=11 // pred_check_branch
          %539 = sbr.rel (%p537) target = $region40
        $region39: #{df_forward.1} parent=11 // pred_region
          _
        $region40: #{df_forward.1} parent=11 // pred_fallthru
          _
        // Predicated region
        $region41: #{df_forward.1} parent=11 // pred_check
          %p540 = pneg %p226
        $region42: #{df_forward.1} parent=11 // pred_check_branch
          %542 = sbr.rel (%p540) target = $region44
        $region43: #{df_forward.1} parent=11 // pred_region
          _
        $region44: #{df_forward.1} parent=11 // pred_fallthru
          _
        // Predicated region
        $region45: #{df_forward.1} parent=11 // pred_check
          %p543 = pneg %p247
        $region46: #{df_forward.1} parent=11 // pred_check_branch
          %545 = sbr.rel (%p543) target = $region48
        $region47: #{df_forward.1} parent=11 // pred_region
          _
        $region48: #{df_forward.1} parent=11 // pred_fallthru
          _
        // Predicated region
        $region49: #{df_forward.1} parent=11 // pred_check
          %p546 = pneg %p268
        $region50: #{df_forward.1} parent=11 // pred_check_branch
          %548 = sbr.rel (%p546) target = $region52
        $region51: #{df_forward.1} parent=11 // pred_region
          _
        $region52: #{df_forward.1} parent=11 // pred_fallthru
          _
        // Predicated region
        $region53: #{df_forward.1} parent=11 // pred_check
          %p549 = pneg %p289
        $region54: #{df_forward.1} parent=11 // pred_check_branch
          %551 = sbr.rel (%p549) target = $region56
        $region55: #{df_forward.1} parent=11 // pred_region
          _
        $region56: #{df_forward.1} parent=11 // pred_fallthru
          _
        // Predicated region
        $region57: #{df_forward.1} parent=11 // pred_check
          %p552 = pneg %p310
        $region58: #{df_forward.1} parent=11 // pred_check_branch
          %554 = sbr.rel (%p552) target = $region60
        $region59: #{df_forward.1} parent=11 // pred_region
          _
        $region60: #{df_forward.1} parent=11 // pred_fallthru
          _
        // Predicated region
        $region61: #{df_forward.1} parent=11 // pred_check
          %p555 = pneg %p331
        $region62: #{df_forward.1} parent=11 // pred_check_branch
          %557 = sbr.rel (%p555) target = $region64
        $region63: #{df_forward.1} parent=11 // pred_region
          %559 = vsyncadd [#allocation6], 0
          %s560 = sshll.u32 %s13, 4
          %s561 = int_to_ptr.hbm [resolvable:$true] %s560
          %s562 = sshll.u32 [#allocation5], 4
          %s563 = int_to_ptr.vmem [resolvable:$true] %s562
          %568 = dma.hbm_to_vmem [thread:$0]  %s561, 16384, %s563, [#allocation6], 128, 128, 8
        $region64: #{df_forward.1} parent=11 // pred_fallthru
          _
        // Predicated region
        $region65: #{df_forward.1} parent=11 // pred_check
          %p569 = pneg %p352
        $region66: #{df_forward.1} parent=11 // pred_check_branch
          %571 = sbr.rel (%p569) target = $region68
        $region67: #{df_forward.1} parent=11 // pred_region
          _
        $region68: #{df_forward.1} parent=11 // pred_fallthru
          _
        // Predicated region
        $region69: #{df_forward.1} parent=11 // pred_check
          %p572 = pneg %p373
        $region70: #{df_forward.1} parent=11 // pred_check_branch
          %574 = sbr.rel (%p572) target = $region72
        $region71: #{df_forward.1} parent=11 // pred_region
          %576 = vsyncadd [#allocation9], 0
          %s577 = sshll.u32 %s15, 4
          %s578 = int_to_ptr.hbm [resolvable:$true] %s577
          %s579 = sshll.u32 [#allocation8], 4
          %s580 = int_to_ptr.vmem [resolvable:$true] %s579
          %585 = dma.hbm_to_vmem [thread:$0]  %s578, 8192, %s580, [#allocation9], 256, 256, 16
        $region72: #{df_forward.1} parent=11 // pred_fallthru
          _
        // Predicated region
        $region73: #{df_forward.1} parent=11 // pred_check
          %p586 = pneg %p394
        $region74: #{df_forward.1} parent=11 // pred_check_branch
          %588 = sbr.rel (%p586) target = $region76
        $region75: #{df_forward.1} parent=11 // pred_region
          _
        $region76: #{df_forward.1} parent=11 // pred_fallthru
          _
        // Predicated region
        $region77: #{df_forward.1} parent=11 // pred_check
          %p589 = pneg %p415
        $region78: #{df_forward.1} parent=11 // pred_check_branch
          %591 = sbr.rel (%p589) target = $region80
        $region79: #{df_forward.1} parent=11 // pred_region
          %593 = vsyncadd [#allocation9], 0
          %s594 = sshll.u32 %s17, 4
          %s595 = int_to_ptr.hbm [resolvable:$true] %s594
          %s596 = sshll.u32 [#allocation10], 4
          %s597 = int_to_ptr.vmem [resolvable:$true] %s596
          %602 = dma.hbm_to_vmem [thread:$0]  %s595, 16384, %s597, [#allocation9], 256, 256, 16
        $region80: #{df_forward.1} parent=11 // pred_fallthru
          _
        // Predicated region
        $region81: #{df_forward.1} parent=11 // pred_check
          %p603 = pneg %p436
        $region82: #{df_forward.1} parent=11 // pred_check_branch
          %605 = sbr.rel (%p603) target = $region84
        $region83: #{df_forward.1} parent=11 // pred_region
          _
        $region84: #{df_forward.1} parent=11 // pred_fallthru
          _
        // Predicated region
        $region85: #{df_forward.1} parent=11 // pred_check
          %p606 = pneg %p457
        $region86: #{df_forward.1} parent=11 // pred_check_branch
          %608 = sbr.rel (%p606) target = $region88
        $region87: #{df_forward.1} parent=11 // pred_region
          _
        $region88: #{df_forward.1} parent=11 // pred_fallthru
          _
        // Predicated region
        $region89: #{df_forward.1} parent=11 // pred_check
          %p609 = pneg %p478
        $region90: #{df_forward.1} parent=11 // pred_check_branch
          %611 = sbr.rel (%p609) target = $region92
        $region91: #{df_forward.1} parent=11 // pred_region
          _
        $region92: #{df_forward.1} parent=11 // pred_fallthru
          _
      $region12: #{df_forward.1} parent=5 // pred_fallthru
        _
      %p612 = scmp.lt.s32.totalorder %s32, 2
      // Predicated region
      $region93: #{df_forward.1} parent=5 // pred_check
        %p613 = pneg %p612
      $region94: #{df_forward.1} parent=5 // pred_check_branch
        %615 = sbr.rel (%p613) target = $region96
      $region95: #{df_forward.1} parent=5 // pred_region
        // Predicated region
        $region97: #{df_forward.1} parent=95 // pred_check
          %p616 = pneg %p52
        $region98: #{df_forward.1} parent=95 // pred_check_branch
          %618 = sbr.rel (%p616) target = $region100
        $region99: #{df_forward.1} parent=95 // pred_region
          %p619 = scmp.lt.s32.totalorder %s32, 1
          %s620 = scalar_select %p619, %s32, 1
          %s621 = smul.addr %s620, 16
          %s622 = smul.addr %s621, 8
          %s623 = scalar_lea.vmem %s0, %s622
        $region100: #{df_forward.1} parent=95 // pred_fallthru
          _
      $region96: #{df_forward.1} parent=5 // pred_fallthru
        _
      %p624 = scmp.le.s32.totalorder 1, %s32
      %p625 = scmp.lt.s32.totalorder %s32, 3
      %p626 = pnand %p624, %p625
      %p627 = pneg %p626
      // Predicated region
      $region101: #{df_forward.1} parent=5 // pred_check
        _
      $region102: #{df_forward.1} parent=5 // pred_check_branch
        %629 = sbr.rel (%p626) target = $region104
      $region103: #{df_forward.1} parent=5 // pred_region
        %s630 = ssub.s32 %s32, 1
        // Predicated region
        $region105: #{df_forward.1} parent=103 // pred_check
          %p631 = pneg %p331
        $region106: #{df_forward.1} parent=103 // pred_check_branch
          %633 = sbr.rel (%p631) target = $region108
        $region107: #{df_forward.1} parent=103 // pred_region
          %635 = dma.done [#allocation6], 16384
        $region108: #{df_forward.1} parent=103 // pred_fallthru
          _
        // Predicated region
        $region109: #{df_forward.1} parent=103 // pred_check
          %p636 = pneg %p373
        $region110: #{df_forward.1} parent=103 // pred_check_branch
          %638 = sbr.rel (%p636) target = $region112
        $region111: #{df_forward.1} parent=103 // pred_region
          %640 = dma.done [#allocation9], 8192
        $region112: #{df_forward.1} parent=103 // pred_fallthru
          _
        // Predicated region
        $region113: #{df_forward.1} parent=103 // pred_check
          %p641 = pneg %p415
        $region114: #{df_forward.1} parent=103 // pred_check_branch
          %643 = sbr.rel (%p641) target = $region116
        $region115: #{df_forward.1} parent=103 // pred_region
          %645 = dma.done [#allocation9], 16384
        $region116: #{df_forward.1} parent=103 // pred_fallthru
          _
        %p646 = scmp.lt.s32.totalorder %s37, 1
        %s647 = scalar_select %p646, %s37, 1
        %s648 = smul.addr %s647, 16
        %s649 = smul.addr %s648, 8
        %s650 = scalar_lea.vmem %s0, %s649
        %p651 = pneg %p58
        %p652 = pneg %p55
        %p653 = pneg %p79
        %p654 = pneg %p76
        %p655 = pneg %p100
        %p656 = pneg %p97
        %p657 = pneg %p121
        %p658 = pneg %p118
        %p659 = pneg %p142
        %p660 = pneg %p139
        %p661 = pneg %p163
        %p662 = pneg %p160
        %p663 = pneg %p184
        %p664 = pneg %p181
        %p665 = pneg %p205
        %p666 = pneg %p202
        %p667 = pneg %p226
        %p668 = pneg %p223
        %p669 = pneg %p247
        %p670 = pneg %p244
        %p671 = pneg %p268
        %p672 = pneg %p265
        %p673 = pneg %p289
        %p674 = pneg %p286
        %p675 = pneg %p310
        %p676 = pneg %p307
        %p677 = pneg %p331
        %p678 = pneg %p328
        %p679 = pneg %p352
        %p680 = pneg %p349
        %p681 = pneg %p373
        %p682 = pneg %p370
        %p683 = pneg %p394
        %p684 = pneg %p391
        %p685 = pneg %p415
        %p686 = pneg %p412
        %p687 = pneg %p436
        %p688 = pneg %p433
        %p689 = pneg %p457
        %p690 = pneg %p454
        %p691 = pneg %p478
        %p692 = pneg %p475
        %p693 = pneg %p504
        %p694 = pneg %p501
        %s695 = sand.u32 %s491, 1
        %s696 = scalar_lea.sflag [#allocation7], %s695
        %s697 = sand.u32 %s491, 1
        %s698 = scalar_lea.vmem [#allocation11], %s697
        %p699 = scmp.lt.s32.totalorder %s37, 1
        %s700 = scalar_select %p699, %s37, 1
        %s701 = smul.addr %s700, 16
        %s702 = smul.addr %s701, 8
        %s703 = scalar_lea.vmem %s0, %s702
        %v704 = vld [vmem:[%s703] sm:$0xff]
        %v705 = vld [vmem:[%s703 + $0x8] sm:$0xff]
        %v706 = vld [vmem:[%s703 + $0x10] sm:$0xff]
        %v707 = vld [vmem:[%s703 + $0x18] sm:$0xff]
        %v708 = vld [vmem:[%s703 + $0x20] sm:$0xff]
        %v709 = vld [vmem:[%s703 + $0x28] sm:$0xff]
        %v710 = vld [vmem:[%s703 + $0x30] sm:$0xff]
        %v711 = vld [vmem:[%s703 + $0x38] sm:$0xff]
        %v712 = vld [vmem:[%s703 + $0x40] sm:$0xff]
        %v713 = vld [vmem:[%s703 + $0x48] sm:$0xff]
        %v714 = vld [vmem:[%s703 + $0x50] sm:$0xff]
        %v715 = vld [vmem:[%s703 + $0x58] sm:$0xff]
        %v716 = vld [vmem:[%s703 + $0x60] sm:$0xff]
        %v717 = vld [vmem:[%s703 + $0x68] sm:$0xff]
        %v718 = vld [vmem:[%s703 + $0x70] sm:$0xff]
        %v719 = vld [vmem:[%s703 + $0x78] sm:$0xff]
        %v720 = vld [vmem:[%s1] sm:$0xf]
        %v721 = vld [vmem:[%s2] sm:$0x1]
        %vm722 = vcmask 2048
        %723 = vst.msk [vmem:[#allocation2] sm:$0x7] %vm722, 0.0
        %vm724 = vcmask 6147
        %725 = vst.msk [vmem:[#allocation2 + $0x100] sm:$0x78] %vm724, 0.0
        %vm742 = vcmask 1042432
        %v743 = vrot.slane %v704, 5
        %v744 = vrot.slane %v705, 5
        %v745 = vsel %vm742, %v743, %v744
        %v746 = vrot.slane %v706, 5
        %v747 = vsel %vm742, %v744, %v746
        %v748 = vrot.slane %v707, 5
        %v749 = vsel %vm742, %v746, %v748
        %v750 = vrot.slane %v708, 5
        %v751 = vsel %vm742, %v748, %v750
        %v752 = vrot.slane %v709, 5
        %v753 = vsel %vm742, %v750, %v752
        %v754 = vrot.slane %v710, 5
        %v755 = vsel %vm742, %v752, %v754
        %v756 = vrot.slane %v711, 5
        %v757 = vsel %vm742, %v754, %v756
        %v758 = vrot.slane %v712, 5
        %v759 = vsel %vm742, %v756, %v758
        %v760 = vrot.slane %v713, 5
        %v761 = vsel %vm742, %v758, %v760
        %v762 = vrot.slane %v714, 5
        %v763 = vsel %vm742, %v760, %v762
        %v764 = vrot.slane %v715, 5
        %v765 = vsel %vm742, %v762, %v764
        %v766 = vrot.slane %v716, 5
        %v767 = vsel %vm742, %v764, %v766
        %v768 = vrot.slane %v717, 5
        %v769 = vsel %vm742, %v766, %v768
        %v770 = vrot.slane %v718, 5
        %v771 = vsel %vm742, %v768, %v770
        %v772 = vrot.slane %v719, 5
        %v773 = vsel %vm742, %v770, %v772
        %vm791 = vcmask 7171
        %792 = vst.msk [vmem:[#allocation2] sm:$0xf8] %vm791, %v743
        %vm793 = vcmask 7168
        %794 = vst.msk [vmem:[#allocation2 + $0x10] sm:$0xff] %vm793, %v745
        %795 = vst.msk [vmem:[#allocation2 + $0x20] sm:$0xff] %vm793, %v747
        %796 = vst.msk [vmem:[#allocation2 + $0x30] sm:$0xff] %vm793, %v749
        %797 = vst.msk [vmem:[#allocation2 + $0x40] sm:$0xff] %vm793, %v751
        %798 = vst.msk [vmem:[#allocation2 + $0x50] sm:$0xff] %vm793, %v753
        %799 = vst.msk [vmem:[#allocation2 + $0x60] sm:$0xff] %vm793, %v755
        %800 = vst.msk [vmem:[#allocation2 + $0x70] sm:$0xff] %vm793, %v757
        %801 = vst.msk [vmem:[#allocation2 + $0x80] sm:$0xff] %vm793, %v759
        %802 = vst.msk [vmem:[#allocation2 + $0x90] sm:$0xff] %vm793, %v761
        %803 = vst.msk [vmem:[#allocation2 + $0xa0] sm:$0xff] %vm793, %v763
        %804 = vst.msk [vmem:[#allocation2 + $0xb0] sm:$0xff] %vm793, %v765
        %805 = vst.msk [vmem:[#allocation2 + $0xc0] sm:$0xff] %vm793, %v767
        %806 = vst.msk [vmem:[#allocation2 + $0xd0] sm:$0xff] %vm793, %v769
        %807 = vst.msk [vmem:[#allocation2 + $0xe0] sm:$0xff] %vm793, %v771
        %808 = vst.msk [vmem:[#allocation2 + $0xf0] sm:$0xff] %vm793, %v773
        %809 = vst.msk [vmem:[#allocation2 + $0x100] sm:$0x7] %vm722, %v772
        %v810 = vunpack.c.l.bf16 %v720
        %v811 = vld [vmem:[#allocation2] sm:$0xff]
        %v812 = vld [vmem:[#allocation2 + $0x10] sm:$0xff]
        %v813 = vld [vmem:[#allocation2 + $0x20] sm:$0xff]
        %v814 = vld [vmem:[#allocation2 + $0x30] sm:$0xff]
        %v815 = vld [vmem:[#allocation2 + $0x40] sm:$0xff]
        %v816 = vld [vmem:[#allocation2 + $0x50] sm:$0xff]
        %v817 = vld [vmem:[#allocation2 + $0x60] sm:$0xff]
        %v818 = vld [vmem:[#allocation2 + $0x70] sm:$0xff]
        %v819 = vld [vmem:[#allocation2 + $0x80] sm:$0xff]
        %v820 = vld [vmem:[#allocation2 + $0x90] sm:$0xff]
        %v821 = vld [vmem:[#allocation2 + $0xa0] sm:$0xff]
        %v822 = vld [vmem:[#allocation2 + $0xb0] sm:$0xff]
        %v823 = vld [vmem:[#allocation2 + $0xc0] sm:$0xff]
        %v824 = vld [vmem:[#allocation2 + $0xd0] sm:$0xff]
        %v825 = vld [vmem:[#allocation2 + $0xe0] sm:$0xff]
        %v826 = vld [vmem:[#allocation2 + $0xf0] sm:$0xff]
        %828 = vset.pattern.permute.xlu0 0
        %829 = vperm.xlu0 %828, %v811
        %v830 = vpop.permute.xlu0 %829
        %833 = vset.pattern.permute.xlu0 0
        %834 = vperm.xlu0 %833, %v812
        %v835 = vpop.permute.xlu0 %834
        %838 = vset.pattern.permute.xlu0 0
        %839 = vperm.xlu0 %838, %v813
        %v840 = vpop.permute.xlu0 %839
        %843 = vset.pattern.permute.xlu0 0
        %844 = vperm.xlu0 %843, %v814
        %v845 = vpop.permute.xlu0 %844
        %848 = vset.pattern.permute.xlu0 0
        %849 = vperm.xlu0 %848, %v815
        %v850 = vpop.permute.xlu0 %849
        %853 = vset.pattern.permute.xlu0 0
        %854 = vperm.xlu0 %853, %v816
        %v855 = vpop.permute.xlu0 %854
        %858 = vset.pattern.permute.xlu0 0
        %859 = vperm.xlu0 %858, %v817
        %v860 = vpop.permute.xlu0 %859
        %863 = vset.pattern.permute.xlu0 0
        %864 = vperm.xlu0 %863, %v818
        %v865 = vpop.permute.xlu0 %864
        %868 = vset.pattern.permute.xlu0 0
        %869 = vperm.xlu0 %868, %v819
        %v870 = vpop.permute.xlu0 %869
        %873 = vset.pattern.permute.xlu0 0
        %874 = vperm.xlu0 %873, %v820
        %v875 = vpop.permute.xlu0 %874
        %878 = vset.pattern.permute.xlu0 0
        %879 = vperm.xlu0 %878, %v821
        %v880 = vpop.permute.xlu0 %879
        %883 = vset.pattern.permute.xlu0 0
        %884 = vperm.xlu0 %883, %v822
        %v885 = vpop.permute.xlu0 %884
        %888 = vset.pattern.permute.xlu0 0
        %889 = vperm.xlu0 %888, %v823
        %v890 = vpop.permute.xlu0 %889
        %893 = vset.pattern.permute.xlu0 0
        %894 = vperm.xlu0 %893, %v824
        %v895 = vpop.permute.xlu0 %894
        %898 = vset.pattern.permute.xlu0 0
        %899 = vperm.xlu0 %898, %v825
        %v900 = vpop.permute.xlu0 %899
        %903 = vset.pattern.permute.xlu0 0
        %904 = vperm.xlu0 %903, %v826
        %v905 = vpop.permute.xlu0 %904
        %v907 = vperm.slane %v810, 0
        %v908 = vmul.f32 %v830, %v907
        %v909 = vmul.f32 %v835, %v907
        %v910 = vmul.f32 %v840, %v907
        %v911 = vmul.f32 %v845, %v907
        %v912 = vmul.f32 %v850, %v907
        %v913 = vmul.f32 %v855, %v907
        %v914 = vmul.f32 %v860, %v907
        %v915 = vmul.f32 %v865, %v907
        %v916 = vmul.f32 %v870, %v907
        %v917 = vmul.f32 %v875, %v907
        %v918 = vmul.f32 %v880, %v907
        %v919 = vmul.f32 %v885, %v907
        %v920 = vmul.f32 %v890, %v907
        %v921 = vmul.f32 %v895, %v907
        %v922 = vmul.f32 %v900, %v907
        %v923 = vmul.f32 %v905, %v907
        %v924 = vadd.f32 %v908, 0.0
        %v925 = vadd.f32 %v909, 0.0
        %v926 = vadd.f32 %v910, 0.0
        %v927 = vadd.f32 %v911, 0.0
        %v928 = vadd.f32 %v912, 0.0
        %v929 = vadd.f32 %v913, 0.0
        %v930 = vadd.f32 %v914, 0.0
        %v931 = vadd.f32 %v915, 0.0
        %v932 = vadd.f32 %v916, 0.0
        %v933 = vadd.f32 %v917, 0.0
        %v934 = vadd.f32 %v918, 0.0
        %v935 = vadd.f32 %v919, 0.0
        %v936 = vadd.f32 %v920, 0.0
        %v937 = vadd.f32 %v921, 0.0
        %v938 = vadd.f32 %v922, 0.0
        %v939 = vadd.f32 %v923, 0.0
        %v940 = vld [vmem:[#allocation2] sm:$0xfe]
        %v941 = vld [vmem:[#allocation2 + $0x10] sm:$0xff]
        %v942 = vld [vmem:[#allocation2 + $0x20] sm:$0xff]
        %v943 = vld [vmem:[#allocation2 + $0x30] sm:$0xff]
        %v944 = vld [vmem:[#allocation2 + $0x40] sm:$0xff]
        %v945 = vld [vmem:[#allocation2 + $0x50] sm:$0xff]
        %v946 = vld [vmem:[#allocation2 + $0x60] sm:$0xff]
        %v947 = vld [vmem:[#allocation2 + $0x70] sm:$0xff]
        %v948 = vld [vmem:[#allocation2 + $0x80] sm:$0xff]
        %v949 = vld [vmem:[#allocation2 + $0x90] sm:$0xff]
        %v950 = vld [vmem:[#allocation2 + $0xa0] sm:$0xff]
        %v951 = vld [vmem:[#allocation2 + $0xb0] sm:$0xff]
        %v952 = vld [vmem:[#allocation2 + $0xc0] sm:$0xff]
        %v953 = vld [vmem:[#allocation2 + $0xd0] sm:$0xff]
        %v954 = vld [vmem:[#allocation2 + $0xe0] sm:$0xff]
        %v955 = vld [vmem:[#allocation2 + $0xf0] sm:$0xff]
        %v956 = vld [vmem:[#allocation2 + $0x100] sm:$0x1]
        %958 = vset.pattern.permute.xlu0 0
        %959 = vperm.xlu0 %958, %v940
        %v960 = vpop.permute.xlu0 %959
        %963 = vset.pattern.permute.xlu0 0
        %964 = vperm.xlu0 %963, %v941
        %v965 = vpop.permute.xlu0 %964
        %968 = vset.pattern.permute.xlu0 0
        %969 = vperm.xlu0 %968, %v942
        %v970 = vpop.permute.xlu0 %969
        %973 = vset.pattern.permute.xlu0 0
        %974 = vperm.xlu0 %973, %v943
        %v975 = vpop.permute.xlu0 %974
        %978 = vset.pattern.permute.xlu0 0
        %979 = vperm.xlu0 %978, %v944
        %v980 = vpop.permute.xlu0 %979
        %983 = vset.pattern.permute.xlu0 0
        %984 = vperm.xlu0 %983, %v945
        %v985 = vpop.permute.xlu0 %984
        %988 = vset.pattern.permute.xlu0 0
        %989 = vperm.xlu0 %988, %v946
        %v990 = vpop.permute.xlu0 %989
        %993 = vset.pattern.permute.xlu0 0
        %994 = vperm.xlu0 %993, %v947
        %v995 = vpop.permute.xlu0 %994
        %998 = vset.pattern.permute.xlu0 0
        %999 = vperm.xlu0 %998, %v948
        %v1000 = vpop.permute.xlu0 %999
        %1003 = vset.pattern.permute.xlu0 0
        %1004 = vperm.xlu0 %1003, %v949
        %v1005 = vpop.permute.xlu0 %1004
        %1008 = vset.pattern.permute.xlu0 0
        %1009 = vperm.xlu0 %1008, %v950
        %v1010 = vpop.permute.xlu0 %1009
        %1013 = vset.pattern.permute.xlu0 0
        %1014 = vperm.xlu0 %1013, %v951
        %v1015 = vpop.permute.xlu0 %1014
        %1018 = vset.pattern.permute.xlu0 0
        %1019 = vperm.xlu0 %1018, %v952
        %v1020 = vpop.permute.xlu0 %1019
        %1023 = vset.pattern.permute.xlu0 0
        %1024 = vperm.xlu0 %1023, %v953
        %v1025 = vpop.permute.xlu0 %1024
        %1028 = vset.pattern.permute.xlu0 0
        %1029 = vperm.xlu0 %1028, %v954
        %v1030 = vpop.permute.xlu0 %1029
        %1033 = vset.pattern.permute.xlu0 0
        %1034 = vperm.xlu0 %1033, %v955
        %v1035 = vpop.permute.xlu0 %1034
        %1038 = vset.pattern.permute.xlu0 0
        %1039 = vperm.xlu0 %1038, %v956
        %v1040 = vpop.permute.xlu0 %1039
        %v1042 = vperm.slane %v810, 1
        %v1043 = vmul.f32 %v960, %v1042
        %v1044 = vmul.f32 %v965, %v1042
        %v1045 = vmul.f32 %v970, %v1042
        %v1046 = vmul.f32 %v975, %v1042
        %v1047 = vmul.f32 %v980, %v1042
        %v1048 = vmul.f32 %v985, %v1042
        %v1049 = vmul.f32 %v990, %v1042
        %v1050 = vmul.f32 %v995, %v1042
        %v1051 = vmul.f32 %v1000, %v1042
        %v1052 = vmul.f32 %v1005, %v1042
        %v1053 = vmul.f32 %v1010, %v1042
        %v1054 = vmul.f32 %v1015, %v1042
        %v1055 = vmul.f32 %v1020, %v1042
        %v1056 = vmul.f32 %v1025, %v1042
        %v1057 = vmul.f32 %v1030, %v1042
        %v1058 = vmul.f32 %v1035, %v1042
        %v1059 = vmul.f32 %v1040, %v1042
        %vm1077 = vcmask 1046528
        %v1078 = vrot.slane %v1043, 1
        %v1079 = vrot.slane %v1044, 1
        %v1080 = vsel %vm1077, %v1078, %v1079
        %v1081 = vrot.slane %v1045, 1
        %v1082 = vsel %vm1077, %v1079, %v1081
        %v1083 = vrot.slane %v1046, 1
        %v1084 = vsel %vm1077, %v1081, %v1083
        %v1085 = vrot.slane %v1047, 1
        %v1086 = vsel %vm1077, %v1083, %v1085
        %v1087 = vrot.slane %v1048, 1
        %v1088 = vsel %vm1077, %v1085, %v1087
        %v1089 = vrot.slane %v1049, 1
        %v1090 = vsel %vm1077, %v1087, %v1089
        %v1091 = vrot.slane %v1050, 1
        %v1092 = vsel %vm1077, %v1089, %v1091
        %v1093 = vrot.slane %v1051, 1
        %v1094 = vsel %vm1077, %v1091, %v1093
        %v1095 = vrot.slane %v1052, 1
        %v1096 = vsel %vm1077, %v1093, %v1095
        %v1097 = vrot.slane %v1053, 1
        %v1098 = vsel %vm1077, %v1095, %v1097
        %v1099 = vrot.slane %v1054, 1
        %v1100 = vsel %vm1077, %v1097, %v1099
        %v1101 = vrot.slane %v1055, 1
        %v1102 = vsel %vm1077, %v1099, %v1101
        %v1103 = vrot.slane %v1056, 1
        %v1104 = vsel %vm1077, %v1101, %v1103
        %v1105 = vrot.slane %v1057, 1
        %v1106 = vsel %vm1077, %v1103, %v1105
        %v1107 = vrot.slane %v1058, 1
        %v1108 = vsel %vm1077, %v1105, %v1107
        %v1109 = vrot.slane %v1059, 1
        %v1110 = vsel %vm1077, %v1107, %v1109
        %v1127 = vadd.f32 %v924, %v1080
        %v1128 = vadd.f32 %v925, %v1082
        %v1129 = vadd.f32 %v926, %v1084
        %v1130 = vadd.f32 %v927, %v1086
        %v1131 = vadd.f32 %v928, %v1088
        %v1132 = vadd.f32 %v929, %v1090
        %v1133 = vadd.f32 %v930, %v1092
        %v1134 = vadd.f32 %v931, %v1094
        %v1135 = vadd.f32 %v932, %v1096
        %v1136 = vadd.f32 %v933, %v1098
        %v1137 = vadd.f32 %v934, %v1100
        %v1138 = vadd.f32 %v935, %v1102
        %v1139 = vadd.f32 %v936, %v1104
        %v1140 = vadd.f32 %v937, %v1106
        %v1141 = vadd.f32 %v938, %v1108
        %v1142 = vadd.f32 %v939, %v1110
        %v1143 = vld [vmem:[#allocation2] sm:$0xfc]
        %v1144 = vld [vmem:[#allocation2 + $0x100] sm:$0x3]
        %1146 = vset.pattern.permute.xlu0 0
        %1147 = vperm.xlu0 %1146, %v1143
        %v1148 = vpop.permute.xlu0 %1147
        %1151 = vset.pattern.permute.xlu0 0
        %1152 = vperm.xlu0 %1151, %v1144
        %v1153 = vpop.permute.xlu0 %1152
        %v1155 = vperm.slane %v810, 2
        %v1156 = vmul.f32 %v1148, %v1155
        %v1157 = vmul.f32 %v965, %v1155
        %v1158 = vmul.f32 %v970, %v1155
        %v1159 = vmul.f32 %v975, %v1155
        %v1160 = vmul.f32 %v980, %v1155
        %v1161 = vmul.f32 %v985, %v1155
        %v1162 = vmul.f32 %v990, %v1155
        %v1163 = vmul.f32 %v995, %v1155
        %v1164 = vmul.f32 %v1000, %v1155
        %v1165 = vmul.f32 %v1005, %v1155
        %v1166 = vmul.f32 %v1010, %v1155
        %v1167 = vmul.f32 %v1015, %v1155
        %v1168 = vmul.f32 %v1020, %v1155
        %v1169 = vmul.f32 %v1025, %v1155
        %v1170 = vmul.f32 %v1030, %v1155
        %v1171 = vmul.f32 %v1035, %v1155
        %v1172 = vmul.f32 %v1153, %v1155
        %vm1190 = vcmask 1045504
        %v1191 = vrot.slane %v1156, 2
        %v1192 = vrot.slane %v1157, 2
        %v1193 = vsel %vm1190, %v1191, %v1192
        %v1194 = vrot.slane %v1158, 2
        %v1195 = vsel %vm1190, %v1192, %v1194
        %v1196 = vrot.slane %v1159, 2
        %v1197 = vsel %vm1190, %v1194, %v1196
        %v1198 = vrot.slane %v1160, 2
        %v1199 = vsel %vm1190, %v1196, %v1198
        %v1200 = vrot.slane %v1161, 2
        %v1201 = vsel %vm1190, %v1198, %v1200
        %v1202 = vrot.slane %v1162, 2
        %v1203 = vsel %vm1190, %v1200, %v1202
        %v1204 = vrot.slane %v1163, 2
        %v1205 = vsel %vm1190, %v1202, %v1204
        %v1206 = vrot.slane %v1164, 2
        %v1207 = vsel %vm1190, %v1204, %v1206
        %v1208 = vrot.slane %v1165, 2
        %v1209 = vsel %vm1190, %v1206, %v1208
        %v1210 = vrot.slane %v1166, 2
        %v1211 = vsel %vm1190, %v1208, %v1210
        %v1212 = vrot.slane %v1167, 2
        %v1213 = vsel %vm1190, %v1210, %v1212
        %v1214 = vrot.slane %v1168, 2
        %v1215 = vsel %vm1190, %v1212, %v1214
        %v1216 = vrot.slane %v1169, 2
        %v1217 = vsel %vm1190, %v1214, %v1216
        %v1218 = vrot.slane %v1170, 2
        %v1219 = vsel %vm1190, %v1216, %v1218
        %v1220 = vrot.slane %v1171, 2
        %v1221 = vsel %vm1190, %v1218, %v1220
        %v1222 = vrot.slane %v1172, 2
        %v1223 = vsel %vm1190, %v1220, %v1222
        %v1240 = vadd.f32 %v1127, %v1193
        %v1241 = vadd.f32 %v1128, %v1195
        %v1242 = vadd.f32 %v1129, %v1197
        %v1243 = vadd.f32 %v1130, %v1199
        %v1244 = vadd.f32 %v1131, %v1201
        %v1245 = vadd.f32 %v1132, %v1203
        %v1246 = vadd.f32 %v1133, %v1205
        %v1247 = vadd.f32 %v1134, %v1207
        %v1248 = vadd.f32 %v1135, %v1209
        %v1249 = vadd.f32 %v1136, %v1211
        %v1250 = vadd.f32 %v1137, %v1213
        %v1251 = vadd.f32 %v1138, %v1215
        %v1252 = vadd.f32 %v1139, %v1217
        %v1253 = vadd.f32 %v1140, %v1219
        %v1254 = vadd.f32 %v1141, %v1221
        %v1255 = vadd.f32 %v1142, %v1223
        %v1256 = vld [vmem:[#allocation2] sm:$0xf8]
        %v1257 = vld [vmem:[#allocation2 + $0x100] sm:$0x7]
        %1259 = vset.pattern.permute.xlu0 0
        %1260 = vperm.xlu0 %1259, %v1256
        %v1261 = vpop.permute.xlu0 %1260
        %1264 = vset.pattern.permute.xlu0 0
        %1265 = vperm.xlu0 %1264, %v1257
        %v1266 = vpop.permute.xlu0 %1265
        %v1268 = vperm.slane %v810, 3
        %v1269 = vmul.f32 %v1261, %v1268
        %v1270 = vmul.f32 %v965, %v1268
        %v1271 = vmul.f32 %v970, %v1268
        %v1272 = vmul.f32 %v975, %v1268
        %v1273 = vmul.f32 %v980, %v1268
        %v1274 = vmul.f32 %v985, %v1268
        %v1275 = vmul.f32 %v990, %v1268
        %v1276 = vmul.f32 %v995, %v1268
        %v1277 = vmul.f32 %v1000, %v1268
        %v1278 = vmul.f32 %v1005, %v1268
        %v1279 = vmul.f32 %v1010, %v1268
        %v1280 = vmul.f32 %v1015, %v1268
        %v1281 = vmul.f32 %v1020, %v1268
        %v1282 = vmul.f32 %v1025, %v1268
        %v1283 = vmul.f32 %v1030, %v1268
        %v1284 = vmul.f32 %v1035, %v1268
        %v1285 = vmul.f32 %v1266, %v1268
        %vm1303 = vcmask 1044480
        %v1304 = vrot.slane %v1269, 3
        %v1305 = vrot.slane %v1270, 3
        %v1306 = vsel %vm1303, %v1304, %v1305
        %v1307 = vrot.slane %v1271, 3
        %v1308 = vsel %vm1303, %v1305, %v1307
        %v1309 = vrot.slane %v1272, 3
        %v1310 = vsel %vm1303, %v1307, %v1309
        %v1311 = vrot.slane %v1273, 3
        %v1312 = vsel %vm1303, %v1309, %v1311
        %v1313 = vrot.slane %v1274, 3
        %v1314 = vsel %vm1303, %v1311, %v1313
        %v1315 = vrot.slane %v1275, 3
        %v1316 = vsel %vm1303, %v1313, %v1315
        %v1317 = vrot.slane %v1276, 3
        %v1318 = vsel %vm1303, %v1315, %v1317
        %v1319 = vrot.slane %v1277, 3
        %v1320 = vsel %vm1303, %v1317, %v1319
        %v1321 = vrot.slane %v1278, 3
        %v1322 = vsel %vm1303, %v1319, %v1321
        %v1323 = vrot.slane %v1279, 3
        %v1324 = vsel %vm1303, %v1321, %v1323
        %v1325 = vrot.slane %v1280, 3
        %v1326 = vsel %vm1303, %v1323, %v1325
        %v1327 = vrot.slane %v1281, 3
        %v1328 = vsel %vm1303, %v1325, %v1327
        %v1329 = vrot.slane %v1282, 3
        %v1330 = vsel %vm1303, %v1327, %v1329
        %v1331 = vrot.slane %v1283, 3
        %v1332 = vsel %vm1303, %v1329, %v1331
        %v1333 = vrot.slane %v1284, 3
        %v1334 = vsel %vm1303, %v1331, %v1333
        %v1335 = vrot.slane %v1285, 3
        %v1336 = vsel %vm1303, %v1333, %v1335
        %v1353 = vadd.f32 %v1240, %v1306
        %v1354 = vadd.f32 %v1241, %v1308
        %v1355 = vadd.f32 %v1242, %v1310
        %v1356 = vadd.f32 %v1243, %v1312
        %v1357 = vadd.f32 %v1244, %v1314
        %v1358 = vadd.f32 %v1245, %v1316
        %v1359 = vadd.f32 %v1246, %v1318
        %v1360 = vadd.f32 %v1247, %v1320
        %v1361 = vadd.f32 %v1248, %v1322
        %v1362 = vadd.f32 %v1249, %v1324
        %v1363 = vadd.f32 %v1250, %v1326
        %v1364 = vadd.f32 %v1251, %v1328
        %v1365 = vadd.f32 %v1252, %v1330
        %v1366 = vadd.f32 %v1253, %v1332
        %v1367 = vadd.f32 %v1254, %v1334
        %v1368 = vadd.f32 %v1255, %v1336
        %v1369 = vld [vmem:[#allocation2] sm:$0xf0]
        %v1370 = vld [vmem:[#allocation2 + $0x100] sm:$0xf]
        %1372 = vset.pattern.permute.xlu0 0
        %1373 = vperm.xlu0 %1372, %v1369
        %v1374 = vpop.permute.xlu0 %1373
        %1377 = vset.pattern.permute.xlu0 0
        %1378 = vperm.xlu0 %1377, %v1370
        %v1379 = vpop.permute.xlu0 %1378
        %v1381 = vperm.slane %v810, 4
        %v1382 = vmul.f32 %v1374, %v1381
        %v1383 = vmul.f32 %v965, %v1381
        %v1384 = vmul.f32 %v970, %v1381
        %v1385 = vmul.f32 %v975, %v1381
        %v1386 = vmul.f32 %v980, %v1381
        %v1387 = vmul.f32 %v985, %v1381
        %v1388 = vmul.f32 %v990, %v1381
        %v1389 = vmul.f32 %v995, %v1381
        %v1390 = vmul.f32 %v1000, %v1381
        %v1391 = vmul.f32 %v1005, %v1381
        %v1392 = vmul.f32 %v1010, %v1381
        %v1393 = vmul.f32 %v1015, %v1381
        %v1394 = vmul.f32 %v1020, %v1381
        %v1395 = vmul.f32 %v1025, %v1381
        %v1396 = vmul.f32 %v1030, %v1381
        %v1397 = vmul.f32 %v1035, %v1381
        %v1398 = vmul.f32 %v1379, %v1381
        %vm1416 = vcmask 1043456
        %v1417 = vrot.slane %v1382, 4
        %v1418 = vrot.slane %v1383, 4
        %v1419 = vsel %vm1416, %v1417, %v1418
        %v1420 = vrot.slane %v1384, 4
        %v1421 = vsel %vm1416, %v1418, %v1420
        %v1422 = vrot.slane %v1385, 4
        %v1423 = vsel %vm1416, %v1420, %v1422
        %v1424 = vrot.slane %v1386, 4
        %v1425 = vsel %vm1416, %v1422, %v1424
        %v1426 = vrot.slane %v1387, 4
        %v1427 = vsel %vm1416, %v1424, %v1426
        %v1428 = vrot.slane %v1388, 4
        %v1429 = vsel %vm1416, %v1426, %v1428
        %v1430 = vrot.slane %v1389, 4
        %v1431 = vsel %vm1416, %v1428, %v1430
        %v1432 = vrot.slane %v1390, 4
        %v1433 = vsel %vm1416, %v1430, %v1432
        %v1434 = vrot.slane %v1391, 4
        %v1435 = vsel %vm1416, %v1432, %v1434
        %v1436 = vrot.slane %v1392, 4
        %v1437 = vsel %vm1416, %v1434, %v1436
        %v1438 = vrot.slane %v1393, 4
        %v1439 = vsel %vm1416, %v1436, %v1438
        %v1440 = vrot.slane %v1394, 4
        %v1441 = vsel %vm1416, %v1438, %v1440
        %v1442 = vrot.slane %v1395, 4
        %v1443 = vsel %vm1416, %v1440, %v1442
        %v1444 = vrot.slane %v1396, 4
        %v1445 = vsel %vm1416, %v1442, %v1444
        %v1446 = vrot.slane %v1397, 4
        %v1447 = vsel %vm1416, %v1444, %v1446
        %v1448 = vrot.slane %v1398, 4
        %v1449 = vsel %vm1416, %v1446, %v1448
        %v1466 = vadd.f32 %v1353, %v1419
        %v1467 = vadd.f32 %v1354, %v1421
        %v1468 = vadd.f32 %v1355, %v1423
        %v1469 = vadd.f32 %v1356, %v1425
        %v1470 = vadd.f32 %v1357, %v1427
        %v1471 = vadd.f32 %v1358, %v1429
        %v1472 = vadd.f32 %v1359, %v1431
        %v1473 = vadd.f32 %v1360, %v1433
        %v1474 = vadd.f32 %v1361, %v1435
        %v1475 = vadd.f32 %v1362, %v1437
        %v1476 = vadd.f32 %v1363, %v1439
        %v1477 = vadd.f32 %v1364, %v1441
        %v1478 = vadd.f32 %v1365, %v1443
        %v1479 = vadd.f32 %v1366, %v1445
        %v1480 = vadd.f32 %v1367, %v1447
        %v1481 = vadd.f32 %v1368, %v1449
        %v1482 = vld [vmem:[#allocation2] sm:$0xe0]
        %v1483 = vld [vmem:[#allocation2 + $0x100] sm:$0x1f]
        %1485 = vset.pattern.permute.xlu0 0
        %1486 = vperm.xlu0 %1485, %v1482
        %v1487 = vpop.permute.xlu0 %1486
        %1490 = vset.pattern.permute.xlu0 0
        %1491 = vperm.xlu0 %1490, %v1483
        %v1492 = vpop.permute.xlu0 %1491
        %v1494 = vperm.slane %v810, 5
        %v1495 = vmul.f32 %v1487, %v1494
        %v1496 = vmul.f32 %v965, %v1494
        %v1497 = vmul.f32 %v970, %v1494
        %v1498 = vmul.f32 %v975, %v1494
        %v1499 = vmul.f32 %v980, %v1494
        %v1500 = vmul.f32 %v985, %v1494
        %v1501 = vmul.f32 %v990, %v1494
        %v1502 = vmul.f32 %v995, %v1494
        %v1503 = vmul.f32 %v1000, %v1494
        %v1504 = vmul.f32 %v1005, %v1494
        %v1505 = vmul.f32 %v1010, %v1494
        %v1506 = vmul.f32 %v1015, %v1494
        %v1507 = vmul.f32 %v1020, %v1494
        %v1508 = vmul.f32 %v1025, %v1494
        %v1509 = vmul.f32 %v1030, %v1494
        %v1510 = vmul.f32 %v1035, %v1494
        %v1511 = vmul.f32 %v1492, %v1494
        %v1529 = vrot.slane %v1495, 5
        %v1530 = vrot.slane %v1496, 5
        %v1531 = vsel %vm742, %v1529, %v1530
        %v1532 = vrot.slane %v1497, 5
        %v1533 = vsel %vm742, %v1530, %v1532
        %v1534 = vrot.slane %v1498, 5
        %v1535 = vsel %vm742, %v1532, %v1534
        %v1536 = vrot.slane %v1499, 5
        %v1537 = vsel %vm742, %v1534, %v1536
        %v1538 = vrot.slane %v1500, 5
        %v1539 = vsel %vm742, %v1536, %v1538
        %v1540 = vrot.slane %v1501, 5
        %v1541 = vsel %vm742, %v1538, %v1540
        %v1542 = vrot.slane %v1502, 5
        %v1543 = vsel %vm742, %v1540, %v1542
        %v1544 = vrot.slane %v1503, 5
        %v1545 = vsel %vm742, %v1542, %v1544
        %v1546 = vrot.slane %v1504, 5
        %v1547 = vsel %vm742, %v1544, %v1546
        %v1548 = vrot.slane %v1505, 5
        %v1549 = vsel %vm742, %v1546, %v1548
        %v1550 = vrot.slane %v1506, 5
        %v1551 = vsel %vm742, %v1548, %v1550
        %v1552 = vrot.slane %v1507, 5
        %v1553 = vsel %vm742, %v1550, %v1552
        %v1554 = vrot.slane %v1508, 5
        %v1555 = vsel %vm742, %v1552, %v1554
        %v1556 = vrot.slane %v1509, 5
        %v1557 = vsel %vm742, %v1554, %v1556
        %v1558 = vrot.slane %v1510, 5
        %v1559 = vsel %vm742, %v1556, %v1558
        %v1560 = vrot.slane %v1511, 5
        %v1561 = vsel %vm742, %v1558, %v1560
        %v1578 = vadd.f32 %v1466, %v1531
        %v1579 = vadd.f32 %v1467, %v1533
        %v1580 = vadd.f32 %v1468, %v1535
        %v1581 = vadd.f32 %v1469, %v1537
        %v1582 = vadd.f32 %v1470, %v1539
        %v1583 = vadd.f32 %v1471, %v1541
        %v1584 = vadd.f32 %v1472, %v1543
        %v1585 = vadd.f32 %v1473, %v1545
        %v1586 = vadd.f32 %v1474, %v1547
        %v1587 = vadd.f32 %v1475, %v1549
        %v1588 = vadd.f32 %v1476, %v1551
        %v1589 = vadd.f32 %v1477, %v1553
        %v1590 = vadd.f32 %v1478, %v1555
        %v1591 = vadd.f32 %v1479, %v1557
        %v1592 = vadd.f32 %v1480, %v1559
        %v1593 = vadd.f32 %v1481, %v1561
        %v1594 = vld [vmem:[#allocation2] sm:$0xc0]
        %v1595 = vld [vmem:[#allocation2 + $0x100] sm:$0x3f]
        %1597 = vset.pattern.permute.xlu0 0
        %1598 = vperm.xlu0 %1597, %v1594
        %v1599 = vpop.permute.xlu0 %1598
        %1602 = vset.pattern.permute.xlu0 0
        %1603 = vperm.xlu0 %1602, %v1595
        %v1604 = vpop.permute.xlu0 %1603
        %v1606 = vperm.slane %v810, 6
        %v1607 = vmul.f32 %v1599, %v1606
        %v1608 = vmul.f32 %v965, %v1606
        %v1609 = vmul.f32 %v970, %v1606
        %v1610 = vmul.f32 %v975, %v1606
        %v1611 = vmul.f32 %v980, %v1606
        %v1612 = vmul.f32 %v985, %v1606
        %v1613 = vmul.f32 %v990, %v1606
        %v1614 = vmul.f32 %v995, %v1606
        %v1615 = vmul.f32 %v1000, %v1606
        %v1616 = vmul.f32 %v1005, %v1606
        %v1617 = vmul.f32 %v1010, %v1606
        %v1618 = vmul.f32 %v1015, %v1606
        %v1619 = vmul.f32 %v1020, %v1606
        %v1620 = vmul.f32 %v1025, %v1606
        %v1621 = vmul.f32 %v1030, %v1606
        %v1622 = vmul.f32 %v1035, %v1606
        %v1623 = vmul.f32 %v1604, %v1606
        %vm1641 = vcmask 1041408
        %v1642 = vrot.slane %v1607, 6
        %v1643 = vrot.slane %v1608, 6
        %v1644 = vsel %vm1641, %v1642, %v1643
        %v1645 = vrot.slane %v1609, 6
        %v1646 = vsel %vm1641, %v1643, %v1645
        %v1647 = vrot.slane %v1610, 6
        %v1648 = vsel %vm1641, %v1645, %v1647
        %v1649 = vrot.slane %v1611, 6
        %v1650 = vsel %vm1641, %v1647, %v1649
        %v1651 = vrot.slane %v1612, 6
        %v1652 = vsel %vm1641, %v1649, %v1651
        %v1653 = vrot.slane %v1613, 6
        %v1654 = vsel %vm1641, %v1651, %v1653
        %v1655 = vrot.slane %v1614, 6
        %v1656 = vsel %vm1641, %v1653, %v1655
        %v1657 = vrot.slane %v1615, 6
        %v1658 = vsel %vm1641, %v1655, %v1657
        %v1659 = vrot.slane %v1616, 6
        %v1660 = vsel %vm1641, %v1657, %v1659
        %v1661 = vrot.slane %v1617, 6
        %v1662 = vsel %vm1641, %v1659, %v1661
        %v1663 = vrot.slane %v1618, 6
        %v1664 = vsel %vm1641, %v1661, %v1663
        %v1665 = vrot.slane %v1619, 6
        %v1666 = vsel %vm1641, %v1663, %v1665
        %v1667 = vrot.slane %v1620, 6
        %v1668 = vsel %vm1641, %v1665, %v1667
        %v1669 = vrot.slane %v1621, 6
        %v1670 = vsel %vm1641, %v1667, %v1669
        %v1671 = vrot.slane %v1622, 6
        %v1672 = vsel %vm1641, %v1669, %v1671
        %v1673 = vrot.slane %v1623, 6
        %v1674 = vsel %vm1641, %v1671, %v1673
        %v1691 = vadd.f32 %v1578, %v1644
        %v1692 = vadd.f32 %v1579, %v1646
        %v1693 = vadd.f32 %v1580, %v1648
        %v1694 = vadd.f32 %v1581, %v1650
        %v1695 = vadd.f32 %v1582, %v1652
        %v1696 = vadd.f32 %v1583, %v1654
        %v1697 = vadd.f32 %v1584, %v1656
        %v1698 = vadd.f32 %v1585, %v1658
        %v1699 = vadd.f32 %v1586, %v1660
        %v1700 = vadd.f32 %v1587, %v1662
        %v1701 = vadd.f32 %v1588, %v1664
        %v1702 = vadd.f32 %v1589, %v1666
        %v1703 = vadd.f32 %v1590, %v1668
        %v1704 = vadd.f32 %v1591, %v1670
        %v1705 = vadd.f32 %v1592, %v1672
        %v1706 = vadd.f32 %v1593, %v1674
        %v1707 = vld [vmem:[#allocation2] sm:$0x80]
        %v1708 = vld [vmem:[#allocation2 + $0x100] sm:$0x7f]
        %1710 = vset.pattern.permute.xlu0 0
        %1711 = vperm.xlu0 %1710, %v1707
        %v1712 = vpop.permute.xlu0 %1711
        %1715 = vset.pattern.permute.xlu0 0
        %1716 = vperm.xlu0 %1715, %v1708
        %v1717 = vpop.permute.xlu0 %1716
        %v1719 = vperm.slane %v810, 7
        %v1720 = vmul.f32 %v1712, %v1719
        %v1721 = vmul.f32 %v965, %v1719
        %v1722 = vmul.f32 %v970, %v1719
        %v1723 = vmul.f32 %v975, %v1719
        %v1724 = vmul.f32 %v980, %v1719
        %v1725 = vmul.f32 %v985, %v1719
        %v1726 = vmul.f32 %v990, %v1719
        %v1727 = vmul.f32 %v995, %v1719
        %v1728 = vmul.f32 %v1000, %v1719
        %v1729 = vmul.f32 %v1005, %v1719
        %v1730 = vmul.f32 %v1010, %v1719
        %v1731 = vmul.f32 %v1015, %v1719
        %v1732 = vmul.f32 %v1020, %v1719
        %v1733 = vmul.f32 %v1025, %v1719
        %v1734 = vmul.f32 %v1030, %v1719
        %v1735 = vmul.f32 %v1035, %v1719
        %v1736 = vmul.f32 %v1717, %v1719
        %vm1754 = vcmask 1040384
        %v1755 = vrot.slane %v1720, 7
        %v1756 = vrot.slane %v1721, 7
        %v1757 = vsel %vm1754, %v1755, %v1756
        %v1758 = vrot.slane %v1722, 7
        %v1759 = vsel %vm1754, %v1756, %v1758
        %v1760 = vrot.slane %v1723, 7
        %v1761 = vsel %vm1754, %v1758, %v1760
        %v1762 = vrot.slane %v1724, 7
        %v1763 = vsel %vm1754, %v1760, %v1762
        %v1764 = vrot.slane %v1725, 7
        %v1765 = vsel %vm1754, %v1762, %v1764
        %v1766 = vrot.slane %v1726, 7
        %v1767 = vsel %vm1754, %v1764, %v1766
        %v1768 = vrot.slane %v1727, 7
        %v1769 = vsel %vm1754, %v1766, %v1768
        %v1770 = vrot.slane %v1728, 7
        %v1771 = vsel %vm1754, %v1768, %v1770
        %v1772 = vrot.slane %v1729, 7
        %v1773 = vsel %vm1754, %v1770, %v1772
        %v1774 = vrot.slane %v1730, 7
        %v1775 = vsel %vm1754, %v1772, %v1774
        %v1776 = vrot.slane %v1731, 7
        %v1777 = vsel %vm1754, %v1774, %v1776
        %v1778 = vrot.slane %v1732, 7
        %v1779 = vsel %vm1754, %v1776, %v1778
        %v1780 = vrot.slane %v1733, 7
        %v1781 = vsel %vm1754, %v1778, %v1780
        %v1782 = vrot.slane %v1734, 7
        %v1783 = vsel %vm1754, %v1780, %v1782
        %v1784 = vrot.slane %v1735, 7
        %v1785 = vsel %vm1754, %v1782, %v1784
        %v1786 = vrot.slane %v1736, 7
        %v1787 = vsel %vm1754, %v1784, %v1786
        %v1804 = vadd.f32 %v1691, %v1757
        %v1805 = vadd.f32 %v1692, %v1759
        %v1806 = vadd.f32 %v1693, %v1761
        %v1807 = vadd.f32 %v1694, %v1763
        %v1808 = vadd.f32 %v1695, %v1765
        %v1809 = vadd.f32 %v1696, %v1767
        %v1810 = vadd.f32 %v1697, %v1769
        %v1811 = vadd.f32 %v1698, %v1771
        %v1812 = vadd.f32 %v1699, %v1773
        %v1813 = vadd.f32 %v1700, %v1775
        %v1814 = vadd.f32 %v1701, %v1777
        %v1815 = vadd.f32 %v1702, %v1779
        %v1816 = vadd.f32 %v1703, %v1781
        %v1817 = vadd.f32 %v1704, %v1783
        %v1818 = vadd.f32 %v1705, %v1785
        %v1819 = vadd.f32 %v1706, %v1787
        %v1821 = vperm.slane %v721, 0
        %v1823 = vadd.f32 %v1804, %v1821
        %v1824 = vadd.f32 %v1805, %v1821
        %v1825 = vadd.f32 %v1806, %v1821
        %v1826 = vadd.f32 %v1807, %v1821
        %v1827 = vadd.f32 %v1808, %v1821
        %v1828 = vadd.f32 %v1809, %v1821
        %v1829 = vadd.f32 %v1810, %v1821
        %v1830 = vadd.f32 %v1811, %v1821
        %v1831 = vadd.f32 %v1812, %v1821
        %v1832 = vadd.f32 %v1813, %v1821
        %v1833 = vadd.f32 %v1814, %v1821
        %v1834 = vadd.f32 %v1815, %v1821
        %v1835 = vadd.f32 %v1816, %v1821
        %v1836 = vadd.f32 %v1817, %v1821
        %v1837 = vadd.f32 %v1818, %v1821
        %v1838 = vadd.f32 %v1819, %v1821
        %vm1839 = vcmp.gt.f32.partialorder %v1823, 0.0
        %vm1840 = vcmp.gt.f32.partialorder %v1824, 0.0
        %vm1841 = vcmp.gt.f32.partialorder %v1825, 0.0
        %vm1842 = vcmp.gt.f32.partialorder %v1826, 0.0
        %vm1843 = vcmp.gt.f32.partialorder %v1827, 0.0
        %vm1844 = vcmp.gt.f32.partialorder %v1828, 0.0
        %vm1845 = vcmp.gt.f32.partialorder %v1829, 0.0
        %vm1846 = vcmp.gt.f32.partialorder %v1830, 0.0
        %vm1847 = vcmp.gt.f32.partialorder %v1831, 0.0
        %vm1848 = vcmp.gt.f32.partialorder %v1832, 0.0
        %vm1849 = vcmp.gt.f32.partialorder %v1833, 0.0
        %vm1850 = vcmp.gt.f32.partialorder %v1834, 0.0
        %vm1851 = vcmp.gt.f32.partialorder %v1835, 0.0
        %vm1852 = vcmp.gt.f32.partialorder %v1836, 0.0
        %vm1853 = vcmp.gt.f32.partialorder %v1837, 0.0
        %vm1854 = vcmp.gt.f32.partialorder %v1838, 0.0
        %v1855 = vmin.f32 %v1823, 0.0
        %v1856 = vmin.f32 %v1824, 0.0
        %v1857 = vmin.f32 %v1825, 0.0
        %v1858 = vmin.f32 %v1826, 0.0
        %v1859 = vmin.f32 %v1827, 0.0
        %v1860 = vmin.f32 %v1828, 0.0
        %v1861 = vmin.f32 %v1829, 0.0
        %v1862 = vmin.f32 %v1830, 0.0
        %v1863 = vmin.f32 %v1831, 0.0
        %v1864 = vmin.f32 %v1832, 0.0
        %v1865 = vmin.f32 %v1833, 0.0
        %v1866 = vmin.f32 %v1834, 0.0
        %v1867 = vmin.f32 %v1835, 0.0
        %v1868 = vmin.f32 %v1836, 0.0
        %v1869 = vmin.f32 %v1837, 0.0
        %v1870 = vmin.f32 %v1838, 0.0
        %v1871 = vmul.f32 %v1855, 1.442695
        %v1872 = vpow.pop %v1871
        %v1873 = vmul.f32 %v1856, 1.442695
        %v1874 = vpow.pop %v1873
        %v1875 = vmul.f32 %v1857, 1.442695
        %v1876 = vpow.pop %v1875
        %v1877 = vmul.f32 %v1858, 1.442695
        %v1878 = vpow.pop %v1877
        %v1879 = vmul.f32 %v1859, 1.442695
        %v1880 = vpow.pop %v1879
        %v1881 = vmul.f32 %v1860, 1.442695
        %v1882 = vpow.pop %v1881
        %v1883 = vmul.f32 %v1861, 1.442695
        %v1884 = vpow.pop %v1883
        %v1885 = vmul.f32 %v1862, 1.442695
        %v1886 = vpow.pop %v1885
        %v1887 = vmul.f32 %v1863, 1.442695
        %v1888 = vpow.pop %v1887
        %v1889 = vmul.f32 %v1864, 1.442695
        %v1890 = vpow.pop %v1889
        %v1891 = vmul.f32 %v1865, 1.442695
        %v1892 = vpow.pop %v1891
        %v1893 = vmul.f32 %v1866, 1.442695
        %v1894 = vpow.pop %v1893
        %v1895 = vmul.f32 %v1867, 1.442695
        %v1896 = vpow.pop %v1895
        %v1897 = vmul.f32 %v1868, 1.442695
        %v1898 = vpow.pop %v1897
        %v1899 = vmul.f32 %v1869, 1.442695
        %v1900 = vpow.pop %v1899
        %v1901 = vmul.f32 %v1870, 1.442695
        %v1902 = vpow.pop %v1901
        %v1903 = vsub.f32 %v1872, 1.0
        %v1904 = vsub.f32 %v1874, 1.0
        %v1905 = vsub.f32 %v1876, 1.0
        %v1906 = vsub.f32 %v1878, 1.0
        %v1907 = vsub.f32 %v1880, 1.0
        %v1908 = vsub.f32 %v1882, 1.0
        %v1909 = vsub.f32 %v1884, 1.0
        %v1910 = vsub.f32 %v1886, 1.0
        %v1911 = vsub.f32 %v1888, 1.0
        %v1912 = vsub.f32 %v1890, 1.0
        %v1913 = vsub.f32 %v1892, 1.0
        %v1914 = vsub.f32 %v1894, 1.0
        %v1915 = vsub.f32 %v1896, 1.0
        %v1916 = vsub.f32 %v1898, 1.0
        %v1917 = vsub.f32 %v1900, 1.0
        %v1918 = vsub.f32 %v1902, 1.0
        %v1919 = vsel %vm1839, %v1823, %v1903
        %v1920 = vsel %vm1840, %v1824, %v1904
        %v1921 = vsel %vm1841, %v1825, %v1905
        %v1922 = vsel %vm1842, %v1826, %v1906
        %v1923 = vsel %vm1843, %v1827, %v1907
        %v1924 = vsel %vm1844, %v1828, %v1908
        %v1925 = vsel %vm1845, %v1829, %v1909
        %v1926 = vsel %vm1846, %v1830, %v1910
        %v1927 = vsel %vm1847, %v1831, %v1911
        %v1928 = vsel %vm1848, %v1832, %v1912
        %v1929 = vsel %vm1849, %v1833, %v1913
        %v1930 = vsel %vm1850, %v1834, %v1914
        %v1931 = vsel %vm1851, %v1835, %v1915
        %v1932 = vsel %vm1852, %v1836, %v1916
        %v1933 = vsel %vm1853, %v1837, %v1917
        %v1934 = vsel %vm1854, %v1838, %v1918
        %v1935 = vld [vmem:[%s3] sm:$0xf]
        %v1936 = vld [vmem:[%s3 + $0x4] sm:$0xf]
        %v1937 = vld [vmem:[%s3 + $0x8] sm:$0xf]
        %v1938 = vld [vmem:[%s3 + $0xc] sm:$0xf]
        %v1939 = vld [vmem:[%s3 + $0x10] sm:$0xf]
        %v1940 = vld [vmem:[%s3 + $0x14] sm:$0xf]
        %v1941 = vld [vmem:[%s3 + $0x18] sm:$0xf]
        %v1942 = vld [vmem:[%s3 + $0x1c] sm:$0xf]
        %v1943 = vld [vmem:[%s3 + $0x20] sm:$0xf]
        %v1944 = vld [vmem:[%s3 + $0x24] sm:$0xf]
        %v1945 = vld [vmem:[%s3 + $0x28] sm:$0xf]
        %v1946 = vld [vmem:[%s3 + $0x2c] sm:$0xf]
        %v1947 = vld [vmem:[%s3 + $0x30] sm:$0xf]
        %v1948 = vld [vmem:[%s3 + $0x34] sm:$0xf]
        %v1949 = vld [vmem:[%s3 + $0x38] sm:$0xf]
        %v1950 = vld [vmem:[%s3 + $0x3c] sm:$0xf]
        %v1951 = vld [vmem:[%s3 + $0x40] sm:$0xf]
        %v1952 = vld [vmem:[%s3 + $0x44] sm:$0xf]
        %v1953 = vld [vmem:[%s3 + $0x48] sm:$0xf]
        %v1954 = vld [vmem:[%s3 + $0x4c] sm:$0xf]
        %v1955 = vld [vmem:[%s3 + $0x50] sm:$0xf]
        %v1956 = vld [vmem:[%s3 + $0x54] sm:$0xf]
        %v1957 = vld [vmem:[%s3 + $0x58] sm:$0xf]
        %v1958 = vld [vmem:[%s3 + $0x5c] sm:$0xf]
        %v1959 = vld [vmem:[%s3 + $0x60] sm:$0xf]
        %v1960 = vld [vmem:[%s3 + $0x64] sm:$0xf]
        %v1961 = vld [vmem:[%s3 + $0x68] sm:$0xf]
        %v1962 = vld [vmem:[%s3 + $0x6c] sm:$0xf]
        %v1963 = vld [vmem:[%s3 + $0x70] sm:$0xf]
        %v1964 = vld [vmem:[%s3 + $0x74] sm:$0xf]
        %v1965 = vld [vmem:[%s3 + $0x78] sm:$0xf]
        %v1966 = vld [vmem:[%s3 + $0x7c] sm:$0xf]
        %v1967 = vld [vmem:[%s4] sm:$0x1]
        %vm1968 = vcmask 256000
        %1969 = vst.msk [vmem:[#allocation2] sm:$0x7] %vm1968, 0.0
        %vm1970 = vcmask 260099
        %1971 = vst.msk [vmem:[#allocation2 + $0x100] sm:$0x78] %vm1970, 0.0
        %v1988 = vrot.slane %v1919, 5
        %v1989 = vrot.slane %v1920, 5
        %v1990 = vsel %vm742, %v1988, %v1989
        %v1991 = vrot.slane %v1921, 5
        %v1992 = vsel %vm742, %v1989, %v1991
        %v1993 = vrot.slane %v1922, 5
        %v1994 = vsel %vm742, %v1991, %v1993
        %v1995 = vrot.slane %v1923, 5
        %v1996 = vsel %vm742, %v1993, %v1995
        %v1997 = vrot.slane %v1924, 5
        %v1998 = vsel %vm742, %v1995, %v1997
        %v1999 = vrot.slane %v1925, 5
        %v2000 = vsel %vm742, %v1997, %v1999
        %v2001 = vrot.slane %v1926, 5
        %v2002 = vsel %vm742, %v1999, %v2001
        %v2003 = vrot.slane %v1927, 5
        %v2004 = vsel %vm742, %v2001, %v2003
        %v2005 = vrot.slane %v1928, 5
        %v2006 = vsel %vm742, %v2003, %v2005
        %v2007 = vrot.slane %v1929, 5
        %v2008 = vsel %vm742, %v2005, %v2007
        %v2009 = vrot.slane %v1930, 5
        %v2010 = vsel %vm742, %v2007, %v2009
        %v2011 = vrot.slane %v1931, 5
        %v2012 = vsel %vm742, %v2009, %v2011
        %v2013 = vrot.slane %v1932, 5
        %v2014 = vsel %vm742, %v2011, %v2013
        %v2015 = vrot.slane %v1933, 5
        %v2016 = vsel %vm742, %v2013, %v2015
        %v2017 = vrot.slane %v1934, 5
        %v2018 = vsel %vm742, %v2015, %v2017
        %vm2036 = vcmask 261123
        %2037 = vst.msk [vmem:[#allocation2] sm:$0xf8] %vm2036, %v1988
        %vm2038 = vcmask 261120
        %2039 = vst.msk [vmem:[#allocation2 + $0x10] sm:$0xff] %vm2038, %v1990
        %2040 = vst.msk [vmem:[#allocation2 + $0x20] sm:$0xff] %vm2038, %v1992
        %2041 = vst.msk [vmem:[#allocation2 + $0x30] sm:$0xff] %vm2038, %v1994
        %2042 = vst.msk [vmem:[#allocation2 + $0x40] sm:$0xff] %vm2038, %v1996
        %2043 = vst.msk [vmem:[#allocation2 + $0x50] sm:$0xff] %vm2038, %v1998
        %2044 = vst.msk [vmem:[#allocation2 + $0x60] sm:$0xff] %vm2038, %v2000
        %2045 = vst.msk [vmem:[#allocation2 + $0x70] sm:$0xff] %vm2038, %v2002
        %2046 = vst.msk [vmem:[#allocation2 + $0x80] sm:$0xff] %vm2038, %v2004
        %2047 = vst.msk [vmem:[#allocation2 + $0x90] sm:$0xff] %vm2038, %v2006
        %2048 = vst.msk [vmem:[#allocation2 + $0xa0] sm:$0xff] %vm2038, %v2008
        %2049 = vst.msk [vmem:[#allocation2 + $0xb0] sm:$0xff] %vm2038, %v2010
        %2050 = vst.msk [vmem:[#allocation2 + $0xc0] sm:$0xff] %vm2038, %v2012
        %2051 = vst.msk [vmem:[#allocation2 + $0xd0] sm:$0xff] %vm2038, %v2014
        %2052 = vst.msk [vmem:[#allocation2 + $0xe0] sm:$0xff] %vm2038, %v2016
        %2053 = vst.msk [vmem:[#allocation2 + $0xf0] sm:$0xff] %vm2038, %v2018
        %2054 = vst.msk [vmem:[#allocation2 + $0x100] sm:$0x7] %vm1968, %v2017
        %v2055 = vld [vmem:[#allocation2] sm:$0xff]
        %v2056 = vld [vmem:[#allocation2 + $0x10] sm:$0xff]
        %v2057 = vld [vmem:[#allocation2 + $0x20] sm:$0xff]
        %v2058 = vld [vmem:[#allocation2 + $0x30] sm:$0xff]
        %v2059 = vld [vmem:[#allocation2 + $0x40] sm:$0xff]
        %v2060 = vld [vmem:[#allocation2 + $0x50] sm:$0xff]
        %v2061 = vld [vmem:[#allocation2 + $0x60] sm:$0xff]
        %v2062 = vld [vmem:[#allocation2 + $0x70] sm:$0xff]
        %v2063 = vld [vmem:[#allocation2 + $0x80] sm:$0xff]
        %v2064 = vld [vmem:[#allocation2 + $0x90] sm:$0xff]
        %v2065 = vld [vmem:[#allocation2 + $0xa0] sm:$0xff]
        %v2066 = vld [vmem:[#allocation2 + $0xb0] sm:$0xff]
        %v2067 = vld [vmem:[#allocation2 + $0xc0] sm:$0xff]
        %v2068 = vld [vmem:[#allocation2 + $0xd0] sm:$0xff]
        %v2069 = vld [vmem:[#allocation2 + $0xe0] sm:$0xff]
        %v2070 = vld [vmem:[#allocation2 + $0xf0] sm:$0xff]
        %2071 = vst.msk [vmem:[#allocation3] sm:$0xff] %vm2038, %v2055
        %2072 = vst.msk [vmem:[#allocation3 + $0x40] sm:$0xff] %vm2038, %v2056
        %2073 = vst.msk [vmem:[#allocation3 + $0x80] sm:$0xff] %vm2038, %v2057
        %2074 = vst.msk [vmem:[#allocation3 + $0xc0] sm:$0xff] %vm2038, %v2058
        %2075 = vst.msk [vmem:[#allocation3 + $0x100] sm:$0xff] %vm2038, %v2059
        %2076 = vst.msk [vmem:[#allocation3 + $0x140] sm:$0xff] %vm2038, %v2060
        %2077 = vst.msk [vmem:[#allocation3 + $0x180] sm:$0xff] %vm2038, %v2061
        %2078 = vst.msk [vmem:[#allocation3 + $0x1c0] sm:$0xff] %vm2038, %v2062
        %2079 = vst.msk [vmem:[#allocation3 + $0x200] sm:$0xff] %vm2038, %v2063
        %2080 = vst.msk [vmem:[#allocation3 + $0x240] sm:$0xff] %vm2038, %v2064
        %2081 = vst.msk [vmem:[#allocation3 + $0x280] sm:$0xff] %vm2038, %v2065
        %2082 = vst.msk [vmem:[#allocation3 + $0x2c0] sm:$0xff] %vm2038, %v2066
        %2083 = vst.msk [vmem:[#allocation3 + $0x300] sm:$0xff] %vm2038, %v2067
        %2084 = vst.msk [vmem:[#allocation3 + $0x340] sm:$0xff] %vm2038, %v2068
        %2085 = vst.msk [vmem:[#allocation3 + $0x380] sm:$0xff] %vm2038, %v2069
        %2086 = vst.msk [vmem:[#allocation3 + $0x3c0] sm:$0xff] %vm2038, %v2070
        %v2087 = vld [vmem:[#allocation2] sm:$0xfe]
        %v2088 = vld [vmem:[#allocation2 + $0x10] sm:$0xff]
        %v2089 = vld [vmem:[#allocation2 + $0x20] sm:$0xff]
        %v2090 = vld [vmem:[#allocation2 + $0x30] sm:$0xff]
        %v2091 = vld [vmem:[#allocation2 + $0x40] sm:$0xff]
        %v2092 = vld [vmem:[#allocation2 + $0x50] sm:$0xff]
        %v2093 = vld [vmem:[#allocation2 + $0x60] sm:$0xff]
        %v2094 = vld [vmem:[#allocation2 + $0x70] sm:$0xff]
        %v2095 = vld [vmem:[#allocation2 + $0x80] sm:$0xff]
        %v2096 = vld [vmem:[#allocation2 + $0x90] sm:$0xff]
        %v2097 = vld [vmem:[#allocation2 + $0xa0] sm:$0xff]
        %v2098 = vld [vmem:[#allocation2 + $0xb0] sm:$0xff]
        %v2099 = vld [vmem:[#allocation2 + $0xc0] sm:$0xff]
        %v2100 = vld [vmem:[#allocation2 + $0xd0] sm:$0xff]
        %v2101 = vld [vmem:[#allocation2 + $0xe0] sm:$0xff]
        %v2102 = vld [vmem:[#allocation2 + $0xf0] sm:$0xff]
        %v2103 = vld [vmem:[#allocation2 + $0x100] sm:$0x1]
        %v2121 = vrot.slane %v2087, 1
        %v2122 = vrot.slane %v2088, 1
        %v2123 = vsel %vm1077, %v2121, %v2122
        %v2124 = vrot.slane %v2089, 1
        %v2125 = vsel %vm1077, %v2122, %v2124
        %v2126 = vrot.slane %v2090, 1
        %v2127 = vsel %vm1077, %v2124, %v2126
        %v2128 = vrot.slane %v2091, 1
        %v2129 = vsel %vm1077, %v2126, %v2128
        %v2130 = vrot.slane %v2092, 1
        %v2131 = vsel %vm1077, %v2128, %v2130
        %v2132 = vrot.slane %v2093, 1
        %v2133 = vsel %vm1077, %v2130, %v2132
        %v2134 = vrot.slane %v2094, 1
        %v2135 = vsel %vm1077, %v2132, %v2134
        %v2136 = vrot.slane %v2095, 1
        %v2137 = vsel %vm1077, %v2134, %v2136
        %v2138 = vrot.slane %v2096, 1
        %v2139 = vsel %vm1077, %v2136, %v2138
        %v2140 = vrot.slane %v2097, 1
        %v2141 = vsel %vm1077, %v2138, %v2140
        %v2142 = vrot.slane %v2098, 1
        %v2143 = vsel %vm1077, %v2140, %v2142
        %v2144 = vrot.slane %v2099, 1
        %v2145 = vsel %vm1077, %v2142, %v2144
        %v2146 = vrot.slane %v2100, 1
        %v2147 = vsel %vm1077, %v2144, %v2146
        %v2148 = vrot.slane %v2101, 1
        %v2149 = vsel %vm1077, %v2146, %v2148
        %v2150 = vrot.slane %v2102, 1
        %v2151 = vsel %vm1077, %v2148, %v2150
        %v2152 = vrot.slane %v2103, 1
        %v2153 = vsel %vm1077, %v2150, %v2152
        %2154 = vrot.lane.b32.xlu0 %v2123, 32
        %v2155 = vpop.permute.xlu0 %2154
        %2156 = vrot.lane.b32.xlu0 %v2125, 32
        %v2157 = vpop.permute.xlu0 %2156
        %2158 = vrot.lane.b32.xlu0 %v2127, 32
        %v2159 = vpop.permute.xlu0 %2158
        %2160 = vrot.lane.b32.xlu0 %v2129, 32
        %v2161 = vpop.permute.xlu0 %2160
        %2162 = vrot.lane.b32.xlu0 %v2131, 32
        %v2163 = vpop.permute.xlu0 %2162
        %2164 = vrot.lane.b32.xlu0 %v2133, 32
        %v2165 = vpop.permute.xlu0 %2164
        %2166 = vrot.lane.b32.xlu0 %v2135, 32
        %v2167 = vpop.permute.xlu0 %2166
        %2168 = vrot.lane.b32.xlu0 %v2137, 32
        %v2169 = vpop.permute.xlu0 %2168
        %2170 = vrot.lane.b32.xlu0 %v2139, 32
        %v2171 = vpop.permute.xlu0 %2170
        %2172 = vrot.lane.b32.xlu0 %v2141, 32
        %v2173 = vpop.permute.xlu0 %2172
        %2174 = vrot.lane.b32.xlu0 %v2143, 32
        %v2175 = vpop.permute.xlu0 %2174
        %2176 = vrot.lane.b32.xlu0 %v2145, 32
        %v2177 = vpop.permute.xlu0 %2176
        %2178 = vrot.lane.b32.xlu0 %v2147, 32
        %v2179 = vpop.permute.xlu0 %2178
        %2180 = vrot.lane.b32.xlu0 %v2149, 32
        %v2181 = vpop.permute.xlu0 %2180
        %2182 = vrot.lane.b32.xlu0 %v2151, 32
        %v2183 = vpop.permute.xlu0 %2182
        %2184 = vrot.lane.b32.xlu0 %v2153, 32
        %v2185 = vpop.permute.xlu0 %2184
        %vm2202 = vcmask 523520
        %2203 = vst.msk [vmem:[#allocation3] sm:$0xff] %vm2202, %v2155
        %2204 = vst.msk [vmem:[#allocation3 + $0x40] sm:$0xff] %vm2202, %v2157
        %2205 = vst.msk [vmem:[#allocation3 + $0x80] sm:$0xff] %vm2202, %v2159
        %2206 = vst.msk [vmem:[#allocation3 + $0xc0] sm:$0xff] %vm2202, %v2161
        %2207 = vst.msk [vmem:[#allocation3 + $0x100] sm:$0xff] %vm2202, %v2163
        %2208 = vst.msk [vmem:[#allocation3 + $0x140] sm:$0xff] %vm2202, %v2165
        %2209 = vst.msk [vmem:[#allocation3 + $0x180] sm:$0xff] %vm2202, %v2167
        %2210 = vst.msk [vmem:[#allocation3 + $0x1c0] sm:$0xff] %vm2202, %v2169
        %2211 = vst.msk [vmem:[#allocation3 + $0x200] sm:$0xff] %vm2202, %v2171
        %2212 = vst.msk [vmem:[#allocation3 + $0x240] sm:$0xff] %vm2202, %v2173
        %2213 = vst.msk [vmem:[#allocation3 + $0x280] sm:$0xff] %vm2202, %v2175
        %2214 = vst.msk [vmem:[#allocation3 + $0x2c0] sm:$0xff] %vm2202, %v2177
        %2215 = vst.msk [vmem:[#allocation3 + $0x300] sm:$0xff] %vm2202, %v2179
        %2216 = vst.msk [vmem:[#allocation3 + $0x340] sm:$0xff] %vm2202, %v2181
        %2217 = vst.msk [vmem:[#allocation3 + $0x380] sm:$0xff] %vm2202, %v2183
        %2218 = vst.msk [vmem:[#allocation3 + $0x3c0] sm:$0xff] %vm2202, %v2185
        %v2219 = vld [vmem:[#allocation2] sm:$0xfc]
        %v2220 = vld [vmem:[#allocation2 + $0x10] sm:$0xff]
        %v2221 = vld [vmem:[#allocation2 + $0x20] sm:$0xff]
        %v2222 = vld [vmem:[#allocation2 + $0x30] sm:$0xff]
        %v2223 = vld [vmem:[#allocation2 + $0x40] sm:$0xff]
        %v2224 = vld [vmem:[#allocation2 + $0x50] sm:$0xff]
        %v2225 = vld [vmem:[#allocation2 + $0x60] sm:$0xff]
        %v2226 = vld [vmem:[#allocation2 + $0x70] sm:$0xff]
        %v2227 = vld [vmem:[#allocation2 + $0x80] sm:$0xff]
        %v2228 = vld [vmem:[#allocation2 + $0x90] sm:$0xff]
        %v2229 = vld [vmem:[#allocation2 + $0xa0] sm:$0xff]
        %v2230 = vld [vmem:[#allocation2 + $0xb0] sm:$0xff]
        %v2231 = vld [vmem:[#allocation2 + $0xc0] sm:$0xff]
        %v2232 = vld [vmem:[#allocation2 + $0xd0] sm:$0xff]
        %v2233 = vld [vmem:[#allocation2 + $0xe0] sm:$0xff]
        %v2234 = vld [vmem:[#allocation2 + $0xf0] sm:$0xff]
        %v2235 = vld [vmem:[#allocation2 + $0x100] sm:$0x3]
        %v2253 = vrot.slane %v2219, 2
        %v2254 = vrot.slane %v2220, 2
        %v2255 = vsel %vm1190, %v2253, %v2254
        %v2256 = vrot.slane %v2221, 2
        %v2257 = vsel %vm1190, %v2254, %v2256
        %v2258 = vrot.slane %v2222, 2
        %v2259 = vsel %vm1190, %v2256, %v2258
        %v2260 = vrot.slane %v2223, 2
        %v2261 = vsel %vm1190, %v2258, %v2260
        %v2262 = vrot.slane %v2224, 2
        %v2263 = vsel %vm1190, %v2260, %v2262
        %v2264 = vrot.slane %v2225, 2
        %v2265 = vsel %vm1190, %v2262, %v2264
        %v2266 = vrot.slane %v2226, 2
        %v2267 = vsel %vm1190, %v2264, %v2266
        %v2268 = vrot.slane %v2227, 2
        %v2269 = vsel %vm1190, %v2266, %v2268
        %v2270 = vrot.slane %v2228, 2
        %v2271 = vsel %vm1190, %v2268, %v2270
        %v2272 = vrot.slane %v2229, 2
        %v2273 = vsel %vm1190, %v2270, %v2272
        %v2274 = vrot.slane %v2230, 2
        %v2275 = vsel %vm1190, %v2272, %v2274
        %v2276 = vrot.slane %v2231, 2
        %v2277 = vsel %vm1190, %v2274, %v2276
        %v2278 = vrot.slane %v2232, 2
        %v2279 = vsel %vm1190, %v2276, %v2278
        %v2280 = vrot.slane %v2233, 2
        %v2281 = vsel %vm1190, %v2278, %v2280
        %v2282 = vrot.slane %v2234, 2
        %v2283 = vsel %vm1190, %v2280, %v2282
        %v2284 = vrot.slane %v2235, 2
        %v2285 = vsel %vm1190, %v2282, %v2284
        %2286 = vrot.lane.b32.xlu0 %v2255, 64
        %v2287 = vpop.permute.xlu0 %2286
        %2288 = vrot.lane.b32.xlu0 %v2257, 64
        %v2289 = vpop.permute.xlu0 %2288
        %2290 = vrot.lane.b32.xlu0 %v2259, 64
        %v2291 = vpop.permute.xlu0 %2290
        %2292 = vrot.lane.b32.xlu0 %v2261, 64
        %v2293 = vpop.permute.xlu0 %2292
        %2294 = vrot.lane.b32.xlu0 %v2263, 64
        %v2295 = vpop.permute.xlu0 %2294
        %2296 = vrot.lane.b32.xlu0 %v2265, 64
        %v2297 = vpop.permute.xlu0 %2296
        %2298 = vrot.lane.b32.xlu0 %v2267, 64
        %v2299 = vpop.permute.xlu0 %2298
        %2300 = vrot.lane.b32.xlu0 %v2269, 64
        %v2301 = vpop.permute.xlu0 %2300
        %2302 = vrot.lane.b32.xlu0 %v2271, 64
        %v2303 = vpop.permute.xlu0 %2302
        %2304 = vrot.lane.b32.xlu0 %v2273, 64
        %v2305 = vpop.permute.xlu0 %2304
        %2306 = vrot.lane.b32.xlu0 %v2275, 64
        %v2307 = vpop.permute.xlu0 %2306
        %2308 = vrot.lane.b32.xlu0 %v2277, 64
        %v2309 = vpop.permute.xlu0 %2308
        %2310 = vrot.lane.b32.xlu0 %v2279, 64
        %v2311 = vpop.permute.xlu0 %2310
        %2312 = vrot.lane.b32.xlu0 %v2281, 64
        %v2313 = vpop.permute.xlu0 %2312
        %2314 = vrot.lane.b32.xlu0 %v2283, 64
        %v2315 = vpop.permute.xlu0 %2314
        %2316 = vrot.lane.b32.xlu0 %v2285, 64
        %v2317 = vpop.permute.xlu0 %2316
        %vm2334 = vcmask 785920
        %2335 = vst.msk [vmem:[#allocation3] sm:$0xff] %vm2334, %v2287
        %2336 = vst.msk [vmem:[#allocation3 + $0x40] sm:$0xff] %vm2334, %v2289
        %2337 = vst.msk [vmem:[#allocation3 + $0x80] sm:$0xff] %vm2334, %v2291
        %2338 = vst.msk [vmem:[#allocation3 + $0xc0] sm:$0xff] %vm2334, %v2293
        %2339 = vst.msk [vmem:[#allocation3 + $0x100] sm:$0xff] %vm2334, %v2295
        %2340 = vst.msk [vmem:[#allocation3 + $0x140] sm:$0xff] %vm2334, %v2297
        %2341 = vst.msk [vmem:[#allocation3 + $0x180] sm:$0xff] %vm2334, %v2299
        %2342 = vst.msk [vmem:[#allocation3 + $0x1c0] sm:$0xff] %vm2334, %v2301
        %2343 = vst.msk [vmem:[#allocation3 + $0x200] sm:$0xff] %vm2334, %v2303
        %2344 = vst.msk [vmem:[#allocation3 + $0x240] sm:$0xff] %vm2334, %v2305
        %2345 = vst.msk [vmem:[#allocation3 + $0x280] sm:$0xff] %vm2334, %v2307
        %2346 = vst.msk [vmem:[#allocation3 + $0x2c0] sm:$0xff] %vm2334, %v2309
        %2347 = vst.msk [vmem:[#allocation3 + $0x300] sm:$0xff] %vm2334, %v2311
        %2348 = vst.msk [vmem:[#allocation3 + $0x340] sm:$0xff] %vm2334, %v2313
        %2349 = vst.msk [vmem:[#allocation3 + $0x380] sm:$0xff] %vm2334, %v2315
        %2350 = vst.msk [vmem:[#allocation3 + $0x3c0] sm:$0xff] %vm2334, %v2317
        %v2351 = vld [vmem:[#allocation2] sm:$0xf8]
        %v2352 = vld [vmem:[#allocation2 + $0x10] sm:$0xff]
        %v2353 = vld [vmem:[#allocation2 + $0x20] sm:$0xff]
        %v2354 = vld [vmem:[#allocation2 + $0x30] sm:$0xff]
        %v2355 = vld [vmem:[#allocation2 + $0x40] sm:$0xff]
        %v2356 = vld [vmem:[#allocation2 + $0x50] sm:$0xff]
        %v2357 = vld [vmem:[#allocation2 + $0x60] sm:$0xff]
        %v2358 = vld [vmem:[#allocation2 + $0x70] sm:$0xff]
        %v2359 = vld [vmem:[#allocation2 + $0x80] sm:$0xff]
        %v2360 = vld [vmem:[#allocation2 + $0x90] sm:$0xff]
        %v2361 = vld [vmem:[#allocation2 + $0xa0] sm:$0xff]
        %v2362 = vld [vmem:[#allocation2 + $0xb0] sm:$0xff]
        %v2363 = vld [vmem:[#allocation2 + $0xc0] sm:$0xff]
        %v2364 = vld [vmem:[#allocation2 + $0xd0] sm:$0xff]
        %v2365 = vld [vmem:[#allocation2 + $0xe0] sm:$0xff]
        %v2366 = vld [vmem:[#allocation2 + $0xf0] sm:$0xff]
        %v2367 = vld [vmem:[#allocation2 + $0x100] sm:$0x7]
        %v2385 = vrot.slane %v2351, 3
        %v2386 = vrot.slane %v2352, 3
        %v2387 = vsel %vm1303, %v2385, %v2386
        %v2388 = vrot.slane %v2353, 3
        %v2389 = vsel %vm1303, %v2386, %v2388
        %v2390 = vrot.slane %v2354, 3
        %v2391 = vsel %vm1303, %v2388, %v2390
        %v2392 = vrot.slane %v2355, 3
        %v2393 = vsel %vm1303, %v2390, %v2392
        %v2394 = vrot.slane %v2356, 3
        %v2395 = vsel %vm1303, %v2392, %v2394
        %v2396 = vrot.slane %v2357, 3
        %v2397 = vsel %vm1303, %v2394, %v2396
        %v2398 = vrot.slane %v2358, 3
        %v2399 = vsel %vm1303, %v2396, %v2398
        %v2400 = vrot.slane %v2359, 3
        %v2401 = vsel %vm1303, %v2398, %v2400
        %v2402 = vrot.slane %v2360, 3
        %v2403 = vsel %vm1303, %v2400, %v2402
        %v2404 = vrot.slane %v2361, 3
        %v2405 = vsel %vm1303, %v2402, %v2404
        %v2406 = vrot.slane %v2362, 3
        %v2407 = vsel %vm1303, %v2404, %v2406
        %v2408 = vrot.slane %v2363, 3
        %v2409 = vsel %vm1303, %v2406, %v2408
        %v2410 = vrot.slane %v2364, 3
        %v2411 = vsel %vm1303, %v2408, %v2410
        %v2412 = vrot.slane %v2365, 3
        %v2413 = vsel %vm1303, %v2410, %v2412
        %v2414 = vrot.slane %v2366, 3
        %v2415 = vsel %vm1303, %v2412, %v2414
        %v2416 = vrot.slane %v2367, 3
        %v2417 = vsel %vm1303, %v2414, %v2416
        %2418 = vrot.lane.b32.xlu0 %v2387, 96
        %v2419 = vpop.permute.xlu0 %2418
        %2420 = vrot.lane.b32.xlu0 %v2389, 96
        %v2421 = vpop.permute.xlu0 %2420
        %2422 = vrot.lane.b32.xlu0 %v2391, 96
        %v2423 = vpop.permute.xlu0 %2422
        %2424 = vrot.lane.b32.xlu0 %v2393, 96
        %v2425 = vpop.permute.xlu0 %2424
        %2426 = vrot.lane.b32.xlu0 %v2395, 96
        %v2427 = vpop.permute.xlu0 %2426
        %2428 = vrot.lane.b32.xlu0 %v2397, 96
        %v2429 = vpop.permute.xlu0 %2428
        %2430 = vrot.lane.b32.xlu0 %v2399, 96
        %v2431 = vpop.permute.xlu0 %2430
        %2432 = vrot.lane.b32.xlu0 %v2401, 96
        %v2433 = vpop.permute.xlu0 %2432
        %2434 = vrot.lane.b32.xlu0 %v2403, 96
        %v2435 = vpop.permute.xlu0 %2434
        %2436 = vrot.lane.b32.xlu0 %v2405, 96
        %v2437 = vpop.permute.xlu0 %2436
        %2438 = vrot.lane.b32.xlu0 %v2407, 96
        %v2439 = vpop.permute.xlu0 %2438
        %2440 = vrot.lane.b32.xlu0 %v2409, 96
        %v2441 = vpop.permute.xlu0 %2440
        %2442 = vrot.lane.b32.xlu0 %v2411, 96
        %v2443 = vpop.permute.xlu0 %2442
        %2444 = vrot.lane.b32.xlu0 %v2413, 96
        %v2445 = vpop.permute.xlu0 %2444
        %2446 = vrot.lane.b32.xlu0 %v2415, 96
        %v2447 = vpop.permute.xlu0 %2446
        %2448 = vrot.lane.b32.xlu0 %v2417, 96
        %v2449 = vpop.permute.xlu0 %2448
        %vm2466 = vcmask 1048320
        %2467 = vst.msk [vmem:[#allocation3] sm:$0xff] %vm2466, %v2419
        %2468 = vst.msk [vmem:[#allocation3 + $0x40] sm:$0xff] %vm2466, %v2421
        %2469 = vst.msk [vmem:[#allocation3 + $0x80] sm:$0xff] %vm2466, %v2423
        %2470 = vst.msk [vmem:[#allocation3 + $0xc0] sm:$0xff] %vm2466, %v2425
        %2471 = vst.msk [vmem:[#allocation3 + $0x100] sm:$0xff] %vm2466, %v2427
        %2472 = vst.msk [vmem:[#allocation3 + $0x140] sm:$0xff] %vm2466, %v2429
        %2473 = vst.msk [vmem:[#allocation3 + $0x180] sm:$0xff] %vm2466, %v2431
        %2474 = vst.msk [vmem:[#allocation3 + $0x1c0] sm:$0xff] %vm2466, %v2433
        %2475 = vst.msk [vmem:[#allocation3 + $0x200] sm:$0xff] %vm2466, %v2435
        %2476 = vst.msk [vmem:[#allocation3 + $0x240] sm:$0xff] %vm2466, %v2437
        %2477 = vst.msk [vmem:[#allocation3 + $0x280] sm:$0xff] %vm2466, %v2439
        %2478 = vst.msk [vmem:[#allocation3 + $0x2c0] sm:$0xff] %vm2466, %v2441
        %2479 = vst.msk [vmem:[#allocation3 + $0x300] sm:$0xff] %vm2466, %v2443
        %2480 = vst.msk [vmem:[#allocation3 + $0x340] sm:$0xff] %vm2466, %v2445
        %2481 = vst.msk [vmem:[#allocation3 + $0x380] sm:$0xff] %vm2466, %v2447
        %2482 = vst.msk [vmem:[#allocation3 + $0x3c0] sm:$0xff] %vm2466, %v2449
        %v2483 = vld [vmem:[#allocation2] sm:$0xf0]
        %v2484 = vld [vmem:[#allocation2 + $0x10] sm:$0xff]
        %v2485 = vld [vmem:[#allocation2 + $0x20] sm:$0xff]
        %v2486 = vld [vmem:[#allocation2 + $0x30] sm:$0xff]
        %v2487 = vld [vmem:[#allocation2 + $0x40] sm:$0xff]
        %v2488 = vld [vmem:[#allocation2 + $0x50] sm:$0xff]
        %v2489 = vld [vmem:[#allocation2 + $0x60] sm:$0xff]
        %v2490 = vld [vmem:[#allocation2 + $0x70] sm:$0xff]
        %v2491 = vld [vmem:[#allocation2 + $0x80] sm:$0xff]
        %v2492 = vld [vmem:[#allocation2 + $0x90] sm:$0xff]
        %v2493 = vld [vmem:[#allocation2 + $0xa0] sm:$0xff]
        %v2494 = vld [vmem:[#allocation2 + $0xb0] sm:$0xff]
        %v2495 = vld [vmem:[#allocation2 + $0xc0] sm:$0xff]
        %v2496 = vld [vmem:[#allocation2 + $0xd0] sm:$0xff]
        %v2497 = vld [vmem:[#allocation2 + $0xe0] sm:$0xff]
        %v2498 = vld [vmem:[#allocation2 + $0xf0] sm:$0xff]
        %v2499 = vld [vmem:[#allocation2 + $0x100] sm:$0xf]
        %v2517 = vrot.slane %v2483, 4
        %v2518 = vrot.slane %v2484, 4
        %v2519 = vsel %vm1416, %v2517, %v2518
        %v2520 = vrot.slane %v2485, 4
        %v2521 = vsel %vm1416, %v2518, %v2520
        %v2522 = vrot.slane %v2486, 4
        %v2523 = vsel %vm1416, %v2520, %v2522
        %v2524 = vrot.slane %v2487, 4
        %v2525 = vsel %vm1416, %v2522, %v2524
        %v2526 = vrot.slane %v2488, 4
        %v2527 = vsel %vm1416, %v2524, %v2526
        %v2528 = vrot.slane %v2489, 4
        %v2529 = vsel %vm1416, %v2526, %v2528
        %v2530 = vrot.slane %v2490, 4
        %v2531 = vsel %vm1416, %v2528, %v2530
        %v2532 = vrot.slane %v2491, 4
        %v2533 = vsel %vm1416, %v2530, %v2532
        %v2534 = vrot.slane %v2492, 4
        %v2535 = vsel %vm1416, %v2532, %v2534
        %v2536 = vrot.slane %v2493, 4
        %v2537 = vsel %vm1416, %v2534, %v2536
        %v2538 = vrot.slane %v2494, 4
        %v2539 = vsel %vm1416, %v2536, %v2538
        %v2540 = vrot.slane %v2495, 4
        %v2541 = vsel %vm1416, %v2538, %v2540
        %v2542 = vrot.slane %v2496, 4
        %v2543 = vsel %vm1416, %v2540, %v2542
        %v2544 = vrot.slane %v2497, 4
        %v2545 = vsel %vm1416, %v2542, %v2544
        %v2546 = vrot.slane %v2498, 4
        %v2547 = vsel %vm1416, %v2544, %v2546
        %v2548 = vrot.slane %v2499, 4
        %v2549 = vsel %vm1416, %v2546, %v2548
        %2566 = vst.msk [vmem:[#allocation3 + $0x8] sm:$0xff] %vm2038, %v2519
        %2567 = vst.msk [vmem:[#allocation3 + $0x48] sm:$0xff] %vm2038, %v2521
        %2568 = vst.msk [vmem:[#allocation3 + $0x88] sm:$0xff] %vm2038, %v2523
        %2569 = vst.msk [vmem:[#allocation3 + $0xc8] sm:$0xff] %vm2038, %v2525
        %2570 = vst.msk [vmem:[#allocation3 + $0x108] sm:$0xff] %vm2038, %v2527
        %2571 = vst.msk [vmem:[#allocation3 + $0x148] sm:$0xff] %vm2038, %v2529
        %2572 = vst.msk [vmem:[#allocation3 + $0x188] sm:$0xff] %vm2038, %v2531
        %2573 = vst.msk [vmem:[#allocation3 + $0x1c8] sm:$0xff] %vm2038, %v2533
        %2574 = vst.msk [vmem:[#allocation3 + $0x208] sm:$0xff] %vm2038, %v2535
        %2575 = vst.msk [vmem:[#allocation3 + $0x248] sm:$0xff] %vm2038, %v2537
        %2576 = vst.msk [vmem:[#allocation3 + $0x288] sm:$0xff] %vm2038, %v2539
        %2577 = vst.msk [vmem:[#allocation3 + $0x2c8] sm:$0xff] %vm2038, %v2541
        %2578 = vst.msk [vmem:[#allocation3 + $0x308] sm:$0xff] %vm2038, %v2543
        %2579 = vst.msk [vmem:[#allocation3 + $0x348] sm:$0xff] %vm2038, %v2545
        %2580 = vst.msk [vmem:[#allocation3 + $0x388] sm:$0xff] %vm2038, %v2547
        %2581 = vst.msk [vmem:[#allocation3 + $0x3c8] sm:$0xff] %vm2038, %v2549
        %v2582 = vld [vmem:[#allocation2] sm:$0xe0]
        %v2583 = vld [vmem:[#allocation2 + $0x10] sm:$0xff]
        %v2584 = vld [vmem:[#allocation2 + $0x20] sm:$0xff]
        %v2585 = vld [vmem:[#allocation2 + $0x30] sm:$0xff]
        %v2586 = vld [vmem:[#allocation2 + $0x40] sm:$0xff]
        %v2587 = vld [vmem:[#allocation2 + $0x50] sm:$0xff]
        %v2588 = vld [vmem:[#allocation2 + $0x60] sm:$0xff]
        %v2589 = vld [vmem:[#allocation2 + $0x70] sm:$0xff]
        %v2590 = vld [vmem:[#allocation2 + $0x80] sm:$0xff]
        %v2591 = vld [vmem:[#allocation2 + $0x90] sm:$0xff]
        %v2592 = vld [vmem:[#allocation2 + $0xa0] sm:$0xff]
        %v2593 = vld [vmem:[#allocation2 + $0xb0] sm:$0xff]
        %v2594 = vld [vmem:[#allocation2 + $0xc0] sm:$0xff]
        %v2595 = vld [vmem:[#allocation2 + $0xd0] sm:$0xff]
        %v2596 = vld [vmem:[#allocation2 + $0xe0] sm:$0xff]
        %v2597 = vld [vmem:[#allocation2 + $0xf0] sm:$0xff]
        %v2598 = vld [vmem:[#allocation2 + $0x100] sm:$0x1f]
        %v2616 = vrot.slane %v2582, 5
        %v2617 = vrot.slane %v2583, 5
        %v2618 = vsel %vm742, %v2616, %v2617
        %v2619 = vrot.slane %v2584, 5
        %v2620 = vsel %vm742, %v2617, %v2619
        %v2621 = vrot.slane %v2585, 5
        %v2622 = vsel %vm742, %v2619, %v2621
        %v2623 = vrot.slane %v2586, 5
        %v2624 = vsel %vm742, %v2621, %v2623
        %v2625 = vrot.slane %v2587, 5
        %v2626 = vsel %vm742, %v2623, %v2625
        %v2627 = vrot.slane %v2588, 5
        %v2628 = vsel %vm742, %v2625, %v2627
        %v2629 = vrot.slane %v2589, 5
        %v2630 = vsel %vm742, %v2627, %v2629
        %v2631 = vrot.slane %v2590, 5
        %v2632 = vsel %vm742, %v2629, %v2631
        %v2633 = vrot.slane %v2591, 5
        %v2634 = vsel %vm742, %v2631, %v2633
        %v2635 = vrot.slane %v2592, 5
        %v2636 = vsel %vm742, %v2633, %v2635
        %v2637 = vrot.slane %v2593, 5
        %v2638 = vsel %vm742, %v2635, %v2637
        %v2639 = vrot.slane %v2594, 5
        %v2640 = vsel %vm742, %v2637, %v2639
        %v2641 = vrot.slane %v2595, 5
        %v2642 = vsel %vm742, %v2639, %v2641
        %v2643 = vrot.slane %v2596, 5
        %v2644 = vsel %vm742, %v2641, %v2643
        %v2645 = vrot.slane %v2597, 5
        %v2646 = vsel %vm742, %v2643, %v2645
        %v2647 = vrot.slane %v2598, 5
        %v2648 = vsel %vm742, %v2645, %v2647
        %2649 = vrot.lane.b32.xlu0 %v2618, 32
        %v2650 = vpop.permute.xlu0 %2649
        %2651 = vrot.lane.b32.xlu0 %v2620, 32
        %v2652 = vpop.permute.xlu0 %2651
        %2653 = vrot.lane.b32.xlu0 %v2622, 32
        %v2654 = vpop.permute.xlu0 %2653
        %2655 = vrot.lane.b32.xlu0 %v2624, 32
        %v2656 = vpop.permute.xlu0 %2655
        %2657 = vrot.lane.b32.xlu0 %v2626, 32
        %v2658 = vpop.permute.xlu0 %2657
        %2659 = vrot.lane.b32.xlu0 %v2628, 32
        %v2660 = vpop.permute.xlu0 %2659
        %2661 = vrot.lane.b32.xlu0 %v2630, 32
        %v2662 = vpop.permute.xlu0 %2661
        %2663 = vrot.lane.b32.xlu0 %v2632, 32
        %v2664 = vpop.permute.xlu0 %2663
        %2665 = vrot.lane.b32.xlu0 %v2634, 32
        %v2666 = vpop.permute.xlu0 %2665
        %2667 = vrot.lane.b32.xlu0 %v2636, 32
        %v2668 = vpop.permute.xlu0 %2667
        %2669 = vrot.lane.b32.xlu0 %v2638, 32
        %v2670 = vpop.permute.xlu0 %2669
        %2671 = vrot.lane.b32.xlu0 %v2640, 32
        %v2672 = vpop.permute.xlu0 %2671
        %2673 = vrot.lane.b32.xlu0 %v2642, 32
        %v2674 = vpop.permute.xlu0 %2673
        %2675 = vrot.lane.b32.xlu0 %v2644, 32
        %v2676 = vpop.permute.xlu0 %2675
        %2677 = vrot.lane.b32.xlu0 %v2646, 32
        %v2678 = vpop.permute.xlu0 %2677
        %2679 = vrot.lane.b32.xlu0 %v2648, 32
        %v2680 = vpop.permute.xlu0 %2679
        %2697 = vst.msk [vmem:[#allocation3 + $0x8] sm:$0xff] %vm2202, %v2650
        %2698 = vst.msk [vmem:[#allocation3 + $0x48] sm:$0xff] %vm2202, %v2652
        %2699 = vst.msk [vmem:[#allocation3 + $0x88] sm:$0xff] %vm2202, %v2654
        %2700 = vst.msk [vmem:[#allocation3 + $0xc8] sm:$0xff] %vm2202, %v2656
        %2701 = vst.msk [vmem:[#allocation3 + $0x108] sm:$0xff] %vm2202, %v2658
        %2702 = vst.msk [vmem:[#allocation3 + $0x148] sm:$0xff] %vm2202, %v2660
        %2703 = vst.msk [vmem:[#allocation3 + $0x188] sm:$0xff] %vm2202, %v2662
        %2704 = vst.msk [vmem:[#allocation3 + $0x1c8] sm:$0xff] %vm2202, %v2664
        %2705 = vst.msk [vmem:[#allocation3 + $0x208] sm:$0xff] %vm2202, %v2666
        %2706 = vst.msk [vmem:[#allocation3 + $0x248] sm:$0xff] %vm2202, %v2668
        %2707 = vst.msk [vmem:[#allocation3 + $0x288] sm:$0xff] %vm2202, %v2670
        %2708 = vst.msk [vmem:[#allocation3 + $0x2c8] sm:$0xff] %vm2202, %v2672
        %2709 = vst.msk [vmem:[#allocation3 + $0x308] sm:$0xff] %vm2202, %v2674
        %2710 = vst.msk [vmem:[#allocation3 + $0x348] sm:$0xff] %vm2202, %v2676
        %2711 = vst.msk [vmem:[#allocation3 + $0x388] sm:$0xff] %vm2202, %v2678
        %2712 = vst.msk [vmem:[#allocation3 + $0x3c8] sm:$0xff] %vm2202, %v2680
        %v2713 = vld [vmem:[#allocation2] sm:$0xc0]
        %v2714 = vld [vmem:[#allocation2 + $0x10] sm:$0xff]
        %v2715 = vld [vmem:[#allocation2 + $0x20] sm:$0xff]
        %v2716 = vld [vmem:[#allocation2 + $0x30] sm:$0xff]
        %v2717 = vld [vmem:[#allocation2 + $0x40] sm:$0xff]
        %v2718 = vld [vmem:[#allocation2 + $0x50] sm:$0xff]
        %v2719 = vld [vmem:[#allocation2 + $0x60] sm:$0xff]
        %v2720 = vld [vmem:[#allocation2 + $0x70] sm:$0xff]
        %v2721 = vld [vmem:[#allocation2 + $0x80] sm:$0xff]
        %v2722 = vld [vmem:[#allocation2 + $0x90] sm:$0xff]
        %v2723 = vld [vmem:[#allocation2 + $0xa0] sm:$0xff]
        %v2724 = vld [vmem:[#allocation2 + $0xb0] sm:$0xff]
        %v2725 = vld [vmem:[#allocation2 + $0xc0] sm:$0xff]
        %v2726 = vld [vmem:[#allocation2 + $0xd0] sm:$0xff]
        %v2727 = vld [vmem:[#allocation2 + $0xe0] sm:$0xff]
        %v2728 = vld [vmem:[#allocation2 + $0xf0] sm:$0xff]
        %v2729 = vld [vmem:[#allocation2 + $0x100] sm:$0x3f]
        %v2747 = vrot.slane %v2713, 6
        %v2748 = vrot.slane %v2714, 6
        %v2749 = vsel %vm1641, %v2747, %v2748
        %v2750 = vrot.slane %v2715, 6
        %v2751 = vsel %vm1641, %v2748, %v2750
        %v2752 = vrot.slane %v2716, 6
        %v2753 = vsel %vm1641, %v2750, %v2752
        %v2754 = vrot.slane %v2717, 6
        %v2755 = vsel %vm1641, %v2752, %v2754
        %v2756 = vrot.slane %v2718, 6
        %v2757 = vsel %vm1641, %v2754, %v2756
        %v2758 = vrot.slane %v2719, 6
        %v2759 = vsel %vm1641, %v2756, %v2758
        %v2760 = vrot.slane %v2720, 6
        %v2761 = vsel %vm1641, %v2758, %v2760
        %v2762 = vrot.slane %v2721, 6
        %v2763 = vsel %vm1641, %v2760, %v2762
        %v2764 = vrot.slane %v2722, 6
        %v2765 = vsel %vm1641, %v2762, %v2764
        %v2766 = vrot.slane %v2723, 6
        %v2767 = vsel %vm1641, %v2764, %v2766
        %v2768 = vrot.slane %v2724, 6
        %v2769 = vsel %vm1641, %v2766, %v2768
        %v2770 = vrot.slane %v2725, 6
        %v2771 = vsel %vm1641, %v2768, %v2770
        %v2772 = vrot.slane %v2726, 6
        %v2773 = vsel %vm1641, %v2770, %v2772
        %v2774 = vrot.slane %v2727, 6
        %v2775 = vsel %vm1641, %v2772, %v2774
        %v2776 = vrot.slane %v2728, 6
        %v2777 = vsel %vm1641, %v2774, %v2776
        %v2778 = vrot.slane %v2729, 6
        %v2779 = vsel %vm1641, %v2776, %v2778
        %2780 = vrot.lane.b32.xlu0 %v2749, 64
        %v2781 = vpop.permute.xlu0 %2780
        %2782 = vrot.lane.b32.xlu0 %v2751, 64
        %v2783 = vpop.permute.xlu0 %2782
        %2784 = vrot.lane.b32.xlu0 %v2753, 64
        %v2785 = vpop.permute.xlu0 %2784
        %2786 = vrot.lane.b32.xlu0 %v2755, 64
        %v2787 = vpop.permute.xlu0 %2786
        %2788 = vrot.lane.b32.xlu0 %v2757, 64
        %v2789 = vpop.permute.xlu0 %2788
        %2790 = vrot.lane.b32.xlu0 %v2759, 64
        %v2791 = vpop.permute.xlu0 %2790
        %2792 = vrot.lane.b32.xlu0 %v2761, 64
        %v2793 = vpop.permute.xlu0 %2792
        %2794 = vrot.lane.b32.xlu0 %v2763, 64
        %v2795 = vpop.permute.xlu0 %2794
        %2796 = vrot.lane.b32.xlu0 %v2765, 64
        %v2797 = vpop.permute.xlu0 %2796
        %2798 = vrot.lane.b32.xlu0 %v2767, 64
        %v2799 = vpop.permute.xlu0 %2798
        %2800 = vrot.lane.b32.xlu0 %v2769, 64
        %v2801 = vpop.permute.xlu0 %2800
        %2802 = vrot.lane.b32.xlu0 %v2771, 64
        %v2803 = vpop.permute.xlu0 %2802
        %2804 = vrot.lane.b32.xlu0 %v2773, 64
        %v2805 = vpop.permute.xlu0 %2804
        %2806 = vrot.lane.b32.xlu0 %v2775, 64
        %v2807 = vpop.permute.xlu0 %2806
        %2808 = vrot.lane.b32.xlu0 %v2777, 64
        %v2809 = vpop.permute.xlu0 %2808
        %2810 = vrot.lane.b32.xlu0 %v2779, 64
        %v2811 = vpop.permute.xlu0 %2810
        %2828 = vst.msk [vmem:[#allocation3 + $0x8] sm:$0xff] %vm2334, %v2781
        %2829 = vst.msk [vmem:[#allocation3 + $0x48] sm:$0xff] %vm2334, %v2783
        %2830 = vst.msk [vmem:[#allocation3 + $0x88] sm:$0xff] %vm2334, %v2785
        %2831 = vst.msk [vmem:[#allocation3 + $0xc8] sm:$0xff] %vm2334, %v2787
        %2832 = vst.msk [vmem:[#allocation3 + $0x108] sm:$0xff] %vm2334, %v2789
        %2833 = vst.msk [vmem:[#allocation3 + $0x148] sm:$0xff] %vm2334, %v2791
        %2834 = vst.msk [vmem:[#allocation3 + $0x188] sm:$0xff] %vm2334, %v2793
        %2835 = vst.msk [vmem:[#allocation3 + $0x1c8] sm:$0xff] %vm2334, %v2795
        %2836 = vst.msk [vmem:[#allocation3 + $0x208] sm:$0xff] %vm2334, %v2797
        %2837 = vst.msk [vmem:[#allocation3 + $0x248] sm:$0xff] %vm2334, %v2799
        %2838 = vst.msk [vmem:[#allocation3 + $0x288] sm:$0xff] %vm2334, %v2801
        %2839 = vst.msk [vmem:[#allocation3 + $0x2c8] sm:$0xff] %vm2334, %v2803
        %2840 = vst.msk [vmem:[#allocation3 + $0x308] sm:$0xff] %vm2334, %v2805
        %2841 = vst.msk [vmem:[#allocation3 + $0x348] sm:$0xff] %vm2334, %v2807
        %2842 = vst.msk [vmem:[#allocation3 + $0x388] sm:$0xff] %vm2334, %v2809
        %2843 = vst.msk [vmem:[#allocation3 + $0x3c8] sm:$0xff] %vm2334, %v2811
        %v2844 = vld [vmem:[#allocation2] sm:$0x80]
        %v2845 = vld [vmem:[#allocation2 + $0x10] sm:$0xff]
        %v2846 = vld [vmem:[#allocation2 + $0x20] sm:$0xff]
        %v2847 = vld [vmem:[#allocation2 + $0x30] sm:$0xff]
        %v2848 = vld [vmem:[#allocation2 + $0x40] sm:$0xff]
        %v2849 = vld [vmem:[#allocation2 + $0x50] sm:$0xff]
        %v2850 = vld [vmem:[#allocation2 + $0x60] sm:$0xff]
        %v2851 = vld [vmem:[#allocation2 + $0x70] sm:$0xff]
        %v2852 = vld [vmem:[#allocation2 + $0x80] sm:$0xff]
        %v2853 = vld [vmem:[#allocation2 + $0x90] sm:$0xff]
        %v2854 = vld [vmem:[#allocation2 + $0xa0] sm:$0xff]
        %v2855 = vld [vmem:[#allocation2 + $0xb0] sm:$0xff]
        %v2856 = vld [vmem:[#allocation2 + $0xc0] sm:$0xff]
        %v2857 = vld [vmem:[#allocation2 + $0xd0] sm:$0xff]
        %v2858 = vld [vmem:[#allocation2 + $0xe0] sm:$0xff]
        %v2859 = vld [vmem:[#allocation2 + $0xf0] sm:$0xff]
        %v2860 = vld [vmem:[#allocation2 + $0x100] sm:$0x7f]
        %v2878 = vrot.slane %v2844, 7
        %v2879 = vrot.slane %v2845, 7
        %v2880 = vsel %vm1754, %v2878, %v2879
        %v2881 = vrot.slane %v2846, 7
        %v2882 = vsel %vm1754, %v2879, %v2881
        %v2883 = vrot.slane %v2847, 7
        %v2884 = vsel %vm1754, %v2881, %v2883
        %v2885 = vrot.slane %v2848, 7
        %v2886 = vsel %vm1754, %v2883, %v2885
        %v2887 = vrot.slane %v2849, 7
        %v2888 = vsel %vm1754, %v2885, %v2887
        %v2889 = vrot.slane %v2850, 7
        %v2890 = vsel %vm1754, %v2887, %v2889
        %v2891 = vrot.slane %v2851, 7
        %v2892 = vsel %vm1754, %v2889, %v2891
        %v2893 = vrot.slane %v2852, 7
        %v2894 = vsel %vm1754, %v2891, %v2893
        %v2895 = vrot.slane %v2853, 7
        %v2896 = vsel %vm1754, %v2893, %v2895
        %v2897 = vrot.slane %v2854, 7
        %v2898 = vsel %vm1754, %v2895, %v2897
        %v2899 = vrot.slane %v2855, 7
        %v2900 = vsel %vm1754, %v2897, %v2899
        %v2901 = vrot.slane %v2856, 7
        %v2902 = vsel %vm1754, %v2899, %v2901
        %v2903 = vrot.slane %v2857, 7
        %v2904 = vsel %vm1754, %v2901, %v2903
        %v2905 = vrot.slane %v2858, 7
        %v2906 = vsel %vm1754, %v2903, %v2905
        %v2907 = vrot.slane %v2859, 7
        %v2908 = vsel %vm1754, %v2905, %v2907
        %v2909 = vrot.slane %v2860, 7
        %v2910 = vsel %vm1754, %v2907, %v2909
        %2911 = vrot.lane.b32.xlu0 %v2880, 96
        %v2912 = vpop.permute.xlu0 %2911
        %2913 = vrot.lane.b32.xlu0 %v2882, 96
        %v2914 = vpop.permute.xlu0 %2913
        %2915 = vrot.lane.b32.xlu0 %v2884, 96
        %v2916 = vpop.permute.xlu0 %2915
        %2917 = vrot.lane.b32.xlu0 %v2886, 96
        %v2918 = vpop.permute.xlu0 %2917
        %2919 = vrot.lane.b32.xlu0 %v2888, 96
        %v2920 = vpop.permute.xlu0 %2919
        %2921 = vrot.lane.b32.xlu0 %v2890, 96
        %v2922 = vpop.permute.xlu0 %2921
        %2923 = vrot.lane.b32.xlu0 %v2892, 96
        %v2924 = vpop.permute.xlu0 %2923
        %2925 = vrot.lane.b32.xlu0 %v2894, 96
        %v2926 = vpop.permute.xlu0 %2925
        %2927 = vrot.lane.b32.xlu0 %v2896, 96
        %v2928 = vpop.permute.xlu0 %2927
        %2929 = vrot.lane.b32.xlu0 %v2898, 96
        %v2930 = vpop.permute.xlu0 %2929
        %2931 = vrot.lane.b32.xlu0 %v2900, 96
        %v2932 = vpop.permute.xlu0 %2931
        %2933 = vrot.lane.b32.xlu0 %v2902, 96
        %v2934 = vpop.permute.xlu0 %2933
        %2935 = vrot.lane.b32.xlu0 %v2904, 96
        %v2936 = vpop.permute.xlu0 %2935
        %2937 = vrot.lane.b32.xlu0 %v2906, 96
        %v2938 = vpop.permute.xlu0 %2937
        %2939 = vrot.lane.b32.xlu0 %v2908, 96
        %v2940 = vpop.permute.xlu0 %2939
        %2941 = vrot.lane.b32.xlu0 %v2910, 96
        %v2942 = vpop.permute.xlu0 %2941
        %2959 = vst.msk [vmem:[#allocation3 + $0x8] sm:$0xff] %vm2466, %v2912
        %2960 = vst.msk [vmem:[#allocation3 + $0x48] sm:$0xff] %vm2466, %v2914
        %2961 = vst.msk [vmem:[#allocation3 + $0x88] sm:$0xff] %vm2466, %v2916
        %2962 = vst.msk [vmem:[#allocation3 + $0xc8] sm:$0xff] %vm2466, %v2918
        %2963 = vst.msk [vmem:[#allocation3 + $0x108] sm:$0xff] %vm2466, %v2920
        %2964 = vst.msk [vmem:[#allocation3 + $0x148] sm:$0xff] %vm2466, %v2922
        %2965 = vst.msk [vmem:[#allocation3 + $0x188] sm:$0xff] %vm2466, %v2924
        %2966 = vst.msk [vmem:[#allocation3 + $0x1c8] sm:$0xff] %vm2466, %v2926
        %2967 = vst.msk [vmem:[#allocation3 + $0x208] sm:$0xff] %vm2466, %v2928
        %2968 = vst.msk [vmem:[#allocation3 + $0x248] sm:$0xff] %vm2466, %v2930
        %2969 = vst.msk [vmem:[#allocation3 + $0x288] sm:$0xff] %vm2466, %v2932
        %2970 = vst.msk [vmem:[#allocation3 + $0x2c8] sm:$0xff] %vm2466, %v2934
        %2971 = vst.msk [vmem:[#allocation3 + $0x308] sm:$0xff] %vm2466, %v2936
        %2972 = vst.msk [vmem:[#allocation3 + $0x348] sm:$0xff] %vm2466, %v2938
        %2973 = vst.msk [vmem:[#allocation3 + $0x388] sm:$0xff] %vm2466, %v2940
        %2974 = vst.msk [vmem:[#allocation3 + $0x3c8] sm:$0xff] %vm2466, %v2942
        %v2975 = vld [vmem:[#allocation3] sm:$0xff]
        %v2976 = vld [vmem:[#allocation3 + $0x8] sm:$0xff]
        %v2977 = vld [vmem:[#allocation3 + $0x40] sm:$0xff]
        %v2978 = vld [vmem:[#allocation3 + $0x48] sm:$0xff]
        %v2979 = vld [vmem:[#allocation3 + $0x80] sm:$0xff]
        %v2980 = vld [vmem:[#allocation3 + $0x88] sm:$0xff]
        %v2981 = vld [vmem:[#allocation3 + $0xc0] sm:$0xff]
        %v2982 = vld [vmem:[#allocation3 + $0xc8] sm:$0xff]
        %v2983 = vld [vmem:[#allocation3 + $0x100] sm:$0xff]
        %v2984 = vld [vmem:[#allocation3 + $0x108] sm:$0xff]
        %v2985 = vld [vmem:[#allocation3 + $0x140] sm:$0xff]
        %v2986 = vld [vmem:[#allocation3 + $0x148] sm:$0xff]
        %v2987 = vld [vmem:[#allocation3 + $0x180] sm:$0xff]
        %v2988 = vld [vmem:[#allocation3 + $0x188] sm:$0xff]
        %v2989 = vld [vmem:[#allocation3 + $0x1c0] sm:$0xff]
        %v2990 = vld [vmem:[#allocation3 + $0x1c8] sm:$0xff]
        %v2991 = vld [vmem:[#allocation3 + $0x200] sm:$0xff]
        %v2992 = vld [vmem:[#allocation3 + $0x208] sm:$0xff]
        %v2993 = vld [vmem:[#allocation3 + $0x240] sm:$0xff]
        %v2994 = vld [vmem:[#allocation3 + $0x248] sm:$0xff]
        %v2995 = vld [vmem:[#allocation3 + $0x280] sm:$0xff]
        %v2996 = vld [vmem:[#allocation3 + $0x288] sm:$0xff]
        %v2997 = vld [vmem:[#allocation3 + $0x2c0] sm:$0xff]
        %v2998 = vld [vmem:[#allocation3 + $0x2c8] sm:$0xff]
        %v2999 = vld [vmem:[#allocation3 + $0x300] sm:$0xff]
        %v3000 = vld [vmem:[#allocation3 + $0x308] sm:$0xff]
        %v3001 = vld [vmem:[#allocation3 + $0x340] sm:$0xff]
        %v3002 = vld [vmem:[#allocation3 + $0x348] sm:$0xff]
        %v3003 = vld [vmem:[#allocation3 + $0x380] sm:$0xff]
        %v3004 = vld [vmem:[#allocation3 + $0x388] sm:$0xff]
        %v3005 = vld [vmem:[#allocation3 + $0x3c0] sm:$0xff]
        %v3006 = vld [vmem:[#allocation3 + $0x3c8] sm:$0xff]
        %v3007 = vpack.c.bf16 %v2977, %v2975
        %v3008 = vpack.c.bf16 %v2978, %v2976
        %v3009 = vpack.c.bf16 %v2981, %v2979
        %v3010 = vpack.c.bf16 %v2982, %v2980
        %v3011 = vpack.c.bf16 %v2985, %v2983
        %v3012 = vpack.c.bf16 %v2986, %v2984
        %v3013 = vpack.c.bf16 %v2989, %v2987
        %v3014 = vpack.c.bf16 %v2990, %v2988
        %v3015 = vpack.c.bf16 %v2993, %v2991
        %v3016 = vpack.c.bf16 %v2994, %v2992
        %v3017 = vpack.c.bf16 %v2997, %v2995
        %v3018 = vpack.c.bf16 %v2998, %v2996
        %v3019 = vpack.c.bf16 %v3001, %v2999
        %v3020 = vpack.c.bf16 %v3002, %v3000
        %v3021 = vpack.c.bf16 %v3005, %v3003
        %v3022 = vpack.c.bf16 %v3006, %v3004
        %v3055 = vunpack.c.l.b16 %v1935
        %v3056 = vunpack.c.l.b16 %v1936
        %v3057 = vunpack.c.l.b16 %v1937
        %v3058 = vunpack.c.l.b16 %v1938
        %v3059 = vunpack.c.l.b16 %v1939
        %v3060 = vunpack.c.l.b16 %v1940
        %v3061 = vunpack.c.l.b16 %v1941
        %v3062 = vunpack.c.l.b16 %v1942
        %v3063 = vunpack.c.l.b16 %v1943
        %v3064 = vunpack.c.l.b16 %v1944
        %v3065 = vunpack.c.l.b16 %v1945
        %v3066 = vunpack.c.l.b16 %v1946
        %v3067 = vunpack.c.l.b16 %v1947
        %v3068 = vunpack.c.l.b16 %v1948
        %v3069 = vunpack.c.l.b16 %v1949
        %v3070 = vunpack.c.l.b16 %v1950
        %v3071 = vunpack.c.l.b16 %v1951
        %v3072 = vunpack.c.l.b16 %v1952
        %v3073 = vunpack.c.l.b16 %v1953
        %v3074 = vunpack.c.l.b16 %v1954
        %v3075 = vunpack.c.l.b16 %v1955
        %v3076 = vunpack.c.l.b16 %v1956
        %v3077 = vunpack.c.l.b16 %v1957
        %v3078 = vunpack.c.l.b16 %v1958
        %v3079 = vunpack.c.l.b16 %v1959
        %v3080 = vunpack.c.l.b16 %v1960
        %v3081 = vunpack.c.l.b16 %v1961
        %v3082 = vunpack.c.l.b16 %v1962
        %v3083 = vunpack.c.l.b16 %v1963
        %v3084 = vunpack.c.l.b16 %v1964
        %v3085 = vunpack.c.l.b16 %v1965
        %v3086 = vunpack.c.l.b16 %v1966
        %v3087 = vpack.c.b16 %v3056, %v3055
        %v3088 = vpack.c.b16 %v3058, %v3057
        %v3089 = vpack.c.b16 %v3060, %v3059
        %v3090 = vpack.c.b16 %v3062, %v3061
        %v3091 = vpack.c.b16 %v3064, %v3063
        %v3092 = vpack.c.b16 %v3066, %v3065
        %v3093 = vpack.c.b16 %v3068, %v3067
        %v3094 = vpack.c.b16 %v3070, %v3069
        %v3095 = vpack.c.b16 %v3072, %v3071
        %v3096 = vpack.c.b16 %v3074, %v3073
        %v3097 = vpack.c.b16 %v3076, %v3075
        %v3098 = vpack.c.b16 %v3078, %v3077
        %v3099 = vpack.c.b16 %v3080, %v3079
        %v3100 = vpack.c.b16 %v3082, %v3081
        %v3101 = vpack.c.b16 %v3084, %v3083
        %v3102 = vpack.c.b16 %v3086, %v3085
        %3119 = vmatpush.bf16.msra.mxu0 %v3094
        %3120 = vmatpush.bf16.msra.mxu0 %v3093
        %3121 = vmatpush.bf16.msra.mxu0 %v3092
        %3122 = vmatpush.bf16.msra.mxu0 %v3091
        %3123 = vmatpush.bf16.msra.mxu0 %v3090
        %3124 = vmatpush.bf16.msra.mxu0 %v3089
        %3125 = vmatpush.bf16.msra.mxu0 %v3088
        %3126 = vmatpush.bf16.msra.mxu0 %v3087
        %3127 = vmatmul.bf16.gmra.mxu0 %v3007
        %v3128 = vpop.f32.mrf.mxu0
        %v3129 = vadd.f32 0.0, %v3128
        %v3130 = vpop.f32.mrf.mxu0
        %v3131 = vadd.f32 0.0, %v3130
        %3132 = vmatmul.bf16.gmra.mxu0 %v3009
        %v3133 = vpop.f32.mrf.mxu0
        %v3134 = vadd.f32 0.0, %v3133
        %v3135 = vpop.f32.mrf.mxu0
        %v3136 = vadd.f32 0.0, %v3135
        %3137 = vmatmul.bf16.gmra.mxu0 %v3011
        %v3138 = vpop.f32.mrf.mxu0
        %v3139 = vadd.f32 0.0, %v3138
        %v3140 = vpop.f32.mrf.mxu0
        %v3141 = vadd.f32 0.0, %v3140
        %3142 = vmatmul.bf16.gmra.mxu0 %v3013
        %v3143 = vpop.f32.mrf.mxu0
        %v3144 = vadd.f32 0.0, %v3143
        %v3145 = vpop.f32.mrf.mxu0
        %v3146 = vadd.f32 0.0, %v3145
        %3147 = vmatmul.bf16.gmra.mxu0 %v3015
        %v3148 = vpop.f32.mrf.mxu0
        %v3149 = vadd.f32 0.0, %v3148
        %v3150 = vpop.f32.mrf.mxu0
        %v3151 = vadd.f32 0.0, %v3150
        %3152 = vmatmul.bf16.gmra.mxu0 %v3017
        %v3153 = vpop.f32.mrf.mxu0
        %v3154 = vadd.f32 0.0, %v3153
        %v3155 = vpop.f32.mrf.mxu0
        %v3156 = vadd.f32 0.0, %v3155
        %3157 = vmatmul.bf16.gmra.mxu0 %v3019
        %v3158 = vpop.f32.mrf.mxu0
        %v3159 = vadd.f32 0.0, %v3158
        %v3160 = vpop.f32.mrf.mxu0
        %v3161 = vadd.f32 0.0, %v3160
        %3162 = vmatmul.bf16.gmra.mxu0 %v3021
        %v3163 = vpop.f32.mrf.mxu0
        %v3164 = vadd.f32 0.0, %v3163
        %v3165 = vpop.f32.mrf.mxu0
        %v3166 = vadd.f32 0.0, %v3165
        %3167 = vdwg.mxu0
        %3168 = vmatpush.bf16.msra.mxu0 %v3102
        %3169 = vmatpush.bf16.msra.mxu0 %v3101
        %3170 = vmatpush.bf16.msra.mxu0 %v3100
        %3171 = vmatpush.bf16.msra.mxu0 %v3099
        %3172 = vmatpush.bf16.msra.mxu0 %v3098
        %3173 = vmatpush.bf16.msra.mxu0 %v3097
        %3174 = vmatpush.bf16.msra.mxu0 %v3096
        %3175 = vmatpush.bf16.msra.mxu0 %v3095
        %3176 = vmatmul.bf16.gmra.mxu0 %v3008
        %v3177 = vpop.f32.mrf.mxu0
        %v3178 = vadd.f32 %v3129, %v3177
        %v3179 = vpop.f32.mrf.mxu0
        %v3180 = vadd.f32 %v3131, %v3179
        %3181 = vmatmul.bf16.gmra.mxu0 %v3010
        %v3182 = vpop.f32.mrf.mxu0
        %v3183 = vadd.f32 %v3134, %v3182
        %v3184 = vpop.f32.mrf.mxu0
        %v3185 = vadd.f32 %v3136, %v3184
        %3186 = vmatmul.bf16.gmra.mxu0 %v3012
        %v3187 = vpop.f32.mrf.mxu0
        %v3188 = vadd.f32 %v3139, %v3187
        %v3189 = vpop.f32.mrf.mxu0
        %v3190 = vadd.f32 %v3141, %v3189
        %3191 = vmatmul.bf16.gmra.mxu0 %v3014
        %v3192 = vpop.f32.mrf.mxu0
        %v3193 = vadd.f32 %v3144, %v3192
        %v3194 = vpop.f32.mrf.mxu0
        %v3195 = vadd.f32 %v3146, %v3194
        %3196 = vmatmul.bf16.gmra.mxu0 %v3016
        %v3197 = vpop.f32.mrf.mxu0
        %v3198 = vadd.f32 %v3149, %v3197
        %v3199 = vpop.f32.mrf.mxu0
        %v3200 = vadd.f32 %v3151, %v3199
        %3201 = vmatmul.bf16.gmra.mxu0 %v3018
        %v3202 = vpop.f32.mrf.mxu0
        %v3203 = vadd.f32 %v3154, %v3202
        %v3204 = vpop.f32.mrf.mxu0
        %v3205 = vadd.f32 %v3156, %v3204
        %3206 = vmatmul.bf16.gmra.mxu0 %v3020
        %v3207 = vpop.f32.mrf.mxu0
        %v3208 = vadd.f32 %v3159, %v3207
        %v3209 = vpop.f32.mrf.mxu0
        %v3210 = vadd.f32 %v3161, %v3209
        %3211 = vmatmul.bf16.gmra.mxu0 %v3022
        %v3212 = vpop.f32.mrf.mxu0
        %v3213 = vadd.f32 %v3164, %v3212
        %v3214 = vpop.f32.mrf.mxu0
        %v3215 = vadd.f32 %v3166, %v3214
        %3216 = vdwg.mxu0
        %v3218 = vperm.slane %v1967, 0
        %v3220 = vadd.f32 %v3178, %v3218
        %v3221 = vadd.f32 %v3180, %v3218
        %v3222 = vadd.f32 %v3183, %v3218
        %v3223 = vadd.f32 %v3185, %v3218
        %v3224 = vadd.f32 %v3188, %v3218
        %v3225 = vadd.f32 %v3190, %v3218
        %v3226 = vadd.f32 %v3193, %v3218
        %v3227 = vadd.f32 %v3195, %v3218
        %v3228 = vadd.f32 %v3198, %v3218
        %v3229 = vadd.f32 %v3200, %v3218
        %v3230 = vadd.f32 %v3203, %v3218
        %v3231 = vadd.f32 %v3205, %v3218
        %v3232 = vadd.f32 %v3208, %v3218
        %v3233 = vadd.f32 %v3210, %v3218
        %v3234 = vadd.f32 %v3213, %v3218
        %v3235 = vadd.f32 %v3215, %v3218
        %vm3236 = vcmp.gt.f32.partialorder %v3220, 0.0
        %vm3237 = vcmp.gt.f32.partialorder %v3221, 0.0
        %vm3238 = vcmp.gt.f32.partialorder %v3222, 0.0
        %vm3239 = vcmp.gt.f32.partialorder %v3223, 0.0
        %vm3240 = vcmp.gt.f32.partialorder %v3224, 0.0
        %vm3241 = vcmp.gt.f32.partialorder %v3225, 0.0
        %vm3242 = vcmp.gt.f32.partialorder %v3226, 0.0
        %vm3243 = vcmp.gt.f32.partialorder %v3227, 0.0
        %vm3244 = vcmp.gt.f32.partialorder %v3228, 0.0
        %vm3245 = vcmp.gt.f32.partialorder %v3229, 0.0
        %vm3246 = vcmp.gt.f32.partialorder %v3230, 0.0
        %vm3247 = vcmp.gt.f32.partialorder %v3231, 0.0
        %vm3248 = vcmp.gt.f32.partialorder %v3232, 0.0
        %vm3249 = vcmp.gt.f32.partialorder %v3233, 0.0
        %vm3250 = vcmp.gt.f32.partialorder %v3234, 0.0
        %vm3251 = vcmp.gt.f32.partialorder %v3235, 0.0
        %v3252 = vmin.f32 %v3220, 0.0
        %v3253 = vmin.f32 %v3221, 0.0
        %v3254 = vmin.f32 %v3222, 0.0
        %v3255 = vmin.f32 %v3223, 0.0
        %v3256 = vmin.f32 %v3224, 0.0
        %v3257 = vmin.f32 %v3225, 0.0
        %v3258 = vmin.f32 %v3226, 0.0
        %v3259 = vmin.f32 %v3227, 0.0
        %v3260 = vmin.f32 %v3228, 0.0
        %v3261 = vmin.f32 %v3229, 0.0
        %v3262 = vmin.f32 %v3230, 0.0
        %v3263 = vmin.f32 %v3231, 0.0
        %v3264 = vmin.f32 %v3232, 0.0
        %v3265 = vmin.f32 %v3233, 0.0
        %v3266 = vmin.f32 %v3234, 0.0
        %v3267 = vmin.f32 %v3235, 0.0
        %v3268 = vmul.f32 %v3252, 1.442695
        %v3269 = vpow.pop %v3268
        %v3270 = vmul.f32 %v3253, 1.442695
        %v3271 = vpow.pop %v3270
        %v3272 = vmul.f32 %v3254, 1.442695
        %v3273 = vpow.pop %v3272
        %v3274 = vmul.f32 %v3255, 1.442695
        %v3275 = vpow.pop %v3274
        %v3276 = vmul.f32 %v3256, 1.442695
        %v3277 = vpow.pop %v3276
        %v3278 = vmul.f32 %v3257, 1.442695
        %v3279 = vpow.pop %v3278
        %v3280 = vmul.f32 %v3258, 1.442695
        %v3281 = vpow.pop %v3280
        %v3282 = vmul.f32 %v3259, 1.442695
        %v3283 = vpow.pop %v3282
        %v3284 = vmul.f32 %v3260, 1.442695
        %v3285 = vpow.pop %v3284
        %v3286 = vmul.f32 %v3261, 1.442695
        %v3287 = vpow.pop %v3286
        %v3288 = vmul.f32 %v3262, 1.442695
        %v3289 = vpow.pop %v3288
        %v3290 = vmul.f32 %v3263, 1.442695
        %v3291 = vpow.pop %v3290
        %v3292 = vmul.f32 %v3264, 1.442695
        %v3293 = vpow.pop %v3292
        %v3294 = vmul.f32 %v3265, 1.442695
        %v3295 = vpow.pop %v3294
        %v3296 = vmul.f32 %v3266, 1.442695
        %v3297 = vpow.pop %v3296
        %v3298 = vmul.f32 %v3267, 1.442695
        %v3299 = vpow.pop %v3298
        %v3300 = vsub.f32 %v3269, 1.0
        %v3301 = vsub.f32 %v3271, 1.0
        %v3302 = vsub.f32 %v3273, 1.0
        %v3303 = vsub.f32 %v3275, 1.0
        %v3304 = vsub.f32 %v3277, 1.0
        %v3305 = vsub.f32 %v3279, 1.0
        %v3306 = vsub.f32 %v3281, 1.0
        %v3307 = vsub.f32 %v3283, 1.0
        %v3308 = vsub.f32 %v3285, 1.0
        %v3309 = vsub.f32 %v3287, 1.0
        %v3310 = vsub.f32 %v3289, 1.0
        %v3311 = vsub.f32 %v3291, 1.0
        %v3312 = vsub.f32 %v3293, 1.0
        %v3313 = vsub.f32 %v3295, 1.0
        %v3314 = vsub.f32 %v3297, 1.0
        %v3315 = vsub.f32 %v3299, 1.0
        %v3316 = vsel %vm3236, %v3220, %v3300
        %v3317 = vsel %vm3237, %v3221, %v3301
        %v3318 = vsel %vm3238, %v3222, %v3302
        %v3319 = vsel %vm3239, %v3223, %v3303
        %v3320 = vsel %vm3240, %v3224, %v3304
        %v3321 = vsel %vm3241, %v3225, %v3305
        %v3322 = vsel %vm3242, %v3226, %v3306
        %v3323 = vsel %vm3243, %v3227, %v3307
        %v3324 = vsel %vm3244, %v3228, %v3308
        %v3325 = vsel %vm3245, %v3229, %v3309
        %v3326 = vsel %vm3246, %v3230, %v3310
        %v3327 = vsel %vm3247, %v3231, %v3311
        %v3328 = vsel %vm3248, %v3232, %v3312
        %v3329 = vsel %vm3249, %v3233, %v3313
        %v3330 = vsel %vm3250, %v3234, %v3314
        %v3331 = vsel %vm3251, %v3235, %v3315
        %3332 = vst.msk [vmem:[#allocation2] sm:$0x7] %vm1968, 0.0
        %3333 = vst.msk [vmem:[#allocation2 + $0x100] sm:$0x78] %vm1970, 0.0
        %v3350 = vrot.slane %v3316, 5
        %v3351 = vrot.slane %v3317, 5
        %v3352 = vsel %vm742, %v3350, %v3351
        %v3353 = vrot.slane %v3318, 5
        %v3354 = vsel %vm742, %v3351, %v3353
        %v3355 = vrot.slane %v3319, 5
        %v3356 = vsel %vm742, %v3353, %v3355
        %v3357 = vrot.slane %v3320, 5
        %v3358 = vsel %vm742, %v3355, %v3357
        %v3359 = vrot.slane %v3321, 5
        %v3360 = vsel %vm742, %v3357, %v3359
        %v3361 = vrot.slane %v3322, 5
        %v3362 = vsel %vm742, %v3359, %v3361
        %v3363 = vrot.slane %v3323, 5
        %v3364 = vsel %vm742, %v3361, %v3363
        %v3365 = vrot.slane %v3324, 5
        %v3366 = vsel %vm742, %v3363, %v3365
        %v3367 = vrot.slane %v3325, 5
        %v3368 = vsel %vm742, %v3365, %v3367
        %v3369 = vrot.slane %v3326, 5
        %v3370 = vsel %vm742, %v3367, %v3369
        %v3371 = vrot.slane %v3327, 5
        %v3372 = vsel %vm742, %v3369, %v3371
        %v3373 = vrot.slane %v3328, 5
        %v3374 = vsel %vm742, %v3371, %v3373
        %v3375 = vrot.slane %v3329, 5
        %v3376 = vsel %vm742, %v3373, %v3375
        %v3377 = vrot.slane %v3330, 5
        %v3378 = vsel %vm742, %v3375, %v3377
        %v3379 = vrot.slane %v3331, 5
        %v3380 = vsel %vm742, %v3377, %v3379
        %3398 = vst.msk [vmem:[#allocation2] sm:$0xf8] %vm2036, %v3350
        %3399 = vst.msk [vmem:[#allocation2 + $0x10] sm:$0xff] %vm2038, %v3352
        %3400 = vst.msk [vmem:[#allocation2 + $0x20] sm:$0xff] %vm2038, %v3354
        %3401 = vst.msk [vmem:[#allocation2 + $0x30] sm:$0xff] %vm2038, %v3356
        %3402 = vst.msk [vmem:[#allocation2 + $0x40] sm:$0xff] %vm2038, %v3358
        %3403 = vst.msk [vmem:[#allocation2 + $0x50] sm:$0xff] %vm2038, %v3360
        %3404 = vst.msk [vmem:[#allocation2 + $0x60] sm:$0xff] %vm2038, %v3362
        %3405 = vst.msk [vmem:[#allocation2 + $0x70] sm:$0xff] %vm2038, %v3364
        %3406 = vst.msk [vmem:[#allocation2 + $0x80] sm:$0xff] %vm2038, %v3366
        %3407 = vst.msk [vmem:[#allocation2 + $0x90] sm:$0xff] %vm2038, %v3368
        %3408 = vst.msk [vmem:[#allocation2 + $0xa0] sm:$0xff] %vm2038, %v3370
        %3409 = vst.msk [vmem:[#allocation2 + $0xb0] sm:$0xff] %vm2038, %v3372
        %3410 = vst.msk [vmem:[#allocation2 + $0xc0] sm:$0xff] %vm2038, %v3374
        %3411 = vst.msk [vmem:[#allocation2 + $0xd0] sm:$0xff] %vm2038, %v3376
        %3412 = vst.msk [vmem:[#allocation2 + $0xe0] sm:$0xff] %vm2038, %v3378
        %3413 = vst.msk [vmem:[#allocation2 + $0xf0] sm:$0xff] %vm2038, %v3380
        %3414 = vst.msk [vmem:[#allocation2 + $0x100] sm:$0x7] %vm1968, %v3379
        %v3415 = vld [vmem:[#allocation2] sm:$0xff]
        %v3416 = vsel %vm2038, %v3415, -inf
        %v3417 = vrot.slane %v3416, 4
        %v3418 = vmax.f32 %v3416, %v3417
        %v3419 = vrot.slane %v3418, 2
        %v3420 = vmax.f32 %v3418, %v3419
        %v3421 = vrot.slane %v3420, 1
        %v3422 = vmax.f32 %v3420, %v3421
        %vm3423 = vcmask 253952
        %3424 = vst.msk [vmem:[#allocation4] sm:$0x1] %vm3423, %v3422
        %v3425 = vld [vmem:[#allocation2 + $0x10] sm:$0xff]
        %v3426 = vsel %vm2038, %v3425, -inf
        %v3427 = vrot.slane %v3426, 4
        %v3428 = vmax.f32 %v3426, %v3427
        %v3429 = vrot.slane %v3428, 2
        %v3430 = vmax.f32 %v3428, %v3429
        %v3431 = vrot.slane %v3430, 1
        %v3432 = vmax.f32 %v3430, %v3431
        %3433 = vst.msk [vmem:[#allocation4 + $0x1] sm:$0x1] %vm3423, %v3432
        %v3434 = vld [vmem:[#allocation2 + $0x20] sm:$0xff]
        %v3435 = vsel %vm2038, %v3434, -inf
        %v3436 = vrot.slane %v3435, 4
        %v3437 = vmax.f32 %v3435, %v3436
        %v3438 = vrot.slane %v3437, 2
        %v3439 = vmax.f32 %v3437, %v3438
        %v3440 = vrot.slane %v3439, 1
        %v3441 = vmax.f32 %v3439, %v3440
        %3442 = vst.msk [vmem:[#allocation4 + $0x2] sm:$0x1] %vm3423, %v3441
        %v3443 = vld [vmem:[#allocation2 + $0x30] sm:$0xff]
        %v3444 = vsel %vm2038, %v3443, -inf
        %v3445 = vrot.slane %v3444, 4
        %v3446 = vmax.f32 %v3444, %v3445
        %v3447 = vrot.slane %v3446, 2
        %v3448 = vmax.f32 %v3446, %v3447
        %v3449 = vrot.slane %v3448, 1
        %v3450 = vmax.f32 %v3448, %v3449
        %3451 = vst.msk [vmem:[#allocation4 + $0x3] sm:$0x1] %vm3423, %v3450
        %v3452 = vld [vmem:[#allocation2 + $0x40] sm:$0xff]
        %v3453 = vsel %vm2038, %v3452, -inf
        %v3454 = vrot.slane %v3453, 4
        %v3455 = vmax.f32 %v3453, %v3454
        %v3456 = vrot.slane %v3455, 2
        %v3457 = vmax.f32 %v3455, %v3456
        %v3458 = vrot.slane %v3457, 1
        %v3459 = vmax.f32 %v3457, %v3458
        %3460 = vst.msk [vmem:[#allocation4 + $0x4] sm:$0x1] %vm3423, %v3459
        %v3461 = vld [vmem:[#allocation2 + $0x50] sm:$0xff]
        %v3462 = vsel %vm2038, %v3461, -inf
        %v3463 = vrot.slane %v3462, 4
        %v3464 = vmax.f32 %v3462, %v3463
        %v3465 = vrot.slane %v3464, 2
        %v3466 = vmax.f32 %v3464, %v3465
        %v3467 = vrot.slane %v3466, 1
        %v3468 = vmax.f32 %v3466, %v3467
        %3469 = vst.msk [vmem:[#allocation4 + $0x5] sm:$0x1] %vm3423, %v3468
        %v3470 = vld [vmem:[#allocation2 + $0x60] sm:$0xff]
        %v3471 = vsel %vm2038, %v3470, -inf
        %v3472 = vrot.slane %v3471, 4
        %v3473 = vmax.f32 %v3471, %v3472
        %v3474 = vrot.slane %v3473, 2
        %v3475 = vmax.f32 %v3473, %v3474
        %v3476 = vrot.slane %v3475, 1
        %v3477 = vmax.f32 %v3475, %v3476
        %3478 = vst.msk [vmem:[#allocation4 + $0x6] sm:$0x1] %vm3423, %v3477
        %v3479 = vld [vmem:[#allocation2 + $0x70] sm:$0xff]
        %v3480 = vsel %vm2038, %v3479, -inf
        %v3481 = vrot.slane %v3480, 4
        %v3482 = vmax.f32 %v3480, %v3481
        %v3483 = vrot.slane %v3482, 2
        %v3484 = vmax.f32 %v3482, %v3483
        %v3485 = vrot.slane %v3484, 1
        %v3486 = vmax.f32 %v3484, %v3485
        %3487 = vst.msk [vmem:[#allocation4 + $0x7] sm:$0x1] %vm3423, %v3486
        %v3488 = vld [vmem:[#allocation2 + $0x80] sm:$0xff]
        %v3489 = vsel %vm2038, %v3488, -inf
        %v3490 = vrot.slane %v3489, 4
        %v3491 = vmax.f32 %v3489, %v3490
        %v3492 = vrot.slane %v3491, 2
        %v3493 = vmax.f32 %v3491, %v3492
        %v3494 = vrot.slane %v3493, 1
        %v3495 = vmax.f32 %v3493, %v3494
        %3496 = vst.msk [vmem:[#allocation4 + $0x10] sm:$0x1] %vm3423, %v3495
        %v3497 = vld [vmem:[#allocation2 + $0x90] sm:$0xff]
        %v3498 = vsel %vm2038, %v3497, -inf
        %v3499 = vrot.slane %v3498, 4
        %v3500 = vmax.f32 %v3498, %v3499
        %v3501 = vrot.slane %v3500, 2
        %v3502 = vmax.f32 %v3500, %v3501
        %v3503 = vrot.slane %v3502, 1
        %v3504 = vmax.f32 %v3502, %v3503
        %3505 = vst.msk [vmem:[#allocation4 + $0x11] sm:$0x1] %vm3423, %v3504
        %v3506 = vld [vmem:[#allocation2 + $0xa0] sm:$0xff]
        %v3507 = vsel %vm2038, %v3506, -inf
        %v3508 = vrot.slane %v3507, 4
        %v3509 = vmax.f32 %v3507, %v3508
        %v3510 = vrot.slane %v3509, 2
        %v3511 = vmax.f32 %v3509, %v3510
        %v3512 = vrot.slane %v3511, 1
        %v3513 = vmax.f32 %v3511, %v3512
        %3514 = vst.msk [vmem:[#allocation4 + $0x12] sm:$0x1] %vm3423, %v3513
        %v3515 = vld [vmem:[#allocation2 + $0xb0] sm:$0xff]
        %v3516 = vsel %vm2038, %v3515, -inf
        %v3517 = vrot.slane %v3516, 4
        %v3518 = vmax.f32 %v3516, %v3517
        %v3519 = vrot.slane %v3518, 2
        %v3520 = vmax.f32 %v3518, %v3519
        %v3521 = vrot.slane %v3520, 1
        %v3522 = vmax.f32 %v3520, %v3521
        %3523 = vst.msk [vmem:[#allocation4 + $0x13] sm:$0x1] %vm3423, %v3522
        %v3524 = vld [vmem:[#allocation2 + $0xc0] sm:$0xff]
        %v3525 = vsel %vm2038, %v3524, -inf
        %v3526 = vrot.slane %v3525, 4
        %v3527 = vmax.f32 %v3525, %v3526
        %v3528 = vrot.slane %v3527, 2
        %v3529 = vmax.f32 %v3527, %v3528
        %v3530 = vrot.slane %v3529, 1
        %v3531 = vmax.f32 %v3529, %v3530
        %3532 = vst.msk [vmem:[#allocation4 + $0x14] sm:$0x1] %vm3423, %v3531
        %v3533 = vld [vmem:[#allocation2 + $0xd0] sm:$0xff]
        %v3534 = vsel %vm2038, %v3533, -inf
        %v3535 = vrot.slane %v3534, 4
        %v3536 = vmax.f32 %v3534, %v3535
        %v3537 = vrot.slane %v3536, 2
        %v3538 = vmax.f32 %v3536, %v3537
        %v3539 = vrot.slane %v3538, 1
        %v3540 = vmax.f32 %v3538, %v3539
        %3541 = vst.msk [vmem:[#allocation4 + $0x15] sm:$0x1] %vm3423, %v3540
        %v3542 = vld [vmem:[#allocation2 + $0xe0] sm:$0xff]
        %v3543 = vsel %vm2038, %v3542, -inf
        %v3544 = vrot.slane %v3543, 4
        %v3545 = vmax.f32 %v3543, %v3544
        %v3546 = vrot.slane %v3545, 2
        %v3547 = vmax.f32 %v3545, %v3546
        %v3548 = vrot.slane %v3547, 1
        %v3549 = vmax.f32 %v3547, %v3548
        %3550 = vst.msk [vmem:[#allocation4 + $0x16] sm:$0x1] %vm3423, %v3549
        %v3551 = vld [vmem:[#allocation2 + $0xf0] sm:$0xff]
        %v3552 = vsel %vm2038, %v3551, -inf
        %v3553 = vrot.slane %v3552, 4
        %v3554 = vmax.f32 %v3552, %v3553
        %v3555 = vrot.slane %v3554, 2
        %v3556 = vmax.f32 %v3554, %v3555
        %v3557 = vrot.slane %v3556, 1
        %v3558 = vmax.f32 %v3556, %v3557
        %3559 = vst.msk [vmem:[#allocation4 + $0x17] sm:$0x1] %vm3423, %v3558
        %v3560 = vld [vmem:[#allocation4] sm:$0xff]
        %v3561 = vld [vmem:[#allocation4 + $0x10] sm:$0xff]
        %v3562 = vld [vmem:[%s5] sm:$0xf]
        %v3563 = vld [vmem:[%s5 + $0x4] sm:$0xf]
        %v3564 = vld [vmem:[%s5 + $0x8] sm:$0xf]
        %v3565 = vld [vmem:[%s5 + $0xc] sm:$0xf]
        %v3566 = vld [vmem:[%s5 + $0x10] sm:$0xf]
        %v3567 = vld [vmem:[%s5 + $0x14] sm:$0xf]
        %v3568 = vld [vmem:[%s5 + $0x18] sm:$0xf]
        %v3569 = vld [vmem:[%s5 + $0x1c] sm:$0xf]
        %v3570 = vld [vmem:[%s5 + $0x20] sm:$0xf]
        %v3571 = vld [vmem:[%s5 + $0x24] sm:$0xf]
        %v3572 = vld [vmem:[%s5 + $0x28] sm:$0xf]
        %v3573 = vld [vmem:[%s5 + $0x2c] sm:$0xf]
        %v3574 = vld [vmem:[%s5 + $0x30] sm:$0xf]
        %v3575 = vld [vmem:[%s5 + $0x34] sm:$0xf]
        %v3576 = vld [vmem:[%s5 + $0x38] sm:$0xf]
        %v3577 = vld [vmem:[%s5 + $0x3c] sm:$0xf]
        %v3578 = vld [vmem:[%s5 + $0x40] sm:$0xf]
        %v3579 = vld [vmem:[%s5 + $0x44] sm:$0xf]
        %v3580 = vld [vmem:[%s5 + $0x48] sm:$0xf]
        %v3581 = vld [vmem:[%s5 + $0x4c] sm:$0xf]
        %v3582 = vld [vmem:[%s5 + $0x50] sm:$0xf]
        %v3583 = vld [vmem:[%s5 + $0x54] sm:$0xf]
        %v3584 = vld [vmem:[%s5 + $0x58] sm:$0xf]
        %v3585 = vld [vmem:[%s5 + $0x5c] sm:$0xf]
        %v3586 = vld [vmem:[%s5 + $0x60] sm:$0xf]
        %v3587 = vld [vmem:[%s5 + $0x64] sm:$0xf]
        %v3588 = vld [vmem:[%s5 + $0x68] sm:$0xf]
        %v3589 = vld [vmem:[%s5 + $0x6c] sm:$0xf]
        %v3590 = vld [vmem:[%s5 + $0x70] sm:$0xf]
        %v3591 = vld [vmem:[%s5 + $0x74] sm:$0xf]
        %v3592 = vld [vmem:[%s5 + $0x78] sm:$0xf]
        %v3593 = vld [vmem:[%s5 + $0x7c] sm:$0xf]
        %v3594 = vld [vmem:[%s6] sm:$0x1]
        %3595 = vst.msk [vmem:[#allocation2] sm:$0x7] %vm1968, 0.0
        %3596 = vst.msk [vmem:[#allocation2 + $0x20] sm:$0x78] %vm1970, 0.0
        %v3599 = vrot.slane %v3560, 5
        %v3600 = vrot.slane %v3561, 5
        %v3601 = vsel %vm742, %v3599, %v3600
        %3605 = vst.msk [vmem:[#allocation2] sm:$0xf8] %vm2036, %v3599
        %3606 = vst.msk [vmem:[#allocation2 + $0x10] sm:$0xff] %vm2038, %v3601
        %3607 = vst.msk [vmem:[#allocation2 + $0x20] sm:$0x7] %vm1968, %v3600
        %v3608 = vld [vmem:[#allocation2] sm:$0xff]
        %v3609 = vld [vmem:[#allocation2 + $0x10] sm:$0xff]
        %3610 = vst.msk [vmem:[#allocation3] sm:$0xff] %vm2038, %v3608
        %3611 = vst.msk [vmem:[#allocation3 + $0x40] sm:$0xff] %vm2038, %v3609
        %v3612 = vld [vmem:[#allocation2] sm:$0xfe]
        %v3613 = vld [vmem:[#allocation2 + $0x10] sm:$0xff]
        %v3614 = vld [vmem:[#allocation2 + $0x20] sm:$0x1]
        %v3618 = vrot.slane %v3612, 1
        %v3619 = vrot.slane %v3613, 1
        %v3620 = vsel %vm1077, %v3618, %v3619
        %v3621 = vrot.slane %v3614, 1
        %v3622 = vsel %vm1077, %v3619, %v3621
        %3623 = vrot.lane.b32.xlu0 %v3620, 32
        %v3624 = vpop.permute.xlu0 %3623
        %3625 = vrot.lane.b32.xlu0 %v3622, 32
        %v3626 = vpop.permute.xlu0 %3625
        %3629 = vst.msk [vmem:[#allocation3] sm:$0xff] %vm2202, %v3624
        %3630 = vst.msk [vmem:[#allocation3 + $0x40] sm:$0xff] %vm2202, %v3626
        %v3631 = vld [vmem:[#allocation2] sm:$0xfc]
        %v3632 = vld [vmem:[#allocation2 + $0x10] sm:$0xff]
        %v3633 = vld [vmem:[#allocation2 + $0x20] sm:$0x3]
        %v3637 = vrot.slane %v3631, 2
        %v3638 = vrot.slane %v3632, 2
        %v3639 = vsel %vm1190, %v3637, %v3638
        %v3640 = vrot.slane %v3633, 2
        %v3641 = vsel %vm1190, %v3638, %v3640
        %3642 = vrot.lane.b32.xlu0 %v3639, 64
        %v3643 = vpop.permute.xlu0 %3642
        %3644 = vrot.lane.b32.xlu0 %v3641, 64
        %v3645 = vpop.permute.xlu0 %3644
        %3648 = vst.msk [vmem:[#allocation3] sm:$0xff] %vm2334, %v3643
        %3649 = vst.msk [vmem:[#allocation3 + $0x40] sm:$0xff] %vm2334, %v3645
        %v3650 = vld [vmem:[#allocation2] sm:$0xf8]
        %v3651 = vld [vmem:[#allocation2 + $0x10] sm:$0xff]
        %v3652 = vld [vmem:[#allocation2 + $0x20] sm:$0x7]
        %v3656 = vrot.slane %v3650, 3
        %v3657 = vrot.slane %v3651, 3
        %v3658 = vsel %vm1303, %v3656, %v3657
        %v3659 = vrot.slane %v3652, 3
        %v3660 = vsel %vm1303, %v3657, %v3659
        %3661 = vrot.lane.b32.xlu0 %v3658, 96
        %v3662 = vpop.permute.xlu0 %3661
        %3663 = vrot.lane.b32.xlu0 %v3660, 96
        %v3664 = vpop.permute.xlu0 %3663
        %3667 = vst.msk [vmem:[#allocation3] sm:$0xff] %vm2466, %v3662
        %3668 = vst.msk [vmem:[#allocation3 + $0x40] sm:$0xff] %vm2466, %v3664
        %v3669 = vld [vmem:[#allocation2] sm:$0xf0]
        %v3670 = vld [vmem:[#allocation2 + $0x10] sm:$0xff]
        %v3671 = vld [vmem:[#allocation2 + $0x20] sm:$0xf]
        %v3675 = vrot.slane %v3669, 4
        %v3676 = vrot.slane %v3670, 4
        %v3677 = vsel %vm1416, %v3675, %v3676
        %v3678 = vrot.slane %v3671, 4
        %v3679 = vsel %vm1416, %v3676, %v3678
        %3682 = vst.msk [vmem:[#allocation3 + $0x8] sm:$0xff] %vm2038, %v3677
        %3683 = vst.msk [vmem:[#allocation3 + $0x48] sm:$0xff] %vm2038, %v3679
        %v3684 = vld [vmem:[#allocation2] sm:$0xe0]
        %v3685 = vld [vmem:[#allocation2 + $0x10] sm:$0xff]
        %v3686 = vld [vmem:[#allocation2 + $0x20] sm:$0x1f]
        %v3690 = vrot.slane %v3684, 5
        %v3691 = vrot.slane %v3685, 5
        %v3692 = vsel %vm742, %v3690, %v3691
        %v3693 = vrot.slane %v3686, 5
        %v3694 = vsel %vm742, %v3691, %v3693
        %3695 = vrot.lane.b32.xlu0 %v3692, 32
        %v3696 = vpop.permute.xlu0 %3695
        %3697 = vrot.lane.b32.xlu0 %v3694, 32
        %v3698 = vpop.permute.xlu0 %3697
        %3701 = vst.msk [vmem:[#allocation3 + $0x8] sm:$0xff] %vm2202, %v3696
        %3702 = vst.msk [vmem:[#allocation3 + $0x48] sm:$0xff] %vm2202, %v3698
        %v3703 = vld [vmem:[#allocation2] sm:$0xc0]
        %v3704 = vld [vmem:[#allocation2 + $0x10] sm:$0xff]
        %v3705 = vld [vmem:[#allocation2 + $0x20] sm:$0x3f]
        %v3709 = vrot.slane %v3703, 6
        %v3710 = vrot.slane %v3704, 6
        %v3711 = vsel %vm1641, %v3709, %v3710
        %v3712 = vrot.slane %v3705, 6
        %v3713 = vsel %vm1641, %v3710, %v3712
        %3714 = vrot.lane.b32.xlu0 %v3711, 64
        %v3715 = vpop.permute.xlu0 %3714
        %3716 = vrot.lane.b32.xlu0 %v3713, 64
        %v3717 = vpop.permute.xlu0 %3716
        %3720 = vst.msk [vmem:[#allocation3 + $0x8] sm:$0xff] %vm2334, %v3715
        %3721 = vst.msk [vmem:[#allocation3 + $0x48] sm:$0xff] %vm2334, %v3717
        %v3722 = vld [vmem:[#allocation2] sm:$0x80]
        %v3723 = vld [vmem:[#allocation2 + $0x10] sm:$0xff]
        %v3724 = vld [vmem:[#allocation2 + $0x20] sm:$0x7f]
        %v3728 = vrot.slane %v3722, 7
        %v3729 = vrot.slane %v3723, 7
        %v3730 = vsel %vm1754, %v3728, %v3729
        %v3731 = vrot.slane %v3724, 7
        %v3732 = vsel %vm1754, %v3729, %v3731
        %3733 = vrot.lane.b32.xlu0 %v3730, 96
        %v3734 = vpop.permute.xlu0 %3733
        %3735 = vrot.lane.b32.xlu0 %v3732, 96
        %v3736 = vpop.permute.xlu0 %3735
        %3739 = vst.msk [vmem:[#allocation3 + $0x8] sm:$0xff] %vm2466, %v3734
        %3740 = vst.msk [vmem:[#allocation3 + $0x48] sm:$0xff] %vm2466, %v3736
        %v3741 = vld [vmem:[#allocation3] sm:$0xff]
        %v3742 = vld [vmem:[#allocation3 + $0x8] sm:$0xff]
        %v3743 = vld [vmem:[#allocation3 + $0x40] sm:$0xff]
        %v3744 = vld [vmem:[#allocation3 + $0x48] sm:$0xff]
        %v3745 = vpack.c.bf16 %v3743, %v3741
        %v3746 = vpack.c.bf16 %v3744, %v3742
        %v3779 = vunpack.c.l.b16 %v3562
        %v3780 = vunpack.c.l.b16 %v3563
        %v3781 = vunpack.c.l.b16 %v3564
        %v3782 = vunpack.c.l.b16 %v3565
        %v3783 = vunpack.c.l.b16 %v3566
        %v3784 = vunpack.c.l.b16 %v3567
        %v3785 = vunpack.c.l.b16 %v3568
        %v3786 = vunpack.c.l.b16 %v3569
        %v3787 = vunpack.c.l.b16 %v3570
        %v3788 = vunpack.c.l.b16 %v3571
        %v3789 = vunpack.c.l.b16 %v3572
        %v3790 = vunpack.c.l.b16 %v3573
        %v3791 = vunpack.c.l.b16 %v3574
        %v3792 = vunpack.c.l.b16 %v3575
        %v3793 = vunpack.c.l.b16 %v3576
        %v3794 = vunpack.c.l.b16 %v3577
        %v3795 = vunpack.c.l.b16 %v3578
        %v3796 = vunpack.c.l.b16 %v3579
        %v3797 = vunpack.c.l.b16 %v3580
        %v3798 = vunpack.c.l.b16 %v3581
        %v3799 = vunpack.c.l.b16 %v3582
        %v3800 = vunpack.c.l.b16 %v3583
        %v3801 = vunpack.c.l.b16 %v3584
        %v3802 = vunpack.c.l.b16 %v3585
        %v3803 = vunpack.c.l.b16 %v3586
        %v3804 = vunpack.c.l.b16 %v3587
        %v3805 = vunpack.c.l.b16 %v3588
        %v3806 = vunpack.c.l.b16 %v3589
        %v3807 = vunpack.c.l.b16 %v3590
        %v3808 = vunpack.c.l.b16 %v3591
        %v3809 = vunpack.c.l.b16 %v3592
        %v3810 = vunpack.c.l.b16 %v3593
        %v3811 = vpack.c.b16 %v3780, %v3779
        %v3812 = vpack.c.b16 %v3782, %v3781
        %v3813 = vpack.c.b16 %v3784, %v3783
        %v3814 = vpack.c.b16 %v3786, %v3785
        %v3815 = vpack.c.b16 %v3788, %v3787
        %v3816 = vpack.c.b16 %v3790, %v3789
        %v3817 = vpack.c.b16 %v3792, %v3791
        %v3818 = vpack.c.b16 %v3794, %v3793
        %v3819 = vpack.c.b16 %v3796, %v3795
        %v3820 = vpack.c.b16 %v3798, %v3797
        %v3821 = vpack.c.b16 %v3800, %v3799
        %v3822 = vpack.c.b16 %v3802, %v3801
        %v3823 = vpack.c.b16 %v3804, %v3803
        %v3824 = vpack.c.b16 %v3806, %v3805
        %v3825 = vpack.c.b16 %v3808, %v3807
        %v3826 = vpack.c.b16 %v3810, %v3809
        %3843 = vmatpush.bf16.msra.mxu0 %v3818
        %3844 = vmatpush.bf16.msra.mxu0 %v3817
        %3845 = vmatpush.bf16.msra.mxu0 %v3816
        %3846 = vmatpush.bf16.msra.mxu0 %v3815
        %3847 = vmatpush.bf16.msra.mxu0 %v3814
        %3848 = vmatpush.bf16.msra.mxu0 %v3813
        %3849 = vmatpush.bf16.msra.mxu0 %v3812
        %3850 = vmatpush.bf16.msra.mxu0 %v3811
        %3851 = vmatmul.bf16.gmra.mxu0 %v3745
        %v3852 = vpop.f32.mrf.mxu0
        %v3853 = vadd.f32 0.0, %v3852
        %v3854 = vpop.f32.mrf.mxu0
        %v3855 = vadd.f32 0.0, %v3854
        %3856 = vdwg.mxu0
        %3857 = vmatpush.bf16.msra.mxu0 %v3826
        %3858 = vmatpush.bf16.msra.mxu0 %v3825
        %3859 = vmatpush.bf16.msra.mxu0 %v3824
        %3860 = vmatpush.bf16.msra.mxu0 %v3823
        %3861 = vmatpush.bf16.msra.mxu0 %v3822
        %3862 = vmatpush.bf16.msra.mxu0 %v3821
        %3863 = vmatpush.bf16.msra.mxu0 %v3820
        %3864 = vmatpush.bf16.msra.mxu0 %v3819
        %3865 = vmatmul.bf16.gmra.mxu0 %v3746
        %v3866 = vpop.f32.mrf.mxu0
        %v3867 = vadd.f32 %v3853, %v3866
        %v3868 = vpop.f32.mrf.mxu0
        %v3869 = vadd.f32 %v3855, %v3868
        %3870 = vdwg.mxu0
        %v3872 = vperm.slane %v3594, 0
        %v3874 = vadd.f32 %v3867, %v3872
        %v3875 = vadd.f32 %v3869, %v3872
        %v3876 = vmax.f32 %v3874, 0.0
        %v3877 = vmax.f32 %v3875, 0.0
        %v3878 = vld [vmem:[%s7] sm:$0xf]
        %v3879 = vld [vmem:[%s7 + $0x4] sm:$0xf]
        %v3880 = vld [vmem:[%s7 + $0x8] sm:$0xf]
        %v3881 = vld [vmem:[%s7 + $0xc] sm:$0xf]
        %v3882 = vld [vmem:[%s7 + $0x10] sm:$0xf]
        %v3883 = vld [vmem:[%s7 + $0x14] sm:$0xf]
        %v3884 = vld [vmem:[%s7 + $0x18] sm:$0xf]
        %v3885 = vld [vmem:[%s7 + $0x1c] sm:$0xf]
        %v3886 = vld [vmem:[%s7 + $0x20] sm:$0xf]
        %v3887 = vld [vmem:[%s7 + $0x24] sm:$0xf]
        %v3888 = vld [vmem:[%s7 + $0x28] sm:$0xf]
        %v3889 = vld [vmem:[%s7 + $0x2c] sm:$0xf]
        %v3890 = vld [vmem:[%s7 + $0x30] sm:$0xf]
        %v3891 = vld [vmem:[%s7 + $0x34] sm:$0xf]
        %v3892 = vld [vmem:[%s7 + $0x38] sm:$0xf]
        %v3893 = vld [vmem:[%s7 + $0x3c] sm:$0xf]
        %v3894 = vld [vmem:[%s7 + $0x40] sm:$0xf]
        %v3895 = vld [vmem:[%s7 + $0x44] sm:$0xf]
        %v3896 = vld [vmem:[%s7 + $0x48] sm:$0xf]
        %v3897 = vld [vmem:[%s7 + $0x4c] sm:$0xf]
        %v3898 = vld [vmem:[%s7 + $0x50] sm:$0xf]
        %v3899 = vld [vmem:[%s7 + $0x54] sm:$0xf]
        %v3900 = vld [vmem:[%s7 + $0x58] sm:$0xf]
        %v3901 = vld [vmem:[%s7 + $0x5c] sm:$0xf]
        %v3902 = vld [vmem:[%s7 + $0x60] sm:$0xf]
        %v3903 = vld [vmem:[%s7 + $0x64] sm:$0xf]
        %v3904 = vld [vmem:[%s7 + $0x68] sm:$0xf]
        %v3905 = vld [vmem:[%s7 + $0x6c] sm:$0xf]
        %v3906 = vld [vmem:[%s7 + $0x70] sm:$0xf]
        %v3907 = vld [vmem:[%s7 + $0x74] sm:$0xf]
        %v3908 = vld [vmem:[%s7 + $0x78] sm:$0xf]
        %v3909 = vld [vmem:[%s7 + $0x7c] sm:$0xf]
        %v3910 = vld [vmem:[%s7 + $0x80] sm:$0xf]
        %v3911 = vld [vmem:[%s7 + $0x84] sm:$0xf]
        %v3912 = vld [vmem:[%s7 + $0x88] sm:$0xf]
        %v3913 = vld [vmem:[%s7 + $0x8c] sm:$0xf]
        %v3914 = vld [vmem:[%s7 + $0x90] sm:$0xf]
        %v3915 = vld [vmem:[%s7 + $0x94] sm:$0xf]
        %v3916 = vld [vmem:[%s7 + $0x98] sm:$0xf]
        %v3917 = vld [vmem:[%s7 + $0x9c] sm:$0xf]
        %v3918 = vld [vmem:[%s7 + $0xa0] sm:$0xf]
        %v3919 = vld [vmem:[%s7 + $0xa4] sm:$0xf]
        %v3920 = vld [vmem:[%s7 + $0xa8] sm:$0xf]
        %v3921 = vld [vmem:[%s7 + $0xac] sm:$0xf]
        %v3922 = vld [vmem:[%s7 + $0xb0] sm:$0xf]
        %v3923 = vld [vmem:[%s7 + $0xb4] sm:$0xf]
        %v3924 = vld [vmem:[%s7 + $0xb8] sm:$0xf]
        %v3925 = vld [vmem:[%s7 + $0xbc] sm:$0xf]
        %v3926 = vld [vmem:[%s7 + $0xc0] sm:$0xf]
        %v3927 = vld [vmem:[%s7 + $0xc4] sm:$0xf]
        %v3928 = vld [vmem:[%s7 + $0xc8] sm:$0xf]
        %v3929 = vld [vmem:[%s7 + $0xcc] sm:$0xf]
        %v3930 = vld [vmem:[%s7 + $0xd0] sm:$0xf]
        %v3931 = vld [vmem:[%s7 + $0xd4] sm:$0xf]
        %v3932 = vld [vmem:[%s7 + $0xd8] sm:$0xf]
        %v3933 = vld [vmem:[%s7 + $0xdc] sm:$0xf]
        %v3934 = vld [vmem:[%s7 + $0xe0] sm:$0xf]
        %v3935 = vld [vmem:[%s7 + $0xe4] sm:$0xf]
        %v3936 = vld [vmem:[%s7 + $0xe8] sm:$0xf]
        %v3937 = vld [vmem:[%s7 + $0xec] sm:$0xf]
        %v3938 = vld [vmem:[%s7 + $0xf0] sm:$0xf]
        %v3939 = vld [vmem:[%s7 + $0xf4] sm:$0xf]
        %v3940 = vld [vmem:[%s7 + $0xf8] sm:$0xf]
        %v3941 = vld [vmem:[%s7 + $0xfc] sm:$0xf]
        %v3942 = vld [vmem:[%s8] sm:$0x1]
        %vm3943 = vcmask 518144
        %3944 = vst.msk [vmem:[#allocation2] sm:$0x7] %vm3943, 0.0
        %vm3945 = vcmask 522243
        %3946 = vst.msk [vmem:[#allocation2 + $0x20] sm:$0x78] %vm3945, 0.0
        %v3949 = vrot.slane %v3876, 5
        %v3950 = vrot.slane %v3877, 5
        %v3951 = vsel %vm742, %v3949, %v3950
        %vm3955 = vcmask 523267
        %3956 = vst.msk [vmem:[#allocation2] sm:$0xf8] %vm3955, %v3949
        %vm3957 = vcmask 523264
        %3958 = vst.msk [vmem:[#allocation2 + $0x10] sm:$0xff] %vm3957, %v3951
        %3959 = vst.msk [vmem:[#allocation2 + $0x20] sm:$0x7] %vm3943, %v3950
        %v3960 = vld [vmem:[#allocation2] sm:$0xff]
        %v3961 = vld [vmem:[#allocation2 + $0x10] sm:$0xff]
        %3962 = vst.msk [vmem:[#allocation3] sm:$0xff] %vm3957, %v3960
        %3963 = vst.msk [vmem:[#allocation3 + $0x40] sm:$0xff] %vm3957, %v3961
        %v3964 = vld [vmem:[#allocation2] sm:$0xfe]
        %v3965 = vld [vmem:[#allocation2 + $0x10] sm:$0xff]
        %v3966 = vld [vmem:[#allocation2 + $0x20] sm:$0x1]
        %v3970 = vrot.slane %v3964, 1
        %v3971 = vrot.slane %v3965, 1
        %v3972 = vsel %vm1077, %v3970, %v3971
        %v3973 = vrot.slane %v3966, 1
        %v3974 = vsel %vm1077, %v3971, %v3973
        %3975 = vrot.lane.b32.xlu0 %v3972, 64
        %v3976 = vpop.permute.xlu0 %3975
        %3977 = vrot.lane.b32.xlu0 %v3974, 64
        %v3978 = vpop.permute.xlu0 %3977
        %vm3981 = vcmask 1048064
        %3982 = vst.msk [vmem:[#allocation3] sm:$0xff] %vm3981, %v3976
        %3983 = vst.msk [vmem:[#allocation3 + $0x40] sm:$0xff] %vm3981, %v3978
        %v3984 = vld [vmem:[#allocation2] sm:$0xfc]
        %v3985 = vld [vmem:[#allocation2 + $0x10] sm:$0xff]
        %v3986 = vld [vmem:[#allocation2 + $0x20] sm:$0x3]
        %v3990 = vrot.slane %v3984, 2
        %v3991 = vrot.slane %v3985, 2
        %v3992 = vsel %vm1190, %v3990, %v3991
        %v3993 = vrot.slane %v3986, 2
        %v3994 = vsel %vm1190, %v3991, %v3993
        %3997 = vst.msk [vmem:[#allocation3 + $0x8] sm:$0xff] %vm3957, %v3992
        %3998 = vst.msk [vmem:[#allocation3 + $0x48] sm:$0xff] %vm3957, %v3994
        %v3999 = vld [vmem:[#allocation2] sm:$0xf8]
        %v4000 = vld [vmem:[#allocation2 + $0x10] sm:$0xff]
        %v4001 = vld [vmem:[#allocation2 + $0x20] sm:$0x7]
        %v4005 = vrot.slane %v3999, 3
        %v4006 = vrot.slane %v4000, 3
        %v4007 = vsel %vm1303, %v4005, %v4006
        %v4008 = vrot.slane %v4001, 3
        %v4009 = vsel %vm1303, %v4006, %v4008
        %4010 = vrot.lane.b32.xlu0 %v4007, 64
        %v4011 = vpop.permute.xlu0 %4010
        %4012 = vrot.lane.b32.xlu0 %v4009, 64
        %v4013 = vpop.permute.xlu0 %4012
        %4016 = vst.msk [vmem:[#allocation3 + $0x8] sm:$0xff] %vm3981, %v4011
        %4017 = vst.msk [vmem:[#allocation3 + $0x48] sm:$0xff] %vm3981, %v4013
        %v4018 = vld [vmem:[#allocation2] sm:$0xf0]
        %v4019 = vld [vmem:[#allocation2 + $0x10] sm:$0xff]
        %v4020 = vld [vmem:[#allocation2 + $0x20] sm:$0xf]
        %v4024 = vrot.slane %v4018, 4
        %v4025 = vrot.slane %v4019, 4
        %v4026 = vsel %vm1416, %v4024, %v4025
        %v4027 = vrot.slane %v4020, 4
        %v4028 = vsel %vm1416, %v4025, %v4027
        %4031 = vst.msk [vmem:[#allocation3 + $0x10] sm:$0xff] %vm3957, %v4026
        %4032 = vst.msk [vmem:[#allocation3 + $0x50] sm:$0xff] %vm3957, %v4028
        %v4033 = vld [vmem:[#allocation2] sm:$0xe0]
        %v4034 = vld [vmem:[#allocation2 + $0x10] sm:$0xff]
        %v4035 = vld [vmem:[#allocation2 + $0x20] sm:$0x1f]
        %v4039 = vrot.slane %v4033, 5
        %v4040 = vrot.slane %v4034, 5
        %v4041 = vsel %vm742, %v4039, %v4040
        %v4042 = vrot.slane %v4035, 5
        %v4043 = vsel %vm742, %v4040, %v4042
        %4044 = vrot.lane.b32.xlu0 %v4041, 64
        %v4045 = vpop.permute.xlu0 %4044
        %4046 = vrot.lane.b32.xlu0 %v4043, 64
        %v4047 = vpop.permute.xlu0 %4046
        %4050 = vst.msk [vmem:[#allocation3 + $0x10] sm:$0xff] %vm3981, %v4045
        %4051 = vst.msk [vmem:[#allocation3 + $0x50] sm:$0xff] %vm3981, %v4047
        %v4052 = vld [vmem:[#allocation2] sm:$0xc0]
        %v4053 = vld [vmem:[#allocation2 + $0x10] sm:$0xff]
        %v4054 = vld [vmem:[#allocation2 + $0x20] sm:$0x3f]
        %v4058 = vrot.slane %v4052, 6
        %v4059 = vrot.slane %v4053, 6
        %v4060 = vsel %vm1641, %v4058, %v4059
        %v4061 = vrot.slane %v4054, 6
        %v4062 = vsel %vm1641, %v4059, %v4061
        %4065 = vst.msk [vmem:[#allocation3 + $0x18] sm:$0xff] %vm3957, %v4060
        %4066 = vst.msk [vmem:[#allocation3 + $0x58] sm:$0xff] %vm3957, %v4062
        %v4067 = vld [vmem:[#allocation2] sm:$0x80]
        %v4068 = vld [vmem:[#allocation2 + $0x10] sm:$0xff]
        %v4069 = vld [vmem:[#allocation2 + $0x20] sm:$0x7f]
        %v4073 = vrot.slane %v4067, 7
        %v4074 = vrot.slane %v4068, 7
        %v4075 = vsel %vm1754, %v4073, %v4074
        %v4076 = vrot.slane %v4069, 7
        %v4077 = vsel %vm1754, %v4074, %v4076
        %4078 = vrot.lane.b32.xlu0 %v4075, 64
        %v4079 = vpop.permute.xlu0 %4078
        %4080 = vrot.lane.b32.xlu0 %v4077, 64
        %v4081 = vpop.permute.xlu0 %4080
        %4084 = vst.msk [vmem:[#allocation3 + $0x18] sm:$0xff] %vm3981, %v4079
        %4085 = vst.msk [vmem:[#allocation3 + $0x58] sm:$0xff] %vm3981, %v4081
        %v4086 = vld [vmem:[#allocation3] sm:$0xff]
        %v4087 = vld [vmem:[#allocation3 + $0x8] sm:$0xff]
        %v4088 = vld [vmem:[#allocation3 + $0x10] sm:$0xff]
        %v4089 = vld [vmem:[#allocation3 + $0x18] sm:$0xff]
        %v4090 = vld [vmem:[#allocation3 + $0x40] sm:$0xff]
        %v4091 = vld [vmem:[#allocation3 + $0x48] sm:$0xff]
        %v4092 = vld [vmem:[#allocation3 + $0x50] sm:$0xff]
        %v4093 = vld [vmem:[#allocation3 + $0x58] sm:$0xff]
        %v4094 = vpack.c.bf16 %v4090, %v4086
        %v4095 = vpack.c.bf16 %v4091, %v4087
        %v4096 = vpack.c.bf16 %v4092, %v4088
        %v4097 = vpack.c.bf16 %v4093, %v4089
        %v4162 = vunpack.c.l.b16 %v3878
        %v4163 = vunpack.c.l.b16 %v3879
        %v4164 = vunpack.c.l.b16 %v3880
        %v4165 = vunpack.c.l.b16 %v3881
        %v4166 = vunpack.c.l.b16 %v3882
        %v4167 = vunpack.c.l.b16 %v3883
        %v4168 = vunpack.c.l.b16 %v3884
        %v4169 = vunpack.c.l.b16 %v3885
        %v4170 = vunpack.c.l.b16 %v3886
        %v4171 = vunpack.c.l.b16 %v3887
        %v4172 = vunpack.c.l.b16 %v3888
        %v4173 = vunpack.c.l.b16 %v3889
        %v4174 = vunpack.c.l.b16 %v3890
        %v4175 = vunpack.c.l.b16 %v3891
        %v4176 = vunpack.c.l.b16 %v3892
        %v4177 = vunpack.c.l.b16 %v3893
        %v4178 = vunpack.c.l.b16 %v3894
        %v4179 = vunpack.c.l.b16 %v3895
        %v4180 = vunpack.c.l.b16 %v3896
        %v4181 = vunpack.c.l.b16 %v3897
        %v4182 = vunpack.c.l.b16 %v3898
        %v4183 = vunpack.c.l.b16 %v3899
        %v4184 = vunpack.c.l.b16 %v3900
        %v4185 = vunpack.c.l.b16 %v3901
        %v4186 = vunpack.c.l.b16 %v3902
        %v4187 = vunpack.c.l.b16 %v3903
        %v4188 = vunpack.c.l.b16 %v3904
        %v4189 = vunpack.c.l.b16 %v3905
        %v4190 = vunpack.c.l.b16 %v3906
        %v4191 = vunpack.c.l.b16 %v3907
        %v4192 = vunpack.c.l.b16 %v3908
        %v4193 = vunpack.c.l.b16 %v3909
        %v4194 = vunpack.c.l.b16 %v3910
        %v4195 = vunpack.c.l.b16 %v3911
        %v4196 = vunpack.c.l.b16 %v3912
        %v4197 = vunpack.c.l.b16 %v3913
        %v4198 = vunpack.c.l.b16 %v3914
        %v4199 = vunpack.c.l.b16 %v3915
        %v4200 = vunpack.c.l.b16 %v3916
        %v4201 = vunpack.c.l.b16 %v3917
        %v4202 = vunpack.c.l.b16 %v3918
        %v4203 = vunpack.c.l.b16 %v3919
        %v4204 = vunpack.c.l.b16 %v3920
        %v4205 = vunpack.c.l.b16 %v3921
        %v4206 = vunpack.c.l.b16 %v3922
        %v4207 = vunpack.c.l.b16 %v3923
        %v4208 = vunpack.c.l.b16 %v3924
        %v4209 = vunpack.c.l.b16 %v3925
        %v4210 = vunpack.c.l.b16 %v3926
        %v4211 = vunpack.c.l.b16 %v3927
        %v4212 = vunpack.c.l.b16 %v3928
        %v4213 = vunpack.c.l.b16 %v3929
        %v4214 = vunpack.c.l.b16 %v3930
        %v4215 = vunpack.c.l.b16 %v3931
        %v4216 = vunpack.c.l.b16 %v3932
        %v4217 = vunpack.c.l.b16 %v3933
        %v4218 = vunpack.c.l.b16 %v3934
        %v4219 = vunpack.c.l.b16 %v3935
        %v4220 = vunpack.c.l.b16 %v3936
        %v4221 = vunpack.c.l.b16 %v3937
        %v4222 = vunpack.c.l.b16 %v3938
        %v4223 = vunpack.c.l.b16 %v3939
        %v4224 = vunpack.c.l.b16 %v3940
        %v4225 = vunpack.c.l.b16 %v3941
        %v4226 = vpack.c.b16 %v4163, %v4162
        %v4227 = vpack.c.b16 %v4165, %v4164
        %v4228 = vpack.c.b16 %v4167, %v4166
        %v4229 = vpack.c.b16 %v4169, %v4168
        %v4230 = vpack.c.b16 %v4171, %v4170
        %v4231 = vpack.c.b16 %v4173, %v4172
        %v4232 = vpack.c.b16 %v4175, %v4174
        %v4233 = vpack.c.b16 %v4177, %v4176
        %v4234 = vpack.c.b16 %v4179, %v4178
        %v4235 = vpack.c.b16 %v4181, %v4180
        %v4236 = vpack.c.b16 %v4183, %v4182
        %v4237 = vpack.c.b16 %v4185, %v4184
        %v4238 = vpack.c.b16 %v4187, %v4186
        %v4239 = vpack.c.b16 %v4189, %v4188
        %v4240 = vpack.c.b16 %v4191, %v4190
        %v4241 = vpack.c.b16 %v4193, %v4192
        %v4242 = vpack.c.b16 %v4195, %v4194
        %v4243 = vpack.c.b16 %v4197, %v4196
        %v4244 = vpack.c.b16 %v4199, %v4198
        %v4245 = vpack.c.b16 %v4201, %v4200
        %v4246 = vpack.c.b16 %v4203, %v4202
        %v4247 = vpack.c.b16 %v4205, %v4204
        %v4248 = vpack.c.b16 %v4207, %v4206
        %v4249 = vpack.c.b16 %v4209, %v4208
        %v4250 = vpack.c.b16 %v4211, %v4210
        %v4251 = vpack.c.b16 %v4213, %v4212
        %v4252 = vpack.c.b16 %v4215, %v4214
        %v4253 = vpack.c.b16 %v4217, %v4216
        %v4254 = vpack.c.b16 %v4219, %v4218
        %v4255 = vpack.c.b16 %v4221, %v4220
        %v4256 = vpack.c.b16 %v4223, %v4222
        %v4257 = vpack.c.b16 %v4225, %v4224
        %4290 = vmatpush.bf16.msra.mxu0 %v4233
        %4291 = vmatpush.bf16.msra.mxu0 %v4232
        %4292 = vmatpush.bf16.msra.mxu0 %v4231
        %4293 = vmatpush.bf16.msra.mxu0 %v4230
        %4294 = vmatpush.bf16.msra.mxu0 %v4229
        %4295 = vmatpush.bf16.msra.mxu0 %v4228
        %4296 = vmatpush.bf16.msra.mxu0 %v4227
        %4297 = vmatpush.bf16.msra.mxu0 %v4226
        %4298 = vmatmul.bf16.gmra.mxu0 %v4094
        %v4299 = vpop.f32.mrf.mxu0
        %v4300 = vadd.f32 0.0, %v4299
        %v4301 = vpop.f32.mrf.mxu0
        %v4302 = vadd.f32 0.0, %v4301
        %4303 = vdwg.mxu0
        %4304 = vmatpush.bf16.msra.mxu0 %v4241
        %4305 = vmatpush.bf16.msra.mxu0 %v4240
        %4306 = vmatpush.bf16.msra.mxu0 %v4239
        %4307 = vmatpush.bf16.msra.mxu0 %v4238
        %4308 = vmatpush.bf16.msra.mxu0 %v4237
        %4309 = vmatpush.bf16.msra.mxu0 %v4236
        %4310 = vmatpush.bf16.msra.mxu0 %v4235
        %4311 = vmatpush.bf16.msra.mxu0 %v4234
        %4312 = vmatmul.bf16.gmra.mxu0 %v4095
        %v4313 = vpop.f32.mrf.mxu0
        %v4314 = vadd.f32 %v4300, %v4313
        %v4315 = vpop.f32.mrf.mxu0
        %v4316 = vadd.f32 %v4302, %v4315
        %4317 = vdwg.mxu0
        %4318 = vmatpush.bf16.msra.mxu0 %v4249
        %4319 = vmatpush.bf16.msra.mxu0 %v4248
        %4320 = vmatpush.bf16.msra.mxu0 %v4247
        %4321 = vmatpush.bf16.msra.mxu0 %v4246
        %4322 = vmatpush.bf16.msra.mxu0 %v4245
        %4323 = vmatpush.bf16.msra.mxu0 %v4244
        %4324 = vmatpush.bf16.msra.mxu0 %v4243
        %4325 = vmatpush.bf16.msra.mxu0 %v4242
        %4326 = vmatmul.bf16.gmra.mxu0 %v4096
        %v4327 = vpop.f32.mrf.mxu0
        %v4328 = vadd.f32 %v4314, %v4327
        %v4329 = vpop.f32.mrf.mxu0
        %v4330 = vadd.f32 %v4316, %v4329
        %4331 = vdwg.mxu0
        %4332 = vmatpush.bf16.msra.mxu0 %v4257
        %4333 = vmatpush.bf16.msra.mxu0 %v4256
        %4334 = vmatpush.bf16.msra.mxu0 %v4255
        %4335 = vmatpush.bf16.msra.mxu0 %v4254
        %4336 = vmatpush.bf16.msra.mxu0 %v4253
        %4337 = vmatpush.bf16.msra.mxu0 %v4252
        %4338 = vmatpush.bf16.msra.mxu0 %v4251
        %4339 = vmatpush.bf16.msra.mxu0 %v4250
        %4340 = vmatmul.bf16.gmra.mxu0 %v4097
        %v4341 = vpop.f32.mrf.mxu0
        %v4342 = vadd.f32 %v4328, %v4341
        %v4343 = vpop.f32.mrf.mxu0
        %v4344 = vadd.f32 %v4330, %v4343
        %4345 = vdwg.mxu0
        %v4347 = vperm.slane %v3942, 0
        %v4349 = vadd.f32 %v4342, %v4347
        %v4350 = vadd.f32 %v4344, %v4347
        %v4351 = vmax.f32 %v4349, 0.0
        %v4352 = vmax.f32 %v4350, 0.0
        %4353 = vst.msk [vmem:[#allocation2] sm:$0x7] %vm3943, 0.0
        %4354 = vst.msk [vmem:[#allocation2 + $0x20] sm:$0x78] %vm3945, 0.0
        %v4357 = vrot.slane %v4351, 5
        %v4358 = vrot.slane %v4352, 5
        %v4359 = vsel %vm742, %v4357, %v4358
        %4363 = vst.msk [vmem:[#allocation2] sm:$0xf8] %vm3955, %v4357
        %4364 = vst.msk [vmem:[#allocation2 + $0x10] sm:$0xff] %vm3957, %v4359
        %4365 = vst.msk [vmem:[#allocation2 + $0x20] sm:$0x7] %vm3943, %v4358
        %v4366 = vld [vmem:[#allocation2] sm:$0xff]
        %v4367 = vsel %vm3957, %v4366, -inf
        %v4368 = vrot.slane %v4367, 4
        %v4369 = vmax.f32 %v4367, %v4368
        %v4370 = vrot.slane %v4369, 2
        %v4371 = vmax.f32 %v4369, %v4370
        %v4372 = vrot.slane %v4371, 1
        %v4373 = vmax.f32 %v4371, %v4372
        %vm4374 = vcmask 516096
        %4375 = vst.msk [vmem:[#allocation4] sm:$0x1] %vm4374, %v4373
        %v4376 = vld [vmem:[#allocation2 + $0x10] sm:$0xff]
        %v4377 = vsel %vm3957, %v4376, -inf
        %v4378 = vrot.slane %v4377, 4
        %v4379 = vmax.f32 %v4377, %v4378
        %v4380 = vrot.slane %v4379, 2
        %v4381 = vmax.f32 %v4379, %v4380
        %v4382 = vrot.slane %v4381, 1
        %v4383 = vmax.f32 %v4381, %v4382
        %4384 = vst.msk [vmem:[#allocation4 + $0x1] sm:$0x1] %vm4374, %v4383
        %v4385 = vld [vmem:[#allocation4] sm:$0x3]
        %v4386 = vld [vmem:[%s9] sm:$0xf]
        %v4387 = vld [vmem:[%s9 + $0x4] sm:$0xf]
        %v4388 = vld [vmem:[%s9 + $0x8] sm:$0xf]
        %v4389 = vld [vmem:[%s9 + $0xc] sm:$0xf]
        %v4390 = vld [vmem:[%s9 + $0x10] sm:$0xf]
        %v4391 = vld [vmem:[%s9 + $0x14] sm:$0xf]
        %v4392 = vld [vmem:[%s9 + $0x18] sm:$0xf]
        %v4393 = vld [vmem:[%s9 + $0x1c] sm:$0xf]
        %v4394 = vld [vmem:[%s9 + $0x20] sm:$0xf]
        %v4395 = vld [vmem:[%s9 + $0x24] sm:$0xf]
        %v4396 = vld [vmem:[%s9 + $0x28] sm:$0xf]
        %v4397 = vld [vmem:[%s9 + $0x2c] sm:$0xf]
        %v4398 = vld [vmem:[%s9 + $0x30] sm:$0xf]
        %v4399 = vld [vmem:[%s9 + $0x34] sm:$0xf]
        %v4400 = vld [vmem:[%s9 + $0x38] sm:$0xf]
        %v4401 = vld [vmem:[%s9 + $0x3c] sm:$0xf]
        %v4402 = vld [vmem:[%s9 + $0x40] sm:$0xf]
        %v4403 = vld [vmem:[%s9 + $0x44] sm:$0xf]
        %v4404 = vld [vmem:[%s9 + $0x48] sm:$0xf]
        %v4405 = vld [vmem:[%s9 + $0x4c] sm:$0xf]
        %v4406 = vld [vmem:[%s9 + $0x50] sm:$0xf]
        %v4407 = vld [vmem:[%s9 + $0x54] sm:$0xf]
        %v4408 = vld [vmem:[%s9 + $0x58] sm:$0xf]
        %v4409 = vld [vmem:[%s9 + $0x5c] sm:$0xf]
        %v4410 = vld [vmem:[%s9 + $0x60] sm:$0xf]
        %v4411 = vld [vmem:[%s9 + $0x64] sm:$0xf]
        %v4412 = vld [vmem:[%s9 + $0x68] sm:$0xf]
        %v4413 = vld [vmem:[%s9 + $0x6c] sm:$0xf]
        %v4414 = vld [vmem:[%s9 + $0x70] sm:$0xf]
        %v4415 = vld [vmem:[%s9 + $0x74] sm:$0xf]
        %v4416 = vld [vmem:[%s9 + $0x78] sm:$0xf]
        %v4417 = vld [vmem:[%s9 + $0x7c] sm:$0xf]
        %v4418 = vld [vmem:[%s9 + $0x80] sm:$0xf]
        %v4419 = vld [vmem:[%s9 + $0x84] sm:$0xf]
        %v4420 = vld [vmem:[%s9 + $0x88] sm:$0xf]
        %v4421 = vld [vmem:[%s9 + $0x8c] sm:$0xf]
        %v4422 = vld [vmem:[%s9 + $0x90] sm:$0xf]
        %v4423 = vld [vmem:[%s9 + $0x94] sm:$0xf]
        %v4424 = vld [vmem:[%s9 + $0x98] sm:$0xf]
        %v4425 = vld [vmem:[%s9 + $0x9c] sm:$0xf]
        %v4426 = vld [vmem:[%s9 + $0xa0] sm:$0xf]
        %v4427 = vld [vmem:[%s9 + $0xa4] sm:$0xf]
        %v4428 = vld [vmem:[%s9 + $0xa8] sm:$0xf]
        %v4429 = vld [vmem:[%s9 + $0xac] sm:$0xf]
        %v4430 = vld [vmem:[%s9 + $0xb0] sm:$0xf]
        %v4431 = vld [vmem:[%s9 + $0xb4] sm:$0xf]
        %v4432 = vld [vmem:[%s9 + $0xb8] sm:$0xf]
        %v4433 = vld [vmem:[%s9 + $0xbc] sm:$0xf]
        %v4434 = vld [vmem:[%s9 + $0xc0] sm:$0xf]
        %v4435 = vld [vmem:[%s9 + $0xc4] sm:$0xf]
        %v4436 = vld [vmem:[%s9 + $0xc8] sm:$0xf]
        %v4437 = vld [vmem:[%s9 + $0xcc] sm:$0xf]
        %v4438 = vld [vmem:[%s9 + $0xd0] sm:$0xf]
        %v4439 = vld [vmem:[%s9 + $0xd4] sm:$0xf]
        %v4440 = vld [vmem:[%s9 + $0xd8] sm:$0xf]
        %v4441 = vld [vmem:[%s9 + $0xdc] sm:$0xf]
        %v4442 = vld [vmem:[%s9 + $0xe0] sm:$0xf]
        %v4443 = vld [vmem:[%s9 + $0xe4] sm:$0xf]
        %v4444 = vld [vmem:[%s9 + $0xe8] sm:$0xf]
        %v4445 = vld [vmem:[%s9 + $0xec] sm:$0xf]
        %v4446 = vld [vmem:[%s9 + $0xf0] sm:$0xf]
        %v4447 = vld [vmem:[%s9 + $0xf4] sm:$0xf]
        %v4448 = vld [vmem:[%s9 + $0xf8] sm:$0xf]
        %v4449 = vld [vmem:[%s9 + $0xfc] sm:$0xf]
        %v4450 = vld [vmem:[%s10] sm:$0x1]
        %4451 = vst.msk [vmem:[#allocation2] sm:$0x7] %vm3943, 0.0
        %vm4452 = vcmask 523269
        %4453 = vst.msk [vmem:[#allocation2] sm:$0xe0] %vm4452, 0.0
        %4454 = vst.msk [vmem:[#allocation2 + $0x10] sm:$0x1] %vm4374, 0.0
        %v4456 = vrot.slane %v4385, 5
        %vm4458 = vcmask 520195
        %4459 = vst.msk [vmem:[#allocation2] sm:$0x18] %vm4458, %v4456
        %v4460 = vld [vmem:[#allocation2] sm:$0x3]
        %vm4461 = vcmask 517120
        %4462 = vst.msk [vmem:[#allocation3] sm:$0x3] %vm4461, %v4460
        %v4463 = vld [vmem:[#allocation2] sm:$0x6]
        %v4465 = vrot.slane %v4463, 1
        %4466 = vrot.lane.b32.xlu0 %v4465, 64
        %v4467 = vpop.permute.xlu0 %4466
        %vm4469 = vcmask 1041920
        %4470 = vst.msk [vmem:[#allocation3] sm:$0x3] %vm4469, %v4467
        %v4471 = vld [vmem:[#allocation2] sm:$0xc]
        %v4473 = vrot.slane %v4471, 2
        %4475 = vst.msk [vmem:[#allocation3 + $0x8] sm:$0x3] %vm4461, %v4473
        %v4476 = vld [vmem:[#allocation2] sm:$0x18]
        %v4478 = vrot.slane %v4476, 3
        %4479 = vrot.lane.b32.xlu0 %v4478, 64
        %v4480 = vpop.permute.xlu0 %4479
        %4482 = vst.msk [vmem:[#allocation3 + $0x8] sm:$0x3] %vm4469, %v4480
        %v4483 = vld [vmem:[#allocation2] sm:$0x30]
        %v4485 = vrot.slane %v4483, 4
        %4487 = vst.msk [vmem:[#allocation3 + $0x10] sm:$0x3] %vm4461, %v4485
        %v4488 = vld [vmem:[#allocation2] sm:$0x60]
        %v4490 = vrot.slane %v4488, 5
        %4491 = vrot.lane.b32.xlu0 %v4490, 64
        %v4492 = vpop.permute.xlu0 %4491
        %4494 = vst.msk [vmem:[#allocation3 + $0x10] sm:$0x3] %vm4469, %v4492
        %v4495 = vld [vmem:[#allocation2] sm:$0xc0]
        %v4497 = vrot.slane %v4495, 6
        %4499 = vst.msk [vmem:[#allocation3 + $0x18] sm:$0x3] %vm4461, %v4497
        %v4500 = vld [vmem:[#allocation2] sm:$0x80]
        %v4501 = vld [vmem:[#allocation2 + $0x10] sm:$0x1]
        %v4504 = vrot.slane %v4500, 7
        %v4505 = vrot.slane %v4501, 7
        %v4506 = vsel %vm1754, %v4504, %v4505
        %4507 = vrot.lane.b32.xlu0 %v4506, 64
        %v4508 = vpop.permute.xlu0 %4507
        %4510 = vst.msk [vmem:[#allocation3 + $0x18] sm:$0x3] %vm4469, %v4508
        %v4511 = vld [vmem:[#allocation3] sm:$0x3]
        %v4512 = vld [vmem:[#allocation3 + $0x8] sm:$0x3]
        %v4513 = vld [vmem:[#allocation3 + $0x10] sm:$0x3]
        %v4514 = vld [vmem:[#allocation3 + $0x18] sm:$0x3]
        %v4515 = vpack.c.bf16 %v4511, %v4511
        %v4516 = vpack.c.bf16 %v4512, %v4512
        %v4517 = vpack.c.bf16 %v4513, %v4513
        %v4518 = vpack.c.bf16 %v4514, %v4514
        %v4583 = vunpack.c.l.b16 %v4386
        %v4584 = vunpack.c.l.b16 %v4387
        %v4585 = vunpack.c.l.b16 %v4388
        %v4586 = vunpack.c.l.b16 %v4389
        %v4587 = vunpack.c.l.b16 %v4390
        %v4588 = vunpack.c.l.b16 %v4391
        %v4589 = vunpack.c.l.b16 %v4392
        %v4590 = vunpack.c.l.b16 %v4393
        %v4591 = vunpack.c.l.b16 %v4394
        %v4592 = vunpack.c.l.b16 %v4395
        %v4593 = vunpack.c.l.b16 %v4396
        %v4594 = vunpack.c.l.b16 %v4397
        %v4595 = vunpack.c.l.b16 %v4398
        %v4596 = vunpack.c.l.b16 %v4399
        %v4597 = vunpack.c.l.b16 %v4400
        %v4598 = vunpack.c.l.b16 %v4401
        %v4599 = vunpack.c.l.b16 %v4402
        %v4600 = vunpack.c.l.b16 %v4403
        %v4601 = vunpack.c.l.b16 %v4404
        %v4602 = vunpack.c.l.b16 %v4405
        %v4603 = vunpack.c.l.b16 %v4406
        %v4604 = vunpack.c.l.b16 %v4407
        %v4605 = vunpack.c.l.b16 %v4408
        %v4606 = vunpack.c.l.b16 %v4409
        %v4607 = vunpack.c.l.b16 %v4410
        %v4608 = vunpack.c.l.b16 %v4411
        %v4609 = vunpack.c.l.b16 %v4412
        %v4610 = vunpack.c.l.b16 %v4413
        %v4611 = vunpack.c.l.b16 %v4414
        %v4612 = vunpack.c.l.b16 %v4415
        %v4613 = vunpack.c.l.b16 %v4416
        %v4614 = vunpack.c.l.b16 %v4417
        %v4615 = vunpack.c.l.b16 %v4418
        %v4616 = vunpack.c.l.b16 %v4419
        %v4617 = vunpack.c.l.b16 %v4420
        %v4618 = vunpack.c.l.b16 %v4421
        %v4619 = vunpack.c.l.b16 %v4422
        %v4620 = vunpack.c.l.b16 %v4423
        %v4621 = vunpack.c.l.b16 %v4424
        %v4622 = vunpack.c.l.b16 %v4425
        %v4623 = vunpack.c.l.b16 %v4426
        %v4624 = vunpack.c.l.b16 %v4427
        %v4625 = vunpack.c.l.b16 %v4428
        %v4626 = vunpack.c.l.b16 %v4429
        %v4627 = vunpack.c.l.b16 %v4430
        %v4628 = vunpack.c.l.b16 %v4431
        %v4629 = vunpack.c.l.b16 %v4432
        %v4630 = vunpack.c.l.b16 %v4433
        %v4631 = vunpack.c.l.b16 %v4434
        %v4632 = vunpack.c.l.b16 %v4435
        %v4633 = vunpack.c.l.b16 %v4436
        %v4634 = vunpack.c.l.b16 %v4437
        %v4635 = vunpack.c.l.b16 %v4438
        %v4636 = vunpack.c.l.b16 %v4439
        %v4637 = vunpack.c.l.b16 %v4440
        %v4638 = vunpack.c.l.b16 %v4441
        %v4639 = vunpack.c.l.b16 %v4442
        %v4640 = vunpack.c.l.b16 %v4443
        %v4641 = vunpack.c.l.b16 %v4444
        %v4642 = vunpack.c.l.b16 %v4445
        %v4643 = vunpack.c.l.b16 %v4446
        %v4644 = vunpack.c.l.b16 %v4447
        %v4645 = vunpack.c.l.b16 %v4448
        %v4646 = vunpack.c.l.b16 %v4449
        %v4647 = vpack.c.b16 %v4584, %v4583
        %v4648 = vpack.c.b16 %v4586, %v4585
        %v4649 = vpack.c.b16 %v4588, %v4587
        %v4650 = vpack.c.b16 %v4590, %v4589
        %v4651 = vpack.c.b16 %v4592, %v4591
        %v4652 = vpack.c.b16 %v4594, %v4593
        %v4653 = vpack.c.b16 %v4596, %v4595
        %v4654 = vpack.c.b16 %v4598, %v4597
        %v4655 = vpack.c.b16 %v4600, %v4599
        %v4656 = vpack.c.b16 %v4602, %v4601
        %v4657 = vpack.c.b16 %v4604, %v4603
        %v4658 = vpack.c.b16 %v4606, %v4605
        %v4659 = vpack.c.b16 %v4608, %v4607
        %v4660 = vpack.c.b16 %v4610, %v4609
        %v4661 = vpack.c.b16 %v4612, %v4611
        %v4662 = vpack.c.b16 %v4614, %v4613
        %v4663 = vpack.c.b16 %v4616, %v4615
        %v4664 = vpack.c.b16 %v4618, %v4617
        %v4665 = vpack.c.b16 %v4620, %v4619
        %v4666 = vpack.c.b16 %v4622, %v4621
        %v4667 = vpack.c.b16 %v4624, %v4623
        %v4668 = vpack.c.b16 %v4626, %v4625
        %v4669 = vpack.c.b16 %v4628, %v4627
        %v4670 = vpack.c.b16 %v4630, %v4629
        %v4671 = vpack.c.b16 %v4632, %v4631
        %v4672 = vpack.c.b16 %v4634, %v4633
        %v4673 = vpack.c.b16 %v4636, %v4635
        %v4674 = vpack.c.b16 %v4638, %v4637
        %v4675 = vpack.c.b16 %v4640, %v4639
        %v4676 = vpack.c.b16 %v4642, %v4641
        %v4677 = vpack.c.b16 %v4644, %v4643
        %v4678 = vpack.c.b16 %v4646, %v4645
        %4711 = vmatpush.bf16.msra.mxu0 %v4654
        %4712 = vmatpush.bf16.msra.mxu0 %v4653
        %4713 = vmatpush.bf16.msra.mxu0 %v4652
        %4714 = vmatpush.bf16.msra.mxu0 %v4651
        %4715 = vmatpush.bf16.msra.mxu0 %v4650
        %4716 = vmatpush.bf16.msra.mxu0 %v4649
        %4717 = vmatpush.bf16.msra.mxu0 %v4648
        %4718 = vmatpush.bf16.msra.mxu0 %v4647
        %4719 = vmatmul.bf16.gmra.mxu0 %v4515
        %v4720 = vpop.f32.mrf.mxu0
        %v4721 = vadd.f32 0.0, %v4720
        %v4722 = vpop.f32.mrf.mxu0
        %4723 = vdwg.mxu0
        %4724 = vmatpush.bf16.msra.mxu0 %v4662
        %4725 = vmatpush.bf16.msra.mxu0 %v4661
        %4726 = vmatpush.bf16.msra.mxu0 %v4660
        %4727 = vmatpush.bf16.msra.mxu0 %v4659
        %4728 = vmatpush.bf16.msra.mxu0 %v4658
        %4729 = vmatpush.bf16.msra.mxu0 %v4657
        %4730 = vmatpush.bf16.msra.mxu0 %v4656
        %4731 = vmatpush.bf16.msra.mxu0 %v4655
        %4732 = vmatmul.bf16.gmra.mxu0 %v4516
        %v4733 = vpop.f32.mrf.mxu0
        %v4734 = vadd.f32 %v4721, %v4733
        %v4735 = vpop.f32.mrf.mxu0
        %4736 = vdwg.mxu0
        %4737 = vmatpush.bf16.msra.mxu0 %v4670
        %4738 = vmatpush.bf16.msra.mxu0 %v4669
        %4739 = vmatpush.bf16.msra.mxu0 %v4668
        %4740 = vmatpush.bf16.msra.mxu0 %v4667
        %4741 = vmatpush.bf16.msra.mxu0 %v4666
        %4742 = vmatpush.bf16.msra.mxu0 %v4665
        %4743 = vmatpush.bf16.msra.mxu0 %v4664
        %4744 = vmatpush.bf16.msra.mxu0 %v4663
        %4745 = vmatmul.bf16.gmra.mxu0 %v4517
        %v4746 = vpop.f32.mrf.mxu0
        %v4747 = vadd.f32 %v4734, %v4746
        %v4748 = vpop.f32.mrf.mxu0
        %4749 = vdwg.mxu0
        %4750 = vmatpush.bf16.msra.mxu0 %v4678
        %4751 = vmatpush.bf16.msra.mxu0 %v4677
        %4752 = vmatpush.bf16.msra.mxu0 %v4676
        %4753 = vmatpush.bf16.msra.mxu0 %v4675
        %4754 = vmatpush.bf16.msra.mxu0 %v4674
        %4755 = vmatpush.bf16.msra.mxu0 %v4673
        %4756 = vmatpush.bf16.msra.mxu0 %v4672
        %4757 = vmatpush.bf16.msra.mxu0 %v4671
        %4758 = vmatmul.bf16.gmra.mxu0 %v4518
        %v4759 = vpop.f32.mrf.mxu0
        %v4760 = vadd.f32 %v4747, %v4759
        %v4761 = vpop.f32.mrf.mxu0
        %4762 = vdwg.mxu0
        %v4764 = vperm.slane %v4450, 0
        %v4766 = vadd.f32 %v4760, %v4764
        %v4767 = vmax.f32 %v4766, 0.0
        %v4768 = vld [vmem:[%s11] sm:$0xf]
        %v4769 = vld [vmem:[%s11 + $0x4] sm:$0xf]
        %v4770 = vld [vmem:[%s11 + $0x8] sm:$0xf]
        %v4771 = vld [vmem:[%s11 + $0xc] sm:$0xf]
        %v4772 = vld [vmem:[%s11 + $0x10] sm:$0xf]
        %v4773 = vld [vmem:[%s11 + $0x14] sm:$0xf]
        %v4774 = vld [vmem:[%s11 + $0x18] sm:$0xf]
        %v4775 = vld [vmem:[%s11 + $0x1c] sm:$0xf]
        %v4776 = vld [vmem:[%s11 + $0x20] sm:$0xf]
        %v4777 = vld [vmem:[%s11 + $0x24] sm:$0xf]
        %v4778 = vld [vmem:[%s11 + $0x28] sm:$0xf]
        %v4779 = vld [vmem:[%s11 + $0x2c] sm:$0xf]
        %v4780 = vld [vmem:[%s11 + $0x30] sm:$0xf]
        %v4781 = vld [vmem:[%s11 + $0x34] sm:$0xf]
        %v4782 = vld [vmem:[%s11 + $0x38] sm:$0xf]
        %v4783 = vld [vmem:[%s11 + $0x3c] sm:$0xf]
        %v4784 = vld [vmem:[%s11 + $0x40] sm:$0xf]
        %v4785 = vld [vmem:[%s11 + $0x44] sm:$0xf]
        %v4786 = vld [vmem:[%s11 + $0x48] sm:$0xf]
        %v4787 = vld [vmem:[%s11 + $0x4c] sm:$0xf]
        %v4788 = vld [vmem:[%s11 + $0x50] sm:$0xf]
        %v4789 = vld [vmem:[%s11 + $0x54] sm:$0xf]
        %v4790 = vld [vmem:[%s11 + $0x58] sm:$0xf]
        %v4791 = vld [vmem:[%s11 + $0x5c] sm:$0xf]
        %v4792 = vld [vmem:[%s11 + $0x60] sm:$0xf]
        %v4793 = vld [vmem:[%s11 + $0x64] sm:$0xf]
        %v4794 = vld [vmem:[%s11 + $0x68] sm:$0xf]
        %v4795 = vld [vmem:[%s11 + $0x6c] sm:$0xf]
        %v4796 = vld [vmem:[%s11 + $0x70] sm:$0xf]
        %v4797 = vld [vmem:[%s11 + $0x74] sm:$0xf]
        %v4798 = vld [vmem:[%s11 + $0x78] sm:$0xf]
        %v4799 = vld [vmem:[%s11 + $0x7c] sm:$0xf]
        %v4800 = vld [vmem:[%s11 + $0x80] sm:$0xf]
        %v4801 = vld [vmem:[%s11 + $0x84] sm:$0xf]
        %v4802 = vld [vmem:[%s11 + $0x88] sm:$0xf]
        %v4803 = vld [vmem:[%s11 + $0x8c] sm:$0xf]
        %v4804 = vld [vmem:[%s11 + $0x90] sm:$0xf]
        %v4805 = vld [vmem:[%s11 + $0x94] sm:$0xf]
        %v4806 = vld [vmem:[%s11 + $0x98] sm:$0xf]
        %v4807 = vld [vmem:[%s11 + $0x9c] sm:$0xf]
        %v4808 = vld [vmem:[%s11 + $0xa0] sm:$0xf]
        %v4809 = vld [vmem:[%s11 + $0xa4] sm:$0xf]
        %v4810 = vld [vmem:[%s11 + $0xa8] sm:$0xf]
        %v4811 = vld [vmem:[%s11 + $0xac] sm:$0xf]
        %v4812 = vld [vmem:[%s11 + $0xb0] sm:$0xf]
        %v4813 = vld [vmem:[%s11 + $0xb4] sm:$0xf]
        %v4814 = vld [vmem:[%s11 + $0xb8] sm:$0xf]
        %v4815 = vld [vmem:[%s11 + $0xbc] sm:$0xf]
        %v4816 = vld [vmem:[%s11 + $0xc0] sm:$0xf]
        %v4817 = vld [vmem:[%s11 + $0xc4] sm:$0xf]
        %v4818 = vld [vmem:[%s11 + $0xc8] sm:$0xf]
        %v4819 = vld [vmem:[%s11 + $0xcc] sm:$0xf]
        %v4820 = vld [vmem:[%s11 + $0xd0] sm:$0xf]
        %v4821 = vld [vmem:[%s11 + $0xd4] sm:$0xf]
        %v4822 = vld [vmem:[%s11 + $0xd8] sm:$0xf]
        %v4823 = vld [vmem:[%s11 + $0xdc] sm:$0xf]
        %v4824 = vld [vmem:[%s11 + $0xe0] sm:$0xf]
        %v4825 = vld [vmem:[%s11 + $0xe4] sm:$0xf]
        %v4826 = vld [vmem:[%s11 + $0xe8] sm:$0xf]
        %v4827 = vld [vmem:[%s11 + $0xec] sm:$0xf]
        %v4828 = vld [vmem:[%s11 + $0xf0] sm:$0xf]
        %v4829 = vld [vmem:[%s11 + $0xf4] sm:$0xf]
        %v4830 = vld [vmem:[%s11 + $0xf8] sm:$0xf]
        %v4831 = vld [vmem:[%s11 + $0xfc] sm:$0xf]
        %v4832 = vld [vmem:[%s11 + $0x100] sm:$0xf]
        %v4833 = vld [vmem:[%s11 + $0x104] sm:$0xf]
        %v4834 = vld [vmem:[%s11 + $0x108] sm:$0xf]
        %v4835 = vld [vmem:[%s11 + $0x10c] sm:$0xf]
        %v4836 = vld [vmem:[%s11 + $0x110] sm:$0xf]
        %v4837 = vld [vmem:[%s11 + $0x114] sm:$0xf]
        %v4838 = vld [vmem:[%s11 + $0x118] sm:$0xf]
        %v4839 = vld [vmem:[%s11 + $0x11c] sm:$0xf]
        %v4840 = vld [vmem:[%s11 + $0x120] sm:$0xf]
        %v4841 = vld [vmem:[%s11 + $0x124] sm:$0xf]
        %v4842 = vld [vmem:[%s11 + $0x128] sm:$0xf]
        %v4843 = vld [vmem:[%s11 + $0x12c] sm:$0xf]
        %v4844 = vld [vmem:[%s11 + $0x130] sm:$0xf]
        %v4845 = vld [vmem:[%s11 + $0x134] sm:$0xf]
        %v4846 = vld [vmem:[%s11 + $0x138] sm:$0xf]
        %v4847 = vld [vmem:[%s11 + $0x13c] sm:$0xf]
        %v4848 = vld [vmem:[%s11 + $0x140] sm:$0xf]
        %v4849 = vld [vmem:[%s11 + $0x144] sm:$0xf]
        %v4850 = vld [vmem:[%s11 + $0x148] sm:$0xf]
        %v4851 = vld [vmem:[%s11 + $0x14c] sm:$0xf]
        %v4852 = vld [vmem:[%s11 + $0x150] sm:$0xf]
        %v4853 = vld [vmem:[%s11 + $0x154] sm:$0xf]
        %v4854 = vld [vmem:[%s11 + $0x158] sm:$0xf]
        %v4855 = vld [vmem:[%s11 + $0x15c] sm:$0xf]
        %v4856 = vld [vmem:[%s11 + $0x160] sm:$0xf]
        %v4857 = vld [vmem:[%s11 + $0x164] sm:$0xf]
        %v4858 = vld [vmem:[%s11 + $0x168] sm:$0xf]
        %v4859 = vld [vmem:[%s11 + $0x16c] sm:$0xf]
        %v4860 = vld [vmem:[%s11 + $0x170] sm:$0xf]
        %v4861 = vld [vmem:[%s11 + $0x174] sm:$0xf]
        %v4862 = vld [vmem:[%s11 + $0x178] sm:$0xf]
        %v4863 = vld [vmem:[%s11 + $0x17c] sm:$0xf]
        %v4864 = vld [vmem:[%s11 + $0x180] sm:$0xf]
        %v4865 = vld [vmem:[%s11 + $0x184] sm:$0xf]
        %v4866 = vld [vmem:[%s11 + $0x188] sm:$0xf]
        %v4867 = vld [vmem:[%s11 + $0x18c] sm:$0xf]
        %v4868 = vld [vmem:[%s11 + $0x190] sm:$0xf]
        %v4869 = vld [vmem:[%s11 + $0x194] sm:$0xf]
        %v4870 = vld [vmem:[%s11 + $0x198] sm:$0xf]
        %v4871 = vld [vmem:[%s11 + $0x19c] sm:$0xf]
        %v4872 = vld [vmem:[%s11 + $0x1a0] sm:$0xf]
        %v4873 = vld [vmem:[%s11 + $0x1a4] sm:$0xf]
        %v4874 = vld [vmem:[%s11 + $0x1a8] sm:$0xf]
        %v4875 = vld [vmem:[%s11 + $0x1ac] sm:$0xf]
        %v4876 = vld [vmem:[%s11 + $0x1b0] sm:$0xf]
        %v4877 = vld [vmem:[%s11 + $0x1b4] sm:$0xf]
        %v4878 = vld [vmem:[%s11 + $0x1b8] sm:$0xf]
        %v4879 = vld [vmem:[%s11 + $0x1bc] sm:$0xf]
        %v4880 = vld [vmem:[%s11 + $0x1c0] sm:$0xf]
        %v4881 = vld [vmem:[%s11 + $0x1c4] sm:$0xf]
        %v4882 = vld [vmem:[%s11 + $0x1c8] sm:$0xf]
        %v4883 = vld [vmem:[%s11 + $0x1cc] sm:$0xf]
        %v4884 = vld [vmem:[%s11 + $0x1d0] sm:$0xf]
        %v4885 = vld [vmem:[%s11 + $0x1d4] sm:$0xf]
        %v4886 = vld [vmem:[%s11 + $0x1d8] sm:$0xf]
        %v4887 = vld [vmem:[%s11 + $0x1dc] sm:$0xf]
        %v4888 = vld [vmem:[%s11 + $0x1e0] sm:$0xf]
        %v4889 = vld [vmem:[%s11 + $0x1e4] sm:$0xf]
        %v4890 = vld [vmem:[%s11 + $0x1e8] sm:$0xf]
        %v4891 = vld [vmem:[%s11 + $0x1ec] sm:$0xf]
        %v4892 = vld [vmem:[%s11 + $0x1f0] sm:$0xf]
        %v4893 = vld [vmem:[%s11 + $0x1f4] sm:$0xf]
        %v4894 = vld [vmem:[%s11 + $0x1f8] sm:$0xf]
        %v4895 = vld [vmem:[%s11 + $0x1fc] sm:$0xf]
        %v4896 = vld [vmem:[%s12] sm:$0x1]
        %4897 = vst [vmem:[#allocation2] sm:$0x7] 0.0
        %4898 = vst [vmem:[#allocation2] sm:$0xe0] 0.0
        %4899 = vst [vmem:[#allocation2 + $0x10] sm:$0x1] 0.0
        %v4901 = vrot.slane %v4767, 5
        %4903 = vst [vmem:[#allocation2] sm:$0x18] %v4901
        %v4904 = vld [vmem:[#allocation2] sm:$0x3]
        %4905 = vst [vmem:[#allocation3] sm:$0x3] %v4904
        %v4906 = vld [vmem:[#allocation2] sm:$0x6]
        %v4908 = vrot.slane %v4906, 1
        %4910 = vst [vmem:[#allocation3 + $0x8] sm:$0x3] %v4908
        %v4911 = vld [vmem:[#allocation2] sm:$0xc]
        %v4913 = vrot.slane %v4911, 2
        %4915 = vst [vmem:[#allocation3 + $0x10] sm:$0x3] %v4913
        %v4916 = vld [vmem:[#allocation2] sm:$0x18]
        %v4918 = vrot.slane %v4916, 3
        %4920 = vst [vmem:[#allocation3 + $0x18] sm:$0x3] %v4918
        %v4921 = vld [vmem:[#allocation2] sm:$0x30]
        %v4923 = vrot.slane %v4921, 4
        %4925 = vst [vmem:[#allocation3 + $0x20] sm:$0x3] %v4923
        %v4926 = vld [vmem:[#allocation2] sm:$0x60]
        %v4928 = vrot.slane %v4926, 5
        %4930 = vst [vmem:[#allocation3 + $0x28] sm:$0x3] %v4928
        %v4931 = vld [vmem:[#allocation2] sm:$0xc0]
        %v4933 = vrot.slane %v4931, 6
        %4935 = vst [vmem:[#allocation3 + $0x30] sm:$0x3] %v4933
        %v4936 = vld [vmem:[#allocation2] sm:$0x80]
        %v4937 = vld [vmem:[#allocation2 + $0x10] sm:$0x1]
        %v4940 = vrot.slane %v4936, 7
        %v4941 = vrot.slane %v4937, 7
        %v4942 = vsel %vm1754, %v4940, %v4941
        %4944 = vst [vmem:[#allocation3 + $0x38] sm:$0x3] %v4942
        %v4945 = vld [vmem:[#allocation3] sm:$0x3]
        %v4946 = vld [vmem:[#allocation3 + $0x8] sm:$0x3]
        %v4947 = vld [vmem:[#allocation3 + $0x10] sm:$0x3]
        %v4948 = vld [vmem:[#allocation3 + $0x18] sm:$0x3]
        %v4949 = vld [vmem:[#allocation3 + $0x20] sm:$0x3]
        %v4950 = vld [vmem:[#allocation3 + $0x28] sm:$0x3]
        %v4951 = vld [vmem:[#allocation3 + $0x30] sm:$0x3]
        %v4952 = vld [vmem:[#allocation3 + $0x38] sm:$0x3]
        %v4953 = vpack.c.bf16 %v4945, %v4945
        %v4954 = vpack.c.bf16 %v4946, %v4946
        %v4955 = vpack.c.bf16 %v4947, %v4947
        %v4956 = vpack.c.bf16 %v4948, %v4948
        %v4957 = vpack.c.bf16 %v4949, %v4949
        %v4958 = vpack.c.bf16 %v4950, %v4950
        %v4959 = vpack.c.bf16 %v4951, %v4951
        %v4960 = vpack.c.bf16 %v4952, %v4952
        %v5089 = vunpack.c.l.b16 %v4768
        %v5090 = vunpack.c.l.b16 %v4769
        %v5091 = vunpack.c.l.b16 %v4770
        %v5092 = vunpack.c.l.b16 %v4771
        %v5093 = vunpack.c.l.b16 %v4772
        %v5094 = vunpack.c.l.b16 %v4773
        %v5095 = vunpack.c.l.b16 %v4774
        %v5096 = vunpack.c.l.b16 %v4775
        %v5097 = vunpack.c.l.b16 %v4776
        %v5098 = vunpack.c.l.b16 %v4777
        %v5099 = vunpack.c.l.b16 %v4778
        %v5100 = vunpack.c.l.b16 %v4779
        %v5101 = vunpack.c.l.b16 %v4780
        %v5102 = vunpack.c.l.b16 %v4781
        %v5103 = vunpack.c.l.b16 %v4782
        %v5104 = vunpack.c.l.b16 %v4783
        %v5105 = vunpack.c.l.b16 %v4784
        %v5106 = vunpack.c.l.b16 %v4785
        %v5107 = vunpack.c.l.b16 %v4786
        %v5108 = vunpack.c.l.b16 %v4787
        %v5109 = vunpack.c.l.b16 %v4788
        %v5110 = vunpack.c.l.b16 %v4789
        %v5111 = vunpack.c.l.b16 %v4790
        %v5112 = vunpack.c.l.b16 %v4791
        %v5113 = vunpack.c.l.b16 %v4792
        %v5114 = vunpack.c.l.b16 %v4793
        %v5115 = vunpack.c.l.b16 %v4794
        %v5116 = vunpack.c.l.b16 %v4795
        %v5117 = vunpack.c.l.b16 %v4796
        %v5118 = vunpack.c.l.b16 %v4797
        %v5119 = vunpack.c.l.b16 %v4798
        %v5120 = vunpack.c.l.b16 %v4799
        %v5121 = vunpack.c.l.b16 %v4800
        %v5122 = vunpack.c.l.b16 %v4801
        %v5123 = vunpack.c.l.b16 %v4802
        %v5124 = vunpack.c.l.b16 %v4803
        %v5125 = vunpack.c.l.b16 %v4804
        %v5126 = vunpack.c.l.b16 %v4805
        %v5127 = vunpack.c.l.b16 %v4806
        %v5128 = vunpack.c.l.b16 %v4807
        %v5129 = vunpack.c.l.b16 %v4808
        %v5130 = vunpack.c.l.b16 %v4809
        %v5131 = vunpack.c.l.b16 %v4810
        %v5132 = vunpack.c.l.b16 %v4811
        %v5133 = vunpack.c.l.b16 %v4812
        %v5134 = vunpack.c.l.b16 %v4813
        %v5135 = vunpack.c.l.b16 %v4814
        %v5136 = vunpack.c.l.b16 %v4815
        %v5137 = vunpack.c.l.b16 %v4816
        %v5138 = vunpack.c.l.b16 %v4817
        %v5139 = vunpack.c.l.b16 %v4818
        %v5140 = vunpack.c.l.b16 %v4819
        %v5141 = vunpack.c.l.b16 %v4820
        %v5142 = vunpack.c.l.b16 %v4821
        %v5143 = vunpack.c.l.b16 %v4822
        %v5144 = vunpack.c.l.b16 %v4823
        %v5145 = vunpack.c.l.b16 %v4824
        %v5146 = vunpack.c.l.b16 %v4825
        %v5147 = vunpack.c.l.b16 %v4826
        %v5148 = vunpack.c.l.b16 %v4827
        %v5149 = vunpack.c.l.b16 %v4828
        %v5150 = vunpack.c.l.b16 %v4829
        %v5151 = vunpack.c.l.b16 %v4830
        %v5152 = vunpack.c.l.b16 %v4831
        %v5153 = vunpack.c.l.b16 %v4832
        %v5154 = vunpack.c.l.b16 %v4833
        %v5155 = vunpack.c.l.b16 %v4834
        %v5156 = vunpack.c.l.b16 %v4835
        %v5157 = vunpack.c.l.b16 %v4836
        %v5158 = vunpack.c.l.b16 %v4837
        %v5159 = vunpack.c.l.b16 %v4838
        %v5160 = vunpack.c.l.b16 %v4839
        %v5161 = vunpack.c.l.b16 %v4840
        %v5162 = vunpack.c.l.b16 %v4841
        %v5163 = vunpack.c.l.b16 %v4842
        %v5164 = vunpack.c.l.b16 %v4843
        %v5165 = vunpack.c.l.b16 %v4844
        %v5166 = vunpack.c.l.b16 %v4845
        %v5167 = vunpack.c.l.b16 %v4846
        %v5168 = vunpack.c.l.b16 %v4847
        %v5169 = vunpack.c.l.b16 %v4848
        %v5170 = vunpack.c.l.b16 %v4849
        %v5171 = vunpack.c.l.b16 %v4850
        %v5172 = vunpack.c.l.b16 %v4851
        %v5173 = vunpack.c.l.b16 %v4852
        %v5174 = vunpack.c.l.b16 %v4853
        %v5175 = vunpack.c.l.b16 %v4854
        %v5176 = vunpack.c.l.b16 %v4855
        %v5177 = vunpack.c.l.b16 %v4856
        %v5178 = vunpack.c.l.b16 %v4857
        %v5179 = vunpack.c.l.b16 %v4858
        %v5180 = vunpack.c.l.b16 %v4859
        %v5181 = vunpack.c.l.b16 %v4860
        %v5182 = vunpack.c.l.b16 %v4861
        %v5183 = vunpack.c.l.b16 %v4862
        %v5184 = vunpack.c.l.b16 %v4863
        %v5185 = vunpack.c.l.b16 %v4864
        %v5186 = vunpack.c.l.b16 %v4865
        %v5187 = vunpack.c.l.b16 %v4866
        %v5188 = vunpack.c.l.b16 %v4867
        %v5189 = vunpack.c.l.b16 %v4868
        %v5190 = vunpack.c.l.b16 %v4869
        %v5191 = vunpack.c.l.b16 %v4870
        %v5192 = vunpack.c.l.b16 %v4871
        %v5193 = vunpack.c.l.b16 %v4872
        %v5194 = vunpack.c.l.b16 %v4873
        %v5195 = vunpack.c.l.b16 %v4874
        %v5196 = vunpack.c.l.b16 %v4875
        %v5197 = vunpack.c.l.b16 %v4876
        %v5198 = vunpack.c.l.b16 %v4877
        %v5199 = vunpack.c.l.b16 %v4878
        %v5200 = vunpack.c.l.b16 %v4879
        %v5201 = vunpack.c.l.b16 %v4880
        %v5202 = vunpack.c.l.b16 %v4881
        %v5203 = vunpack.c.l.b16 %v4882
        %v5204 = vunpack.c.l.b16 %v4883
        %v5205 = vunpack.c.l.b16 %v4884
        %v5206 = vunpack.c.l.b16 %v4885
        %v5207 = vunpack.c.l.b16 %v4886
        %v5208 = vunpack.c.l.b16 %v4887
        %v5209 = vunpack.c.l.b16 %v4888
        %v5210 = vunpack.c.l.b16 %v4889
        %v5211 = vunpack.c.l.b16 %v4890
        %v5212 = vunpack.c.l.b16 %v4891
        %v5213 = vunpack.c.l.b16 %v4892
        %v5214 = vunpack.c.l.b16 %v4893
        %v5215 = vunpack.c.l.b16 %v4894
        %v5216 = vunpack.c.l.b16 %v4895
        %v5217 = vpack.c.b16 %v5090, %v5089
        %v5218 = vpack.c.b16 %v5092, %v5091
        %v5219 = vpack.c.b16 %v5094, %v5093
        %v5220 = vpack.c.b16 %v5096, %v5095
        %v5221 = vpack.c.b16 %v5098, %v5097
        %v5222 = vpack.c.b16 %v5100, %v5099
        %v5223 = vpack.c.b16 %v5102, %v5101
        %v5224 = vpack.c.b16 %v5104, %v5103
        %v5225 = vpack.c.b16 %v5106, %v5105
        %v5226 = vpack.c.b16 %v5108, %v5107
        %v5227 = vpack.c.b16 %v5110, %v5109
        %v5228 = vpack.c.b16 %v5112, %v5111
        %v5229 = vpack.c.b16 %v5114, %v5113
        %v5230 = vpack.c.b16 %v5116, %v5115
        %v5231 = vpack.c.b16 %v5118, %v5117
        %v5232 = vpack.c.b16 %v5120, %v5119
        %v5233 = vpack.c.b16 %v5122, %v5121
        %v5234 = vpack.c.b16 %v5124, %v5123
        %v5235 = vpack.c.b16 %v5126, %v5125
        %v5236 = vpack.c.b16 %v5128, %v5127
        %v5237 = vpack.c.b16 %v5130, %v5129
        %v5238 = vpack.c.b16 %v5132, %v5131
        %v5239 = vpack.c.b16 %v5134, %v5133
        %v5240 = vpack.c.b16 %v5136, %v5135
        %v5241 = vpack.c.b16 %v5138, %v5137
        %v5242 = vpack.c.b16 %v5140, %v5139
        %v5243 = vpack.c.b16 %v5142, %v5141
        %v5244 = vpack.c.b16 %v5144, %v5143
        %v5245 = vpack.c.b16 %v5146, %v5145
        %v5246 = vpack.c.b16 %v5148, %v5147
        %v5247 = vpack.c.b16 %v5150, %v5149
        %v5248 = vpack.c.b16 %v5152, %v5151
        %v5249 = vpack.c.b16 %v5154, %v5153
        %v5250 = vpack.c.b16 %v5156, %v5155
        %v5251 = vpack.c.b16 %v5158, %v5157
        %v5252 = vpack.c.b16 %v5160, %v5159
        %v5253 = vpack.c.b16 %v5162, %v5161
        %v5254 = vpack.c.b16 %v5164, %v5163
        %v5255 = vpack.c.b16 %v5166, %v5165
        %v5256 = vpack.c.b16 %v5168, %v5167
        %v5257 = vpack.c.b16 %v5170, %v5169
        %v5258 = vpack.c.b16 %v5172, %v5171
        %v5259 = vpack.c.b16 %v5174, %v5173
        %v5260 = vpack.c.b16 %v5176, %v5175
        %v5261 = vpack.c.b16 %v5178, %v5177
        %v5262 = vpack.c.b16 %v5180, %v5179
        %v5263 = vpack.c.b16 %v5182, %v5181
        %v5264 = vpack.c.b16 %v5184, %v5183
        %v5265 = vpack.c.b16 %v5186, %v5185
        %v5266 = vpack.c.b16 %v5188, %v5187
        %v5267 = vpack.c.b16 %v5190, %v5189
        %v5268 = vpack.c.b16 %v5192, %v5191
        %v5269 = vpack.c.b16 %v5194, %v5193
        %v5270 = vpack.c.b16 %v5196, %v5195
        %v5271 = vpack.c.b16 %v5198, %v5197
        %v5272 = vpack.c.b16 %v5200, %v5199
        %v5273 = vpack.c.b16 %v5202, %v5201
        %v5274 = vpack.c.b16 %v5204, %v5203
        %v5275 = vpack.c.b16 %v5206, %v5205
        %v5276 = vpack.c.b16 %v5208, %v5207
        %v5277 = vpack.c.b16 %v5210, %v5209
        %v5278 = vpack.c.b16 %v5212, %v5211
        %v5279 = vpack.c.b16 %v5214, %v5213
        %v5280 = vpack.c.b16 %v5216, %v5215
        %5345 = vmatpush.bf16.msra.mxu0 %v5224
        %5346 = vmatpush.bf16.msra.mxu0 %v5223
        %5347 = vmatpush.bf16.msra.mxu0 %v5222
        %5348 = vmatpush.bf16.msra.mxu0 %v5221
        %5349 = vmatpush.bf16.msra.mxu0 %v5220
        %5350 = vmatpush.bf16.msra.mxu0 %v5219
        %5351 = vmatpush.bf16.msra.mxu0 %v5218
        %5352 = vmatpush.bf16.msra.mxu0 %v5217
        %5353 = vmatmul.bf16.gmra.mxu0 %v4953
        %v5354 = vpop.f32.mrf.mxu0
        %v5355 = vadd.f32 0.0, %v5354
        %v5356 = vpop.f32.mrf.mxu0
        %5357 = vdwg.mxu0
        %5358 = vmatpush.bf16.msra.mxu0 %v5232
        %5359 = vmatpush.bf16.msra.mxu0 %v5231
        %5360 = vmatpush.bf16.msra.mxu0 %v5230
        %5361 = vmatpush.bf16.msra.mxu0 %v5229
        %5362 = vmatpush.bf16.msra.mxu0 %v5228
        %5363 = vmatpush.bf16.msra.mxu0 %v5227
        %5364 = vmatpush.bf16.msra.mxu0 %v5226
        %5365 = vmatpush.bf16.msra.mxu0 %v5225
        %5366 = vmatmul.bf16.gmra.mxu0 %v4954
        %v5367 = vpop.f32.mrf.mxu0
        %v5368 = vadd.f32 %v5355, %v5367
        %v5369 = vpop.f32.mrf.mxu0
        %5370 = vdwg.mxu0
        %5371 = vmatpush.bf16.msra.mxu0 %v5240
        %5372 = vmatpush.bf16.msra.mxu0 %v5239
        %5373 = vmatpush.bf16.msra.mxu0 %v5238
        %5374 = vmatpush.bf16.msra.mxu0 %v5237
        %5375 = vmatpush.bf16.msra.mxu0 %v5236
        %5376 = vmatpush.bf16.msra.mxu0 %v5235
        %5377 = vmatpush.bf16.msra.mxu0 %v5234
        %5378 = vmatpush.bf16.msra.mxu0 %v5233
        %5379 = vmatmul.bf16.gmra.mxu0 %v4955
        %v5380 = vpop.f32.mrf.mxu0
        %v5381 = vadd.f32 %v5368, %v5380
        %v5382 = vpop.f32.mrf.mxu0
        %5383 = vdwg.mxu0
        %5384 = vmatpush.bf16.msra.mxu0 %v5248
        %5385 = vmatpush.bf16.msra.mxu0 %v5247
        %5386 = vmatpush.bf16.msra.mxu0 %v5246
        %5387 = vmatpush.bf16.msra.mxu0 %v5245
        %5388 = vmatpush.bf16.msra.mxu0 %v5244
        %5389 = vmatpush.bf16.msra.mxu0 %v5243
        %5390 = vmatpush.bf16.msra.mxu0 %v5242
        %5391 = vmatpush.bf16.msra.mxu0 %v5241
        %5392 = vmatmul.bf16.gmra.mxu0 %v4956
        %v5393 = vpop.f32.mrf.mxu0
        %v5394 = vadd.f32 %v5381, %v5393
        %v5395 = vpop.f32.mrf.mxu0
        %5396 = vdwg.mxu0
        %5397 = vmatpush.bf16.msra.mxu0 %v5256
        %5398 = vmatpush.bf16.msra.mxu0 %v5255
        %5399 = vmatpush.bf16.msra.mxu0 %v5254
        %5400 = vmatpush.bf16.msra.mxu0 %v5253
        %5401 = vmatpush.bf16.msra.mxu0 %v5252
        %5402 = vmatpush.bf16.msra.mxu0 %v5251
        %5403 = vmatpush.bf16.msra.mxu0 %v5250
        %5404 = vmatpush.bf16.msra.mxu0 %v5249
        %5405 = vmatmul.bf16.gmra.mxu0 %v4957
        %v5406 = vpop.f32.mrf.mxu0
        %v5407 = vadd.f32 %v5394, %v5406
        %v5408 = vpop.f32.mrf.mxu0
        %5409 = vdwg.mxu0
        %5410 = vmatpush.bf16.msra.mxu0 %v5264
        %5411 = vmatpush.bf16.msra.mxu0 %v5263
        %5412 = vmatpush.bf16.msra.mxu0 %v5262
        %5413 = vmatpush.bf16.msra.mxu0 %v5261
        %5414 = vmatpush.bf16.msra.mxu0 %v5260
        %5415 = vmatpush.bf16.msra.mxu0 %v5259
        %5416 = vmatpush.bf16.msra.mxu0 %v5258
        %5417 = vmatpush.bf16.msra.mxu0 %v5257
        %5418 = vmatmul.bf16.gmra.mxu0 %v4958
        %v5419 = vpop.f32.mrf.mxu0
        %v5420 = vadd.f32 %v5407, %v5419
        %v5421 = vpop.f32.mrf.mxu0
        %5422 = vdwg.mxu0
        %5423 = vmatpush.bf16.msra.mxu0 %v5272
        %5424 = vmatpush.bf16.msra.mxu0 %v5271
        %5425 = vmatpush.bf16.msra.mxu0 %v5270
        %5426 = vmatpush.bf16.msra.mxu0 %v5269
        %5427 = vmatpush.bf16.msra.mxu0 %v5268
        %5428 = vmatpush.bf16.msra.mxu0 %v5267
        %5429 = vmatpush.bf16.msra.mxu0 %v5266
        %5430 = vmatpush.bf16.msra.mxu0 %v5265
        %5431 = vmatmul.bf16.gmra.mxu0 %v4959
        %v5432 = vpop.f32.mrf.mxu0
        %v5433 = vadd.f32 %v5420, %v5432
        %v5434 = vpop.f32.mrf.mxu0
        %5435 = vdwg.mxu0
        %5436 = vmatpush.bf16.msra.mxu0 %v5280
        %5437 = vmatpush.bf16.msra.mxu0 %v5279
        %5438 = vmatpush.bf16.msra.mxu0 %v5278
        %5439 = vmatpush.bf16.msra.mxu0 %v5277
        %5440 = vmatpush.bf16.msra.mxu0 %v5276
        %5441 = vmatpush.bf16.msra.mxu0 %v5275
        %5442 = vmatpush.bf16.msra.mxu0 %v5274
        %5443 = vmatpush.bf16.msra.mxu0 %v5273
        %5444 = vmatmul.bf16.gmra.mxu0 %v4960
        %v5445 = vpop.f32.mrf.mxu0
        %v5446 = vadd.f32 %v5433, %v5445
        %v5447 = vpop.f32.mrf.mxu0
        %5448 = vdwg.mxu0
        %v5450 = vperm.slane %v4896, 0
        %v5452 = vadd.f32 %v5446, %v5450
        %v5453 = vmax.f32 %v5452, 0.0
        %5454 = vst [vmem:[#allocation2] sm:$0x7] 0.0
        %5455 = vst [vmem:[#allocation2] sm:$0xe0] 0.0
        %5456 = vst [vmem:[#allocation2 + $0x10] sm:$0x1] 0.0
        %v5458 = vrot.slane %v5453, 5
        %5460 = vst [vmem:[#allocation2] sm:$0x18] %v5458
        %v5461 = vld [vmem:[#allocation2] sm:$0xff]
        %v5462 = vrot.slane %v5461, 4
        %v5463 = vmax.f32 %v5461, %v5462
        %v5464 = vrot.slane %v5463, 2
        %v5465 = vmax.f32 %v5463, %v5464
        %v5466 = vrot.slane %v5465, 1
        %v5467 = vmax.f32 %v5465, %v5466
        %5468 = vst [vmem:[#allocation4] sm:$0x1] %v5467
        %v5469 = vld [vmem:[#allocation4] ss:$0 sm:$0xff]
        %v5470 = vld [vmem:[#allocation5] sm:$0xff]
        %v5471 = vld [vmem:[#allocation5 + $0x8] sm:$0xff]
        %v5472 = vld [vmem:[#allocation5 + $0x10] sm:$0xff]
        %v5473 = vld [vmem:[#allocation5 + $0x18] sm:$0xff]
        %v5474 = vld [vmem:[#allocation5 + $0x20] sm:$0xff]
        %v5475 = vld [vmem:[#allocation5 + $0x28] sm:$0xff]
        %v5476 = vld [vmem:[#allocation5 + $0x30] sm:$0xff]
        %v5477 = vld [vmem:[#allocation5 + $0x38] sm:$0xff]
        %v5478 = vld [vmem:[#allocation5 + $0x40] sm:$0xff]
        %v5479 = vld [vmem:[#allocation5 + $0x48] sm:$0xff]
        %v5480 = vld [vmem:[#allocation5 + $0x50] sm:$0xff]
        %v5481 = vld [vmem:[#allocation5 + $0x58] sm:$0xff]
        %v5482 = vld [vmem:[#allocation5 + $0x60] sm:$0xff]
        %v5483 = vld [vmem:[#allocation5 + $0x68] sm:$0xff]
        %v5484 = vld [vmem:[#allocation5 + $0x70] sm:$0xff]
        %v5485 = vld [vmem:[#allocation5 + $0x78] sm:$0xff]
        %v5486 = vld [vmem:[#allocation5 + $0x80] sm:$0xff]
        %v5487 = vld [vmem:[#allocation5 + $0x88] sm:$0xff]
        %v5488 = vld [vmem:[#allocation5 + $0x90] sm:$0xff]
        %v5489 = vld [vmem:[#allocation5 + $0x98] sm:$0xff]
        %v5490 = vld [vmem:[#allocation5 + $0xa0] sm:$0xff]
        %v5491 = vld [vmem:[#allocation5 + $0xa8] sm:$0xff]
        %v5492 = vld [vmem:[#allocation5 + $0xb0] sm:$0xff]
        %v5493 = vld [vmem:[#allocation5 + $0xb8] sm:$0xff]
        %v5494 = vld [vmem:[#allocation5 + $0xc0] sm:$0xff]
        %v5495 = vld [vmem:[#allocation5 + $0xc8] sm:$0xff]
        %v5496 = vld [vmem:[#allocation5 + $0xd0] sm:$0xff]
        %v5497 = vld [vmem:[#allocation5 + $0xd8] sm:$0xff]
        %v5498 = vld [vmem:[#allocation5 + $0xe0] sm:$0xff]
        %v5499 = vld [vmem:[#allocation5 + $0xe8] sm:$0xff]
        %v5500 = vld [vmem:[#allocation5 + $0xf0] sm:$0xff]
        %v5501 = vld [vmem:[#allocation5 + $0xf8] sm:$0xff]
        %v5502 = vld [vmem:[#allocation5 + $0x100] sm:$0xff]
        %v5503 = vld [vmem:[#allocation5 + $0x108] sm:$0xff]
        %v5504 = vld [vmem:[#allocation5 + $0x110] sm:$0xff]
        %v5505 = vld [vmem:[#allocation5 + $0x118] sm:$0xff]
        %v5506 = vld [vmem:[#allocation5 + $0x120] sm:$0xff]
        %v5507 = vld [vmem:[#allocation5 + $0x128] sm:$0xff]
        %v5508 = vld [vmem:[#allocation5 + $0x130] sm:$0xff]
        %v5509 = vld [vmem:[#allocation5 + $0x138] sm:$0xff]
        %v5510 = vld [vmem:[#allocation5 + $0x140] sm:$0xff]
        %v5511 = vld [vmem:[#allocation5 + $0x148] sm:$0xff]
        %v5512 = vld [vmem:[#allocation5 + $0x150] sm:$0xff]
        %v5513 = vld [vmem:[#allocation5 + $0x158] sm:$0xff]
        %v5514 = vld [vmem:[#allocation5 + $0x160] sm:$0xff]
        %v5515 = vld [vmem:[#allocation5 + $0x168] sm:$0xff]
        %v5516 = vld [vmem:[#allocation5 + $0x170] sm:$0xff]
        %v5517 = vld [vmem:[#allocation5 + $0x178] sm:$0xff]
        %v5518 = vld [vmem:[#allocation5 + $0x180] sm:$0xff]
        %v5519 = vld [vmem:[#allocation5 + $0x188] sm:$0xff]
        %v5520 = vld [vmem:[#allocation5 + $0x190] sm:$0xff]
        %v5521 = vld [vmem:[#allocation5 + $0x198] sm:$0xff]
        %v5522 = vld [vmem:[#allocation5 + $0x1a0] sm:$0xff]
        %v5523 = vld [vmem:[#allocation5 + $0x1a8] sm:$0xff]
        %v5524 = vld [vmem:[#allocation5 + $0x1b0] sm:$0xff]
        %v5525 = vld [vmem:[#allocation5 + $0x1b8] sm:$0xff]
        %v5526 = vld [vmem:[#allocation5 + $0x1c0] sm:$0xff]
        %v5527 = vld [vmem:[#allocation5 + $0x1c8] sm:$0xff]
        %v5528 = vld [vmem:[#allocation5 + $0x1d0] sm:$0xff]
        %v5529 = vld [vmem:[#allocation5 + $0x1d8] sm:$0xff]
        %v5530 = vld [vmem:[#allocation5 + $0x1e0] sm:$0xff]
        %v5531 = vld [vmem:[#allocation5 + $0x1e8] sm:$0xff]
        %v5532 = vld [vmem:[#allocation5 + $0x1f0] sm:$0xff]
        %v5533 = vld [vmem:[#allocation5 + $0x1f8] sm:$0xff]
        %v5534 = vld [vmem:[#allocation5 + $0x200] sm:$0xff]
        %v5535 = vld [vmem:[#allocation5 + $0x208] sm:$0xff]
        %v5536 = vld [vmem:[#allocation5 + $0x210] sm:$0xff]
        %v5537 = vld [vmem:[#allocation5 + $0x218] sm:$0xff]
        %v5538 = vld [vmem:[#allocation5 + $0x220] sm:$0xff]
        %v5539 = vld [vmem:[#allocation5 + $0x228] sm:$0xff]
        %v5540 = vld [vmem:[#allocation5 + $0x230] sm:$0xff]
        %v5541 = vld [vmem:[#allocation5 + $0x238] sm:$0xff]
        %v5542 = vld [vmem:[#allocation5 + $0x240] sm:$0xff]
        %v5543 = vld [vmem:[#allocation5 + $0x248] sm:$0xff]
        %v5544 = vld [vmem:[#allocation5 + $0x250] sm:$0xff]
        %v5545 = vld [vmem:[#allocation5 + $0x258] sm:$0xff]
        %v5546 = vld [vmem:[#allocation5 + $0x260] sm:$0xff]
        %v5547 = vld [vmem:[#allocation5 + $0x268] sm:$0xff]
        %v5548 = vld [vmem:[#allocation5 + $0x270] sm:$0xff]
        %v5549 = vld [vmem:[#allocation5 + $0x278] sm:$0xff]
        %v5550 = vld [vmem:[#allocation5 + $0x280] sm:$0xff]
        %v5551 = vld [vmem:[#allocation5 + $0x288] sm:$0xff]
        %v5552 = vld [vmem:[#allocation5 + $0x290] sm:$0xff]
        %v5553 = vld [vmem:[#allocation5 + $0x298] sm:$0xff]
        %v5554 = vld [vmem:[#allocation5 + $0x2a0] sm:$0xff]
        %v5555 = vld [vmem:[#allocation5 + $0x2a8] sm:$0xff]
        %v5556 = vld [vmem:[#allocation5 + $0x2b0] sm:$0xff]
        %v5557 = vld [vmem:[#allocation5 + $0x2b8] sm:$0xff]
        %v5558 = vld [vmem:[#allocation5 + $0x2c0] sm:$0xff]
        %v5559 = vld [vmem:[#allocation5 + $0x2c8] sm:$0xff]
        %v5560 = vld [vmem:[#allocation5 + $0x2d0] sm:$0xff]
        %v5561 = vld [vmem:[#allocation5 + $0x2d8] sm:$0xff]
        %v5562 = vld [vmem:[#allocation5 + $0x2e0] sm:$0xff]
        %v5563 = vld [vmem:[#allocation5 + $0x2e8] sm:$0xff]
        %v5564 = vld [vmem:[#allocation5 + $0x2f0] sm:$0xff]
        %v5565 = vld [vmem:[#allocation5 + $0x2f8] sm:$0xff]
        %v5566 = vld [vmem:[#allocation5 + $0x300] sm:$0xff]
        %v5567 = vld [vmem:[#allocation5 + $0x308] sm:$0xff]
        %v5568 = vld [vmem:[#allocation5 + $0x310] sm:$0xff]
        %v5569 = vld [vmem:[#allocation5 + $0x318] sm:$0xff]
        %v5570 = vld [vmem:[#allocation5 + $0x320] sm:$0xff]
        %v5571 = vld [vmem:[#allocation5 + $0x328] sm:$0xff]
        %v5572 = vld [vmem:[#allocation5 + $0x330] sm:$0xff]
        %v5573 = vld [vmem:[#allocation5 + $0x338] sm:$0xff]
        %v5574 = vld [vmem:[#allocation5 + $0x340] sm:$0xff]
        %v5575 = vld [vmem:[#allocation5 + $0x348] sm:$0xff]
        %v5576 = vld [vmem:[#allocation5 + $0x350] sm:$0xff]
        %v5577 = vld [vmem:[#allocation5 + $0x358] sm:$0xff]
        %v5578 = vld [vmem:[#allocation5 + $0x360] sm:$0xff]
        %v5579 = vld [vmem:[#allocation5 + $0x368] sm:$0xff]
        %v5580 = vld [vmem:[#allocation5 + $0x370] sm:$0xff]
        %v5581 = vld [vmem:[#allocation5 + $0x378] sm:$0xff]
        %v5582 = vld [vmem:[#allocation5 + $0x380] sm:$0xff]
        %v5583 = vld [vmem:[#allocation5 + $0x388] sm:$0xff]
        %v5584 = vld [vmem:[#allocation5 + $0x390] sm:$0xff]
        %v5585 = vld [vmem:[#allocation5 + $0x398] sm:$0xff]
        %v5586 = vld [vmem:[#allocation5 + $0x3a0] sm:$0xff]
        %v5587 = vld [vmem:[#allocation5 + $0x3a8] sm:$0xff]
        %v5588 = vld [vmem:[#allocation5 + $0x3b0] sm:$0xff]
        %v5589 = vld [vmem:[#allocation5 + $0x3b8] sm:$0xff]
        %v5590 = vld [vmem:[#allocation5 + $0x3c0] sm:$0xff]
        %v5591 = vld [vmem:[#allocation5 + $0x3c8] sm:$0xff]
        %v5592 = vld [vmem:[#allocation5 + $0x3d0] sm:$0xff]
        %v5593 = vld [vmem:[#allocation5 + $0x3d8] sm:$0xff]
        %v5594 = vld [vmem:[#allocation5 + $0x3e0] sm:$0xff]
        %v5595 = vld [vmem:[#allocation5 + $0x3e8] sm:$0xff]
        %v5596 = vld [vmem:[#allocation5 + $0x3f0] sm:$0xff]
        %v5597 = vld [vmem:[#allocation5 + $0x3f8] sm:$0xff]
        %v5598 = vld [vmem:[%s14] sm:$0x3]
        %5599 = vst [vmem:[#allocation2] sm:$0x7] 0.0
        %5600 = vst [vmem:[#allocation2] sm:$0xf0] 0.0
        %5601 = vst [vmem:[#allocation2 + $0x3] sm:$0x1] %v5469
        %v5602 = vld [vmem:[#allocation2] ss:$0 sm:$0xff]
        %5603 = vst [vmem:[#allocation3] sm:$0x1] %v5602
        %v5604 = vld [vmem:[#allocation2 + $0x1] ss:$0 sm:$0xff]
        %5605 = vst [vmem:[#allocation3 + $0x8] sm:$0x1] %v5604
        %v5606 = vld [vmem:[#allocation2 + $0x2] ss:$0 sm:$0xff]
        %5607 = vst [vmem:[#allocation3 + $0x10] sm:$0x1] %v5606
        %v5608 = vld [vmem:[#allocation2 + $0x3] ss:$0 sm:$0xff]
        %5609 = vst [vmem:[#allocation3 + $0x18] sm:$0x1] %v5608
        %v5610 = vld [vmem:[#allocation2 + $0x4] ss:$0 sm:$0xff]
        %5611 = vst [vmem:[#allocation3 + $0x20] sm:$0x1] %v5610
        %v5612 = vld [vmem:[#allocation2 + $0x5] ss:$0 sm:$0xff]
        %5613 = vst [vmem:[#allocation3 + $0x28] sm:$0x1] %v5612
        %v5614 = vld [vmem:[#allocation2 + $0x6] ss:$0 sm:$0xff]
        %5615 = vst [vmem:[#allocation3 + $0x30] sm:$0x1] %v5614
        %v5616 = vld [vmem:[#allocation2 + $0x7] ss:$0 sm:$0xff]
        %5617 = vst [vmem:[#allocation3 + $0x38] sm:$0x1] %v5616
        %v5618 = vld [vmem:[#allocation3] ss:$8 sm:$0xf]
        %v5619 = vld [vmem:[#allocation3] ss:$8 sm:$0xf0]
        %v5620 = vor.u32 %v5618, %v5619
        %v5622 = vperm.slane %v5620, 0
        %v5623 = vperm.slane %v5620, 1
        %v5624 = vperm.slane %v5620, 2
        %v5625 = vperm.slane %v5620, 3
        %v5626 = vperm.slane %v5620, 4
        %v5627 = vperm.slane %v5620, 5
        %v5628 = vperm.slane %v5620, 6
        %v5629 = vperm.slane %v5620, 7
        %v5638 = vpack.c.bf16 %v5622, %v5622
        %v5639 = vpack.c.bf16 %v5623, %v5623
        %v5640 = vpack.c.bf16 %v5624, %v5624
        %v5641 = vpack.c.bf16 %v5625, %v5625
        %v5642 = vpack.c.bf16 %v5626, %v5626
        %v5643 = vpack.c.bf16 %v5627, %v5627
        %v5644 = vpack.c.bf16 %v5628, %v5628
        %v5645 = vpack.c.bf16 %v5629, %v5629
        %v5774 = vunpack.c.l.b16 %v5470
        %v5775 = vunpack.c.h.b16 %v5470
        %v5776 = vunpack.c.l.b16 %v5471
        %v5777 = vunpack.c.h.b16 %v5471
        %v5778 = vunpack.c.l.b16 %v5472
        %v5779 = vunpack.c.h.b16 %v5472
        %v5780 = vunpack.c.l.b16 %v5473
        %v5781 = vunpack.c.h.b16 %v5473
        %v5782 = vunpack.c.l.b16 %v5474
        %v5783 = vunpack.c.h.b16 %v5474
        %v5784 = vunpack.c.l.b16 %v5475
        %v5785 = vunpack.c.h.b16 %v5475
        %v5786 = vunpack.c.l.b16 %v5476
        %v5787 = vunpack.c.h.b16 %v5476
        %v5788 = vunpack.c.l.b16 %v5477
        %v5789 = vunpack.c.h.b16 %v5477
        %v5790 = vunpack.c.l.b16 %v5478
        %v5791 = vunpack.c.h.b16 %v5478
        %v5792 = vunpack.c.l.b16 %v5479
        %v5793 = vunpack.c.h.b16 %v5479
        %v5794 = vunpack.c.l.b16 %v5480
        %v5795 = vunpack.c.h.b16 %v5480
        %v5796 = vunpack.c.l.b16 %v5481
        %v5797 = vunpack.c.h.b16 %v5481
        %v5798 = vunpack.c.l.b16 %v5482
        %v5799 = vunpack.c.h.b16 %v5482
        %v5800 = vunpack.c.l.b16 %v5483
        %v5801 = vunpack.c.h.b16 %v5483
        %v5802 = vunpack.c.l.b16 %v5484
        %v5803 = vunpack.c.h.b16 %v5484
        %v5804 = vunpack.c.l.b16 %v5485
        %v5805 = vunpack.c.h.b16 %v5485
        %v5806 = vunpack.c.l.b16 %v5486
        %v5807 = vunpack.c.h.b16 %v5486
        %v5808 = vunpack.c.l.b16 %v5487
        %v5809 = vunpack.c.h.b16 %v5487
        %v5810 = vunpack.c.l.b16 %v5488
        %v5811 = vunpack.c.h.b16 %v5488
        %v5812 = vunpack.c.l.b16 %v5489
        %v5813 = vunpack.c.h.b16 %v5489
        %v5814 = vunpack.c.l.b16 %v5490
        %v5815 = vunpack.c.h.b16 %v5490
        %v5816 = vunpack.c.l.b16 %v5491
        %v5817 = vunpack.c.h.b16 %v5491
        %v5818 = vunpack.c.l.b16 %v5492
        %v5819 = vunpack.c.h.b16 %v5492
        %v5820 = vunpack.c.l.b16 %v5493
        %v5821 = vunpack.c.h.b16 %v5493
        %v5822 = vunpack.c.l.b16 %v5494
        %v5823 = vunpack.c.h.b16 %v5494
        %v5824 = vunpack.c.l.b16 %v5495
        %v5825 = vunpack.c.h.b16 %v5495
        %v5826 = vunpack.c.l.b16 %v5496
        %v5827 = vunpack.c.h.b16 %v5496
        %v5828 = vunpack.c.l.b16 %v5497
        %v5829 = vunpack.c.h.b16 %v5497
        %v5830 = vunpack.c.l.b16 %v5498
        %v5831 = vunpack.c.h.b16 %v5498
        %v5832 = vunpack.c.l.b16 %v5499
        %v5833 = vunpack.c.h.b16 %v5499
        %v5834 = vunpack.c.l.b16 %v5500
        %v5835 = vunpack.c.h.b16 %v5500
        %v5836 = vunpack.c.l.b16 %v5501
        %v5837 = vunpack.c.h.b16 %v5501
        %v5838 = vunpack.c.l.b16 %v5502
        %v5839 = vunpack.c.h.b16 %v5502
        %v5840 = vunpack.c.l.b16 %v5503
        %v5841 = vunpack.c.h.b16 %v5503
        %v5842 = vunpack.c.l.b16 %v5504
        %v5843 = vunpack.c.h.b16 %v5504
        %v5844 = vunpack.c.l.b16 %v5505
        %v5845 = vunpack.c.h.b16 %v5505
        %v5846 = vunpack.c.l.b16 %v5506
        %v5847 = vunpack.c.h.b16 %v5506
        %v5848 = vunpack.c.l.b16 %v5507
        %v5849 = vunpack.c.h.b16 %v5507
        %v5850 = vunpack.c.l.b16 %v5508
        %v5851 = vunpack.c.h.b16 %v5508
        %v5852 = vunpack.c.l.b16 %v5509
        %v5853 = vunpack.c.h.b16 %v5509
        %v5854 = vunpack.c.l.b16 %v5510
        %v5855 = vunpack.c.h.b16 %v5510
        %v5856 = vunpack.c.l.b16 %v5511
        %v5857 = vunpack.c.h.b16 %v5511
        %v5858 = vunpack.c.l.b16 %v5512
        %v5859 = vunpack.c.h.b16 %v5512
        %v5860 = vunpack.c.l.b16 %v5513
        %v5861 = vunpack.c.h.b16 %v5513
        %v5862 = vunpack.c.l.b16 %v5514
        %v5863 = vunpack.c.h.b16 %v5514
        %v5864 = vunpack.c.l.b16 %v5515
        %v5865 = vunpack.c.h.b16 %v5515
        %v5866 = vunpack.c.l.b16 %v5516
        %v5867 = vunpack.c.h.b16 %v5516
        %v5868 = vunpack.c.l.b16 %v5517
        %v5869 = vunpack.c.h.b16 %v5517
        %v5870 = vunpack.c.l.b16 %v5518
        %v5871 = vunpack.c.h.b16 %v5518
        %v5872 = vunpack.c.l.b16 %v5519
        %v5873 = vunpack.c.h.b16 %v5519
        %v5874 = vunpack.c.l.b16 %v5520
        %v5875 = vunpack.c.h.b16 %v5520
        %v5876 = vunpack.c.l.b16 %v5521
        %v5877 = vunpack.c.h.b16 %v5521
        %v5878 = vunpack.c.l.b16 %v5522
        %v5879 = vunpack.c.h.b16 %v5522
        %v5880 = vunpack.c.l.b16 %v5523
        %v5881 = vunpack.c.h.b16 %v5523
        %v5882 = vunpack.c.l.b16 %v5524
        %v5883 = vunpack.c.h.b16 %v5524
        %v5884 = vunpack.c.l.b16 %v5525
        %v5885 = vunpack.c.h.b16 %v5525
        %v5886 = vunpack.c.l.b16 %v5526
        %v5887 = vunpack.c.h.b16 %v5526
        %v5888 = vunpack.c.l.b16 %v5527
        %v5889 = vunpack.c.h.b16 %v5527
        %v5890 = vunpack.c.l.b16 %v5528
        %v5891 = vunpack.c.h.b16 %v5528
        %v5892 = vunpack.c.l.b16 %v5529
        %v5893 = vunpack.c.h.b16 %v5529
        %v5894 = vunpack.c.l.b16 %v5530
        %v5895 = vunpack.c.h.b16 %v5530
        %v5896 = vunpack.c.l.b16 %v5531
        %v5897 = vunpack.c.h.b16 %v5531
        %v5898 = vunpack.c.l.b16 %v5532
        %v5899 = vunpack.c.h.b16 %v5532
        %v5900 = vunpack.c.l.b16 %v5533
        %v5901 = vunpack.c.h.b16 %v5533
        %v5902 = vunpack.c.l.b16 %v5534
        %v5903 = vunpack.c.h.b16 %v5534
        %v5904 = vunpack.c.l.b16 %v5535
        %v5905 = vunpack.c.h.b16 %v5535
        %v5906 = vunpack.c.l.b16 %v5536
        %v5907 = vunpack.c.h.b16 %v5536
        %v5908 = vunpack.c.l.b16 %v5537
        %v5909 = vunpack.c.h.b16 %v5537
        %v5910 = vunpack.c.l.b16 %v5538
        %v5911 = vunpack.c.h.b16 %v5538
        %v5912 = vunpack.c.l.b16 %v5539
        %v5913 = vunpack.c.h.b16 %v5539
        %v5914 = vunpack.c.l.b16 %v5540
        %v5915 = vunpack.c.h.b16 %v5540
        %v5916 = vunpack.c.l.b16 %v5541
        %v5917 = vunpack.c.h.b16 %v5541
        %v5918 = vunpack.c.l.b16 %v5542
        %v5919 = vunpack.c.h.b16 %v5542
        %v5920 = vunpack.c.l.b16 %v5543
        %v5921 = vunpack.c.h.b16 %v5543
        %v5922 = vunpack.c.l.b16 %v5544
        %v5923 = vunpack.c.h.b16 %v5544
        %v5924 = vunpack.c.l.b16 %v5545
        %v5925 = vunpack.c.h.b16 %v5545
        %v5926 = vunpack.c.l.b16 %v5546
        %v5927 = vunpack.c.h.b16 %v5546
        %v5928 = vunpack.c.l.b16 %v5547
        %v5929 = vunpack.c.h.b16 %v5547
        %v5930 = vunpack.c.l.b16 %v5548
        %v5931 = vunpack.c.h.b16 %v5548
        %v5932 = vunpack.c.l.b16 %v5549
        %v5933 = vunpack.c.h.b16 %v5549
        %v5934 = vunpack.c.l.b16 %v5550
        %v5935 = vunpack.c.h.b16 %v5550
        %v5936 = vunpack.c.l.b16 %v5551
        %v5937 = vunpack.c.h.b16 %v5551
        %v5938 = vunpack.c.l.b16 %v5552
        %v5939 = vunpack.c.h.b16 %v5552
        %v5940 = vunpack.c.l.b16 %v5553
        %v5941 = vunpack.c.h.b16 %v5553
        %v5942 = vunpack.c.l.b16 %v5554
        %v5943 = vunpack.c.h.b16 %v5554
        %v5944 = vunpack.c.l.b16 %v5555
        %v5945 = vunpack.c.h.b16 %v5555
        %v5946 = vunpack.c.l.b16 %v5556
        %v5947 = vunpack.c.h.b16 %v5556
        %v5948 = vunpack.c.l.b16 %v5557
        %v5949 = vunpack.c.h.b16 %v5557
        %v5950 = vunpack.c.l.b16 %v5558
        %v5951 = vunpack.c.h.b16 %v5558
        %v5952 = vunpack.c.l.b16 %v5559
        %v5953 = vunpack.c.h.b16 %v5559
        %v5954 = vunpack.c.l.b16 %v5560
        %v5955 = vunpack.c.h.b16 %v5560
        %v5956 = vunpack.c.l.b16 %v5561
        %v5957 = vunpack.c.h.b16 %v5561
        %v5958 = vunpack.c.l.b16 %v5562
        %v5959 = vunpack.c.h.b16 %v5562
        %v5960 = vunpack.c.l.b16 %v5563
        %v5961 = vunpack.c.h.b16 %v5563
        %v5962 = vunpack.c.l.b16 %v5564
        %v5963 = vunpack.c.h.b16 %v5564
        %v5964 = vunpack.c.l.b16 %v5565
        %v5965 = vunpack.c.h.b16 %v5565
        %v5966 = vunpack.c.l.b16 %v5566
        %v5967 = vunpack.c.h.b16 %v5566
        %v5968 = vunpack.c.l.b16 %v5567
        %v5969 = vunpack.c.h.b16 %v5567
        %v5970 = vunpack.c.l.b16 %v5568
        %v5971 = vunpack.c.h.b16 %v5568
        %v5972 = vunpack.c.l.b16 %v5569
        %v5973 = vunpack.c.h.b16 %v5569
        %v5974 = vunpack.c.l.b16 %v5570
        %v5975 = vunpack.c.h.b16 %v5570
        %v5976 = vunpack.c.l.b16 %v5571
        %v5977 = vunpack.c.h.b16 %v5571
        %v5978 = vunpack.c.l.b16 %v5572
        %v5979 = vunpack.c.h.b16 %v5572
        %v5980 = vunpack.c.l.b16 %v5573
        %v5981 = vunpack.c.h.b16 %v5573
        %v5982 = vunpack.c.l.b16 %v5574
        %v5983 = vunpack.c.h.b16 %v5574
        %v5984 = vunpack.c.l.b16 %v5575
        %v5985 = vunpack.c.h.b16 %v5575
        %v5986 = vunpack.c.l.b16 %v5576
        %v5987 = vunpack.c.h.b16 %v5576
        %v5988 = vunpack.c.l.b16 %v5577
        %v5989 = vunpack.c.h.b16 %v5577
        %v5990 = vunpack.c.l.b16 %v5578
        %v5991 = vunpack.c.h.b16 %v5578
        %v5992 = vunpack.c.l.b16 %v5579
        %v5993 = vunpack.c.h.b16 %v5579
        %v5994 = vunpack.c.l.b16 %v5580
        %v5995 = vunpack.c.h.b16 %v5580
        %v5996 = vunpack.c.l.b16 %v5581
        %v5997 = vunpack.c.h.b16 %v5581
        %v5998 = vunpack.c.l.b16 %v5582
        %v5999 = vunpack.c.h.b16 %v5582
        %v6000 = vunpack.c.l.b16 %v5583
        %v6001 = vunpack.c.h.b16 %v5583
        %v6002 = vunpack.c.l.b16 %v5584
        %v6003 = vunpack.c.h.b16 %v5584
        %v6004 = vunpack.c.l.b16 %v5585
        %v6005 = vunpack.c.h.b16 %v5585
        %v6006 = vunpack.c.l.b16 %v5586
        %v6007 = vunpack.c.h.b16 %v5586
        %v6008 = vunpack.c.l.b16 %v5587
        %v6009 = vunpack.c.h.b16 %v5587
        %v6010 = vunpack.c.l.b16 %v5588
        %v6011 = vunpack.c.h.b16 %v5588
        %v6012 = vunpack.c.l.b16 %v5589
        %v6013 = vunpack.c.h.b16 %v5589
        %v6014 = vunpack.c.l.b16 %v5590
        %v6015 = vunpack.c.h.b16 %v5590
        %v6016 = vunpack.c.l.b16 %v5591
        %v6017 = vunpack.c.h.b16 %v5591
        %v6018 = vunpack.c.l.b16 %v5592
        %v6019 = vunpack.c.h.b16 %v5592
        %v6020 = vunpack.c.l.b16 %v5593
        %v6021 = vunpack.c.h.b16 %v5593
        %v6022 = vunpack.c.l.b16 %v5594
        %v6023 = vunpack.c.h.b16 %v5594
        %v6024 = vunpack.c.l.b16 %v5595
        %v6025 = vunpack.c.h.b16 %v5595
        %v6026 = vunpack.c.l.b16 %v5596
        %v6027 = vunpack.c.h.b16 %v5596
        %v6028 = vunpack.c.l.b16 %v5597
        %v6029 = vunpack.c.h.b16 %v5597
        %v6030 = vpack.c.b16 %v5776, %v5774
        %v6031 = vpack.c.b16 %v5777, %v5775
        %v6032 = vpack.c.b16 %v5780, %v5778
        %v6033 = vpack.c.b16 %v5781, %v5779
        %v6034 = vpack.c.b16 %v5784, %v5782
        %v6035 = vpack.c.b16 %v5785, %v5783
        %v6036 = vpack.c.b16 %v5788, %v5786
        %v6037 = vpack.c.b16 %v5789, %v5787
        %v6038 = vpack.c.b16 %v5792, %v5790
        %v6039 = vpack.c.b16 %v5793, %v5791
        %v6040 = vpack.c.b16 %v5796, %v5794
        %v6041 = vpack.c.b16 %v5797, %v5795
        %v6042 = vpack.c.b16 %v5800, %v5798
        %v6043 = vpack.c.b16 %v5801, %v5799
        %v6044 = vpack.c.b16 %v5804, %v5802
        %v6045 = vpack.c.b16 %v5805, %v5803
        %v6046 = vpack.c.b16 %v5808, %v5806
        %v6047 = vpack.c.b16 %v5809, %v5807
        %v6048 = vpack.c.b16 %v5812, %v5810
        %v6049 = vpack.c.b16 %v5813, %v5811
        %v6050 = vpack.c.b16 %v5816, %v5814
        %v6051 = vpack.c.b16 %v5817, %v5815
        %v6052 = vpack.c.b16 %v5820, %v5818
        %v6053 = vpack.c.b16 %v5821, %v5819
        %v6054 = vpack.c.b16 %v5824, %v5822
        %v6055 = vpack.c.b16 %v5825, %v5823
        %v6056 = vpack.c.b16 %v5828, %v5826
        %v6057 = vpack.c.b16 %v5829, %v5827
        %v6058 = vpack.c.b16 %v5832, %v5830
        %v6059 = vpack.c.b16 %v5833, %v5831
        %v6060 = vpack.c.b16 %v5836, %v5834
        %v6061 = vpack.c.b16 %v5837, %v5835
        %v6062 = vpack.c.b16 %v5840, %v5838
        %v6063 = vpack.c.b16 %v5841, %v5839
        %v6064 = vpack.c.b16 %v5844, %v5842
        %v6065 = vpack.c.b16 %v5845, %v5843
        %v6066 = vpack.c.b16 %v5848, %v5846
        %v6067 = vpack.c.b16 %v5849, %v5847
        %v6068 = vpack.c.b16 %v5852, %v5850
        %v6069 = vpack.c.b16 %v5853, %v5851
        %v6070 = vpack.c.b16 %v5856, %v5854
        %v6071 = vpack.c.b16 %v5857, %v5855
        %v6072 = vpack.c.b16 %v5860, %v5858
        %v6073 = vpack.c.b16 %v5861, %v5859
        %v6074 = vpack.c.b16 %v5864, %v5862
        %v6075 = vpack.c.b16 %v5865, %v5863
        %v6076 = vpack.c.b16 %v5868, %v5866
        %v6077 = vpack.c.b16 %v5869, %v5867
        %v6078 = vpack.c.b16 %v5872, %v5870
        %v6079 = vpack.c.b16 %v5873, %v5871
        %v6080 = vpack.c.b16 %v5876, %v5874
        %v6081 = vpack.c.b16 %v5877, %v5875
        %v6082 = vpack.c.b16 %v5880, %v5878
        %v6083 = vpack.c.b16 %v5881, %v5879
        %v6084 = vpack.c.b16 %v5884, %v5882
        %v6085 = vpack.c.b16 %v5885, %v5883
        %v6086 = vpack.c.b16 %v5888, %v5886
        %v6087 = vpack.c.b16 %v5889, %v5887
        %v6088 = vpack.c.b16 %v5892, %v5890
        %v6089 = vpack.c.b16 %v5893, %v5891
        %v6090 = vpack.c.b16 %v5896, %v5894
        %v6091 = vpack.c.b16 %v5897, %v5895
        %v6092 = vpack.c.b16 %v5900, %v5898
        %v6093 = vpack.c.b16 %v5901, %v5899
        %v6094 = vpack.c.b16 %v5904, %v5902
        %v6095 = vpack.c.b16 %v5905, %v5903
        %v6096 = vpack.c.b16 %v5908, %v5906
        %v6097 = vpack.c.b16 %v5909, %v5907
        %v6098 = vpack.c.b16 %v5912, %v5910
        %v6099 = vpack.c.b16 %v5913, %v5911
        %v6100 = vpack.c.b16 %v5916, %v5914
        %v6101 = vpack.c.b16 %v5917, %v5915
        %v6102 = vpack.c.b16 %v5920, %v5918
        %v6103 = vpack.c.b16 %v5921, %v5919
        %v6104 = vpack.c.b16 %v5924, %v5922
        %v6105 = vpack.c.b16 %v5925, %v5923
        %v6106 = vpack.c.b16 %v5928, %v5926
        %v6107 = vpack.c.b16 %v5929, %v5927
        %v6108 = vpack.c.b16 %v5932, %v5930
        %v6109 = vpack.c.b16 %v5933, %v5931
        %v6110 = vpack.c.b16 %v5936, %v5934
        %v6111 = vpack.c.b16 %v5937, %v5935
        %v6112 = vpack.c.b16 %v5940, %v5938
        %v6113 = vpack.c.b16 %v5941, %v5939
        %v6114 = vpack.c.b16 %v5944, %v5942
        %v6115 = vpack.c.b16 %v5945, %v5943
        %v6116 = vpack.c.b16 %v5948, %v5946
        %v6117 = vpack.c.b16 %v5949, %v5947
        %v6118 = vpack.c.b16 %v5952, %v5950
        %v6119 = vpack.c.b16 %v5953, %v5951
        %v6120 = vpack.c.b16 %v5956, %v5954
        %v6121 = vpack.c.b16 %v5957, %v5955
        %v6122 = vpack.c.b16 %v5960, %v5958
        %v6123 = vpack.c.b16 %v5961, %v5959
        %v6124 = vpack.c.b16 %v5964, %v5962
        %v6125 = vpack.c.b16 %v5965, %v5963
        %v6126 = vpack.c.b16 %v5968, %v5966
        %v6127 = vpack.c.b16 %v5969, %v5967
        %v6128 = vpack.c.b16 %v5972, %v5970
        %v6129 = vpack.c.b16 %v5973, %v5971
        %v6130 = vpack.c.b16 %v5976, %v5974
        %v6131 = vpack.c.b16 %v5977, %v5975
        %v6132 = vpack.c.b16 %v5980, %v5978
        %v6133 = vpack.c.b16 %v5981, %v5979
        %v6134 = vpack.c.b16 %v5984, %v5982
        %v6135 = vpack.c.b16 %v5985, %v5983
        %v6136 = vpack.c.b16 %v5988, %v5986
        %v6137 = vpack.c.b16 %v5989, %v5987
        %v6138 = vpack.c.b16 %v5992, %v5990
        %v6139 = vpack.c.b16 %v5993, %v5991
        %v6140 = vpack.c.b16 %v5996, %v5994
        %v6141 = vpack.c.b16 %v5997, %v5995
        %v6142 = vpack.c.b16 %v6000, %v5998
        %v6143 = vpack.c.b16 %v6001, %v5999
        %v6144 = vpack.c.b16 %v6004, %v6002
        %v6145 = vpack.c.b16 %v6005, %v6003
        %v6146 = vpack.c.b16 %v6008, %v6006
        %v6147 = vpack.c.b16 %v6009, %v6007
        %v6148 = vpack.c.b16 %v6012, %v6010
        %v6149 = vpack.c.b16 %v6013, %v6011
        %v6150 = vpack.c.b16 %v6016, %v6014
        %v6151 = vpack.c.b16 %v6017, %v6015
        %v6152 = vpack.c.b16 %v6020, %v6018
        %v6153 = vpack.c.b16 %v6021, %v6019
        %v6154 = vpack.c.b16 %v6024, %v6022
        %v6155 = vpack.c.b16 %v6025, %v6023
        %v6156 = vpack.c.b16 %v6028, %v6026
        %v6157 = vpack.c.b16 %v6029, %v6027
        %6286 = vmatpush.bf16.msra.mxu0 %v6044
        %6287 = vmatpush.bf16.msra.mxu0 %v6042
        %6288 = vmatpush.bf16.msra.mxu0 %v6040
        %6289 = vmatpush.bf16.msra.mxu0 %v6038
        %6290 = vmatpush.bf16.msra.mxu0 %v6036
        %6291 = vmatpush.bf16.msra.mxu0 %v6034
        %6292 = vmatpush.bf16.msra.mxu0 %v6032
        %6293 = vmatpush.bf16.msra.mxu0 %v6030
        %6294 = vmatmul.bf16.gmra.mxu0 %v5638
        %v6295 = vpop.f32.mrf.mxu0
        %v6296 = vadd.f32 0.0, %v6295
        %v6297 = vpop.f32.mrf.mxu0
        %6298 = vdwg.mxu0
        %6299 = vmatpush.bf16.msra.mxu0 %v6060
        %6300 = vmatpush.bf16.msra.mxu0 %v6058
        %6301 = vmatpush.bf16.msra.mxu0 %v6056
        %6302 = vmatpush.bf16.msra.mxu0 %v6054
        %6303 = vmatpush.bf16.msra.mxu0 %v6052
        %6304 = vmatpush.bf16.msra.mxu0 %v6050
        %6305 = vmatpush.bf16.msra.mxu0 %v6048
        %6306 = vmatpush.bf16.msra.mxu0 %v6046
        %6307 = vmatmul.bf16.gmra.mxu0 %v5639
        %v6308 = vpop.f32.mrf.mxu0
        %v6309 = vadd.f32 %v6296, %v6308
        %v6310 = vpop.f32.mrf.mxu0
        %6311 = vdwg.mxu0
        %6312 = vmatpush.bf16.msra.mxu0 %v6076
        %6313 = vmatpush.bf16.msra.mxu0 %v6074
        %6314 = vmatpush.bf16.msra.mxu0 %v6072
        %6315 = vmatpush.bf16.msra.mxu0 %v6070
        %6316 = vmatpush.bf16.msra.mxu0 %v6068
        %6317 = vmatpush.bf16.msra.mxu0 %v6066
        %6318 = vmatpush.bf16.msra.mxu0 %v6064
        %6319 = vmatpush.bf16.msra.mxu0 %v6062
        %6320 = vmatmul.bf16.gmra.mxu0 %v5640
        %v6321 = vpop.f32.mrf.mxu0
        %v6322 = vadd.f32 %v6309, %v6321
        %v6323 = vpop.f32.mrf.mxu0
        %6324 = vdwg.mxu0
        %6325 = vmatpush.bf16.msra.mxu0 %v6092
        %6326 = vmatpush.bf16.msra.mxu0 %v6090
        %6327 = vmatpush.bf16.msra.mxu0 %v6088
        %6328 = vmatpush.bf16.msra.mxu0 %v6086
        %6329 = vmatpush.bf16.msra.mxu0 %v6084
        %6330 = vmatpush.bf16.msra.mxu0 %v6082
        %6331 = vmatpush.bf16.msra.mxu0 %v6080
        %6332 = vmatpush.bf16.msra.mxu0 %v6078
        %6333 = vmatmul.bf16.gmra.mxu0 %v5641
        %v6334 = vpop.f32.mrf.mxu0
        %v6335 = vadd.f32 %v6322, %v6334
        %v6336 = vpop.f32.mrf.mxu0
        %6337 = vdwg.mxu0
        %6338 = vmatpush.bf16.msra.mxu0 %v6108
        %6339 = vmatpush.bf16.msra.mxu0 %v6106
        %6340 = vmatpush.bf16.msra.mxu0 %v6104
        %6341 = vmatpush.bf16.msra.mxu0 %v6102
        %6342 = vmatpush.bf16.msra.mxu0 %v6100
        %6343 = vmatpush.bf16.msra.mxu0 %v6098
        %6344 = vmatpush.bf16.msra.mxu0 %v6096
        %6345 = vmatpush.bf16.msra.mxu0 %v6094
        %6346 = vmatmul.bf16.gmra.mxu0 %v5642
        %v6347 = vpop.f32.mrf.mxu0
        %v6348 = vadd.f32 %v6335, %v6347
        %v6349 = vpop.f32.mrf.mxu0
        %6350 = vdwg.mxu0
        %6351 = vmatpush.bf16.msra.mxu0 %v6124
        %6352 = vmatpush.bf16.msra.mxu0 %v6122
        %6353 = vmatpush.bf16.msra.mxu0 %v6120
        %6354 = vmatpush.bf16.msra.mxu0 %v6118
        %6355 = vmatpush.bf16.msra.mxu0 %v6116
        %6356 = vmatpush.bf16.msra.mxu0 %v6114
        %6357 = vmatpush.bf16.msra.mxu0 %v6112
        %6358 = vmatpush.bf16.msra.mxu0 %v6110
        %6359 = vmatmul.bf16.gmra.mxu0 %v5643
        %v6360 = vpop.f32.mrf.mxu0
        %v6361 = vadd.f32 %v6348, %v6360
        %v6362 = vpop.f32.mrf.mxu0
        %6363 = vdwg.mxu0
        %6364 = vmatpush.bf16.msra.mxu0 %v6140
        %6365 = vmatpush.bf16.msra.mxu0 %v6138
        %6366 = vmatpush.bf16.msra.mxu0 %v6136
        %6367 = vmatpush.bf16.msra.mxu0 %v6134
        %6368 = vmatpush.bf16.msra.mxu0 %v6132
        %6369 = vmatpush.bf16.msra.mxu0 %v6130
        %6370 = vmatpush.bf16.msra.mxu0 %v6128
        %6371 = vmatpush.bf16.msra.mxu0 %v6126
        %6372 = vmatmul.bf16.gmra.mxu0 %v5644
        %v6373 = vpop.f32.mrf.mxu0
        %v6374 = vadd.f32 %v6361, %v6373
        %v6375 = vpop.f32.mrf.mxu0
        %6376 = vdwg.mxu0
        %6377 = vmatpush.bf16.msra.mxu0 %v6156
        %6378 = vmatpush.bf16.msra.mxu0 %v6154
        %6379 = vmatpush.bf16.msra.mxu0 %v6152
        %6380 = vmatpush.bf16.msra.mxu0 %v6150
        %6381 = vmatpush.bf16.msra.mxu0 %v6148
        %6382 = vmatpush.bf16.msra.mxu0 %v6146
        %6383 = vmatpush.bf16.msra.mxu0 %v6144
        %6384 = vmatpush.bf16.msra.mxu0 %v6142
        %6385 = vmatmul.bf16.gmra.mxu0 %v5645
        %v6386 = vpop.f32.mrf.mxu0
        %v6387 = vadd.f32 %v6374, %v6386
        %v6388 = vpop.f32.mrf.mxu0
        %6389 = vdwg.mxu0
        %6390 = vmatpush.bf16.msra.mxu0 %v6045
        %6391 = vmatpush.bf16.msra.mxu0 %v6043
        %6392 = vmatpush.bf16.msra.mxu0 %v6041
        %6393 = vmatpush.bf16.msra.mxu0 %v6039
        %6394 = vmatpush.bf16.msra.mxu0 %v6037
        %6395 = vmatpush.bf16.msra.mxu0 %v6035
        %6396 = vmatpush.bf16.msra.mxu0 %v6033
        %6397 = vmatpush.bf16.msra.mxu0 %v6031
        %6398 = vmatmul.bf16.gmra.mxu0 %v5638
        %v6399 = vpop.f32.mrf.mxu0
        %v6400 = vadd.f32 0.0, %v6399
        %v6401 = vpop.f32.mrf.mxu0
        %6402 = vdwg.mxu0
        %6403 = vmatpush.bf16.msra.mxu0 %v6061
        %6404 = vmatpush.bf16.msra.mxu0 %v6059
        %6405 = vmatpush.bf16.msra.mxu0 %v6057
        %6406 = vmatpush.bf16.msra.mxu0 %v6055
        %6407 = vmatpush.bf16.msra.mxu0 %v6053
        %6408 = vmatpush.bf16.msra.mxu0 %v6051
        %6409 = vmatpush.bf16.msra.mxu0 %v6049
        %6410 = vmatpush.bf16.msra.mxu0 %v6047
        %6411 = vmatmul.bf16.gmra.mxu0 %v5639
        %v6412 = vpop.f32.mrf.mxu0
        %v6413 = vadd.f32 %v6400, %v6412
        %v6414 = vpop.f32.mrf.mxu0
        %6415 = vdwg.mxu0
        %6416 = vmatpush.bf16.msra.mxu0 %v6077
        %6417 = vmatpush.bf16.msra.mxu0 %v6075
        %6418 = vmatpush.bf16.msra.mxu0 %v6073
        %6419 = vmatpush.bf16.msra.mxu0 %v6071
        %6420 = vmatpush.bf16.msra.mxu0 %v6069
        %6421 = vmatpush.bf16.msra.mxu0 %v6067
        %6422 = vmatpush.bf16.msra.mxu0 %v6065
        %6423 = vmatpush.bf16.msra.mxu0 %v6063
        %6424 = vmatmul.bf16.gmra.mxu0 %v5640
        %v6425 = vpop.f32.mrf.mxu0
        %v6426 = vadd.f32 %v6413, %v6425
        %v6427 = vpop.f32.mrf.mxu0
        %6428 = vdwg.mxu0
        %6429 = vmatpush.bf16.msra.mxu0 %v6093
        %6430 = vmatpush.bf16.msra.mxu0 %v6091
        %6431 = vmatpush.bf16.msra.mxu0 %v6089
        %6432 = vmatpush.bf16.msra.mxu0 %v6087
        %6433 = vmatpush.bf16.msra.mxu0 %v6085
        %6434 = vmatpush.bf16.msra.mxu0 %v6083
        %6435 = vmatpush.bf16.msra.mxu0 %v6081
        %6436 = vmatpush.bf16.msra.mxu0 %v6079
        %6437 = vmatmul.bf16.gmra.mxu0 %v5641
        %v6438 = vpop.f32.mrf.mxu0
        %v6439 = vadd.f32 %v6426, %v6438
        %v6440 = vpop.f32.mrf.mxu0
        %6441 = vdwg.mxu0
        %6442 = vmatpush.bf16.msra.mxu0 %v6109
        %6443 = vmatpush.bf16.msra.mxu0 %v6107
        %6444 = vmatpush.bf16.msra.mxu0 %v6105
        %6445 = vmatpush.bf16.msra.mxu0 %v6103
        %6446 = vmatpush.bf16.msra.mxu0 %v6101
        %6447 = vmatpush.bf16.msra.mxu0 %v6099
        %6448 = vmatpush.bf16.msra.mxu0 %v6097
        %6449 = vmatpush.bf16.msra.mxu0 %v6095
        %6450 = vmatmul.bf16.gmra.mxu0 %v5642
        %v6451 = vpop.f32.mrf.mxu0
        %v6452 = vadd.f32 %v6439, %v6451
        %v6453 = vpop.f32.mrf.mxu0
        %6454 = vdwg.mxu0
        %6455 = vmatpush.bf16.msra.mxu0 %v6125
        %6456 = vmatpush.bf16.msra.mxu0 %v6123
        %6457 = vmatpush.bf16.msra.mxu0 %v6121
        %6458 = vmatpush.bf16.msra.mxu0 %v6119
        %6459 = vmatpush.bf16.msra.mxu0 %v6117
        %6460 = vmatpush.bf16.msra.mxu0 %v6115
        %6461 = vmatpush.bf16.msra.mxu0 %v6113
        %6462 = vmatpush.bf16.msra.mxu0 %v6111
        %6463 = vmatmul.bf16.gmra.mxu0 %v5643
        %v6464 = vpop.f32.mrf.mxu0
        %v6465 = vadd.f32 %v6452, %v6464
        %v6466 = vpop.f32.mrf.mxu0
        %6467 = vdwg.mxu0
        %6468 = vmatpush.bf16.msra.mxu0 %v6141
        %6469 = vmatpush.bf16.msra.mxu0 %v6139
        %6470 = vmatpush.bf16.msra.mxu0 %v6137
        %6471 = vmatpush.bf16.msra.mxu0 %v6135
        %6472 = vmatpush.bf16.msra.mxu0 %v6133
        %6473 = vmatpush.bf16.msra.mxu0 %v6131
        %6474 = vmatpush.bf16.msra.mxu0 %v6129
        %6475 = vmatpush.bf16.msra.mxu0 %v6127
        %6476 = vmatmul.bf16.gmra.mxu0 %v5644
        %v6477 = vpop.f32.mrf.mxu0
        %v6478 = vadd.f32 %v6465, %v6477
        %v6479 = vpop.f32.mrf.mxu0
        %6480 = vdwg.mxu0
        %6481 = vmatpush.bf16.msra.mxu0 %v6157
        %6482 = vmatpush.bf16.msra.mxu0 %v6155
        %6483 = vmatpush.bf16.msra.mxu0 %v6153
        %6484 = vmatpush.bf16.msra.mxu0 %v6151
        %6485 = vmatpush.bf16.msra.mxu0 %v6149
        %6486 = vmatpush.bf16.msra.mxu0 %v6147
        %6487 = vmatpush.bf16.msra.mxu0 %v6145
        %6488 = vmatpush.bf16.msra.mxu0 %v6143
        %6489 = vmatmul.bf16.gmra.mxu0 %v5645
        %v6490 = vpop.f32.mrf.mxu0
        %v6491 = vadd.f32 %v6478, %v6490
        %v6492 = vpop.f32.mrf.mxu0
        %6493 = vdwg.mxu0
        %v6495 = vperm.slane %v5598, 0
        %v6496 = vperm.slane %v5598, 1
        %v6499 = vadd.f32 %v6387, %v6495
        %v6500 = vadd.f32 %v6491, %v6496
        %v6501 = vmax.f32 %v6499, 0.0
        %v6502 = vmax.f32 %v6500, 0.0
        %6503 = vst [vmem:[#allocation2] sm:$0x7] 0.0
        %6504 = vst [vmem:[#allocation2 + $0x8] sm:$0x7] 0.0
        %6505 = vst [vmem:[#allocation2] sm:$0xf0] 0.0
        %6506 = vst [vmem:[#allocation2 + $0x8] sm:$0xf0] 0.0
        %v6509 = vrot.slane %v6502, 7
        %v6510 = vsel %vm1754, %v6501, %v6509
        %v6512 = vlaneseq
        %vm6513 = vcmp.ge.s32.totalorder %v6512, 0
        %vm6514 = vcmp.lt.s32.totalorder %v6512, 256
        %vm6515 = vmand %vm6513, %vm6514
        %s6516 = scalar_lea.vmem [#allocation2], 3
        %6517 = vst.msk [vmem:[%s6516] ss:$8 sm:$0x3] %vm6515, %v6510
        %6518 = vst.msk [vmem:[%s6516] ss:$8 sm:$0x0] %vm6515, %v6510
        %v6519 = vld [vmem:[#allocation2] sm:$0xff]
        %v6520 = vld [vmem:[#allocation2 + $0x8] sm:$0xff]
        %v6521 = vrot.slane %v6519, 4
        %v6522 = vmax.f32 %v6519, %v6521
        %v6523 = vrot.slane %v6522, 2
        %v6524 = vmax.f32 %v6522, %v6523
        %v6525 = vrot.slane %v6524, 1
        %v6526 = vmax.f32 %v6524, %v6525
        %v6527 = vrot.slane %v6520, 4
        %v6528 = vmax.f32 %v6520, %v6527
        %v6529 = vrot.slane %v6528, 2
        %v6530 = vmax.f32 %v6528, %v6529
        %v6531 = vrot.slane %v6530, 1
        %v6532 = vmax.f32 %v6530, %v6531
        %v6535 = vrot.slane %v6532, 7
        %v6536 = vsel %vm1754, %v6526, %v6535
        %6538 = vst.msk [vmem:[#allocation4] ss:$8 sm:$0x3] %vm6515, %v6536
        %6539 = vst.msk [vmem:[#allocation4] ss:$8 sm:$0x0] %vm6515, %v6536
        %v6540 = vld [vmem:[#allocation4] ss:$8 sm:$0x3]
        %v6541 = vld [vmem:[#allocation8] sm:$0xff]
        %v6542 = vld [vmem:[#allocation8 + $0x8] sm:$0xff]
        %v6543 = vld [vmem:[#allocation8 + $0x10] sm:$0xff]
        %v6544 = vld [vmem:[#allocation8 + $0x18] sm:$0xff]
        %v6545 = vld [vmem:[#allocation8 + $0x20] sm:$0xff]
        %v6546 = vld [vmem:[#allocation8 + $0x28] sm:$0xff]
        %v6547 = vld [vmem:[#allocation8 + $0x30] sm:$0xff]
        %v6548 = vld [vmem:[#allocation8 + $0x38] sm:$0xff]
        %v6549 = vld [vmem:[#allocation8 + $0x40] sm:$0xff]
        %v6550 = vld [vmem:[#allocation8 + $0x48] sm:$0xff]
        %v6551 = vld [vmem:[#allocation8 + $0x50] sm:$0xff]
        %v6552 = vld [vmem:[#allocation8 + $0x58] sm:$0xff]
        %v6553 = vld [vmem:[#allocation8 + $0x60] sm:$0xff]
        %v6554 = vld [vmem:[#allocation8 + $0x68] sm:$0xff]
        %v6555 = vld [vmem:[#allocation8 + $0x70] sm:$0xff]
        %v6556 = vld [vmem:[#allocation8 + $0x78] sm:$0xff]
        %v6557 = vld [vmem:[#allocation8 + $0x80] sm:$0xff]
        %v6558 = vld [vmem:[#allocation8 + $0x88] sm:$0xff]
        %v6559 = vld [vmem:[#allocation8 + $0x90] sm:$0xff]
        %v6560 = vld [vmem:[#allocation8 + $0x98] sm:$0xff]
        %v6561 = vld [vmem:[#allocation8 + $0xa0] sm:$0xff]
        %v6562 = vld [vmem:[#allocation8 + $0xa8] sm:$0xff]
        %v6563 = vld [vmem:[#allocation8 + $0xb0] sm:$0xff]
        %v6564 = vld [vmem:[#allocation8 + $0xb8] sm:$0xff]
        %v6565 = vld [vmem:[#allocation8 + $0xc0] sm:$0xff]
        %v6566 = vld [vmem:[#allocation8 + $0xc8] sm:$0xff]
        %v6567 = vld [vmem:[#allocation8 + $0xd0] sm:$0xff]
        %v6568 = vld [vmem:[#allocation8 + $0xd8] sm:$0xff]
        %v6569 = vld [vmem:[#allocation8 + $0xe0] sm:$0xff]
        %v6570 = vld [vmem:[#allocation8 + $0xe8] sm:$0xff]
        %v6571 = vld [vmem:[#allocation8 + $0xf0] sm:$0xff]
        %v6572 = vld [vmem:[#allocation8 + $0xf8] sm:$0xff]
        %v6573 = vld [vmem:[#allocation8 + $0x100] sm:$0xff]
        %v6574 = vld [vmem:[#allocation8 + $0x108] sm:$0xff]
        %v6575 = vld [vmem:[#allocation8 + $0x110] sm:$0xff]
        %v6576 = vld [vmem:[#allocation8 + $0x118] sm:$0xff]
        %v6577 = vld [vmem:[#allocation8 + $0x120] sm:$0xff]
        %v6578 = vld [vmem:[#allocation8 + $0x128] sm:$0xff]
        %v6579 = vld [vmem:[#allocation8 + $0x130] sm:$0xff]
        %v6580 = vld [vmem:[#allocation8 + $0x138] sm:$0xff]
        %v6581 = vld [vmem:[#allocation8 + $0x140] sm:$0xff]
        %v6582 = vld [vmem:[#allocation8 + $0x148] sm:$0xff]
        %v6583 = vld [vmem:[#allocation8 + $0x150] sm:$0xff]
        %v6584 = vld [vmem:[#allocation8 + $0x158] sm:$0xff]
        %v6585 = vld [vmem:[#allocation8 + $0x160] sm:$0xff]
        %v6586 = vld [vmem:[#allocation8 + $0x168] sm:$0xff]
        %v6587 = vld [vmem:[#allocation8 + $0x170] sm:$0xff]
        %v6588 = vld [vmem:[#allocation8 + $0x178] sm:$0xff]
        %v6589 = vld [vmem:[#allocation8 + $0x180] sm:$0xff]
        %v6590 = vld [vmem:[#allocation8 + $0x188] sm:$0xff]
        %v6591 = vld [vmem:[#allocation8 + $0x190] sm:$0xff]
        %v6592 = vld [vmem:[#allocation8 + $0x198] sm:$0xff]
        %v6593 = vld [vmem:[#allocation8 + $0x1a0] sm:$0xff]
        %v6594 = vld [vmem:[#allocation8 + $0x1a8] sm:$0xff]
        %v6595 = vld [vmem:[#allocation8 + $0x1b0] sm:$0xff]
        %v6596 = vld [vmem:[#allocation8 + $0x1b8] sm:$0xff]
        %v6597 = vld [vmem:[#allocation8 + $0x1c0] sm:$0xff]
        %v6598 = vld [vmem:[#allocation8 + $0x1c8] sm:$0xff]
        %v6599 = vld [vmem:[#allocation8 + $0x1d0] sm:$0xff]
        %v6600 = vld [vmem:[#allocation8 + $0x1d8] sm:$0xff]
        %v6601 = vld [vmem:[#allocation8 + $0x1e0] sm:$0xff]
        %v6602 = vld [vmem:[#allocation8 + $0x1e8] sm:$0xff]
        %v6603 = vld [vmem:[#allocation8 + $0x1f0] sm:$0xff]
        %v6604 = vld [vmem:[#allocation8 + $0x1f8] sm:$0xff]
        %v6605 = vld [vmem:[%s16] sm:$0xf]
        %v6607 = vperm.slane %v6540, 0
        %v6608 = vperm.slane %v6540, 1
        %v6611 = vpack.c.bf16 %v6607, %v6607
        %v6612 = vpack.c.bf16 %v6608, %v6608
        %v6677 = vunpack.c.l.b16 %v6541
        %v6678 = vunpack.c.h.b16 %v6541
        %v6679 = vunpack.c.l.b16 %v6542
        %v6680 = vunpack.c.h.b16 %v6542
        %v6681 = vunpack.c.l.b16 %v6543
        %v6682 = vunpack.c.h.b16 %v6543
        %v6683 = vunpack.c.l.b16 %v6544
        %v6684 = vunpack.c.h.b16 %v6544
        %v6685 = vunpack.c.l.b16 %v6545
        %v6686 = vunpack.c.h.b16 %v6545
        %v6687 = vunpack.c.l.b16 %v6546
        %v6688 = vunpack.c.h.b16 %v6546
        %v6689 = vunpack.c.l.b16 %v6547
        %v6690 = vunpack.c.h.b16 %v6547
        %v6691 = vunpack.c.l.b16 %v6548
        %v6692 = vunpack.c.h.b16 %v6548
        %v6693 = vunpack.c.l.b16 %v6549
        %v6694 = vunpack.c.h.b16 %v6549
        %v6695 = vunpack.c.l.b16 %v6550
        %v6696 = vunpack.c.h.b16 %v6550
        %v6697 = vunpack.c.l.b16 %v6551
        %v6698 = vunpack.c.h.b16 %v6551
        %v6699 = vunpack.c.l.b16 %v6552
        %v6700 = vunpack.c.h.b16 %v6552
        %v6701 = vunpack.c.l.b16 %v6553
        %v6702 = vunpack.c.h.b16 %v6553
        %v6703 = vunpack.c.l.b16 %v6554
        %v6704 = vunpack.c.h.b16 %v6554
        %v6705 = vunpack.c.l.b16 %v6555
        %v6706 = vunpack.c.h.b16 %v6555
        %v6707 = vunpack.c.l.b16 %v6556
        %v6708 = vunpack.c.h.b16 %v6556
        %v6709 = vunpack.c.l.b16 %v6557
        %v6710 = vunpack.c.h.b16 %v6557
        %v6711 = vunpack.c.l.b16 %v6558
        %v6712 = vunpack.c.h.b16 %v6558
        %v6713 = vunpack.c.l.b16 %v6559
        %v6714 = vunpack.c.h.b16 %v6559
        %v6715 = vunpack.c.l.b16 %v6560
        %v6716 = vunpack.c.h.b16 %v6560
        %v6717 = vunpack.c.l.b16 %v6561
        %v6718 = vunpack.c.h.b16 %v6561
        %v6719 = vunpack.c.l.b16 %v6562
        %v6720 = vunpack.c.h.b16 %v6562
        %v6721 = vunpack.c.l.b16 %v6563
        %v6722 = vunpack.c.h.b16 %v6563
        %v6723 = vunpack.c.l.b16 %v6564
        %v6724 = vunpack.c.h.b16 %v6564
        %v6725 = vunpack.c.l.b16 %v6565
        %v6726 = vunpack.c.h.b16 %v6565
        %v6727 = vunpack.c.l.b16 %v6566
        %v6728 = vunpack.c.h.b16 %v6566
        %v6729 = vunpack.c.l.b16 %v6567
        %v6730 = vunpack.c.h.b16 %v6567
        %v6731 = vunpack.c.l.b16 %v6568
        %v6732 = vunpack.c.h.b16 %v6568
        %v6733 = vunpack.c.l.b16 %v6569
        %v6734 = vunpack.c.h.b16 %v6569
        %v6735 = vunpack.c.l.b16 %v6570
        %v6736 = vunpack.c.h.b16 %v6570
        %v6737 = vunpack.c.l.b16 %v6571
        %v6738 = vunpack.c.h.b16 %v6571
        %v6739 = vunpack.c.l.b16 %v6572
        %v6740 = vunpack.c.h.b16 %v6572
        %v6741 = vunpack.c.l.b16 %v6573
        %v6742 = vunpack.c.h.b16 %v6573
        %v6743 = vunpack.c.l.b16 %v6574
        %v6744 = vunpack.c.h.b16 %v6574
        %v6745 = vunpack.c.l.b16 %v6575
        %v6746 = vunpack.c.h.b16 %v6575
        %v6747 = vunpack.c.l.b16 %v6576
        %v6748 = vunpack.c.h.b16 %v6576
        %v6749 = vunpack.c.l.b16 %v6577
        %v6750 = vunpack.c.h.b16 %v6577
        %v6751 = vunpack.c.l.b16 %v6578
        %v6752 = vunpack.c.h.b16 %v6578
        %v6753 = vunpack.c.l.b16 %v6579
        %v6754 = vunpack.c.h.b16 %v6579
        %v6755 = vunpack.c.l.b16 %v6580
        %v6756 = vunpack.c.h.b16 %v6580
        %v6757 = vunpack.c.l.b16 %v6581
        %v6758 = vunpack.c.h.b16 %v6581
        %v6759 = vunpack.c.l.b16 %v6582
        %v6760 = vunpack.c.h.b16 %v6582
        %v6761 = vunpack.c.l.b16 %v6583
        %v6762 = vunpack.c.h.b16 %v6583
        %v6763 = vunpack.c.l.b16 %v6584
        %v6764 = vunpack.c.h.b16 %v6584
        %v6765 = vunpack.c.l.b16 %v6585
        %v6766 = vunpack.c.h.b16 %v6585
        %v6767 = vunpack.c.l.b16 %v6586
        %v6768 = vunpack.c.h.b16 %v6586
        %v6769 = vunpack.c.l.b16 %v6587
        %v6770 = vunpack.c.h.b16 %v6587
        %v6771 = vunpack.c.l.b16 %v6588
        %v6772 = vunpack.c.h.b16 %v6588
        %v6773 = vunpack.c.l.b16 %v6589
        %v6774 = vunpack.c.h.b16 %v6589
        %v6775 = vunpack.c.l.b16 %v6590
        %v6776 = vunpack.c.h.b16 %v6590
        %v6777 = vunpack.c.l.b16 %v6591
        %v6778 = vunpack.c.h.b16 %v6591
        %v6779 = vunpack.c.l.b16 %v6592
        %v6780 = vunpack.c.h.b16 %v6592
        %v6781 = vunpack.c.l.b16 %v6593
        %v6782 = vunpack.c.h.b16 %v6593
        %v6783 = vunpack.c.l.b16 %v6594
        %v6784 = vunpack.c.h.b16 %v6594
        %v6785 = vunpack.c.l.b16 %v6595
        %v6786 = vunpack.c.h.b16 %v6595
        %v6787 = vunpack.c.l.b16 %v6596
        %v6788 = vunpack.c.h.b16 %v6596
        %v6789 = vunpack.c.l.b16 %v6597
        %v6790 = vunpack.c.h.b16 %v6597
        %v6791 = vunpack.c.l.b16 %v6598
        %v6792 = vunpack.c.h.b16 %v6598
        %v6793 = vunpack.c.l.b16 %v6599
        %v6794 = vunpack.c.h.b16 %v6599
        %v6795 = vunpack.c.l.b16 %v6600
        %v6796 = vunpack.c.h.b16 %v6600
        %v6797 = vunpack.c.l.b16 %v6601
        %v6798 = vunpack.c.h.b16 %v6601
        %v6799 = vunpack.c.l.b16 %v6602
        %v6800 = vunpack.c.h.b16 %v6602
        %v6801 = vunpack.c.l.b16 %v6603
        %v6802 = vunpack.c.h.b16 %v6603
        %v6803 = vunpack.c.l.b16 %v6604
        %v6804 = vunpack.c.h.b16 %v6604
        %v6805 = vpack.c.b16 %v6681, %v6677
        %v6806 = vpack.c.b16 %v6682, %v6678
        %v6807 = vpack.c.b16 %v6683, %v6679
        %v6808 = vpack.c.b16 %v6684, %v6680
        %v6809 = vpack.c.b16 %v6689, %v6685
        %v6810 = vpack.c.b16 %v6690, %v6686
        %v6811 = vpack.c.b16 %v6691, %v6687
        %v6812 = vpack.c.b16 %v6692, %v6688
        %v6813 = vpack.c.b16 %v6697, %v6693
        %v6814 = vpack.c.b16 %v6698, %v6694
        %v6815 = vpack.c.b16 %v6699, %v6695
        %v6816 = vpack.c.b16 %v6700, %v6696
        %v6817 = vpack.c.b16 %v6705, %v6701
        %v6818 = vpack.c.b16 %v6706, %v6702
        %v6819 = vpack.c.b16 %v6707, %v6703
        %v6820 = vpack.c.b16 %v6708, %v6704
        %v6821 = vpack.c.b16 %v6713, %v6709
        %v6822 = vpack.c.b16 %v6714, %v6710
        %v6823 = vpack.c.b16 %v6715, %v6711
        %v6824 = vpack.c.b16 %v6716, %v6712
        %v6825 = vpack.c.b16 %v6721, %v6717
        %v6826 = vpack.c.b16 %v6722, %v6718
        %v6827 = vpack.c.b16 %v6723, %v6719
        %v6828 = vpack.c.b16 %v6724, %v6720
        %v6829 = vpack.c.b16 %v6729, %v6725
        %v6830 = vpack.c.b16 %v6730, %v6726
        %v6831 = vpack.c.b16 %v6731, %v6727
        %v6832 = vpack.c.b16 %v6732, %v6728
        %v6833 = vpack.c.b16 %v6737, %v6733
        %v6834 = vpack.c.b16 %v6738, %v6734
        %v6835 = vpack.c.b16 %v6739, %v6735
        %v6836 = vpack.c.b16 %v6740, %v6736
        %v6837 = vpack.c.b16 %v6745, %v6741
        %v6838 = vpack.c.b16 %v6746, %v6742
        %v6839 = vpack.c.b16 %v6747, %v6743
        %v6840 = vpack.c.b16 %v6748, %v6744
        %v6841 = vpack.c.b16 %v6753, %v6749
        %v6842 = vpack.c.b16 %v6754, %v6750
        %v6843 = vpack.c.b16 %v6755, %v6751
        %v6844 = vpack.c.b16 %v6756, %v6752
        %v6845 = vpack.c.b16 %v6761, %v6757
        %v6846 = vpack.c.b16 %v6762, %v6758
        %v6847 = vpack.c.b16 %v6763, %v6759
        %v6848 = vpack.c.b16 %v6764, %v6760
        %v6849 = vpack.c.b16 %v6769, %v6765
        %v6850 = vpack.c.b16 %v6770, %v6766
        %v6851 = vpack.c.b16 %v6771, %v6767
        %v6852 = vpack.c.b16 %v6772, %v6768
        %v6853 = vpack.c.b16 %v6777, %v6773
        %v6854 = vpack.c.b16 %v6778, %v6774
        %v6855 = vpack.c.b16 %v6779, %v6775
        %v6856 = vpack.c.b16 %v6780, %v6776
        %v6857 = vpack.c.b16 %v6785, %v6781
        %v6858 = vpack.c.b16 %v6786, %v6782
        %v6859 = vpack.c.b16 %v6787, %v6783
        %v6860 = vpack.c.b16 %v6788, %v6784
        %v6861 = vpack.c.b16 %v6793, %v6789
        %v6862 = vpack.c.b16 %v6794, %v6790
        %v6863 = vpack.c.b16 %v6795, %v6791
        %v6864 = vpack.c.b16 %v6796, %v6792
        %v6865 = vpack.c.b16 %v6801, %v6797
        %v6866 = vpack.c.b16 %v6802, %v6798
        %v6867 = vpack.c.b16 %v6803, %v6799
        %v6868 = vpack.c.b16 %v6804, %v6800
        %v6934 = vperm.slane %v6605, 0
        %v6935 = vperm.slane %v6605, 1
        %v6936 = vperm.slane %v6605, 2
        %v6937 = vperm.slane %v6605, 3
        %6942 = vmatpush.bf16.msra.mxu0 %v6833
        %6943 = vmatpush.bf16.msra.mxu0 %v6829
        %6944 = vmatpush.bf16.msra.mxu0 %v6825
        %6945 = vmatpush.bf16.msra.mxu0 %v6821
        %6946 = vmatpush.bf16.msra.mxu0 %v6817
        %6947 = vmatpush.bf16.msra.mxu0 %v6813
        %6948 = vmatpush.bf16.msra.mxu0 %v6809
        %6949 = vmatpush.bf16.msra.mxu0 %v6805
        %6950 = vmatmul.bf16.gmra.mxu0 %v6611
        %v6951 = vpop.f32.mrf.mxu0
        %v6952 = vadd.f32 %v6934, %v6951
        %v6953 = vpop.f32.mrf.mxu0
        %6954 = vdwg.mxu0
        %6955 = vmatpush.bf16.msra.mxu0 %v6865
        %6956 = vmatpush.bf16.msra.mxu0 %v6861
        %6957 = vmatpush.bf16.msra.mxu0 %v6857
        %6958 = vmatpush.bf16.msra.mxu0 %v6853
        %6959 = vmatpush.bf16.msra.mxu0 %v6849
        %6960 = vmatpush.bf16.msra.mxu0 %v6845
        %6961 = vmatpush.bf16.msra.mxu0 %v6841
        %6962 = vmatpush.bf16.msra.mxu0 %v6837
        %6963 = vmatmul.bf16.gmra.mxu0 %v6612
        %v6964 = vpop.f32.mrf.mxu0
        %v6965 = vadd.f32 %v6952, %v6964
        %v6966 = vpop.f32.mrf.mxu0
        %6967 = vdwg.mxu0
        %6968 = vmatpush.bf16.msra.mxu0 %v6834
        %6969 = vmatpush.bf16.msra.mxu0 %v6830
        %6970 = vmatpush.bf16.msra.mxu0 %v6826
        %6971 = vmatpush.bf16.msra.mxu0 %v6822
        %6972 = vmatpush.bf16.msra.mxu0 %v6818
        %6973 = vmatpush.bf16.msra.mxu0 %v6814
        %6974 = vmatpush.bf16.msra.mxu0 %v6810
        %6975 = vmatpush.bf16.msra.mxu0 %v6806
        %6976 = vmatmul.bf16.gmra.mxu0 %v6611
        %v6977 = vpop.f32.mrf.mxu0
        %v6978 = vadd.f32 %v6935, %v6977
        %v6979 = vpop.f32.mrf.mxu0
        %6980 = vdwg.mxu0
        %6981 = vmatpush.bf16.msra.mxu0 %v6866
        %6982 = vmatpush.bf16.msra.mxu0 %v6862
        %6983 = vmatpush.bf16.msra.mxu0 %v6858
        %6984 = vmatpush.bf16.msra.mxu0 %v6854
        %6985 = vmatpush.bf16.msra.mxu0 %v6850
        %6986 = vmatpush.bf16.msra.mxu0 %v6846
        %6987 = vmatpush.bf16.msra.mxu0 %v6842
        %6988 = vmatpush.bf16.msra.mxu0 %v6838
        %6989 = vmatmul.bf16.gmra.mxu0 %v6612
        %v6990 = vpop.f32.mrf.mxu0
        %v6991 = vadd.f32 %v6978, %v6990
        %v6992 = vpop.f32.mrf.mxu0
        %6993 = vdwg.mxu0
        %6994 = vmatpush.bf16.msra.mxu0 %v6835
        %6995 = vmatpush.bf16.msra.mxu0 %v6831
        %6996 = vmatpush.bf16.msra.mxu0 %v6827
        %6997 = vmatpush.bf16.msra.mxu0 %v6823
        %6998 = vmatpush.bf16.msra.mxu0 %v6819
        %6999 = vmatpush.bf16.msra.mxu0 %v6815
        %7000 = vmatpush.bf16.msra.mxu0 %v6811
        %7001 = vmatpush.bf16.msra.mxu0 %v6807
        %7002 = vmatmul.bf16.gmra.mxu0 %v6611
        %v7003 = vpop.f32.mrf.mxu0
        %v7004 = vadd.f32 %v6936, %v7003
        %v7005 = vpop.f32.mrf.mxu0
        %7006 = vdwg.mxu0
        %7007 = vmatpush.bf16.msra.mxu0 %v6867
        %7008 = vmatpush.bf16.msra.mxu0 %v6863
        %7009 = vmatpush.bf16.msra.mxu0 %v6859
        %7010 = vmatpush.bf16.msra.mxu0 %v6855
        %7011 = vmatpush.bf16.msra.mxu0 %v6851
        %7012 = vmatpush.bf16.msra.mxu0 %v6847
        %7013 = vmatpush.bf16.msra.mxu0 %v6843
        %7014 = vmatpush.bf16.msra.mxu0 %v6839
        %7015 = vmatmul.bf16.gmra.mxu0 %v6612
        %v7016 = vpop.f32.mrf.mxu0
        %v7017 = vadd.f32 %v7004, %v7016
        %v7018 = vpop.f32.mrf.mxu0
        %7019 = vdwg.mxu0
        %7020 = vmatpush.bf16.msra.mxu0 %v6836
        %7021 = vmatpush.bf16.msra.mxu0 %v6832
        %7022 = vmatpush.bf16.msra.mxu0 %v6828
        %7023 = vmatpush.bf16.msra.mxu0 %v6824
        %7024 = vmatpush.bf16.msra.mxu0 %v6820
        %7025 = vmatpush.bf16.msra.mxu0 %v6816
        %7026 = vmatpush.bf16.msra.mxu0 %v6812
        %7027 = vmatpush.bf16.msra.mxu0 %v6808
        %7028 = vmatmul.bf16.gmra.mxu0 %v6611
        %v7029 = vpop.f32.mrf.mxu0
        %v7030 = vadd.f32 %v6937, %v7029
        %v7031 = vpop.f32.mrf.mxu0
        %7032 = vdwg.mxu0
        %7033 = vmatpush.bf16.msra.mxu0 %v6868
        %7034 = vmatpush.bf16.msra.mxu0 %v6864
        %7035 = vmatpush.bf16.msra.mxu0 %v6860
        %7036 = vmatpush.bf16.msra.mxu0 %v6856
        %7037 = vmatpush.bf16.msra.mxu0 %v6852
        %7038 = vmatpush.bf16.msra.mxu0 %v6848
        %7039 = vmatpush.bf16.msra.mxu0 %v6844
        %7040 = vmatpush.bf16.msra.mxu0 %v6840
        %7041 = vmatmul.bf16.gmra.mxu0 %v6612
        %v7042 = vpop.f32.mrf.mxu0
        %v7043 = vadd.f32 %v7030, %v7042
        %v7044 = vpop.f32.mrf.mxu0
        %7045 = vdwg.mxu0
        %v7046 = vmax.f32 %v6965, 0.0
        %v7047 = vmax.f32 %v6991, 0.0
        %v7048 = vmax.f32 %v7017, 0.0
        %v7049 = vmax.f32 %v7043, 0.0
        %v7050 = vld [vmem:[#allocation10] sm:$0xff]
        %v7051 = vld [vmem:[#allocation10 + $0x8] sm:$0xff]
        %v7052 = vld [vmem:[#allocation10 + $0x10] sm:$0xff]
        %v7053 = vld [vmem:[#allocation10 + $0x18] sm:$0xff]
        %v7054 = vld [vmem:[#allocation10 + $0x20] sm:$0xff]
        %v7055 = vld [vmem:[#allocation10 + $0x28] sm:$0xff]
        %v7056 = vld [vmem:[#allocation10 + $0x30] sm:$0xff]
        %v7057 = vld [vmem:[#allocation10 + $0x38] sm:$0xff]
        %v7058 = vld [vmem:[#allocation10 + $0x40] sm:$0xff]
        %v7059 = vld [vmem:[#allocation10 + $0x48] sm:$0xff]
        %v7060 = vld [vmem:[#allocation10 + $0x50] sm:$0xff]
        %v7061 = vld [vmem:[#allocation10 + $0x58] sm:$0xff]
        %v7062 = vld [vmem:[#allocation10 + $0x60] sm:$0xff]
        %v7063 = vld [vmem:[#allocation10 + $0x68] sm:$0xff]
        %v7064 = vld [vmem:[#allocation10 + $0x70] sm:$0xff]
        %v7065 = vld [vmem:[#allocation10 + $0x78] sm:$0xff]
        %v7066 = vld [vmem:[#allocation10 + $0x80] sm:$0xff]
        %v7067 = vld [vmem:[#allocation10 + $0x88] sm:$0xff]
        %v7068 = vld [vmem:[#allocation10 + $0x90] sm:$0xff]
        %v7069 = vld [vmem:[#allocation10 + $0x98] sm:$0xff]
        %v7070 = vld [vmem:[#allocation10 + $0xa0] sm:$0xff]
        %v7071 = vld [vmem:[#allocation10 + $0xa8] sm:$0xff]
        %v7072 = vld [vmem:[#allocation10 + $0xb0] sm:$0xff]
        %v7073 = vld [vmem:[#allocation10 + $0xb8] sm:$0xff]
        %v7074 = vld [vmem:[#allocation10 + $0xc0] sm:$0xff]
        %v7075 = vld [vmem:[#allocation10 + $0xc8] sm:$0xff]
        %v7076 = vld [vmem:[#allocation10 + $0xd0] sm:$0xff]
        %v7077 = vld [vmem:[#allocation10 + $0xd8] sm:$0xff]
        %v7078 = vld [vmem:[#allocation10 + $0xe0] sm:$0xff]
        %v7079 = vld [vmem:[#allocation10 + $0xe8] sm:$0xff]
        %v7080 = vld [vmem:[#allocation10 + $0xf0] sm:$0xff]
        %v7081 = vld [vmem:[#allocation10 + $0xf8] sm:$0xff]
        %v7082 = vld [vmem:[#allocation10 + $0x100] sm:$0xff]
        %v7083 = vld [vmem:[#allocation10 + $0x108] sm:$0xff]
        %v7084 = vld [vmem:[#allocation10 + $0x110] sm:$0xff]
        %v7085 = vld [vmem:[#allocation10 + $0x118] sm:$0xff]
        %v7086 = vld [vmem:[#allocation10 + $0x120] sm:$0xff]
        %v7087 = vld [vmem:[#allocation10 + $0x128] sm:$0xff]
        %v7088 = vld [vmem:[#allocation10 + $0x130] sm:$0xff]
        %v7089 = vld [vmem:[#allocation10 + $0x138] sm:$0xff]
        %v7090 = vld [vmem:[#allocation10 + $0x140] sm:$0xff]
        %v7091 = vld [vmem:[#allocation10 + $0x148] sm:$0xff]
        %v7092 = vld [vmem:[#allocation10 + $0x150] sm:$0xff]
        %v7093 = vld [vmem:[#allocation10 + $0x158] sm:$0xff]
        %v7094 = vld [vmem:[#allocation10 + $0x160] sm:$0xff]
        %v7095 = vld [vmem:[#allocation10 + $0x168] sm:$0xff]
        %v7096 = vld [vmem:[#allocation10 + $0x170] sm:$0xff]
        %v7097 = vld [vmem:[#allocation10 + $0x178] sm:$0xff]
        %v7098 = vld [vmem:[#allocation10 + $0x180] sm:$0xff]
        %v7099 = vld [vmem:[#allocation10 + $0x188] sm:$0xff]
        %v7100 = vld [vmem:[#allocation10 + $0x190] sm:$0xff]
        %v7101 = vld [vmem:[#allocation10 + $0x198] sm:$0xff]
        %v7102 = vld [vmem:[#allocation10 + $0x1a0] sm:$0xff]
        %v7103 = vld [vmem:[#allocation10 + $0x1a8] sm:$0xff]
        %v7104 = vld [vmem:[#allocation10 + $0x1b0] sm:$0xff]
        %v7105 = vld [vmem:[#allocation10 + $0x1b8] sm:$0xff]
        %v7106 = vld [vmem:[#allocation10 + $0x1c0] sm:$0xff]
        %v7107 = vld [vmem:[#allocation10 + $0x1c8] sm:$0xff]
        %v7108 = vld [vmem:[#allocation10 + $0x1d0] sm:$0xff]
        %v7109 = vld [vmem:[#allocation10 + $0x1d8] sm:$0xff]
        %v7110 = vld [vmem:[#allocation10 + $0x1e0] sm:$0xff]
        %v7111 = vld [vmem:[#allocation10 + $0x1e8] sm:$0xff]
        %v7112 = vld [vmem:[#allocation10 + $0x1f0] sm:$0xff]
        %v7113 = vld [vmem:[#allocation10 + $0x1f8] sm:$0xff]
        %v7114 = vld [vmem:[#allocation10 + $0x200] sm:$0xff]
        %v7115 = vld [vmem:[#allocation10 + $0x208] sm:$0xff]
        %v7116 = vld [vmem:[#allocation10 + $0x210] sm:$0xff]
        %v7117 = vld [vmem:[#allocation10 + $0x218] sm:$0xff]
        %v7118 = vld [vmem:[#allocation10 + $0x220] sm:$0xff]
        %v7119 = vld [vmem:[#allocation10 + $0x228] sm:$0xff]
        %v7120 = vld [vmem:[#allocation10 + $0x230] sm:$0xff]
        %v7121 = vld [vmem:[#allocation10 + $0x238] sm:$0xff]
        %v7122 = vld [vmem:[#allocation10 + $0x240] sm:$0xff]
        %v7123 = vld [vmem:[#allocation10 + $0x248] sm:$0xff]
        %v7124 = vld [vmem:[#allocation10 + $0x250] sm:$0xff]
        %v7125 = vld [vmem:[#allocation10 + $0x258] sm:$0xff]
        %v7126 = vld [vmem:[#allocation10 + $0x260] sm:$0xff]
        %v7127 = vld [vmem:[#allocation10 + $0x268] sm:$0xff]
        %v7128 = vld [vmem:[#allocation10 + $0x270] sm:$0xff]
        %v7129 = vld [vmem:[#allocation10 + $0x278] sm:$0xff]
        %v7130 = vld [vmem:[#allocation10 + $0x280] sm:$0xff]
        %v7131 = vld [vmem:[#allocation10 + $0x288] sm:$0xff]
        %v7132 = vld [vmem:[#allocation10 + $0x290] sm:$0xff]
        %v7133 = vld [vmem:[#allocation10 + $0x298] sm:$0xff]
        %v7134 = vld [vmem:[#allocation10 + $0x2a0] sm:$0xff]
        %v7135 = vld [vmem:[#allocation10 + $0x2a8] sm:$0xff]
        %v7136 = vld [vmem:[#allocation10 + $0x2b0] sm:$0xff]
        %v7137 = vld [vmem:[#allocation10 + $0x2b8] sm:$0xff]
        %v7138 = vld [vmem:[#allocation10 + $0x2c0] sm:$0xff]
        %v7139 = vld [vmem:[#allocation10 + $0x2c8] sm:$0xff]
        %v7140 = vld [vmem:[#allocation10 + $0x2d0] sm:$0xff]
        %v7141 = vld [vmem:[#allocation10 + $0x2d8] sm:$0xff]
        %v7142 = vld [vmem:[#allocation10 + $0x2e0] sm:$0xff]
        %v7143 = vld [vmem:[#allocation10 + $0x2e8] sm:$0xff]
        %v7144 = vld [vmem:[#allocation10 + $0x2f0] sm:$0xff]
        %v7145 = vld [vmem:[#allocation10 + $0x2f8] sm:$0xff]
        %v7146 = vld [vmem:[#allocation10 + $0x300] sm:$0xff]
        %v7147 = vld [vmem:[#allocation10 + $0x308] sm:$0xff]
        %v7148 = vld [vmem:[#allocation10 + $0x310] sm:$0xff]
        %v7149 = vld [vmem:[#allocation10 + $0x318] sm:$0xff]
        %v7150 = vld [vmem:[#allocation10 + $0x320] sm:$0xff]
        %v7151 = vld [vmem:[#allocation10 + $0x328] sm:$0xff]
        %v7152 = vld [vmem:[#allocation10 + $0x330] sm:$0xff]
        %v7153 = vld [vmem:[#allocation10 + $0x338] sm:$0xff]
        %v7154 = vld [vmem:[#allocation10 + $0x340] sm:$0xff]
        %v7155 = vld [vmem:[#allocation10 + $0x348] sm:$0xff]
        %v7156 = vld [vmem:[#allocation10 + $0x350] sm:$0xff]
        %v7157 = vld [vmem:[#allocation10 + $0x358] sm:$0xff]
        %v7158 = vld [vmem:[#allocation10 + $0x360] sm:$0xff]
        %v7159 = vld [vmem:[#allocation10 + $0x368] sm:$0xff]
        %v7160 = vld [vmem:[#allocation10 + $0x370] sm:$0xff]
        %v7161 = vld [vmem:[#allocation10 + $0x378] sm:$0xff]
        %v7162 = vld [vmem:[#allocation10 + $0x380] sm:$0xff]
        %v7163 = vld [vmem:[#allocation10 + $0x388] sm:$0xff]
        %v7164 = vld [vmem:[#allocation10 + $0x390] sm:$0xff]
        %v7165 = vld [vmem:[#allocation10 + $0x398] sm:$0xff]
        %v7166 = vld [vmem:[#allocation10 + $0x3a0] sm:$0xff]
        %v7167 = vld [vmem:[#allocation10 + $0x3a8] sm:$0xff]
        %v7168 = vld [vmem:[#allocation10 + $0x3b0] sm:$0xff]
        %v7169 = vld [vmem:[#allocation10 + $0x3b8] sm:$0xff]
        %v7170 = vld [vmem:[#allocation10 + $0x3c0] sm:$0xff]
        %v7171 = vld [vmem:[#allocation10 + $0x3c8] sm:$0xff]
        %v7172 = vld [vmem:[#allocation10 + $0x3d0] sm:$0xff]
        %v7173 = vld [vmem:[#allocation10 + $0x3d8] sm:$0xff]
        %v7174 = vld [vmem:[#allocation10 + $0x3e0] sm:$0xff]
        %v7175 = vld [vmem:[#allocation10 + $0x3e8] sm:$0xff]
        %v7176 = vld [vmem:[#allocation10 + $0x3f0] sm:$0xff]
        %v7177 = vld [vmem:[#allocation10 + $0x3f8] sm:$0xff]
        %v7178 = vld [vmem:[%s18] sm:$0xf]
        %v7179 = vpack.c.bf16 %v7046, %v7046
        %v7180 = vpack.c.bf16 %v7047, %v7047
        %v7181 = vpack.c.bf16 %v7048, %v7048
        %v7182 = vpack.c.bf16 %v7049, %v7049
        %v7311 = vunpack.c.l.b16 %v7050
        %v7312 = vunpack.c.h.b16 %v7050
        %v7313 = vunpack.c.l.b16 %v7051
        %v7314 = vunpack.c.h.b16 %v7051
        %v7315 = vunpack.c.l.b16 %v7052
        %v7316 = vunpack.c.h.b16 %v7052
        %v7317 = vunpack.c.l.b16 %v7053
        %v7318 = vunpack.c.h.b16 %v7053
        %v7319 = vunpack.c.l.b16 %v7054
        %v7320 = vunpack.c.h.b16 %v7054
        %v7321 = vunpack.c.l.b16 %v7055
        %v7322 = vunpack.c.h.b16 %v7055
        %v7323 = vunpack.c.l.b16 %v7056
        %v7324 = vunpack.c.h.b16 %v7056
        %v7325 = vunpack.c.l.b16 %v7057
        %v7326 = vunpack.c.h.b16 %v7057
        %v7327 = vunpack.c.l.b16 %v7058
        %v7328 = vunpack.c.h.b16 %v7058
        %v7329 = vunpack.c.l.b16 %v7059
        %v7330 = vunpack.c.h.b16 %v7059
        %v7331 = vunpack.c.l.b16 %v7060
        %v7332 = vunpack.c.h.b16 %v7060
        %v7333 = vunpack.c.l.b16 %v7061
        %v7334 = vunpack.c.h.b16 %v7061
        %v7335 = vunpack.c.l.b16 %v7062
        %v7336 = vunpack.c.h.b16 %v7062
        %v7337 = vunpack.c.l.b16 %v7063
        %v7338 = vunpack.c.h.b16 %v7063
        %v7339 = vunpack.c.l.b16 %v7064
        %v7340 = vunpack.c.h.b16 %v7064
        %v7341 = vunpack.c.l.b16 %v7065
        %v7342 = vunpack.c.h.b16 %v7065
        %v7343 = vunpack.c.l.b16 %v7066
        %v7344 = vunpack.c.h.b16 %v7066
        %v7345 = vunpack.c.l.b16 %v7067
        %v7346 = vunpack.c.h.b16 %v7067
        %v7347 = vunpack.c.l.b16 %v7068
        %v7348 = vunpack.c.h.b16 %v7068
        %v7349 = vunpack.c.l.b16 %v7069
        %v7350 = vunpack.c.h.b16 %v7069
        %v7351 = vunpack.c.l.b16 %v7070
        %v7352 = vunpack.c.h.b16 %v7070
        %v7353 = vunpack.c.l.b16 %v7071
        %v7354 = vunpack.c.h.b16 %v7071
        %v7355 = vunpack.c.l.b16 %v7072
        %v7356 = vunpack.c.h.b16 %v7072
        %v7357 = vunpack.c.l.b16 %v7073
        %v7358 = vunpack.c.h.b16 %v7073
        %v7359 = vunpack.c.l.b16 %v7074
        %v7360 = vunpack.c.h.b16 %v7074
        %v7361 = vunpack.c.l.b16 %v7075
        %v7362 = vunpack.c.h.b16 %v7075
        %v7363 = vunpack.c.l.b16 %v7076
        %v7364 = vunpack.c.h.b16 %v7076
        %v7365 = vunpack.c.l.b16 %v7077
        %v7366 = vunpack.c.h.b16 %v7077
        %v7367 = vunpack.c.l.b16 %v7078
        %v7368 = vunpack.c.h.b16 %v7078
        %v7369 = vunpack.c.l.b16 %v7079
        %v7370 = vunpack.c.h.b16 %v7079
        %v7371 = vunpack.c.l.b16 %v7080
        %v7372 = vunpack.c.h.b16 %v7080
        %v7373 = vunpack.c.l.b16 %v7081
        %v7374 = vunpack.c.h.b16 %v7081
        %v7375 = vunpack.c.l.b16 %v7082
        %v7376 = vunpack.c.h.b16 %v7082
        %v7377 = vunpack.c.l.b16 %v7083
        %v7378 = vunpack.c.h.b16 %v7083
        %v7379 = vunpack.c.l.b16 %v7084
        %v7380 = vunpack.c.h.b16 %v7084
        %v7381 = vunpack.c.l.b16 %v7085
        %v7382 = vunpack.c.h.b16 %v7085
        %v7383 = vunpack.c.l.b16 %v7086
        %v7384 = vunpack.c.h.b16 %v7086
        %v7385 = vunpack.c.l.b16 %v7087
        %v7386 = vunpack.c.h.b16 %v7087
        %v7387 = vunpack.c.l.b16 %v7088
        %v7388 = vunpack.c.h.b16 %v7088
        %v7389 = vunpack.c.l.b16 %v7089
        %v7390 = vunpack.c.h.b16 %v7089
        %v7391 = vunpack.c.l.b16 %v7090
        %v7392 = vunpack.c.h.b16 %v7090
        %v7393 = vunpack.c.l.b16 %v7091
        %v7394 = vunpack.c.h.b16 %v7091
        %v7395 = vunpack.c.l.b16 %v7092
        %v7396 = vunpack.c.h.b16 %v7092
        %v7397 = vunpack.c.l.b16 %v7093
        %v7398 = vunpack.c.h.b16 %v7093
        %v7399 = vunpack.c.l.b16 %v7094
        %v7400 = vunpack.c.h.b16 %v7094
        %v7401 = vunpack.c.l.b16 %v7095
        %v7402 = vunpack.c.h.b16 %v7095
        %v7403 = vunpack.c.l.b16 %v7096
        %v7404 = vunpack.c.h.b16 %v7096
        %v7405 = vunpack.c.l.b16 %v7097
        %v7406 = vunpack.c.h.b16 %v7097
        %v7407 = vunpack.c.l.b16 %v7098
        %v7408 = vunpack.c.h.b16 %v7098
        %v7409 = vunpack.c.l.b16 %v7099
        %v7410 = vunpack.c.h.b16 %v7099
        %v7411 = vunpack.c.l.b16 %v7100
        %v7412 = vunpack.c.h.b16 %v7100
        %v7413 = vunpack.c.l.b16 %v7101
        %v7414 = vunpack.c.h.b16 %v7101
        %v7415 = vunpack.c.l.b16 %v7102
        %v7416 = vunpack.c.h.b16 %v7102
        %v7417 = vunpack.c.l.b16 %v7103
        %v7418 = vunpack.c.h.b16 %v7103
        %v7419 = vunpack.c.l.b16 %v7104
        %v7420 = vunpack.c.h.b16 %v7104
        %v7421 = vunpack.c.l.b16 %v7105
        %v7422 = vunpack.c.h.b16 %v7105
        %v7423 = vunpack.c.l.b16 %v7106
        %v7424 = vunpack.c.h.b16 %v7106
        %v7425 = vunpack.c.l.b16 %v7107
        %v7426 = vunpack.c.h.b16 %v7107
        %v7427 = vunpack.c.l.b16 %v7108
        %v7428 = vunpack.c.h.b16 %v7108
        %v7429 = vunpack.c.l.b16 %v7109
        %v7430 = vunpack.c.h.b16 %v7109
        %v7431 = vunpack.c.l.b16 %v7110
        %v7432 = vunpack.c.h.b16 %v7110
        %v7433 = vunpack.c.l.b16 %v7111
        %v7434 = vunpack.c.h.b16 %v7111
        %v7435 = vunpack.c.l.b16 %v7112
        %v7436 = vunpack.c.h.b16 %v7112
        %v7437 = vunpack.c.l.b16 %v7113
        %v7438 = vunpack.c.h.b16 %v7113
        %v7439 = vunpack.c.l.b16 %v7114
        %v7440 = vunpack.c.h.b16 %v7114
        %v7441 = vunpack.c.l.b16 %v7115
        %v7442 = vunpack.c.h.b16 %v7115
        %v7443 = vunpack.c.l.b16 %v7116
        %v7444 = vunpack.c.h.b16 %v7116
        %v7445 = vunpack.c.l.b16 %v7117
        %v7446 = vunpack.c.h.b16 %v7117
        %v7447 = vunpack.c.l.b16 %v7118
        %v7448 = vunpack.c.h.b16 %v7118
        %v7449 = vunpack.c.l.b16 %v7119
        %v7450 = vunpack.c.h.b16 %v7119
        %v7451 = vunpack.c.l.b16 %v7120
        %v7452 = vunpack.c.h.b16 %v7120
        %v7453 = vunpack.c.l.b16 %v7121
        %v7454 = vunpack.c.h.b16 %v7121
        %v7455 = vunpack.c.l.b16 %v7122
        %v7456 = vunpack.c.h.b16 %v7122
        %v7457 = vunpack.c.l.b16 %v7123
        %v7458 = vunpack.c.h.b16 %v7123
        %v7459 = vunpack.c.l.b16 %v7124
        %v7460 = vunpack.c.h.b16 %v7124
        %v7461 = vunpack.c.l.b16 %v7125
        %v7462 = vunpack.c.h.b16 %v7125
        %v7463 = vunpack.c.l.b16 %v7126
        %v7464 = vunpack.c.h.b16 %v7126
        %v7465 = vunpack.c.l.b16 %v7127
        %v7466 = vunpack.c.h.b16 %v7127
        %v7467 = vunpack.c.l.b16 %v7128
        %v7468 = vunpack.c.h.b16 %v7128
        %v7469 = vunpack.c.l.b16 %v7129
        %v7470 = vunpack.c.h.b16 %v7129
        %v7471 = vunpack.c.l.b16 %v7130
        %v7472 = vunpack.c.h.b16 %v7130
        %v7473 = vunpack.c.l.b16 %v7131
        %v7474 = vunpack.c.h.b16 %v7131
        %v7475 = vunpack.c.l.b16 %v7132
        %v7476 = vunpack.c.h.b16 %v7132
        %v7477 = vunpack.c.l.b16 %v7133
        %v7478 = vunpack.c.h.b16 %v7133
        %v7479 = vunpack.c.l.b16 %v7134
        %v7480 = vunpack.c.h.b16 %v7134
        %v7481 = vunpack.c.l.b16 %v7135
        %v7482 = vunpack.c.h.b16 %v7135
        %v7483 = vunpack.c.l.b16 %v7136
        %v7484 = vunpack.c.h.b16 %v7136
        %v7485 = vunpack.c.l.b16 %v7137
        %v7486 = vunpack.c.h.b16 %v7137
        %v7487 = vunpack.c.l.b16 %v7138
        %v7488 = vunpack.c.h.b16 %v7138
        %v7489 = vunpack.c.l.b16 %v7139
        %v7490 = vunpack.c.h.b16 %v7139
        %v7491 = vunpack.c.l.b16 %v7140
        %v7492 = vunpack.c.h.b16 %v7140
        %v7493 = vunpack.c.l.b16 %v7141
        %v7494 = vunpack.c.h.b16 %v7141
        %v7495 = vunpack.c.l.b16 %v7142
        %v7496 = vunpack.c.h.b16 %v7142
        %v7497 = vunpack.c.l.b16 %v7143
        %v7498 = vunpack.c.h.b16 %v7143
        %v7499 = vunpack.c.l.b16 %v7144
        %v7500 = vunpack.c.h.b16 %v7144
        %v7501 = vunpack.c.l.b16 %v7145
        %v7502 = vunpack.c.h.b16 %v7145
        %v7503 = vunpack.c.l.b16 %v7146
        %v7504 = vunpack.c.h.b16 %v7146
        %v7505 = vunpack.c.l.b16 %v7147
        %v7506 = vunpack.c.h.b16 %v7147
        %v7507 = vunpack.c.l.b16 %v7148
        %v7508 = vunpack.c.h.b16 %v7148
        %v7509 = vunpack.c.l.b16 %v7149
        %v7510 = vunpack.c.h.b16 %v7149
        %v7511 = vunpack.c.l.b16 %v7150
        %v7512 = vunpack.c.h.b16 %v7150
        %v7513 = vunpack.c.l.b16 %v7151
        %v7514 = vunpack.c.h.b16 %v7151
        %v7515 = vunpack.c.l.b16 %v7152
        %v7516 = vunpack.c.h.b16 %v7152
        %v7517 = vunpack.c.l.b16 %v7153
        %v7518 = vunpack.c.h.b16 %v7153
        %v7519 = vunpack.c.l.b16 %v7154
        %v7520 = vunpack.c.h.b16 %v7154
        %v7521 = vunpack.c.l.b16 %v7155
        %v7522 = vunpack.c.h.b16 %v7155
        %v7523 = vunpack.c.l.b16 %v7156
        %v7524 = vunpack.c.h.b16 %v7156
        %v7525 = vunpack.c.l.b16 %v7157
        %v7526 = vunpack.c.h.b16 %v7157
        %v7527 = vunpack.c.l.b16 %v7158
        %v7528 = vunpack.c.h.b16 %v7158
        %v7529 = vunpack.c.l.b16 %v7159
        %v7530 = vunpack.c.h.b16 %v7159
        %v7531 = vunpack.c.l.b16 %v7160
        %v7532 = vunpack.c.h.b16 %v7160
        %v7533 = vunpack.c.l.b16 %v7161
        %v7534 = vunpack.c.h.b16 %v7161
        %v7535 = vunpack.c.l.b16 %v7162
        %v7536 = vunpack.c.h.b16 %v7162
        %v7537 = vunpack.c.l.b16 %v7163
        %v7538 = vunpack.c.h.b16 %v7163
        %v7539 = vunpack.c.l.b16 %v7164
        %v7540 = vunpack.c.h.b16 %v7164
        %v7541 = vunpack.c.l.b16 %v7165
        %v7542 = vunpack.c.h.b16 %v7165
        %v7543 = vunpack.c.l.b16 %v7166
        %v7544 = vunpack.c.h.b16 %v7166
        %v7545 = vunpack.c.l.b16 %v7167
        %v7546 = vunpack.c.h.b16 %v7167
        %v7547 = vunpack.c.l.b16 %v7168
        %v7548 = vunpack.c.h.b16 %v7168
        %v7549 = vunpack.c.l.b16 %v7169
        %v7550 = vunpack.c.h.b16 %v7169
        %v7551 = vunpack.c.l.b16 %v7170
        %v7552 = vunpack.c.h.b16 %v7170
        %v7553 = vunpack.c.l.b16 %v7171
        %v7554 = vunpack.c.h.b16 %v7171
        %v7555 = vunpack.c.l.b16 %v7172
        %v7556 = vunpack.c.h.b16 %v7172
        %v7557 = vunpack.c.l.b16 %v7173
        %v7558 = vunpack.c.h.b16 %v7173
        %v7559 = vunpack.c.l.b16 %v7174
        %v7560 = vunpack.c.h.b16 %v7174
        %v7561 = vunpack.c.l.b16 %v7175
        %v7562 = vunpack.c.h.b16 %v7175
        %v7563 = vunpack.c.l.b16 %v7176
        %v7564 = vunpack.c.h.b16 %v7176
        %v7565 = vunpack.c.l.b16 %v7177
        %v7566 = vunpack.c.h.b16 %v7177
        %v7567 = vpack.c.b16 %v7315, %v7311
        %v7568 = vpack.c.b16 %v7316, %v7312
        %v7569 = vpack.c.b16 %v7317, %v7313
        %v7570 = vpack.c.b16 %v7318, %v7314
        %v7571 = vpack.c.b16 %v7323, %v7319
        %v7572 = vpack.c.b16 %v7324, %v7320
        %v7573 = vpack.c.b16 %v7325, %v7321
        %v7574 = vpack.c.b16 %v7326, %v7322
        %v7575 = vpack.c.b16 %v7331, %v7327
        %v7576 = vpack.c.b16 %v7332, %v7328
        %v7577 = vpack.c.b16 %v7333, %v7329
        %v7578 = vpack.c.b16 %v7334, %v7330
        %v7579 = vpack.c.b16 %v7339, %v7335
        %v7580 = vpack.c.b16 %v7340, %v7336
        %v7581 = vpack.c.b16 %v7341, %v7337
        %v7582 = vpack.c.b16 %v7342, %v7338
        %v7583 = vpack.c.b16 %v7347, %v7343
        %v7584 = vpack.c.b16 %v7348, %v7344
        %v7585 = vpack.c.b16 %v7349, %v7345
        %v7586 = vpack.c.b16 %v7350, %v7346
        %v7587 = vpack.c.b16 %v7355, %v7351
        %v7588 = vpack.c.b16 %v7356, %v7352
        %v7589 = vpack.c.b16 %v7357, %v7353
        %v7590 = vpack.c.b16 %v7358, %v7354
        %v7591 = vpack.c.b16 %v7363, %v7359
        %v7592 = vpack.c.b16 %v7364, %v7360
        %v7593 = vpack.c.b16 %v7365, %v7361
        %v7594 = vpack.c.b16 %v7366, %v7362
        %v7595 = vpack.c.b16 %v7371, %v7367
        %v7596 = vpack.c.b16 %v7372, %v7368
        %v7597 = vpack.c.b16 %v7373, %v7369
        %v7598 = vpack.c.b16 %v7374, %v7370
        %v7599 = vpack.c.b16 %v7379, %v7375
        %v7600 = vpack.c.b16 %v7380, %v7376
        %v7601 = vpack.c.b16 %v7381, %v7377
        %v7602 = vpack.c.b16 %v7382, %v7378
        %v7603 = vpack.c.b16 %v7387, %v7383
        %v7604 = vpack.c.b16 %v7388, %v7384
        %v7605 = vpack.c.b16 %v7389, %v7385
        %v7606 = vpack.c.b16 %v7390, %v7386
        %v7607 = vpack.c.b16 %v7395, %v7391
        %v7608 = vpack.c.b16 %v7396, %v7392
        %v7609 = vpack.c.b16 %v7397, %v7393
        %v7610 = vpack.c.b16 %v7398, %v7394
        %v7611 = vpack.c.b16 %v7403, %v7399
        %v7612 = vpack.c.b16 %v7404, %v7400
        %v7613 = vpack.c.b16 %v7405, %v7401
        %v7614 = vpack.c.b16 %v7406, %v7402
        %v7615 = vpack.c.b16 %v7411, %v7407
        %v7616 = vpack.c.b16 %v7412, %v7408
        %v7617 = vpack.c.b16 %v7413, %v7409
        %v7618 = vpack.c.b16 %v7414, %v7410
        %v7619 = vpack.c.b16 %v7419, %v7415
        %v7620 = vpack.c.b16 %v7420, %v7416
        %v7621 = vpack.c.b16 %v7421, %v7417
        %v7622 = vpack.c.b16 %v7422, %v7418
        %v7623 = vpack.c.b16 %v7427, %v7423
        %v7624 = vpack.c.b16 %v7428, %v7424
        %v7625 = vpack.c.b16 %v7429, %v7425
        %v7626 = vpack.c.b16 %v7430, %v7426
        %v7627 = vpack.c.b16 %v7435, %v7431
        %v7628 = vpack.c.b16 %v7436, %v7432
        %v7629 = vpack.c.b16 %v7437, %v7433
        %v7630 = vpack.c.b16 %v7438, %v7434
        %v7631 = vpack.c.b16 %v7443, %v7439
        %v7632 = vpack.c.b16 %v7444, %v7440
        %v7633 = vpack.c.b16 %v7445, %v7441
        %v7634 = vpack.c.b16 %v7446, %v7442
        %v7635 = vpack.c.b16 %v7451, %v7447
        %v7636 = vpack.c.b16 %v7452, %v7448
        %v7637 = vpack.c.b16 %v7453, %v7449
        %v7638 = vpack.c.b16 %v7454, %v7450
        %v7639 = vpack.c.b16 %v7459, %v7455
        %v7640 = vpack.c.b16 %v7460, %v7456
        %v7641 = vpack.c.b16 %v7461, %v7457
        %v7642 = vpack.c.b16 %v7462, %v7458
        %v7643 = vpack.c.b16 %v7467, %v7463
        %v7644 = vpack.c.b16 %v7468, %v7464
        %v7645 = vpack.c.b16 %v7469, %v7465
        %v7646 = vpack.c.b16 %v7470, %v7466
        %v7647 = vpack.c.b16 %v7475, %v7471
        %v7648 = vpack.c.b16 %v7476, %v7472
        %v7649 = vpack.c.b16 %v7477, %v7473
        %v7650 = vpack.c.b16 %v7478, %v7474
        %v7651 = vpack.c.b16 %v7483, %v7479
        %v7652 = vpack.c.b16 %v7484, %v7480
        %v7653 = vpack.c.b16 %v7485, %v7481
        %v7654 = vpack.c.b16 %v7486, %v7482
        %v7655 = vpack.c.b16 %v7491, %v7487
        %v7656 = vpack.c.b16 %v7492, %v7488
        %v7657 = vpack.c.b16 %v7493, %v7489
        %v7658 = vpack.c.b16 %v7494, %v7490
        %v7659 = vpack.c.b16 %v7499, %v7495
        %v7660 = vpack.c.b16 %v7500, %v7496
        %v7661 = vpack.c.b16 %v7501, %v7497
        %v7662 = vpack.c.b16 %v7502, %v7498
        %v7663 = vpack.c.b16 %v7507, %v7503
        %v7664 = vpack.c.b16 %v7508, %v7504
        %v7665 = vpack.c.b16 %v7509, %v7505
        %v7666 = vpack.c.b16 %v7510, %v7506
        %v7667 = vpack.c.b16 %v7515, %v7511
        %v7668 = vpack.c.b16 %v7516, %v7512
        %v7669 = vpack.c.b16 %v7517, %v7513
        %v7670 = vpack.c.b16 %v7518, %v7514
        %v7671 = vpack.c.b16 %v7523, %v7519
        %v7672 = vpack.c.b16 %v7524, %v7520
        %v7673 = vpack.c.b16 %v7525, %v7521
        %v7674 = vpack.c.b16 %v7526, %v7522
        %v7675 = vpack.c.b16 %v7531, %v7527
        %v7676 = vpack.c.b16 %v7532, %v7528
        %v7677 = vpack.c.b16 %v7533, %v7529
        %v7678 = vpack.c.b16 %v7534, %v7530
        %v7679 = vpack.c.b16 %v7539, %v7535
        %v7680 = vpack.c.b16 %v7540, %v7536
        %v7681 = vpack.c.b16 %v7541, %v7537
        %v7682 = vpack.c.b16 %v7542, %v7538
        %v7683 = vpack.c.b16 %v7547, %v7543
        %v7684 = vpack.c.b16 %v7548, %v7544
        %v7685 = vpack.c.b16 %v7549, %v7545
        %v7686 = vpack.c.b16 %v7550, %v7546
        %v7687 = vpack.c.b16 %v7555, %v7551
        %v7688 = vpack.c.b16 %v7556, %v7552
        %v7689 = vpack.c.b16 %v7557, %v7553
        %v7690 = vpack.c.b16 %v7558, %v7554
        %v7691 = vpack.c.b16 %v7563, %v7559
        %v7692 = vpack.c.b16 %v7564, %v7560
        %v7693 = vpack.c.b16 %v7565, %v7561
        %v7694 = vpack.c.b16 %v7566, %v7562
        %v7824 = vperm.slane %v7178, 0
        %v7825 = vperm.slane %v7178, 1
        %v7826 = vperm.slane %v7178, 2
        %v7827 = vperm.slane %v7178, 3
        %7832 = vmatpush.bf16.msra.mxu0 %v7595
        %7833 = vmatpush.bf16.msra.mxu0 %v7591
        %7834 = vmatpush.bf16.msra.mxu0 %v7587
        %7835 = vmatpush.bf16.msra.mxu0 %v7583
        %7836 = vmatpush.bf16.msra.mxu0 %v7579
        %7837 = vmatpush.bf16.msra.mxu0 %v7575
        %7838 = vmatpush.bf16.msra.mxu0 %v7571
        %7839 = vmatpush.bf16.msra.mxu0 %v7567
        %7840 = vmatmul.bf16.gmra.mxu0 %v7179
        %v7841 = vpop.f32.mrf.mxu0
        %v7842 = vadd.f32 %v7824, %v7841
        %v7843 = vpop.f32.mrf.mxu0
        %7844 = vdwg.mxu0
        %7845 = vmatpush.bf16.msra.mxu0 %v7627
        %7846 = vmatpush.bf16.msra.mxu0 %v7623
        %7847 = vmatpush.bf16.msra.mxu0 %v7619
        %7848 = vmatpush.bf16.msra.mxu0 %v7615
        %7849 = vmatpush.bf16.msra.mxu0 %v7611
        %7850 = vmatpush.bf16.msra.mxu0 %v7607
        %7851 = vmatpush.bf16.msra.mxu0 %v7603
        %7852 = vmatpush.bf16.msra.mxu0 %v7599
        %7853 = vmatmul.bf16.gmra.mxu0 %v7180
        %v7854 = vpop.f32.mrf.mxu0
        %v7855 = vadd.f32 %v7842, %v7854
        %v7856 = vpop.f32.mrf.mxu0
        %7857 = vdwg.mxu0
        %7858 = vmatpush.bf16.msra.mxu0 %v7659
        %7859 = vmatpush.bf16.msra.mxu0 %v7655
        %7860 = vmatpush.bf16.msra.mxu0 %v7651
        %7861 = vmatpush.bf16.msra.mxu0 %v7647
        %7862 = vmatpush.bf16.msra.mxu0 %v7643
        %7863 = vmatpush.bf16.msra.mxu0 %v7639
        %7864 = vmatpush.bf16.msra.mxu0 %v7635
        %7865 = vmatpush.bf16.msra.mxu0 %v7631
        %7866 = vmatmul.bf16.gmra.mxu0 %v7181
        %v7867 = vpop.f32.mrf.mxu0
        %v7868 = vadd.f32 %v7855, %v7867
        %v7869 = vpop.f32.mrf.mxu0
        %7870 = vdwg.mxu0
        %7871 = vmatpush.bf16.msra.mxu0 %v7691
        %7872 = vmatpush.bf16.msra.mxu0 %v7687
        %7873 = vmatpush.bf16.msra.mxu0 %v7683
        %7874 = vmatpush.bf16.msra.mxu0 %v7679
        %7875 = vmatpush.bf16.msra.mxu0 %v7675
        %7876 = vmatpush.bf16.msra.mxu0 %v7671
        %7877 = vmatpush.bf16.msra.mxu0 %v7667
        %7878 = vmatpush.bf16.msra.mxu0 %v7663
        %7879 = vmatmul.bf16.gmra.mxu0 %v7182
        %v7880 = vpop.f32.mrf.mxu0
        %v7881 = vadd.f32 %v7868, %v7880
        %v7882 = vpop.f32.mrf.mxu0
        %7883 = vdwg.mxu0
        %7884 = vmatpush.bf16.msra.mxu0 %v7596
        %7885 = vmatpush.bf16.msra.mxu0 %v7592
        %7886 = vmatpush.bf16.msra.mxu0 %v7588
        %7887 = vmatpush.bf16.msra.mxu0 %v7584
        %7888 = vmatpush.bf16.msra.mxu0 %v7580
        %7889 = vmatpush.bf16.msra.mxu0 %v7576
        %7890 = vmatpush.bf16.msra.mxu0 %v7572
        %7891 = vmatpush.bf16.msra.mxu0 %v7568
        %7892 = vmatmul.bf16.gmra.mxu0 %v7179
        %v7893 = vpop.f32.mrf.mxu0
        %v7894 = vadd.f32 %v7825, %v7893
        %v7895 = vpop.f32.mrf.mxu0
        %7896 = vdwg.mxu0
        %7897 = vmatpush.bf16.msra.mxu0 %v7628
        %7898 = vmatpush.bf16.msra.mxu0 %v7624
        %7899 = vmatpush.bf16.msra.mxu0 %v7620
        %7900 = vmatpush.bf16.msra.mxu0 %v7616
        %7901 = vmatpush.bf16.msra.mxu0 %v7612
        %7902 = vmatpush.bf16.msra.mxu0 %v7608
        %7903 = vmatpush.bf16.msra.mxu0 %v7604
        %7904 = vmatpush.bf16.msra.mxu0 %v7600
        %7905 = vmatmul.bf16.gmra.mxu0 %v7180
        %v7906 = vpop.f32.mrf.mxu0
        %v7907 = vadd.f32 %v7894, %v7906
        %v7908 = vpop.f32.mrf.mxu0
        %7909 = vdwg.mxu0
        %7910 = vmatpush.bf16.msra.mxu0 %v7660
        %7911 = vmatpush.bf16.msra.mxu0 %v7656
        %7912 = vmatpush.bf16.msra.mxu0 %v7652
        %7913 = vmatpush.bf16.msra.mxu0 %v7648
        %7914 = vmatpush.bf16.msra.mxu0 %v7644
        %7915 = vmatpush.bf16.msra.mxu0 %v7640
        %7916 = vmatpush.bf16.msra.mxu0 %v7636
        %7917 = vmatpush.bf16.msra.mxu0 %v7632
        %7918 = vmatmul.bf16.gmra.mxu0 %v7181
        %v7919 = vpop.f32.mrf.mxu0
        %v7920 = vadd.f32 %v7907, %v7919
        %v7921 = vpop.f32.mrf.mxu0
        %7922 = vdwg.mxu0
        %7923 = vmatpush.bf16.msra.mxu0 %v7692
        %7924 = vmatpush.bf16.msra.mxu0 %v7688
        %7925 = vmatpush.bf16.msra.mxu0 %v7684
        %7926 = vmatpush.bf16.msra.mxu0 %v7680
        %7927 = vmatpush.bf16.msra.mxu0 %v7676
        %7928 = vmatpush.bf16.msra.mxu0 %v7672
        %7929 = vmatpush.bf16.msra.mxu0 %v7668
        %7930 = vmatpush.bf16.msra.mxu0 %v7664
        %7931 = vmatmul.bf16.gmra.mxu0 %v7182
        %v7932 = vpop.f32.mrf.mxu0
        %v7933 = vadd.f32 %v7920, %v7932
        %v7934 = vpop.f32.mrf.mxu0
        %7935 = vdwg.mxu0
        %7936 = vmatpush.bf16.msra.mxu0 %v7597
        %7937 = vmatpush.bf16.msra.mxu0 %v7593
        %7938 = vmatpush.bf16.msra.mxu0 %v7589
        %7939 = vmatpush.bf16.msra.mxu0 %v7585
        %7940 = vmatpush.bf16.msra.mxu0 %v7581
        %7941 = vmatpush.bf16.msra.mxu0 %v7577
        %7942 = vmatpush.bf16.msra.mxu0 %v7573
        %7943 = vmatpush.bf16.msra.mxu0 %v7569
        %7944 = vmatmul.bf16.gmra.mxu0 %v7179
        %v7945 = vpop.f32.mrf.mxu0
        %v7946 = vadd.f32 %v7826, %v7945
        %v7947 = vpop.f32.mrf.mxu0
        %7948 = vdwg.mxu0
        %7949 = vmatpush.bf16.msra.mxu0 %v7629
        %7950 = vmatpush.bf16.msra.mxu0 %v7625
        %7951 = vmatpush.bf16.msra.mxu0 %v7621
        %7952 = vmatpush.bf16.msra.mxu0 %v7617
        %7953 = vmatpush.bf16.msra.mxu0 %v7613
        %7954 = vmatpush.bf16.msra.mxu0 %v7609
        %7955 = vmatpush.bf16.msra.mxu0 %v7605
        %7956 = vmatpush.bf16.msra.mxu0 %v7601
        %7957 = vmatmul.bf16.gmra.mxu0 %v7180
        %v7958 = vpop.f32.mrf.mxu0
        %v7959 = vadd.f32 %v7946, %v7958
        %v7960 = vpop.f32.mrf.mxu0
        %7961 = vdwg.mxu0
        %7962 = vmatpush.bf16.msra.mxu0 %v7661
        %7963 = vmatpush.bf16.msra.mxu0 %v7657
        %7964 = vmatpush.bf16.msra.mxu0 %v7653
        %7965 = vmatpush.bf16.msra.mxu0 %v7649
        %7966 = vmatpush.bf16.msra.mxu0 %v7645
        %7967 = vmatpush.bf16.msra.mxu0 %v7641
        %7968 = vmatpush.bf16.msra.mxu0 %v7637
        %7969 = vmatpush.bf16.msra.mxu0 %v7633
        %7970 = vmatmul.bf16.gmra.mxu0 %v7181
        %v7971 = vpop.f32.mrf.mxu0
        %v7972 = vadd.f32 %v7959, %v7971
        %v7973 = vpop.f32.mrf.mxu0
        %7974 = vdwg.mxu0
        %7975 = vmatpush.bf16.msra.mxu0 %v7693
        %7976 = vmatpush.bf16.msra.mxu0 %v7689
        %7977 = vmatpush.bf16.msra.mxu0 %v7685
        %7978 = vmatpush.bf16.msra.mxu0 %v7681
        %7979 = vmatpush.bf16.msra.mxu0 %v7677
        %7980 = vmatpush.bf16.msra.mxu0 %v7673
        %7981 = vmatpush.bf16.msra.mxu0 %v7669
        %7982 = vmatpush.bf16.msra.mxu0 %v7665
        %7983 = vmatmul.bf16.gmra.mxu0 %v7182
        %v7984 = vpop.f32.mrf.mxu0
        %v7985 = vadd.f32 %v7972, %v7984
        %v7986 = vpop.f32.mrf.mxu0
        %7987 = vdwg.mxu0
        %7988 = vmatpush.bf16.msra.mxu0 %v7598
        %7989 = vmatpush.bf16.msra.mxu0 %v7594
        %7990 = vmatpush.bf16.msra.mxu0 %v7590
        %7991 = vmatpush.bf16.msra.mxu0 %v7586
        %7992 = vmatpush.bf16.msra.mxu0 %v7582
        %7993 = vmatpush.bf16.msra.mxu0 %v7578
        %7994 = vmatpush.bf16.msra.mxu0 %v7574
        %7995 = vmatpush.bf16.msra.mxu0 %v7570
        %7996 = vmatmul.bf16.gmra.mxu0 %v7179
        %v7997 = vpop.f32.mrf.mxu0
        %v7998 = vadd.f32 %v7827, %v7997
        %v7999 = vpop.f32.mrf.mxu0
        %8000 = vdwg.mxu0
        %8001 = vmatpush.bf16.msra.mxu0 %v7630
        %8002 = vmatpush.bf16.msra.mxu0 %v7626
        %8003 = vmatpush.bf16.msra.mxu0 %v7622
        %8004 = vmatpush.bf16.msra.mxu0 %v7618
        %8005 = vmatpush.bf16.msra.mxu0 %v7614
        %8006 = vmatpush.bf16.msra.mxu0 %v7610
        %8007 = vmatpush.bf16.msra.mxu0 %v7606
        %8008 = vmatpush.bf16.msra.mxu0 %v7602
        %8009 = vmatmul.bf16.gmra.mxu0 %v7180
        %v8010 = vpop.f32.mrf.mxu0
        %v8011 = vadd.f32 %v7998, %v8010
        %v8012 = vpop.f32.mrf.mxu0
        %8013 = vdwg.mxu0
        %8014 = vmatpush.bf16.msra.mxu0 %v7662
        %8015 = vmatpush.bf16.msra.mxu0 %v7658
        %8016 = vmatpush.bf16.msra.mxu0 %v7654
        %8017 = vmatpush.bf16.msra.mxu0 %v7650
        %8018 = vmatpush.bf16.msra.mxu0 %v7646
        %8019 = vmatpush.bf16.msra.mxu0 %v7642
        %8020 = vmatpush.bf16.msra.mxu0 %v7638
        %8021 = vmatpush.bf16.msra.mxu0 %v7634
        %8022 = vmatmul.bf16.gmra.mxu0 %v7181
        %v8023 = vpop.f32.mrf.mxu0
        %v8024 = vadd.f32 %v8011, %v8023
        %v8025 = vpop.f32.mrf.mxu0
        %8026 = vdwg.mxu0
        %8027 = vmatpush.bf16.msra.mxu0 %v7694
        %8028 = vmatpush.bf16.msra.mxu0 %v7690
        %8029 = vmatpush.bf16.msra.mxu0 %v7686
        %8030 = vmatpush.bf16.msra.mxu0 %v7682
        %8031 = vmatpush.bf16.msra.mxu0 %v7678
        %8032 = vmatpush.bf16.msra.mxu0 %v7674
        %8033 = vmatpush.bf16.msra.mxu0 %v7670
        %8034 = vmatpush.bf16.msra.mxu0 %v7666
        %8035 = vmatmul.bf16.gmra.mxu0 %v7182
        %v8036 = vpop.f32.mrf.mxu0
        %v8037 = vadd.f32 %v8024, %v8036
        %v8038 = vpop.f32.mrf.mxu0
        %8039 = vdwg.mxu0
        %v8040 = vmax.f32 %v7881, 0.0
        %v8041 = vmax.f32 %v7933, 0.0
        %v8042 = vmax.f32 %v7985, 0.0
        %v8043 = vmax.f32 %v8037, 0.0
        %v8044 = vld [vmem:[%s19] sm:$0xf]
        %v8045 = vld [vmem:[%s19 + $0x4] sm:$0xf]
        %v8046 = vld [vmem:[%s19 + $0x8] sm:$0xf]
        %v8047 = vld [vmem:[%s19 + $0xc] sm:$0xf]
        %v8048 = vld [vmem:[%s19 + $0x10] sm:$0xf]
        %v8049 = vld [vmem:[%s19 + $0x14] sm:$0xf]
        %v8050 = vld [vmem:[%s19 + $0x18] sm:$0xf]
        %v8051 = vld [vmem:[%s19 + $0x1c] sm:$0xf]
        %v8052 = vld [vmem:[%s19 + $0x20] sm:$0xf]
        %v8053 = vld [vmem:[%s19 + $0x24] sm:$0xf]
        %v8054 = vld [vmem:[%s19 + $0x28] sm:$0xf]
        %v8055 = vld [vmem:[%s19 + $0x2c] sm:$0xf]
        %v8056 = vld [vmem:[%s19 + $0x30] sm:$0xf]
        %v8057 = vld [vmem:[%s19 + $0x34] sm:$0xf]
        %v8058 = vld [vmem:[%s19 + $0x38] sm:$0xf]
        %v8059 = vld [vmem:[%s19 + $0x3c] sm:$0xf]
        %v8060 = vld [vmem:[%s19 + $0x40] sm:$0xf]
        %v8061 = vld [vmem:[%s19 + $0x44] sm:$0xf]
        %v8062 = vld [vmem:[%s19 + $0x48] sm:$0xf]
        %v8063 = vld [vmem:[%s19 + $0x4c] sm:$0xf]
        %v8064 = vld [vmem:[%s19 + $0x50] sm:$0xf]
        %v8065 = vld [vmem:[%s19 + $0x54] sm:$0xf]
        %v8066 = vld [vmem:[%s19 + $0x58] sm:$0xf]
        %v8067 = vld [vmem:[%s19 + $0x5c] sm:$0xf]
        %v8068 = vld [vmem:[%s19 + $0x60] sm:$0xf]
        %v8069 = vld [vmem:[%s19 + $0x64] sm:$0xf]
        %v8070 = vld [vmem:[%s19 + $0x68] sm:$0xf]
        %v8071 = vld [vmem:[%s19 + $0x6c] sm:$0xf]
        %v8072 = vld [vmem:[%s19 + $0x70] sm:$0xf]
        %v8073 = vld [vmem:[%s19 + $0x74] sm:$0xf]
        %v8074 = vld [vmem:[%s19 + $0x78] sm:$0xf]
        %v8075 = vld [vmem:[%s19 + $0x7c] sm:$0xf]
        %v8076 = vld [vmem:[%s19 + $0x80] sm:$0xf]
        %v8077 = vld [vmem:[%s19 + $0x84] sm:$0xf]
        %v8078 = vld [vmem:[%s19 + $0x88] sm:$0xf]
        %v8079 = vld [vmem:[%s19 + $0x8c] sm:$0xf]
        %v8080 = vld [vmem:[%s19 + $0x90] sm:$0xf]
        %v8081 = vld [vmem:[%s19 + $0x94] sm:$0xf]
        %v8082 = vld [vmem:[%s19 + $0x98] sm:$0xf]
        %v8083 = vld [vmem:[%s19 + $0x9c] sm:$0xf]
        %v8084 = vld [vmem:[%s19 + $0xa0] sm:$0xf]
        %v8085 = vld [vmem:[%s19 + $0xa4] sm:$0xf]
        %v8086 = vld [vmem:[%s19 + $0xa8] sm:$0xf]
        %v8087 = vld [vmem:[%s19 + $0xac] sm:$0xf]
        %v8088 = vld [vmem:[%s19 + $0xb0] sm:$0xf]
        %v8089 = vld [vmem:[%s19 + $0xb4] sm:$0xf]
        %v8090 = vld [vmem:[%s19 + $0xb8] sm:$0xf]
        %v8091 = vld [vmem:[%s19 + $0xbc] sm:$0xf]
        %v8092 = vld [vmem:[%s19 + $0xc0] sm:$0xf]
        %v8093 = vld [vmem:[%s19 + $0xc4] sm:$0xf]
        %v8094 = vld [vmem:[%s19 + $0xc8] sm:$0xf]
        %v8095 = vld [vmem:[%s19 + $0xcc] sm:$0xf]
        %v8096 = vld [vmem:[%s19 + $0xd0] sm:$0xf]
        %v8097 = vld [vmem:[%s19 + $0xd4] sm:$0xf]
        %v8098 = vld [vmem:[%s19 + $0xd8] sm:$0xf]
        %v8099 = vld [vmem:[%s19 + $0xdc] sm:$0xf]
        %v8100 = vld [vmem:[%s19 + $0xe0] sm:$0xf]
        %v8101 = vld [vmem:[%s19 + $0xe4] sm:$0xf]
        %v8102 = vld [vmem:[%s19 + $0xe8] sm:$0xf]
        %v8103 = vld [vmem:[%s19 + $0xec] sm:$0xf]
        %v8104 = vld [vmem:[%s19 + $0xf0] sm:$0xf]
        %v8105 = vld [vmem:[%s19 + $0xf4] sm:$0xf]
        %v8106 = vld [vmem:[%s19 + $0xf8] sm:$0xf]
        %v8107 = vld [vmem:[%s19 + $0xfc] sm:$0xf]
        %v8108 = vld [vmem:[%s20] sm:$0x1]
        %v8109 = vpack.c.bf16 %v8040, %v8040
        %v8110 = vpack.c.bf16 %v8041, %v8041
        %v8111 = vpack.c.bf16 %v8042, %v8042
        %v8112 = vpack.c.bf16 %v8043, %v8043
        %v8177 = vunpack.c.l.b16 %v8044
        %v8178 = vunpack.c.l.b16 %v8045
        %v8179 = vunpack.c.l.b16 %v8046
        %v8180 = vunpack.c.l.b16 %v8047
        %v8181 = vunpack.c.l.b16 %v8048
        %v8182 = vunpack.c.l.b16 %v8049
        %v8183 = vunpack.c.l.b16 %v8050
        %v8184 = vunpack.c.l.b16 %v8051
        %v8185 = vunpack.c.l.b16 %v8052
        %v8186 = vunpack.c.l.b16 %v8053
        %v8187 = vunpack.c.l.b16 %v8054
        %v8188 = vunpack.c.l.b16 %v8055
        %v8189 = vunpack.c.l.b16 %v8056
        %v8190 = vunpack.c.l.b16 %v8057
        %v8191 = vunpack.c.l.b16 %v8058
        %v8192 = vunpack.c.l.b16 %v8059
        %v8193 = vunpack.c.l.b16 %v8060
        %v8194 = vunpack.c.l.b16 %v8061
        %v8195 = vunpack.c.l.b16 %v8062
        %v8196 = vunpack.c.l.b16 %v8063
        %v8197 = vunpack.c.l.b16 %v8064
        %v8198 = vunpack.c.l.b16 %v8065
        %v8199 = vunpack.c.l.b16 %v8066
        %v8200 = vunpack.c.l.b16 %v8067
        %v8201 = vunpack.c.l.b16 %v8068
        %v8202 = vunpack.c.l.b16 %v8069
        %v8203 = vunpack.c.l.b16 %v8070
        %v8204 = vunpack.c.l.b16 %v8071
        %v8205 = vunpack.c.l.b16 %v8072
        %v8206 = vunpack.c.l.b16 %v8073
        %v8207 = vunpack.c.l.b16 %v8074
        %v8208 = vunpack.c.l.b16 %v8075
        %v8209 = vunpack.c.l.b16 %v8076
        %v8210 = vunpack.c.l.b16 %v8077
        %v8211 = vunpack.c.l.b16 %v8078
        %v8212 = vunpack.c.l.b16 %v8079
        %v8213 = vunpack.c.l.b16 %v8080
        %v8214 = vunpack.c.l.b16 %v8081
        %v8215 = vunpack.c.l.b16 %v8082
        %v8216 = vunpack.c.l.b16 %v8083
        %v8217 = vunpack.c.l.b16 %v8084
        %v8218 = vunpack.c.l.b16 %v8085
        %v8219 = vunpack.c.l.b16 %v8086
        %v8220 = vunpack.c.l.b16 %v8087
        %v8221 = vunpack.c.l.b16 %v8088
        %v8222 = vunpack.c.l.b16 %v8089
        %v8223 = vunpack.c.l.b16 %v8090
        %v8224 = vunpack.c.l.b16 %v8091
        %v8225 = vunpack.c.l.b16 %v8092
        %v8226 = vunpack.c.l.b16 %v8093
        %v8227 = vunpack.c.l.b16 %v8094
        %v8228 = vunpack.c.l.b16 %v8095
        %v8229 = vunpack.c.l.b16 %v8096
        %v8230 = vunpack.c.l.b16 %v8097
        %v8231 = vunpack.c.l.b16 %v8098
        %v8232 = vunpack.c.l.b16 %v8099
        %v8233 = vunpack.c.l.b16 %v8100
        %v8234 = vunpack.c.l.b16 %v8101
        %v8235 = vunpack.c.l.b16 %v8102
        %v8236 = vunpack.c.l.b16 %v8103
        %v8237 = vunpack.c.l.b16 %v8104
        %v8238 = vunpack.c.l.b16 %v8105
        %v8239 = vunpack.c.l.b16 %v8106
        %v8240 = vunpack.c.l.b16 %v8107
        %v8241 = vpack.c.b16 %v8178, %v8177
        %v8242 = vpack.c.b16 %v8180, %v8179
        %v8243 = vpack.c.b16 %v8182, %v8181
        %v8244 = vpack.c.b16 %v8184, %v8183
        %v8245 = vpack.c.b16 %v8186, %v8185
        %v8246 = vpack.c.b16 %v8188, %v8187
        %v8247 = vpack.c.b16 %v8190, %v8189
        %v8248 = vpack.c.b16 %v8192, %v8191
        %v8249 = vpack.c.b16 %v8194, %v8193
        %v8250 = vpack.c.b16 %v8196, %v8195
        %v8251 = vpack.c.b16 %v8198, %v8197
        %v8252 = vpack.c.b16 %v8200, %v8199
        %v8253 = vpack.c.b16 %v8202, %v8201
        %v8254 = vpack.c.b16 %v8204, %v8203
        %v8255 = vpack.c.b16 %v8206, %v8205
        %v8256 = vpack.c.b16 %v8208, %v8207
        %v8257 = vpack.c.b16 %v8210, %v8209
        %v8258 = vpack.c.b16 %v8212, %v8211
        %v8259 = vpack.c.b16 %v8214, %v8213
        %v8260 = vpack.c.b16 %v8216, %v8215
        %v8261 = vpack.c.b16 %v8218, %v8217
        %v8262 = vpack.c.b16 %v8220, %v8219
        %v8263 = vpack.c.b16 %v8222, %v8221
        %v8264 = vpack.c.b16 %v8224, %v8223
        %v8265 = vpack.c.b16 %v8226, %v8225
        %v8266 = vpack.c.b16 %v8228, %v8227
        %v8267 = vpack.c.b16 %v8230, %v8229
        %v8268 = vpack.c.b16 %v8232, %v8231
        %v8269 = vpack.c.b16 %v8234, %v8233
        %v8270 = vpack.c.b16 %v8236, %v8235
        %v8271 = vpack.c.b16 %v8238, %v8237
        %v8272 = vpack.c.b16 %v8240, %v8239
        %8305 = vmatpush.bf16.msra.mxu0 %v8248
        %8306 = vmatpush.bf16.msra.mxu0 %v8247
        %8307 = vmatpush.bf16.msra.mxu0 %v8246
        %8308 = vmatpush.bf16.msra.mxu0 %v8245
        %8309 = vmatpush.bf16.msra.mxu0 %v8244
        %8310 = vmatpush.bf16.msra.mxu0 %v8243
        %8311 = vmatpush.bf16.msra.mxu0 %v8242
        %8312 = vmatpush.bf16.msra.mxu0 %v8241
        %8313 = vmatmul.bf16.gmra.mxu0 %v8109
        %v8314 = vpop.f32.mrf.mxu0
        %v8315 = vadd.f32 %v8108, %v8314
        %v8316 = vpop.f32.mrf.mxu0
        %8317 = vdwg.mxu0
        %8318 = vmatpush.bf16.msra.mxu0 %v8256
        %8319 = vmatpush.bf16.msra.mxu0 %v8255
        %8320 = vmatpush.bf16.msra.mxu0 %v8254
        %8321 = vmatpush.bf16.msra.mxu0 %v8253
        %8322 = vmatpush.bf16.msra.mxu0 %v8252
        %8323 = vmatpush.bf16.msra.mxu0 %v8251
        %8324 = vmatpush.bf16.msra.mxu0 %v8250
        %8325 = vmatpush.bf16.msra.mxu0 %v8249
        %8326 = vmatmul.bf16.gmra.mxu0 %v8110
        %v8327 = vpop.f32.mrf.mxu0
        %v8328 = vadd.f32 %v8315, %v8327
        %v8329 = vpop.f32.mrf.mxu0
        %8330 = vdwg.mxu0
        %8331 = vmatpush.bf16.msra.mxu0 %v8264
        %8332 = vmatpush.bf16.msra.mxu0 %v8263
        %8333 = vmatpush.bf16.msra.mxu0 %v8262
        %8334 = vmatpush.bf16.msra.mxu0 %v8261
        %8335 = vmatpush.bf16.msra.mxu0 %v8260
        %8336 = vmatpush.bf16.msra.mxu0 %v8259
        %8337 = vmatpush.bf16.msra.mxu0 %v8258
        %8338 = vmatpush.bf16.msra.mxu0 %v8257
        %8339 = vmatmul.bf16.gmra.mxu0 %v8111
        %v8340 = vpop.f32.mrf.mxu0
        %v8341 = vadd.f32 %v8328, %v8340
        %v8342 = vpop.f32.mrf.mxu0
        %8343 = vdwg.mxu0
        %8344 = vmatpush.bf16.msra.mxu0 %v8272
        %8345 = vmatpush.bf16.msra.mxu0 %v8271
        %8346 = vmatpush.bf16.msra.mxu0 %v8270
        %8347 = vmatpush.bf16.msra.mxu0 %v8269
        %8348 = vmatpush.bf16.msra.mxu0 %v8268
        %8349 = vmatpush.bf16.msra.mxu0 %v8267
        %8350 = vmatpush.bf16.msra.mxu0 %v8266
        %8351 = vmatpush.bf16.msra.mxu0 %v8265
        %8352 = vmatmul.bf16.gmra.mxu0 %v8112
        %v8353 = vpop.f32.mrf.mxu0
        %v8354 = vadd.f32 %v8341, %v8353
        %v8355 = vpop.f32.mrf.mxu0
        %8356 = vdwg.mxu0
        %vm8357 = vcmask 811008
        %8358 = vst.msk [vmem:[%s698] sm:$0x1] %vm8357, %v8354
        %s8359 = sand.u32 %s491, 1
        %s8360 = scalar_lea.sflag [#allocation7], %s8359
        %s8361 = sand.u32 %s491, 1
        %s8362 = scalar_lea.vmem [#allocation11], %s8361
        // Predicated region
        $region117: #{df_forward.1} parent=103 // pred_check
          %p8363 = pneg %p501
        $region118: #{df_forward.1} parent=103 // pred_check_branch
          %8365 = sbr.rel (%p8363) target = $region120
        $region119: #{df_forward.1} parent=103 // pred_region
          %8367 = vsyncadd %s8360, 0
          %s8368 = scalar_lea.hbm %s21, %s37
          %s8370 = sshll.u32 %s8362, 4
          %s8371 = int_to_ptr.vmem [resolvable:$true] %s8370
          %s8372 = sshll.u32 %s8368, 4
          %s8373 = int_to_ptr.hbm [resolvable:$true] %s8372
          %8375 = dma.vmem_to_hbm [thread:$0]  %s8371, 16, %s8373, %s8360
        $region120: #{df_forward.1} parent=103 // pred_fallthru
          _
      $region104: #{df_forward.1} parent=5 // pred_fallthru
        _
      %p8376 = scmp.le.s32.totalorder 2, %s32
      // Predicated region
      $region121: #{df_forward.1} parent=5 // pred_check
        %p8377 = pneg %p8376
      $region122: #{df_forward.1} parent=5 // pred_check_branch
        %8379 = sbr.rel (%p8377) target = $region124
      $region123: #{df_forward.1} parent=5 // pred_region
        %s8380 = ssub.s32 %s32, 2
        // Predicated region
        $region125: #{df_forward.1} parent=123 // pred_check
          %p8381 = pneg %p507
        $region126: #{df_forward.1} parent=123 // pred_check_branch
          %8383 = sbr.rel (%p8381) target = $region128
        $region127: #{df_forward.1} parent=123 // pred_region
          %s8384 = sand.u32 %s492, 1
          %s8385 = scalar_lea.sflag [#allocation7], %s8384
          %s8386 = sand.u32 %s492, 1
          %s8387 = scalar_lea.vmem [#allocation11], %s8386
          %8389 = dma.done %s8385, 16
        $region128: #{df_forward.1} parent=123 // pred_fallthru
          _
      $region124: #{df_forward.1} parent=5 // pred_fallthru
        _
    $region6: #{df_forward.1} parent=1 // loop_footer
      %s36 = sadd.s32 1, %s32
    $region7: #{df_forward.1} parent=1 // loop_footer_branch
      %31 = sbr.rel target = $region3
    $region8: #{df_forward.1} parent=1 // loop_exit
      _
    %8390 = vsyncpa [#allocation6], 1
    %s8391 = scalar_lea.sflag [#allocation6], 1
    %8392 = vsyncpa %s8391, 1
    %8393 = vsyncpa [#allocation9], 1
    %8394 = vsyncpa [#allocation7], 1
    %s8395 = scalar_lea.sflag [#allocation7], 1
    %8396 = vsyncpa %s8395, 1

</llo_original>
